<compile_context>
chip_gen: v5e
topology: v5e:2x2
jax: 0.10.0
libtpu: 0.0.40
codegen_flags: <defaults>
</compile_context>

<pallas_src>
import functools

import jax
import jax.numpy as jnp
from jax import lax
from jax.experimental import pallas as pl
from jax.experimental.pallas import tpu as pltpu

EPS = 1e-8               # eps used by getCadistAvg
IN_EPS = 1e-5            # nn.InstanceNorm2d default eps
BINS = 32
NUM_EMB = 2 * BINS + 2   # 66 embedding rows (RelativePosition)
EMB_PAD = 128            # padded table rows (full lane width / MXU K)
PAIR_DIM = 128           # pairwise_state_dim hard-coded in BlockV1
SEQ_DIM = 1024           # sequence_state_dim hard-coded in BlockV1
PLDDT_DIM = 50

TARGET_POSITIONS = 8192              # pair positions per tile
VMEM_LIMIT_BYTES = 64 * 1024 * 1024  # fits v7x (64 MiB) / v5e / v6e


# ---------------------------------------------------------------------------
# small helpers
# ---------------------------------------------------------------------------
def _elu(y):
    return jnp.where(y > 0, y, jnp.exp(jnp.minimum(y, 0.0)) - 1.0)


def _params(*axes):
    return pltpu.CompilerParams(dimension_semantics=axes,
                                vmem_limit_bytes=VMEM_LIMIT_BYTES)


def _choose_row_tile(L, target_positions=TARGET_POSITIONS):
    """Rows-of-pairs per tile: ti | L and (ti % 8 == 0 or ti == L)."""
    cap = max(1, min(L, target_positions // max(L, 1)))
    for cand in range(cap, 0, -1):
        if L % cand == 0 and (cand % 8 == 0 or cand == L):
            return cand
    # TODO(synk): L with no multiple-of-8 divisor below the cap falls back to
    # ti == L (whole plane per tile); very large awkward L would need
    # remainder tiles to stay inside v7x's 64 MiB VMEM.
    return L


def _fold_ircn_weight(w):
    """Fold IRCN's 3x channel replication placeholder into the conv weight."""
    cin = w.shape[0] // 3
    return (w[:cin] + w[cin:2 * cin] + w[2 * cin:]).astype(jnp.float32)


# ---------------------------------------------------------------------------
# Kernel 1: relpos add (one-hot @ padded table) + IRCN0 conv+ELU (+ stats)
# ---------------------------------------------------------------------------
def _relpos_ircn0_kernel(idx_ref, pair_ref, emb_ref, w_ref, b_ref,
                         out_ref, stats_ref):
    t = pl.program_id(1)

    @pl.when(t == 0)
    def _():
        stats_ref[...] = jnp.zeros_like(stats_ref)

    tn = idx_ref.shape[1]
    idx = idx_ref[0]                                               # (TN, 1)
    oh = (idx == lax.broadcasted_iota(jnp.int32, (tn, EMB_PAD), 1)
          ).astype(jnp.bfloat16)
    emb = jnp.dot(oh, emb_ref[...], preferred_element_type=jnp.float32)
    x = pair_ref[0].astype(jnp.float32) + emb                      # z = pair + relpos
    y = jnp.dot(x.astype(jnp.bfloat16), w_ref[...],
                preferred_element_type=jnp.float32)
    y = _elu(y + b_ref[...])
    out_ref[0] = y.astype(out_ref.dtype)
    stats_ref[0, 0:1, :] += jnp.sum(y, axis=0, keepdims=True)
    stats_ref[0, 1:2, :] += jnp.sum(y * y, axis=0, keepdims=True)


# ---------------------------------------------------------------------------
# Kernel 2: insnorm(prev) -> predDxyz heads -> next featureReduction conv
#           (optionally fused pLDDT head).  znew / z_norm stay in VMEM.
# ---------------------------------------------------------------------------
def _make_preddxyz_ircn_kernel(L, ti, n_spatial, with_plddt):
    inv_n = 1.0 / float(n_spatial)
    inv_l = 1.0 / float(L)

    def kernel(*refs):
        if with_plddt:
            (res_ref, stats_in_ref, gamma_ref, beta_ref, md_ref, cad_ref,
             wxyz_ref, bxyz_ref, wpair_ref, bpair_ref,
             wn1_ref, wn2_ref, bn_ref, wpz_ref, wpc_ref, bp_ref,
             xyz_ref, out_ref, stats_out_ref, plddt_ref, zs_ref) = refs
        else:
            (res_ref, stats_in_ref, gamma_ref, beta_ref, md_ref,
             wxyz_ref, bxyz_ref, wpair_ref, bpair_ref,
             wn1_ref, wn2_ref, bn_ref,
             xyz_ref, out_ref, stats_out_ref, zs_ref) = refs

        t = pl.program_id(1)

        @pl.when(t == 0)
        def _():
            stats_out_ref[...] = jnp.zeros_like(stats_out_ref)

        # InstanceNorm pass-2 folded in (stats of the previous conv output).
        res_bf = res_ref[0]                                        # (TN, C) bf16
        x = res_bf.astype(jnp.float32)
        mu = stats_in_ref[0, 0:1, :] * inv_n
        var = jnp.maximum(stats_in_ref[0, 1:2, :] * inv_n - mu * mu, 0.0)
        scale = lax.rsqrt(var + IN_EPS) * gamma_ref[...]
        shift = beta_ref[...] - mu * scale
        zs_ref[...] = (x * scale + shift).astype(zs_ref.dtype)     # bf16 scratch
        zn = zs_ref[...]                                           # (TN, C)

        # predDxyz pair head (kept in VMEM; never round-trips HBM).
        # TODO(synk): Module.predDxyz_shareWeight source unavailable; the
        # optional cadist input of the shared-weight call is only used by the
        # fused pLDDT head below.
        znew = jnp.dot(zn, wpair_ref[...], preferred_element_type=jnp.float32)
        znew = _elu(znew + bpair_ref[...])

        # next featureReduction conv: split-K over (residual_prev | znew),
        # replacing torch.cat((residual, z), -1) with no HBM concat.
        y = jnp.dot(res_bf, wn1_ref[...], preferred_element_type=jnp.float32)
        y = y + jnp.dot(znew.astype(jnp.bfloat16), wn2_ref[...],
                        preferred_element_type=jnp.float32)
        y = _elu(y + bn_ref[...])
        out_ref[0] = y.astype(out_ref.dtype)
        stats_out_ref[0, 0:1, :] += jnp.sum(y, axis=0, keepdims=True)
        stats_out_ref[0, 1:2, :] += jnp.sum(y * y, axis=0, keepdims=True)

        # xyz head (lane-dense) + optional pLDDT, one row of L pairs at a time
        # so the pair axis j stays on lanes (no relayout, no masked stores).
        wxyz = wxyz_ref[...]                                       # (3, C)
        bxyz = bxyz_ref[...]                                       # (3, 1)
        if with_plddt:
            wpz = wpz_ref[...]                                     # (C, 50)
            wpc = wpc_ref[...]                                     # (1, 50)
            bp = bp_ref[...]                                       # (1, 50)

        def row_body(r, carry):
            off = pl.multiple_of(r * L, L)
            zrow = zs_ref[pl.ds(off, L), :]                        # (L, C)
            xr = lax.dot_general(wxyz, zrow, (((1,), (1,)), ((), ())),
                                 preferred_element_type=jnp.float32)  # (3, L)
            xr = xr + bxyz
            md = md_ref[0, 0, pl.ds(r, 1), :]                      # (1, L)
            xyz_ref[0, :, pl.ds(r, 1), :] = (xr * md)[:, None, :]
            if with_plddt:
                # TODO(synk): Module.pLDDT source unavailable; placeholder:
                # split-K conv(z_norm | cadist) + ELU, mean over j.
                crow = cad_ref[0, pl.ds(off, L), :].astype(jnp.float32)  # (L,1)
                prow = jnp.dot(zrow, wpz, preferred_element_type=jnp.float32)
                prow = _elu(prow + crow * wpc + bp)                # (L, 50)
                plddt_ref[0, pl.ds(r, 1), :] = (
                    jnp.sum(prow, axis=0, keepdims=True) * inv_l)
            return carry

        lax.fori_loop(0, ti, row_body, 0)

    return kernel


# ---------------------------------------------------------------------------
# Kernel 3: insnorm(ircn2) -> fused pLDDT1 + forNextBlock
# ---------------------------------------------------------------------------
def _make_plddt_fnb_kernel(L, ti, n_spatial):
    inv_n = 1.0 / float(n_spatial)
    inv_l = 1.0 / float(L)

    def kernel(res_ref, stats_ref, gamma_ref, beta_ref, cad_ref,
               wf_ref, wfc_ref, bf_ref, wp_ref, wpc_ref, bp_ref,
               znext_ref, plddt_ref, zs_ref):
        res_bf = res_ref[0]
        x = res_bf.astype(jnp.float32)
        mu = stats_ref[0, 0:1, :] * inv_n
        var = jnp.maximum(stats_ref[0, 1:2, :] * inv_n - mu * mu, 0.0)
        scale = lax.rsqrt(var + IN_EPS) * gamma_ref[...]
        shift = beta_ref[...] - mu * scale
        zs_ref[...] = (x * scale + shift).astype(zs_ref.dtype)
        zn = zs_ref[...]

        # TODO(synk): Module.forNextBlock source unavailable; placeholder:
        # split-K conv over (z_norm | cadist) + ELU.
        cad = cad_ref[0].astype(jnp.float32)                       # (TN, 1)
        y = jnp.dot(zn, wf_ref[...], preferred_element_type=jnp.float32)
        y = _elu(y + cad * wfc_ref[...] + bf_ref[...])
        znext_ref[0] = y.astype(znext_ref.dtype)

        # TODO(synk): Module.pLDDT source unavailable; placeholder per-residue
        # head (conv + ELU, mean over the second pair axis).
        wp = wp_ref[...]
        wpc = wpc_ref[...]
        bp = bp_ref[...]

        def row_body(r, carry):
            off = pl.multiple_of(r * L, L)
            zrow = zs_ref[pl.ds(off, L), :]                        # (L, C)
            crow = cad_ref[0, pl.ds(off, L), :].astype(jnp.float32)
            prow = jnp.dot(zrow, wp, preferred_element_type=jnp.float32)
            prow = _elu(prow + crow * wpc + bp)                    # (L, 50)
            plddt_ref[0, pl.ds(r, 1), :] = (
                jnp.sum(prow, axis=0, keepdims=True) * inv_l)
            return carry

        lax.fori_loop(0, ti, row_body, 0)

    return kernel


# ---------------------------------------------------------------------------
# Kernel 4: getCadistAvg, row-looped Gram form (no (TI, L, L) cube)
# ---------------------------------------------------------------------------
def _make_cadist_kernel(L, ti):
    inv_l = 1.0 / float(L)

    def kernel(xyz_ref, o_ref):
        t = pl.program_id(1)

        @pl.when(t == 0)
        def _():
            o_ref[...] = jnp.zeros_like(o_ref)

        eye = (lax.broadcasted_iota(jnp.int32, (L, L), 0)
               == lax.broadcasted_iota(jnp.int32, (L, L), 1)
               ).astype(jnp.float32)

        def row_body(r, carry):
            xc = xyz_ref[0, :, pl.ds(r, 1), :].reshape(3, L)       # (3, L)
            xb = xc.astype(jnp.bfloat16)
            gram = lax.dot_general(xb, xb, (((0,), (0,)), ((), ())),
                                   preferred_element_type=jnp.float32)  # (L,L)
            diag = gram * eye
            colsq = jnp.sum(diag, axis=1, keepdims=True)           # (L, 1)
            rowsq = jnp.sum(diag, axis=0, keepdims=True)           # (1, L)
            d2 = jnp.maximum(colsq + rowsq - 2.0 * gram, 0.0)
            o_ref[0] += jnp.sqrt(d2 + EPS)
            return carry

        lax.fori_loop(0, ti, row_body, 0)

        @pl.when(t == pl.num_programs(1) - 1)
        def _():
            o_ref[...] = o_ref[...] * inv_l

    return kernel


# ---------------------------------------------------------------------------
# pallas_call wrappers
# ---------------------------------------------------------------------------
def relpos_ircn0(pair_flat, idx_flat, emb, p0, tn):
    B, N, C = pair_flat.shape
    emb_pad = jnp.zeros((EMB_PAD, C), jnp.bfloat16).at[:emb.shape[0]].set(
        emb.astype(jnp.bfloat16))
    w_eff = _fold_ircn_weight(p0["w"]).astype(jnp.bfloat16)        # (C, C)
    grid = (B, N // tn)
    return pl.pallas_call(
        _relpos_ircn0_kernel,
        out_shape=(jax.ShapeDtypeStruct((B, N, C), jnp.bfloat16),
                   jax.ShapeDtypeStruct((B, 2, C), jnp.float32)),
        grid=grid,
        in_specs=[
            pl.BlockSpec((1, tn, 1), lambda b, t: (b, t, 0)),
            pl.BlockSpec((1, tn, C), lambda b, t: (b, t, 0)),
            pl.BlockSpec((EMB_PAD, C), lambda b, t: (0, 0)),
            pl.BlockSpec((C, C), lambda b, t: (0, 0)),
            pl.BlockSpec((1, C), lambda b, t: (0, 0)),
        ],
        out_specs=(pl.BlockSpec((1, tn, C), lambda b, t: (b, t, 0)),
                   pl.BlockSpec((1, 2, C), lambda b, t: (b, 0, 0))),
        compiler_params=_params("parallel", "arbitrary"),
    )(idx_flat, pair_flat, emb_pad, w_eff, p0["b"])


def preddxyz_ircn_stage(residual_prev, stats_prev, p_prev_norm, p_dxyz,
                        p_next, maskdiag4, ti, L, cad_flat=None, p_plddt=None):
    B, N, C = residual_prev.shape
    tn = ti * L
    with_plddt = p_plddt is not None

    w_next = _fold_ircn_weight(p_next["w"])                        # (2C, C)
    wn1 = w_next[:C].astype(jnp.bfloat16)
    wn2 = w_next[C:].astype(jnp.bfloat16)
    w_xyz = jnp.transpose(p_dxyz["w_xyz"]).astype(jnp.bfloat16)    # (3, C)
    b_xyz = p_dxyz["b_xyz"].reshape(3, 1).astype(jnp.float32)
    w_pair = p_dxyz["w_pair"].astype(jnp.bfloat16)

    in_specs = [
        pl.BlockSpec((1, tn, C), lambda b, t: (b, t, 0)),          # residual_prev
        pl.BlockSpec((1, 2, C), lambda b, t: (b, 0, 0)),           # stats_prev
        pl.BlockSpec((1, C), lambda b, t: (0, 0)),                 # gamma
        pl.BlockSpec((1, C), lambda b, t: (0, 0)),                 # beta
        pl.BlockSpec((1, 1, ti, L), lambda b, t: (b, 0, t, 0)),    # maskdiag
    ]
    args = [residual_prev, stats_prev, p_prev_norm["gamma"],
            p_prev_norm["beta"], maskdiag4]
    if with_plddt:
        in_specs.append(pl.BlockSpec((1, tn, 1), lambda b, t: (b, t, 0)))
        args.append(cad_flat)
    in_specs += [
        pl.BlockSpec((3, C), lambda b, t: (0, 0)),                 # w_xyz
        pl.BlockSpec((3, 1), lambda b, t: (0, 0)),                 # b_xyz
        pl.BlockSpec((C, C), lambda b, t: (0, 0)),                 # w_pair
        pl.BlockSpec((1, C), lambda b, t: (0, 0)),                 # b_pair
        pl.BlockSpec((C, C), lambda b, t: (0, 0)),                 # wn1
        pl.BlockSpec((C, C), lambda b, t: (0, 0)),                 # wn2
        pl.BlockSpec((1, C), lambda b, t: (0, 0)),                 # bn
    ]
    args += [w_xyz, b_xyz, w_pair, p_dxyz["b_pair"], wn1, wn2, p_next["b"]]

    out_shape = [jax.ShapeDtypeStruct((B, 3, L, L), jnp.float32),
                 jax.ShapeDtypeStruct((B, N, C), jnp.bfloat16),
                 jax.ShapeDtypeStruct((B, 2, C), jnp.float32)]
    out_specs = [pl.BlockSpec((1, 3, ti, L), lambda b, t: (b, 0, t, 0)),
                 pl.BlockSpec((1, tn, C), lambda b, t: (b, t, 0)),
                 pl.BlockSpec((1, 2, C), lambda b, t: (b, 0, 0))]
    if with_plddt:
        in_specs += [pl.BlockSpec((C, PLDDT_DIM), lambda b, t: (0, 0)),
                     pl.BlockSpec((1, PLDDT_DIM), lambda b, t: (0, 0)),
                     pl.BlockSpec((1, PLDDT_DIM), lambda b, t: (0, 0))]
        w_pl = p_plddt["w"]
        args += [w_pl[:C].astype(jnp.bfloat16),
                 w_pl[C:C + 1].astype(jnp.float32), p_plddt["b"]]
        out_shape.append(jax.ShapeDtypeStruct((B, L, PLDDT_DIM), jnp.float32))
        out_specs.append(pl.BlockSpec((1, ti, PLDDT_DIM),
                                      lambda b, t: (b, t, 0)))

    outs = pl.pallas_call(
        _make_preddxyz_ircn_kernel(L, ti, N, with_plddt),
        out_shape=tuple(out_shape),
        grid=(B, N // tn),
        in_specs=in_specs,
        out_specs=tuple(out_specs),
        scratch_shapes=[pltpu.VMEM((tn, C), jnp.bfloat16)],
        compiler_params=_params("parallel", "arbitrary"),
    )(*args)
    if with_plddt:
        xyz, res_next, stats_next, plddt = outs
        return xyz, res_next, stats_next, plddt
    xyz, res_next, stats_next = outs
    return xyz, res_next, stats_next, None


def plddt_fnb_stage(residual, stats, p_norm, p_fnb, p_plddt, cad_flat, ti, L):
    B, N, C = residual.shape
    tn = ti * L
    wf = p_fnb["w"][:C].astype(jnp.bfloat16)
    wfc = p_fnb["w"][C:C + 1].astype(jnp.float32)
    wp = p_plddt["w"][:C].astype(jnp.bfloat16)
    wpc = p_plddt["w"][C:C + 1].astype(jnp.float32)
    return pl.pallas_call(
        _make_plddt_fnb_kernel(L, ti, N),
        out_shape=(jax.ShapeDtypeStruct((B, N, C), jnp.bfloat16),
                   jax.ShapeDtypeStruct((B, L, PLDDT_DIM), jnp.float32)),
        grid=(B, N // tn),
        in_specs=[
            pl.BlockSpec((1, tn, C), lambda b, t: (b, t, 0)),
            pl.BlockSpec((1, 2, C), lambda b, t: (b, 0, 0)),
            pl.BlockSpec((1, C), lambda b, t: (0, 0)),
            pl.BlockSpec((1, C), lambda b, t: (0, 0)),
            pl.BlockSpec((1, tn, 1), lambda b, t: (b, t, 0)),
            pl.BlockSpec((C, C), lambda b, t: (0, 0)),
            pl.BlockSpec((1, C), lambda b, t: (0, 0)),
            pl.BlockSpec((1, C), lambda b, t: (0, 0)),
            pl.BlockSpec((C, PLDDT_DIM), lambda b, t: (0, 0)),
            pl.BlockSpec((1, PLDDT_DIM), lambda b, t: (0, 0)),
            pl.BlockSpec((1, PLDDT_DIM), lambda b, t: (0, 0)),
        ],
        out_specs=(pl.BlockSpec((1, tn, C), lambda b, t: (b, t, 0)),
                   pl.BlockSpec((1, ti, PLDDT_DIM), lambda b, t: (b, t, 0))),
        scratch_shapes=[pltpu.VMEM((tn, C), jnp.bfloat16)],
        compiler_params=_params("parallel", "parallel"),
    )(residual, stats, p_norm["gamma"], p_norm["beta"], cad_flat,
      wf, wfc, p_fnb["b"], wp, wpc, p_plddt["b"])


def cadist_avg(predxyz, ti):
    B, _, L, _ = predxyz.shape
    return pl.pallas_call(
        _make_cadist_kernel(L, ti),
        out_shape=jax.ShapeDtypeStruct((B, L, L), jnp.float32),
        grid=(B, L // ti),
        in_specs=[pl.BlockSpec((1, 3, ti, L), lambda b, t: (b, 0, t, 0))],
        out_specs=pl.BlockSpec((1, L, L), lambda b, t: (b, 0, 0)),
        compiler_params=_params("parallel", "arbitrary"),
    )(predxyz)


# ---------------------------------------------------------------------------
# BlockV1 forward
# ---------------------------------------------------------------------------
def block_v1_forward(params, seq_feats, pair_feats, true_aa, residx, mask,
                     maskdiag, *, row_tile=None):
    del true_aa                               # unused in the reference forward
    B, L, _, C = pair_feats.shape
    N = L * L
    ti = row_tile if row_tile is not None else _choose_row_tile(L)
    assert L % ti == 0 and (ti % 8 == 0 or ti == L)
    tn = ti * L

    # RelativePosition index map (tiny, built with XLA; masked positions -> 0).
    diff = residx[:, None, :] - residx[:, :, None]
    diff = jnp.clip(diff, -BINS, BINS) + BINS + 1
    maskf = mask.astype(jnp.float32)
    pmask = maskf[:, None, :] * maskf[:, :, None]
    idx = jnp.where(pmask > 0, diff, 0).astype(jnp.int32).reshape(B, N, 1)

    pair_flat = pair_feats.reshape(B, N, C)
    md4 = maskdiag.reshape(B, 1, L, L).astype(jnp.float32)

    # TODO(synk): TriangularSelfAttentionBlock source unavailable; attention
    # stack treated as identity over (s, z); the relpos add is folded into the
    # ircn0 conv while that holds (revert the fold when the real block lands).
    s = seq_feats

    # Stage 0: z = pair + relpos  ->  ircn0 conv+ELU (+ InstanceNorm stats).
    residual0, stats0 = relpos_ircn0(pair_flat, idx, params["rel_emb"],
                                     params["ircn0"], tn)

    # Stage 1: insnorm(ircn0) -> predDxyz heads -> ircn1 conv (+ stats).
    xyz1, residual1, stats1, _ = preddxyz_ircn_stage(
        residual0, stats0, params["ircn0"], params["preddxyz"],
        params["ircn1"], md4, ti, L)
    predxyz = xyz1                                   # (B, 3, L, L), maskdiag fused
    cad = cadist_avg(predxyz, ti)
    cad_flat = cad.reshape(B, N, 1).astype(jnp.bfloat16)

    Predxyz = [predxyz]
    PredCadistavg = [cad]

    # Stage 2: insnorm(ircn1) -> fused pLDDT0 + predDxyz (shared weights)
    #          -> ircn2 conv (+ stats).
    dxyz, residual2, stats2, plddt0 = preddxyz_ircn_stage(
        residual1, stats1, params["ircn1"], params["preddxyz"],
        params["ircn2"], md4, ti, L, cad_flat=cad_flat,
        p_plddt=params["plddt0"])
    Plddt = [plddt0]

    predxyz = predxyz + dxyz                         # small (B, 3, L, L) add
    cad = cadist_avg(predxyz, ti)
    cad_flat = cad.reshape(B, N, 1).astype(jnp.bfloat16)
    Predxyz.append(predxyz)
    PredCadistavg.append(cad)

    # Stage 3: insnorm(ircn2) -> fused pLDDT1 + forNextBlock.
    znext, plddt1 = plddt_fnb_stage(residual2, stats2, params["ircn2"],
                                    params["fnb"], params["plddt1"],
                                    cad_flat, ti, L)
    Plddt.append(plddt1)

    return Predxyz, PredCadistavg, Plddt, s, znext.reshape(B, L, L, C)


# ---------------------------------------------------------------------------
# Deterministic parameter init (synthetic; shapes follow BlockV1.__init__)
# ---------------------------------------------------------------------------
def init_params(key, channel):
    ks = jax.random.split(key, 10)

    def dense(k, cin, cout):
        kw, kb = jax.random.split(k)
        return {"w": jax.random.normal(kw, (cin, cout), jnp.float32) / jnp.sqrt(cin),
                "b": jax.random.normal(kb, (1, cout), jnp.float32) * 0.01}

    def featred(k, cin, cout):
        d = dense(k, 3 * cin, cout)
        d["gamma"] = jnp.ones((1, cout), jnp.float32)
        d["beta"] = jnp.zeros((1, cout), jnp.float32)
        return d

    C = channel
    return {
        "rel_emb": jax.random.normal(ks[0], (NUM_EMB, PAIR_DIM), jnp.float32) * 0.02,
        "ircn0": featred(ks[1], C, C),
        "ircn1": featred(ks[2], 2 * C, C),
        "ircn2": featred(ks[3], 2 * C, C),
        "preddxyz": {
            "w_xyz": jax.random.normal(ks[4], (C, 3), jnp.float32) * 0.05,
            "b_xyz": jnp.zeros((1, 3), jnp.float32),
            "w_pair": jax.random.normal(ks[5], (C, C), jnp.float32) / jnp.sqrt(C),
            "b_pair": jnp.zeros((1, C), jnp.float32),
        },
        "plddt0": dense(ks[6], C + 1, PLDDT_DIM),
        "plddt1": dense(ks[7], C + 1, PLDDT_DIM),
        "fnb": dense(ks[8], C + 1, C),
    }


if __name__ == "__main__":
    B, L, C = 2, 16, PAIR_DIM      # pairwise dim fixed to 128 by BlockV1
    key = jax.random.PRNGKey(0)
    k1, k2, k3, kp = jax.random.split(key, 4)

    seq_feats = jax.random.normal(k1, (B, L, SEQ_DIM), jnp.float32) * 0.1
    pair_feats = jax.random.normal(k2, (B, L, L, C), jnp.float32) * 0.1
    true_aa = jax.random.randint(k3, (B, L), 0, 20, dtype=jnp.int32)
    residx = jnp.broadcast_to(jnp.arange(L, dtype=jnp.int32), (B, L))
    mask = jnp.ones((B, L), jnp.float32)
    maskdiag = jnp.broadcast_to(1.0 - jnp.eye(L, dtype=jnp.float32),
                                (B, 1, L, L))

    params = init_params(kp, C)
    # row_tile=8 -> tile axis of size 2: exercises the cross-tile InstanceNorm
    # stats and the tiled cadist accumulation.
    fwd = jax.jit(functools.partial(block_v1_forward, row_tile=8))
    out = jax.block_until_ready(fwd(params, seq_feats, pair_feats, true_aa,
                                    residx, mask, maskdiag))

    Predxyz, PredCadistavg, Plddt, s_out, z_out = out
    assert Predxyz[0].shape == (B, 3, L, L) and Predxyz[1].shape == (B, 3, L, L)
    assert PredCadistavg[0].shape == (B, L, L) and PredCadistavg[1].shape == (B, L, L)
    assert Plddt[0].shape == (B, L, PLDDT_DIM) and Plddt[1].shape == (B, L, PLDDT_DIM)
    assert s_out.shape == (B, L, SEQ_DIM)
    assert z_out.shape == (B, L, L, C)
    for t in (Predxyz[1], PredCadistavg[1], Plddt[1], z_out):
        assert bool(jnp.all(jnp.isfinite(t.astype(jnp.float32))))

    # Sanity check: getCadistAvg kernel vs a direct (reference-style) compute
    # on the kernel's own xyz output (loose tolerance: Gram-form + bf16 MXU).
    rel = Predxyz[0][:, :, :, None, :] - Predxyz[0][:, :, :, :, None]
    ref_cad = jnp.mean(jnp.sqrt(jnp.sum(rel * rel, axis=1) + EPS), axis=1)
    assert bool(jnp.allclose(PredCadistavg[0], ref_cad, atol=5e-2, rtol=5e-2))

    print("KERNEL_OK")
</pallas_src>

<mosaic_0001>
module attributes {stable_mosaic.version = 11 : i64} {
  func.func @_relpos_ircn0_kernel(%arg0: i32, %arg1: i32, %arg2: memref<1x128x1xi32, #tpu.memory_space<vmem>>, %arg3: memref<1x128x128xf32, #tpu.memory_space<vmem>>, %arg4: memref<128x128xbf16, #tpu.memory_space<vmem>>, %arg5: memref<128x128xbf16, #tpu.memory_space<vmem>>, %arg6: memref<1x128xf32, #tpu.memory_space<vmem>>, %arg7: memref<1x128x128xbf16, #tpu.memory_space<vmem>>, %arg8: memref<1x2x128xf32, #tpu.memory_space<vmem>>) attributes {dimension_semantics = [#tpu.dimension_semantics<parallel>, #tpu.dimension_semantics<arbitrary>], iteration_bounds = array<i64: 2, 2>, scalar_prefetch = 0 : i64, scratch_operands = 0 : i64, tpu.core_type = #tpu.core_type<tc>, window_params = [{transform_indices = @transform_0, window_bounds = array<i64: 1, 128, 1>}, {transform_indices = @transform_1, window_bounds = array<i64: 1, 128, 128>}, {pipeline_mode = #tpu.pipeline_mode<synchronous>, transform_indices = @transform_2, window_bounds = array<i64: 128, 128>}, {pipeline_mode = #tpu.pipeline_mode<synchronous>, transform_indices = @transform_3, window_bounds = array<i64: 128, 128>}, {pipeline_mode = #tpu.pipeline_mode<synchronous>, transform_indices = @transform_4, window_bounds = array<i64: 1, 128>}, {transform_indices = @transform_5, window_bounds = array<i64: 1, 128, 128>}, {transform_indices = @transform_6, window_bounds = array<i64: 1, 2, 128>}]} {
    %c0_i32 = arith.constant 0 : i32
    %0 = arith.cmpi eq, %arg1, %c0_i32 : i32
    %1 = arith.extui %0 : i1 to i32
    %c0_i32_0 = arith.constant 0 : i32
    %2 = arith.cmpi ne, %1, %c0_i32_0 : i32
    scf.if %2 {
      %cst_32 = arith.constant 0.000000e+00 : f32
      %51 = vector.broadcast %cst_32 : f32 to vector<1x2x128xf32>
      %c0_33 = arith.constant 0 : index
      %c0_34 = arith.constant 0 : index
      %c0_35 = arith.constant 0 : index
      %52 = vector.load %arg8[%c0_33, %c0_34, %c0_35] : memref<1x2x128xf32, #tpu.memory_space<vmem>>, vector<1x2x128xf32>
      tpu.vector_store %arg8[%c0_33, %c0_34, %c0_35], %51 {strides = array<i32>} : memref<1x2x128xf32, #tpu.memory_space<vmem>>, vector<1x2x128xf32>,
    } else {
    }
    %c0 = arith.constant 0 : index
    %c0_1 = arith.constant 0 : index
    %c0_2 = arith.constant 0 : index
    %3 = vector.load %arg2[%c0, %c0_1, %c0_2] : memref<1x128x1xi32, #tpu.memory_space<vmem>>, vector<1x128x1xi32>
    %4 = vector.shape_cast %3 : vector<1x128x1xi32> to vector<128x1xi32>
    %5 = tpu.iota {dimensions = array<i32: 1>} : vector<128x128xi32>
    %6 = vector.broadcast %4 : vector<128x1xi32> to vector<128x128xi32>
    %7 = arith.cmpi eq, %6, %5 : vector<128x128xi32>
    %8 = arith.extui %7 : vector<128x128xi1> to vector<128x128xi32>
    %9 = arith.sitofp %8 : vector<128x128xi32> to vector<128x128xf32>
    %10 = arith.truncf %9 : vector<128x128xf32> to vector<128x128xbf16>
    %c0_3 = arith.constant 0 : index
    %c0_4 = arith.constant 0 : index
    %11 = vector.load %arg4[%c0_3, %c0_4] : memref<128x128xbf16, #tpu.memory_space<vmem>>, vector<128x128xbf16>
    %cst = arith.constant dense<0.000000e+00> : vector<128x128xf32>
    %12 = tpu.matmul %10, %11, %cst {dimension_numbers = #tpu.dot_dimension_numbers<[1], [0], [0], [1], [0, 0, 1, 1], [], []>} : vector<128x128xbf16>, vector<128x128xbf16>, vector<128x128xf32> -> vector<128x128xf32>
    %c0_5 = arith.constant 0 : index
    %c0_6 = arith.constant 0 : index
    %c0_7 = arith.constant 0 : index
    %13 = vector.load %arg3[%c0_5, %c0_6, %c0_7] : memref<1x128x128xf32, #tpu.memory_space<vmem>>, vector<1x128x128xf32>
    %14 = vector.shape_cast %13 : vector<1x128x128xf32> to vector<128x128xf32>
    %15 = arith.addf %14, %12 : vector<128x128xf32>
    %16 = arith.truncf %15 : vector<128x128xf32> to vector<128x128xbf16>
    %c0_8 = arith.constant 0 : index
    %c0_9 = arith.constant 0 : index
    %17 = vector.load %arg5[%c0_8, %c0_9] : memref<128x128xbf16, #tpu.memory_space<vmem>>, vector<128x128xbf16>
    %cst_10 = arith.constant dense<0.000000e+00> : vector<128x128xf32>
    %18 = tpu.matmul %16, %17, %cst_10 {dimension_numbers = #tpu.dot_dimension_numbers<[1], [0], [0], [1], [0, 0, 1, 1], [], []>} : vector<128x128xbf16>, vector<128x128xbf16>, vector<128x128xf32> -> vector<128x128xf32>
    %c0_11 = arith.constant 0 : index
    %c0_12 = arith.constant 0 : index
    %19 = vector.load %arg6[%c0_11, %c0_12] : memref<1x128xf32, #tpu.memory_space<vmem>>, vector<1x128xf32>
    %20 = vector.broadcast %19 : vector<1x128xf32> to vector<128x128xf32>
    %21 = arith.addf %18, %20 : vector<128x128xf32>
    %cst_13 = arith.constant 0.000000e+00 : f32
    %22 = vector.broadcast %cst_13 : f32 to vector<128x128xf32>
    %23 = arith.cmpf ogt, %21, %22 : vector<128x128xf32>
    %cst_14 = arith.constant 0.000000e+00 : f32
    %24 = vector.broadcast %cst_14 : f32 to vector<128x128xf32>
    %25 = arith.minimumf %21, %24 : vector<128x128xf32>
    %26 = math.exp %25 : vector<128x128xf32>
    %cst_15 = arith.constant 1.000000e+00 : f32
    %27 = vector.broadcast %cst_15 : f32 to vector<128x128xf32>
    %28 = arith.subf %26, %27 : vector<128x128xf32>
    %29 = arith.select %23, %21, %28 : vector<128x128xi1>, vector<128x128xf32>
    %30 = arith.truncf %29 : vector<128x128xf32> to vector<128x128xbf16>
    %c0_16 = arith.constant 0 : index
    %c0_17 = arith.constant 0 : index
    %c0_18 = arith.constant 0 : index
    %31 = vector.load %arg7[%c0_16, %c0_17, %c0_18] : memref<1x128x128xbf16, #tpu.memory_space<vmem>>, vector<1x128x128xbf16>
    %32 = vector.shape_cast %31 : vector<1x128x128xbf16> to vector<128x128xbf16>
    %33 = vector.shape_cast %30 : vector<128x128xbf16> to vector<1x128x128xbf16>
    tpu.vector_store %arg7[%c0_16, %c0_17, %c0_18], %33 {strides = array<i32>} : memref<1x128x128xbf16, #tpu.memory_space<vmem>>, vector<1x128x128xbf16>,
    %c0_19 = arith.constant 0 : index
    %c0_20 = arith.constant 0 : index
    %c0_21 = arith.constant 0 : index
    %34 = vector.load %arg8[%c0_19, %c0_20, %c0_21] : memref<1x2x128xf32, #tpu.memory_space<vmem>>, vector<1x1x128xf32>
    %35 = vector.shape_cast %34 : vector<1x1x128xf32> to vector<1x128xf32>
    %cst_22 = arith.constant dense<0.000000e+00> : vector<128xf32>
    %36 = vector.multi_reduction <add>, %29, %cst_22 [0] : vector<128x128xf32> to vector<128xf32>
    %37 = vector.shape_cast %36 : vector<128xf32> to vector<1x128xf32>
    %38 = arith.addf %35, %37 : vector<1x128xf32>
    %c0_23 = arith.constant 0 : index
    %c0_24 = arith.constant 0 : index
    %c0_25 = arith.constant 0 : index
    %39 = vector.load %arg8[%c0_23, %c0_24, %c0_25] : memref<1x2x128xf32, #tpu.memory_space<vmem>>, vector<1x1x128xf32>
    %40 = vector.shape_cast %39 : vector<1x1x128xf32> to vector<1x128xf32>
    %41 = vector.shape_cast %38 : vector<1x128xf32> to vector<1x1x128xf32>
    tpu.vector_store %arg8[%c0_23, %c0_24, %c0_25], %41 {strides = array<i32>} : memref<1x2x128xf32, #tpu.memory_space<vmem>>, vector<1x1x128xf32>,
    %c0_26 = arith.constant 0 : index
    %c1 = arith.constant 1 : index
    %c0_27 = arith.constant 0 : index
    %42 = vector.load %arg8[%c0_26, %c1, %c0_27] : memref<1x2x128xf32, #tpu.memory_space<vmem>>, vector<1x1x128xf32>
    %43 = vector.shape_cast %42 : vector<1x1x128xf32> to vector<1x128xf32>
    %44 = arith.mulf %29, %29 : vector<128x128xf32>
    %cst_28 = arith.constant dense<0.000000e+00> : vector<128xf32>
    %45 = vector.multi_reduction <add>, %44, %cst_28 [0] : vector<128x128xf32> to vector<128xf32>
    %46 = vector.shape_cast %45 : vector<128xf32> to vector<1x128xf32>
    %47 = arith.addf %43, %46 : vector<1x128xf32>
    %c0_29 = arith.constant 0 : index
    %c1_30 = arith.constant 1 : index
    %c0_31 = arith.constant 0 : index
    %48 = vector.load %arg8[%c0_29, %c1_30, %c0_31] : memref<1x2x128xf32, #tpu.memory_space<vmem>>, vector<1x1x128xf32>
    %49 = vector.shape_cast %48 : vector<1x1x128xf32> to vector<1x128xf32>
    %50 = vector.shape_cast %47 : vector<1x128xf32> to vector<1x1x128xf32>
    tpu.vector_store %arg8[%c0_29, %c1_30, %c0_31], %50 {strides = array<i32>} : memref<1x2x128xf32, #tpu.memory_space<vmem>>, vector<1x1x128xf32>,
    return
  }
  func.func @transform_0(%arg0: i32, %arg1: i32) -> (i32, i32, i32) {
    %c0_i32 = arith.constant 0 : i32
    %c0_i32_0 = arith.constant 0 : i32
    return %arg0, %arg1, %c0_i32 : i32, i32, i32
  }
  func.func @transform_1(%arg0: i32, %arg1: i32) -> (i32, i32, i32) {
    %c0_i32 = arith.constant 0 : i32
    %c0_i32_0 = arith.constant 0 : i32
    return %arg0, %arg1, %c0_i32 : i32, i32, i32
  }
  func.func @transform_2(%arg0: i32, %arg1: i32) -> (i32, i32) {
    %c0_i32 = arith.constant 0 : i32
    %c0_i32_0 = arith.constant 0 : i32
    %c0_i32_1 = arith.constant 0 : i32
    return %c0_i32, %c0_i32_0 : i32, i32
  }
  func.func @transform_3(%arg0: i32, %arg1: i32) -> (i32, i32) {
    %c0_i32 = arith.constant 0 : i32
    %c0_i32_0 = arith.constant 0 : i32
    %c0_i32_1 = arith.constant 0 : i32
    return %c0_i32, %c0_i32_0 : i32, i32
  }
  func.func @transform_4(%arg0: i32, %arg1: i32) -> (i32, i32) {
    %c0_i32 = arith.constant 0 : i32
    %c0_i32_0 = arith.constant 0 : i32
    %c0_i32_1 = arith.constant 0 : i32
    return %c0_i32, %c0_i32_0 : i32, i32
  }
  func.func @transform_5(%arg0: i32, %arg1: i32) -> (i32, i32, i32) {
    %c0_i32 = arith.constant 0 : i32
    %c0_i32_0 = arith.constant 0 : i32
    return %arg0, %arg1, %c0_i32 : i32, i32, i32
  }
  func.func @transform_6(%arg0: i32, %arg1: i32) -> (i32, i32, i32) {
    %c0_i32 = arith.constant 0 : i32
    %c0_i32_0 = arith.constant 0 : i32
    %c0_i32_1 = arith.constant 0 : i32
    return %arg0, %c0_i32, %c0_i32_0 : i32, i32, i32
  }
}

module attributes {stable_mosaic.version = 11 : i64} {
  func.func @kernel(%arg0: i32, %arg1: i32, %arg2: memref<1x128x128xbf16, #tpu.memory_space<vmem>>, %arg3: memref<1x2x128xf32, #tpu.memory_space<vmem>>, %arg4: memref<1x128xf32, #tpu.memory_space<vmem>>, %arg5: memref<1x128xf32, #tpu.memory_space<vmem>>, %arg6: memref<1x1x8x16xf32, #tpu.memory_space<vmem>>, %arg7: memref<3x128xbf16, #tpu.memory_space<vmem>>, %arg8: memref<3x1xf32, #tpu.memory_space<vmem>>, %arg9: memref<128x128xbf16, #tpu.memory_space<vmem>>, %arg10: memref<1x128xf32, #tpu.memory_space<vmem>>, %arg11: memref<128x128xbf16, #tpu.memory_space<vmem>>, %arg12: memref<128x128xbf16, #tpu.memory_space<vmem>>, %arg13: memref<1x128xf32, #tpu.memory_space<vmem>>, %arg14: memref<1x3x8x16xf32, #tpu.memory_space<vmem>>, %arg15: memref<1x128x128xbf16, #tpu.memory_space<vmem>>, %arg16: memref<1x2x128xf32, #tpu.memory_space<vmem>>, %arg17: memref<128x128xbf16, #tpu.memory_space<vmem>>) attributes {dimension_semantics = [#tpu.dimension_semantics<parallel>, #tpu.dimension_semantics<arbitrary>], iteration_bounds = array<i64: 2, 2>, scalar_prefetch = 0 : i64, scratch_operands = 1 : i64, tpu.core_type = #tpu.core_type<tc>, window_params = [{transform_indices = @transform_0, window_bounds = array<i64: 1, 128, 128>}, {transform_indices = @transform_1, window_bounds = array<i64: 1, 2, 128>}, {pipeline_mode = #tpu.pipeline_mode<synchronous>, transform_indices = @transform_2, window_bounds = array<i64: 1, 128>}, {pipeline_mode = #tpu.pipeline_mode<synchronous>, transform_indices = @transform_3, window_bounds = array<i64: 1, 128>}, {transform_indices = @transform_4, window_bounds = array<i64: 1, 1, 8, 16>}, {pipeline_mode = #tpu.pipeline_mode<synchronous>, transform_indices = @transform_5, window_bounds = array<i64: 3, 128>}, {pipeline_mode = #tpu.pipeline_mode<synchronous>, transform_indices = @transform_6, window_bounds = array<i64: 3, 1>}, {pipeline_mode = #tpu.pipeline_mode<synchronous>, transform_indices = @transform_7, window_bounds = array<i64: 128, 128>}, {pipeline_mode = #tpu.pipeline_mode<synchronous>, transform_indices = @transform_8, window_bounds = array<i64: 1, 128>}, {pipeline_mode = #tpu.pipeline_mode<synchronous>, transform_indices = @transform_9, window_bounds = array<i64: 128, 128>}, {pipeline_mode = #tpu.pipeline_mode<synchronous>, transform_indices = @transform_10, window_bounds = array<i64: 128, 128>}, {pipeline_mode = #tpu.pipeline_mode<synchronous>, transform_indices = @transform_11, window_bounds = array<i64: 1, 128>}, {transform_indices = @transform_12, window_bounds = array<i64: 1, 3, 8, 16>}, {transform_indices = @transform_13, window_bounds = array<i64: 1, 128, 128>}, {transform_indices = @transform_14, window_bounds = array<i64: 1, 2, 128>}]} {
    %c0_i32 = arith.constant 0 : i32
    %0 = arith.cmpi eq, %arg1, %c0_i32 : i32
    %1 = arith.extui %0 : i1 to i32
    %c0_i32_0 = arith.constant 0 : i32
    %2 = arith.cmpi ne, %1, %c0_i32_0 : i32
    scf.if %2 {
      %cst_61 = arith.constant 0.000000e+00 : f32
      %87 = vector.broadcast %cst_61 : f32 to vector<1x2x128xf32>
      %c0_62 = arith.constant 0 : index
      %c0_63 = arith.constant 0 : index
      %c0_64 = arith.constant 0 : index
      %88 = vector.load %arg16[%c0_62, %c0_63, %c0_64] : memref<1x2x128xf32, #tpu.memory_space<vmem>>, vector<1x2x128xf32>
      tpu.vector_store %arg16[%c0_62, %c0_63, %c0_64], %87 {strides = array<i32>} : memref<1x2x128xf32, #tpu.memory_space<vmem>>, vector<1x2x128xf32>,
    } else {
    }
    %c0 = arith.constant 0 : index
    %c0_1 = arith.constant 0 : index
    %c0_2 = arith.constant 0 : index
    %3 = vector.load %arg2[%c0, %c0_1, %c0_2] : memref<1x128x128xbf16, #tpu.memory_space<vmem>>, vector<1x128x128xbf16>
    %4 = vector.shape_cast %3 : vector<1x128x128xbf16> to vector<128x128xbf16>
    %5 = arith.extf %4 : vector<128x128xbf16> to vector<128x128xf32>
    %c0_3 = arith.constant 0 : index
    %c0_4 = arith.constant 0 : index
    %c0_5 = arith.constant 0 : index
    %6 = vector.load %arg3[%c0_3, %c0_4, %c0_5] : memref<1x2x128xf32, #tpu.memory_space<vmem>>, vector<1x1x128xf32>
    %7 = vector.shape_cast %6 : vector<1x1x128xf32> to vector<1x128xf32>
    %cst = arith.constant 3.906250e-03 : f32
    %8 = vector.broadcast %cst : f32 to vector<1x128xf32>
    %9 = arith.mulf %7, %8 : vector<1x128xf32>
    %c0_6 = arith.constant 0 : index
    %c1 = arith.constant 1 : index
    %c0_7 = arith.constant 0 : index
    %10 = vector.load %arg3[%c0_6, %c1, %c0_7] : memref<1x2x128xf32, #tpu.memory_space<vmem>>, vector<1x1x128xf32>
    %11 = vector.shape_cast %10 : vector<1x1x128xf32> to vector<1x128xf32>
    %cst_8 = arith.constant 3.906250e-03 : f32
    %12 = vector.broadcast %cst_8 : f32 to vector<1x128xf32>
    %13 = arith.mulf %11, %12 : vector<1x128xf32>
    %14 = arith.mulf %9, %9 : vector<1x128xf32>
    %15 = arith.subf %13, %14 : vector<1x128xf32>
    %cst_9 = arith.constant 0.000000e+00 : f32
    %16 = vector.broadcast %cst_9 : f32 to vector<1x128xf32>
    %17 = arith.maximumf %15, %16 : vector<1x128xf32>
    %cst_10 = arith.constant 9.99999974E-6 : f32
    %18 = vector.broadcast %cst_10 : f32 to vector<1x128xf32>
    %19 = arith.addf %17, %18 : vector<1x128xf32>
    %20 = math.rsqrt %19 : vector<1x128xf32>
    %c0_11 = arith.constant 0 : index
    %c0_12 = arith.constant 0 : index
    %21 = vector.load %arg4[%c0_11, %c0_12] : memref<1x128xf32, #tpu.memory_space<vmem>>, vector<1x128xf32>
    %22 = arith.mulf %20, %21 : vector<1x128xf32>
    %c0_13 = arith.constant 0 : index
    %c0_14 = arith.constant 0 : index
    %23 = vector.load %arg5[%c0_13, %c0_14] : memref<1x128xf32, #tpu.memory_space<vmem>>, vector<1x128xf32>
    %24 = arith.mulf %9, %22 : vector<1x128xf32>
    %25 = arith.subf %23, %24 : vector<1x128xf32>
    %26 = vector.broadcast %22 : vector<1x128xf32> to vector<128x128xf32>
    %27 = arith.mulf %5, %26 : vector<128x128xf32>
    %28 = vector.broadcast %25 : vector<1x128xf32> to vector<128x128xf32>
    %29 = arith.addf %27, %28 : vector<128x128xf32>
    %30 = arith.truncf %29 : vector<128x128xf32> to vector<128x128xbf16>
    %c0_15 = arith.constant 0 : index
    %c0_16 = arith.constant 0 : index
    %31 = vector.load %arg17[%c0_15, %c0_16] : memref<128x128xbf16, #tpu.memory_space<vmem>>, vector<128x128xbf16>
    tpu.vector_store %arg17[%c0_15, %c0_16], %30 {strides = array<i32>} : memref<128x128xbf16, #tpu.memory_space<vmem>>, vector<128x128xbf16>,
    %c0_17 = arith.constant 0 : index
    %c0_18 = arith.constant 0 : index
    %32 = vector.load %arg17[%c0_17, %c0_18] : memref<128x128xbf16, #tpu.memory_space<vmem>>, vector<128x128xbf16>
    %c0_19 = arith.constant 0 : index
    %c0_20 = arith.constant 0 : index
    %33 = vector.load %arg9[%c0_19, %c0_20] : memref<128x128xbf16, #tpu.memory_space<vmem>>, vector<128x128xbf16>
    %cst_21 = arith.constant dense<0.000000e+00> : vector<128x128xf32>
    %34 = tpu.matmul %32, %33, %cst_21 {dimension_numbers = #tpu.dot_dimension_numbers<[1], [0], [0], [1], [0, 0, 1, 1], [], []>} : vector<128x128xbf16>, vector<128x128xbf16>, vector<128x128xf32> -> vector<128x128xf32>
    %c0_22 = arith.constant 0 : index
    %c0_23 = arith.constant 0 : index
    %35 = vector.load %arg10[%c0_22, %c0_23] : memref<1x128xf32, #tpu.memory_space<vmem>>, vector<1x128xf32>
    %36 = vector.broadcast %35 : vector<1x128xf32> to vector<128x128xf32>
    %37 = arith.addf %34, %36 : vector<128x128xf32>
    %cst_24 = arith.constant 0.000000e+00 : f32
    %38 = vector.broadcast %cst_24 : f32 to vector<128x128xf32>
    %39 = arith.cmpf ogt, %37, %38 : vector<128x128xf32>
    %cst_25 = arith.constant 0.000000e+00 : f32
    %40 = vector.broadcast %cst_25 : f32 to vector<128x128xf32>
    %41 = arith.minimumf %37, %40 : vector<128x128xf32>
    %42 = math.exp %41 : vector<128x128xf32>
    %cst_26 = arith.constant 1.000000e+00 : f32
    %43 = vector.broadcast %cst_26 : f32 to vector<128x128xf32>
    %44 = arith.subf %42, %43 : vector<128x128xf32>
    %45 = arith.select %39, %37, %44 : vector<128x128xi1>, vector<128x128xf32>
    %c0_27 = arith.constant 0 : index
    %c0_28 = arith.constant 0 : index
    %46 = vector.load %arg11[%c0_27, %c0_28] : memref<128x128xbf16, #tpu.memory_space<vmem>>, vector<128x128xbf16>
    %cst_29 = arith.constant dense<0.000000e+00> : vector<128x128xf32>
    %47 = tpu.matmul %4, %46, %cst_29 {dimension_numbers = #tpu.dot_dimension_numbers<[1], [0], [0], [1], [0, 0, 1, 1], [], []>} : vector<128x128xbf16>, vector<128x128xbf16>, vector<128x128xf32> -> vector<128x128xf32>
    %48 = arith.truncf %45 : vector<128x128xf32> to vector<128x128xbf16>
    %c0_30 = arith.constant 0 : index
    %c0_31 = arith.constant 0 : index
    %49 = vector.load %arg12[%c0_30, %c0_31] : memref<128x128xbf16, #tpu.memory_space<vmem>>, vector<128x128xbf16>
    %cst_32 = arith.constant dense<0.000000e+00> : vector<128x128xf32>
    %50 = tpu.matmul %48, %49, %cst_32 {dimension_numbers = #tpu.dot_dimension_numbers<[1], [0], [0], [1], [0, 0, 1, 1], [], []>} : vector<128x128xbf16>, vector<128x128xbf16>, vector<128x128xf32> -> vector<128x128xf32>
    %51 = arith.addf %47, %50 : vector<128x128xf32>
    %c0_33 = arith.constant 0 : index
    %c0_34 = arith.constant 0 : index
    %52 = vector.load %arg13[%c0_33, %c0_34] : memref<1x128xf32, #tpu.memory_space<vmem>>, vector<1x128xf32>
    %53 = vector.broadcast %52 : vector<1x128xf32> to vector<128x128xf32>
    %54 = arith.addf %51, %53 : vector<128x128xf32>
    %cst_35 = arith.constant 0.000000e+00 : f32
    %55 = vector.broadcast %cst_35 : f32 to vector<128x128xf32>
    %56 = arith.cmpf ogt, %54, %55 : vector<128x128xf32>
    %cst_36 = arith.constant 0.000000e+00 : f32
    %57 = vector.broadcast %cst_36 : f32 to vector<128x128xf32>
    %58 = arith.minimumf %54, %57 : vector<128x128xf32>
    %59 = math.exp %58 : vector<128x128xf32>
    %cst_37 = arith.constant 1.000000e+00 : f32
    %60 = vector.broadcast %cst_37 : f32 to vector<128x128xf32>
    %61 = arith.subf %59, %60 : vector<128x128xf32>
    %62 = arith.select %56, %54, %61 : vector<128x128xi1>, vector<128x128xf32>
    %63 = arith.truncf %62 : vector<128x128xf32> to vector<128x128xbf16>
    %c0_38 = arith.constant 0 : index
    %c0_39 = arith.constant 0 : index
    %c0_40 = arith.constant 0 : index
    %64 = vector.load %arg15[%c0_38, %c0_39, %c0_40] : memref<1x128x128xbf16, #tpu.memory_space<vmem>>, vector<1x128x128xbf16>
    %65 = vector.shape_cast %64 : vector<1x128x128xbf16> to vector<128x128xbf16>
    %66 = vector.shape_cast %63 : vector<128x128xbf16> to vector<1x128x128xbf16>
    tpu.vector_store %arg15[%c0_38, %c0_39, %c0_40], %66 {strides = array<i32>} : memref<1x128x128xbf16, #tpu.memory_space<vmem>>, vector<1x128x128xbf16>,
    %c0_41 = arith.constant 0 : index
    %c0_42 = arith.constant 0 : index
    %c0_43 = arith.constant 0 : index
    %67 = vector.load %arg16[%c0_41, %c0_42, %c0_43] : memref<1x2x128xf32, #tpu.memory_space<vmem>>, vector<1x1x128xf32>
    %68 = vector.shape_cast %67 : vector<1x1x128xf32> to vector<1x128xf32>
    %cst_44 = arith.constant dense<0.000000e+00> : vector<128xf32>
    %69 = vector.multi_reduction <add>, %62, %cst_44 [0] : vector<128x128xf32> to vector<128xf32>
    %70 = vector.shape_cast %69 : vector<128xf32> to vector<1x128xf32>
    %71 = arith.addf %68, %70 : vector<1x128xf32>
    %c0_45 = arith.constant 0 : index
    %c0_46 = arith.constant 0 : index
    %c0_47 = arith.constant 0 : index
    %72 = vector.load %arg16[%c0_45, %c0_46, %c0_47] : memref<1x2x128xf32, #tpu.memory_space<vmem>>, vector<1x1x128xf32>
    %73 = vector.shape_cast %72 : vector<1x1x128xf32> to vector<1x128xf32>
    %74 = vector.shape_cast %71 : vector<1x128xf32> to vector<1x1x128xf32>
    tpu.vector_store %arg16[%c0_45, %c0_46, %c0_47], %74 {strides = array<i32>} : memref<1x2x128xf32, #tpu.memory_space<vmem>>, vector<1x1x128xf32>,
    %c0_48 = arith.constant 0 : index
    %c1_49 = arith.constant 1 : index
    %c0_50 = arith.constant 0 : index
    %75 = vector.load %arg16[%c0_48, %c1_49, %c0_50] : memref<1x2x128xf32, #tpu.memory_space<vmem>>, vector<1x1x128xf32>
    %76 = vector.shape_cast %75 : vector<1x1x128xf32> to vector<1x128xf32>
    %77 = arith.mulf %62, %62 : vector<128x128xf32>
    %cst_51 = arith.constant dense<0.000000e+00> : vector<128xf32>
    %78 = vector.multi_reduction <add>, %77, %cst_51 [0] : vector<128x128xf32> to vector<128xf32>
    %79 = vector.shape_cast %78 : vector<128xf32> to vector<1x128xf32>
    %80 = arith.addf %76, %79 : vector<1x128xf32>
    %c0_52 = arith.constant 0 : index
    %c1_53 = arith.constant 1 : index
    %c0_54 = arith.constant 0 : index
    %81 = vector.load %arg16[%c0_52, %c1_53, %c0_54] : memref<1x2x128xf32, #tpu.memory_space<vmem>>, vector<1x1x128xf32>
    %82 = vector.shape_cast %81 : vector<1x1x128xf32> to vector<1x128xf32>
    %83 = vector.shape_cast %80 : vector<1x128xf32> to vector<1x1x128xf32>
    tpu.vector_store %arg16[%c0_52, %c1_53, %c0_54], %83 {strides = array<i32>} : memref<1x2x128xf32, #tpu.memory_space<vmem>>, vector<1x1x128xf32>,
    %c0_55 = arith.constant 0 : index
    %c0_56 = arith.constant 0 : index
    %84 = vector.load %arg7[%c0_55, %c0_56] : memref<3x128xbf16, #tpu.memory_space<vmem>>, vector<3x128xbf16>
    %c0_57 = arith.constant 0 : index
    %c0_58 = arith.constant 0 : index
    %85 = vector.load %arg8[%c0_57, %c0_58] : memref<3x1xf32, #tpu.memory_space<vmem>>, vector<3x1xf32>
    %c0_i32_59 = arith.constant 0 : i32
    %c8_i32 = arith.constant 8 : i32
    %86 = arith.addi %c0_i32_59, %c8_i32 : i32
    %c1_i32 = arith.constant 1 : i32
    scf.for %arg18 = %c0_i32_59 to %86 step %c1_i32  : i32 {
      %c16_i32 = arith.constant 16 : i32
      %87 = arith.muli %arg18, %c16_i32 : i32
      %88 = tpu.assume_multiple %87, 16 : i32
      %89 = arith.index_cast %88 : i32 to index
      %c0_61 = arith.constant 0 : index
      %90 = vector.load %arg17[%89, %c0_61] : memref<128x128xbf16, #tpu.memory_space<vmem>>, vector<16x128xbf16>
      %cst_62 = arith.constant dense<0.000000e+00> : vector<3x16xf32>
      %91 = tpu.matmul %84, %90, %cst_62 {dimension_numbers = #tpu.dot_dimension_numbers<[1], [1], [0], [0], [0, 0, 1, 0], [], []>} : vector<3x128xbf16>, vector<16x128xbf16>, vector<3x16xf32> -> vector<3x16xf32>
      %92 = vector.broadcast %85 : vector<3x1xf32> to vector<3x16xf32>
      %93 = arith.addf %91, %92 : vector<3x16xf32>
      %c0_63 = arith.constant 0 : index
      %c0_64 = arith.constant 0 : index
      %94 = arith.index_cast %arg18 : i32 to index
      %c0_65 = arith.constant 0 : index
      %95 = vector.load %arg6[%c0_63, %c0_64, %94, %c0_65] : memref<1x1x8x16xf32, #tpu.memory_space<vmem>>, vector<1x1x1x16xf32>
      %96 = vector.shape_cast %95 : vector<1x1x1x16xf32> to vector<1x16xf32>
      %97 = vector.broadcast %96 : vector<1x16xf32> to vector<3x16xf32>
      %98 = arith.mulf %93, %97 : vector<3x16xf32>
      %99 = vector.shape_cast %98 : vector<3x16xf32> to vector<3x1x16xf32>
      %c0_66 = arith.constant 0 : index
      %c0_67 = arith.constant 0 : index
      %100 = arith.index_cast %arg18 : i32 to index
      %c0_68 = arith.constant 0 : index
      %101 = vector.load %arg14[%c0_66, %c0_67, %100, %c0_68] : memref<1x3x8x16xf32, #tpu.memory_space<vmem>>, vector<1x3x1x16xf32>
      %102 = vector.shape_cast %101 : vector<1x3x1x16xf32> to vector<3x1x16xf32>
      %103 = vector.shape_cast %99 : vector<3x1x16xf32> to vector<1x3x1x16xf32>
      tpu.vector_store %arg14[%c0_66, %c0_67, %100, %c0_68], %103 {strides = array<i32>} : memref<1x3x8x16xf32, #tpu.memory_space<vmem>>, vector<1x3x1x16xf32>,
    }
    %c8_i32_60 = arith.constant 8 : i32
    return
  }
  func.func @transform_0(%arg0: i32, %arg1: i32) -> (i32, i32, i32) {
    %c0_i32 = arith.constant 0 : i32
    %c0_i32_0 = arith.constant 0 : i32
    return %arg0, %arg1, %c0_i32 : i32, i32, i32
  }
  func.func @transform_1(%arg0: i32, %arg1: i32) -> (i32, i32, i32) {
    %c0_i32 = arith.constant 0 : i32
    %c0_i32_0 = arith.constant 0 : i32
    %c0_i32_1 = arith.constant 0 : i32
    return %arg0, %c0_i32, %c0_i32_0 : i32, i32, i32
  }
  func.func @transform_2(%arg0: i32, %arg1: i32) -> (i32, i32) {
    %c0_i32 = arith.constant 0 : i32
    %c0_i32_0 = arith.constant 0 : i32
    %c0_i32_1 = arith.constant 0 : i32
    return %c0_i32, %c0_i32_0 : i32, i32
  }
  func.func @transform_3(%arg0: i32, %arg1: i32) -> (i32, i32) {
    %c0_i32 = arith.constant 0 : i32
    %c0_i32_0 = arith.constant 0 : i32
    %c0_i32_1 = arith.constant 0 : i32
    return %c0_i32, %c0_i32_0 : i32, i32
  }
  func.func @transform_4(%arg0: i32, %arg1: i32) -> (i32, i32, i32, i32) {
    %c0_i32 = arith.constant 0 : i32
    %c0_i32_0 = arith.constant 0 : i32
    %c0_i32_1 = arith.constant 0 : i32
    return %arg0, %c0_i32, %arg1, %c0_i32_0 : i32, i32, i32, i32
  }
  func.func @transform_5(%arg0: i32, %arg1: i32) -> (i32, i32) {
    %c0_i32 = arith.constant 0 : i32
    %c0_i32_0 = arith.constant 0 : i32
    %c0_i32_1 = arith.constant 0 : i32
    return %c0_i32, %c0_i32_0 : i32, i32
  }
  func.func @transform_6(%arg0: i32, %arg1: i32) -> (i32, i32) {
    %c0_i32 = arith.constant 0 : i32
    %c0_i32_0 = arith.constant 0 : i32
    %c0_i32_1 = arith.constant 0 : i32
    return %c0_i32, %c0_i32_0 : i32, i32
  }
  func.func @transform_7(%arg0: i32, %arg1: i32) -> (i32, i32) {
    %c0_i32 = arith.constant 0 : i32
    %c0_i32_0 = arith.constant 0 : i32
    %c0_i32_1 = arith.constant 0 : i32
    return %c0_i32, %c0_i32_0 : i32, i32
  }
  func.func @transform_8(%arg0: i32, %arg1: i32) -> (i32, i32) {
    %c0_i32 = arith.constant 0 : i32
    %c0_i32_0 = arith.constant 0 : i32
    %c0_i32_1 = arith.constant 0 : i32
    return %c0_i32, %c0_i32_0 : i32, i32
  }
  func.func @transform_9(%arg0: i32, %arg1: i32) -> (i32, i32) {
    %c0_i32 = arith.constant 0 : i32
    %c0_i32_0 = arith.constant 0 : i32
    %c0_i32_1 = arith.constant 0 : i32
    return %c0_i32, %c0_i32_0 : i32, i32
  }
  func.func @transform_10(%arg0: i32, %arg1: i32) -> (i32, i32) {
    %c0_i32 = arith.constant 0 : i32
    %c0_i32_0 = arith.constant 0 : i32
    %c0_i32_1 = arith.constant 0 : i32
    return %c0_i32, %c0_i32_0 : i32, i32
  }
  func.func @transform_11(%arg0: i32, %arg1: i32) -> (i32, i32) {
    %c0_i32 = arith.constant 0 : i32
    %c0_i32_0 = arith.constant 0 : i32
    %c0_i32_1 = arith.constant 0 : i32
    return %c0_i32, %c0_i32_0 : i32, i32
  }
  func.func @transform_12(%arg0: i32, %arg1: i32) -> (i32, i32, i32, i32) {
    %c0_i32 = arith.constant 0 : i32
    %c0_i32_0 = arith.constant 0 : i32
    %c0_i32_1 = arith.constant 0 : i32
    return %arg0, %c0_i32, %arg1, %c0_i32_0 : i32, i32, i32, i32
  }
  func.func @transform_13(%arg0: i32, %arg1: i32) -> (i32, i32, i32) {
    %c0_i32 = arith.constant 0 : i32
    %c0_i32_0 = arith.constant 0 : i32
    return %arg0, %arg1, %c0_i32 : i32, i32, i32
  }
  func.func @transform_14(%arg0: i32, %arg1: i32) -> (i32, i32, i32) {
    %c0_i32 = arith.constant 0 : i32
    %c0_i32_0 = arith.constant 0 : i32
    %c0_i32_1 = arith.constant 0 : i32
    return %arg0, %c0_i32, %c0_i32_0 : i32, i32, i32
  }
}

module attributes {stable_mosaic.version = 11 : i64} {
  func.func @kernel(%arg0: i32, %arg1: i32, %arg2: memref<1x3x8x16xf32, #tpu.memory_space<vmem>>, %arg3: memref<1x16x16xf32, #tpu.memory_space<vmem>>) attributes {dimension_semantics = [#tpu.dimension_semantics<parallel>, #tpu.dimension_semantics<arbitrary>], iteration_bounds = array<i64: 2, 2>, scalar_prefetch = 0 : i64, scratch_operands = 0 : i64, tpu.core_type = #tpu.core_type<tc>, window_params = [{transform_indices = @transform_0, window_bounds = array<i64: 1, 3, 8, 16>}, {transform_indices = @transform_1, window_bounds = array<i64: 1, 16, 16>}]} {
    %c0_i32 = arith.constant 0 : i32
    %0 = arith.cmpi eq, %arg1, %c0_i32 : i32
    %1 = arith.extui %0 : i1 to i32
    %c0_i32_0 = arith.constant 0 : i32
    %2 = arith.cmpi ne, %1, %c0_i32_0 : i32
    scf.if %2 {
      %cst = arith.constant 0.000000e+00 : f32
      %12 = vector.broadcast %cst : f32 to vector<1x16x16xf32>
      %c0 = arith.constant 0 : index
      %c0_5 = arith.constant 0 : index
      %c0_6 = arith.constant 0 : index
      %13 = vector.load %arg3[%c0, %c0_5, %c0_6] : memref<1x16x16xf32, #tpu.memory_space<vmem>>, vector<1x16x16xf32>
      tpu.vector_store %arg3[%c0, %c0_5, %c0_6], %12 {strides = array<i32>} : memref<1x16x16xf32, #tpu.memory_space<vmem>>, vector<1x16x16xf32>,
    } else {
    }
    %3 = tpu.iota {dimensions = array<i32: 0>} : vector<16x16xi32>
    %4 = tpu.iota {dimensions = array<i32: 1>} : vector<16x16xi32>
    %5 = arith.cmpi eq, %3, %4 : vector<16x16xi32>
    %6 = arith.extui %5 : vector<16x16xi1> to vector<16x16xi32>
    %7 = arith.sitofp %6 : vector<16x16xi32> to vector<16x16xf32>
    %c0_i32_1 = arith.constant 0 : i32
    %c8_i32 = arith.constant 8 : i32
    %8 = arith.addi %c0_i32_1, %c8_i32 : i32
    %c1_i32 = arith.constant 1 : i32
    scf.for %arg4 = %c0_i32_1 to %8 step %c1_i32  : i32 {
      %c0 = arith.constant 0 : index
      %c0_5 = arith.constant 0 : index
      %12 = arith.index_cast %arg4 : i32 to index
      %c0_6 = arith.constant 0 : index
      %13 = vector.load %arg2[%c0, %c0_5, %12, %c0_6] : memref<1x3x8x16xf32, #tpu.memory_space<vmem>>, vector<1x3x1x16xf32>
      %14 = vector.shape_cast %13 : vector<1x3x1x16xf32> to vector<3x1x16xf32>
      %15 = vector.shape_cast %14 : vector<3x1x16xf32> to vector<3x16xf32>
      %16 = arith.truncf %15 : vector<3x16xf32> to vector<3x16xbf16>
      %cst = arith.constant dense<0.000000e+00> : vector<16x16xf32>
      %17 = tpu.matmul %16, %16, %cst {dimension_numbers = #tpu.dot_dimension_numbers<[0], [0], [1], [1], [0, 1, 1, 1], [], []>} : vector<3x16xbf16>, vector<3x16xbf16>, vector<16x16xf32> -> vector<16x16xf32>
      %18 = arith.mulf %17, %7 : vector<16x16xf32>
      %cst_7 = arith.constant dense<0.000000e+00> : vector<16xf32>
      %19 = vector.multi_reduction <add>, %18, %cst_7 [1] : vector<16x16xf32> to vector<16xf32>
      %20 = vector.shape_cast %19 : vector<16xf32> to vector<16x1xf32>
      %cst_8 = arith.constant dense<0.000000e+00> : vector<16xf32>
      %21 = vector.multi_reduction <add>, %18, %cst_8 [0] : vector<16x16xf32> to vector<16xf32>
      %22 = vector.shape_cast %21 : vector<16xf32> to vector<1x16xf32>
      %23 = vector.broadcast %20 : vector<16x1xf32> to vector<16x16xf32>
      %24 = vector.broadcast %22 : vector<1x16xf32> to vector<16x16xf32>
      %25 = arith.addf %23, %24 : vector<16x16xf32>
      %cst_9 = arith.constant 2.000000e+00 : f32
      %26 = vector.broadcast %cst_9 : f32 to vector<16x16xf32>
      %27 = arith.mulf %26, %17 : vector<16x16xf32>
      %28 = arith.subf %25, %27 : vector<16x16xf32>
      %cst_10 = arith.constant 0.000000e+00 : f32
      %29 = vector.broadcast %cst_10 : f32 to vector<16x16xf32>
      %30 = arith.maximumf %28, %29 : vector<16x16xf32>
      %c0_11 = arith.constant 0 : index
      %c0_12 = arith.constant 0 : index
      %c0_13 = arith.constant 0 : index
      %31 = vector.load %arg3[%c0_11, %c0_12, %c0_13] : memref<1x16x16xf32, #tpu.memory_space<vmem>>, vector<1x16x16xf32>
      %32 = vector.shape_cast %31 : vector<1x16x16xf32> to vector<16x16xf32>
      %cst_14 = arith.constant 9.99999993E-9 : f32
      %33 = vector.broadcast %cst_14 : f32 to vector<16x16xf32>
      %34 = arith.addf %30, %33 : vector<16x16xf32>
      %35 = math.sqrt %34 : vector<16x16xf32>
      %36 = arith.addf %32, %35 : vector<16x16xf32>
      %c0_15 = arith.constant 0 : index
      %c0_16 = arith.constant 0 : index
      %c0_17 = arith.constant 0 : index
      %37 = vector.load %arg3[%c0_15, %c0_16, %c0_17] : memref<1x16x16xf32, #tpu.memory_space<vmem>>, vector<1x16x16xf32>
      %38 = vector.shape_cast %37 : vector<1x16x16xf32> to vector<16x16xf32>
      %39 = vector.shape_cast %36 : vector<16x16xf32> to vector<1x16x16xf32>
      tpu.vector_store %arg3[%c0_15, %c0_16, %c0_17], %39 {strides = array<i32>} : memref<1x16x16xf32, #tpu.memory_space<vmem>>, vector<1x16x16xf32>,
    }
    %c8_i32_2 = arith.constant 8 : i32
    %c1_i32_3 = arith.constant 1 : i32
    %9 = arith.cmpi eq, %arg1, %c1_i32_3 : i32
    %10 = arith.extui %9 : i1 to i32
    %c0_i32_4 = arith.constant 0 : i32
    %11 = arith.cmpi ne, %10, %c0_i32_4 : i32
    scf.if %11 {
      %c0 = arith.constant 0 : index
      %c0_5 = arith.constant 0 : index
      %c0_6 = arith.constant 0 : index
      %12 = vector.load %arg3[%c0, %c0_5, %c0_6] : memref<1x16x16xf32, #tpu.memory_space<vmem>>, vector<1x16x16xf32>
      %cst = arith.constant 6.250000e-02 : f32
      %13 = vector.broadcast %cst : f32 to vector<1x16x16xf32>
      %14 = arith.mulf %12, %13 : vector<1x16x16xf32>
      %c0_7 = arith.constant 0 : index
      %c0_8 = arith.constant 0 : index
      %c0_9 = arith.constant 0 : index
      %15 = vector.load %arg3[%c0_7, %c0_8, %c0_9] : memref<1x16x16xf32, #tpu.memory_space<vmem>>, vector<1x16x16xf32>
      tpu.vector_store %arg3[%c0_7, %c0_8, %c0_9], %14 {strides = array<i32>} : memref<1x16x16xf32, #tpu.memory_space<vmem>>, vector<1x16x16xf32>,
    } else {
    }
    return
  }
  func.func @transform_0(%arg0: i32, %arg1: i32) -> (i32, i32, i32, i32) {
    %c0_i32 = arith.constant 0 : i32
    %c0_i32_0 = arith.constant 0 : i32
    %c0_i32_1 = arith.constant 0 : i32
    return %arg0, %c0_i32, %arg1, %c0_i32_0 : i32, i32, i32, i32
  }
  func.func @transform_1(%arg0: i32, %arg1: i32) -> (i32, i32, i32) {
    %c0_i32 = arith.constant 0 : i32
    %c0_i32_0 = arith.constant 0 : i32
    %c0_i32_1 = arith.constant 0 : i32
    return %arg0, %c0_i32, %c0_i32_0 : i32, i32, i32
  }
}

module attributes {stable_mosaic.version = 11 : i64} {
  func.func @kernel(%arg0: i32, %arg1: i32, %arg2: memref<1x128x128xbf16, #tpu.memory_space<vmem>>, %arg3: memref<1x2x128xf32, #tpu.memory_space<vmem>>, %arg4: memref<1x128xf32, #tpu.memory_space<vmem>>, %arg5: memref<1x128xf32, #tpu.memory_space<vmem>>, %arg6: memref<1x1x8x16xf32, #tpu.memory_space<vmem>>, %arg7: memref<1x128x1xbf16, #tpu.memory_space<vmem>>, %arg8: memref<3x128xbf16, #tpu.memory_space<vmem>>, %arg9: memref<3x1xf32, #tpu.memory_space<vmem>>, %arg10: memref<128x128xbf16, #tpu.memory_space<vmem>>, %arg11: memref<1x128xf32, #tpu.memory_space<vmem>>, %arg12: memref<128x128xbf16, #tpu.memory_space<vmem>>, %arg13: memref<128x128xbf16, #tpu.memory_space<vmem>>, %arg14: memref<1x128xf32, #tpu.memory_space<vmem>>, %arg15: memref<128x50xbf16, #tpu.memory_space<vmem>>, %arg16: memref<1x50xf32, #tpu.memory_space<vmem>>, %arg17: memref<1x50xf32, #tpu.memory_space<vmem>>, %arg18: memref<1x3x8x16xf32, #tpu.memory_space<vmem>>, %arg19: memref<1x128x128xbf16, #tpu.memory_space<vmem>>, %arg20: memref<1x2x128xf32, #tpu.memory_space<vmem>>, %arg21: memref<1x8x50xf32, #tpu.memory_space<vmem>>, %arg22: memref<128x128xbf16, #tpu.memory_space<vmem>>) attributes {dimension_semantics = [#tpu.dimension_semantics<parallel>, #tpu.dimension_semantics<arbitrary>], iteration_bounds = array<i64: 2, 2>, scalar_prefetch = 0 : i64, scratch_operands = 1 : i64, tpu.core_type = #tpu.core_type<tc>, window_params = [{transform_indices = @transform_0, window_bounds = array<i64: 1, 128, 128>}, {transform_indices = @transform_1, window_bounds = array<i64: 1, 2, 128>}, {pipeline_mode = #tpu.pipeline_mode<synchronous>, transform_indices = @transform_2, window_bounds = array<i64: 1, 128>}, {pipeline_mode = #tpu.pipeline_mode<synchronous>, transform_indices = @transform_3, window_bounds = array<i64: 1, 128>}, {transform_indices = @transform_4, window_bounds = array<i64: 1, 1, 8, 16>}, {transform_indices = @transform_5, window_bounds = array<i64: 1, 128, 1>}, {pipeline_mode = #tpu.pipeline_mode<synchronous>, transform_indices = @transform_6, window_bounds = array<i64: 3, 128>}, {pipeline_mode = #tpu.pipeline_mode<synchronous>, transform_indices = @transform_7, window_bounds = array<i64: 3, 1>}, {pipeline_mode = #tpu.pipeline_mode<synchronous>, transform_indices = @transform_8, window_bounds = array<i64: 128, 128>}, {pipeline_mode = #tpu.pipeline_mode<synchronous>, transform_indices = @transform_9, window_bounds = array<i64: 1, 128>}, {pipeline_mode = #tpu.pipeline_mode<synchronous>, transform_indices = @transform_10, window_bounds = array<i64: 128, 128>}, {pipeline_mode = #tpu.pipeline_mode<synchronous>, transform_indices = @transform_11, window_bounds = array<i64: 128, 128>}, {pipeline_mode = #tpu.pipeline_mode<synchronous>, transform_indices = @transform_12, window_bounds = array<i64: 1, 128>}, {pipeline_mode = #tpu.pipeline_mode<synchronous>, transform_indices = @transform_13, window_bounds = array<i64: 128, 50>}, {pipeline_mode = #tpu.pipeline_mode<synchronous>, transform_indices = @transform_14, window_bounds = array<i64: 1, 50>}, {pipeline_mode = #tpu.pipeline_mode<synchronous>, transform_indices = @transform_15, window_bounds = array<i64: 1, 50>}, {transform_indices = @transform_16, window_bounds = array<i64: 1, 3, 8, 16>}, {transform_indices = @transform_17, window_bounds = array<i64: 1, 128, 128>}, {transform_indices = @transform_18, window_bounds = array<i64: 1, 2, 128>}, {transform_indices = @transform_19, window_bounds = array<i64: 1, 8, 50>}]} {
    %c0_i32 = arith.constant 0 : i32
    %0 = arith.cmpi eq, %arg1, %c0_i32 : i32
    %1 = arith.extui %0 : i1 to i32
    %c0_i32_0 = arith.constant 0 : i32
    %2 = arith.cmpi ne, %1, %c0_i32_0 : i32
    scf.if %2 {
      %cst_67 = arith.constant 0.000000e+00 : f32
      %90 = vector.broadcast %cst_67 : f32 to vector<1x2x128xf32>
      %c0_68 = arith.constant 0 : index
      %c0_69 = arith.constant 0 : index
      %c0_70 = arith.constant 0 : index
      %91 = vector.load %arg20[%c0_68, %c0_69, %c0_70] : memref<1x2x128xf32, #tpu.memory_space<vmem>>, vector<1x2x128xf32>
      tpu.vector_store %arg20[%c0_68, %c0_69, %c0_70], %90 {strides = array<i32>} : memref<1x2x128xf32, #tpu.memory_space<vmem>>, vector<1x2x128xf32>,
    } else {
    }
    %c0 = arith.constant 0 : index
    %c0_1 = arith.constant 0 : index
    %c0_2 = arith.constant 0 : index
    %3 = vector.load %arg2[%c0, %c0_1, %c0_2] : memref<1x128x128xbf16, #tpu.memory_space<vmem>>, vector<1x128x128xbf16>
    %4 = vector.shape_cast %3 : vector<1x128x128xbf16> to vector<128x128xbf16>
    %5 = arith.extf %4 : vector<128x128xbf16> to vector<128x128xf32>
    %c0_3 = arith.constant 0 : index
    %c0_4 = arith.constant 0 : index
    %c0_5 = arith.constant 0 : index
    %6 = vector.load %arg3[%c0_3, %c0_4, %c0_5] : memref<1x2x128xf32, #tpu.memory_space<vmem>>, vector<1x1x128xf32>
    %7 = vector.shape_cast %6 : vector<1x1x128xf32> to vector<1x128xf32>
    %cst = arith.constant 3.906250e-03 : f32
    %8 = vector.broadcast %cst : f32 to vector<1x128xf32>
    %9 = arith.mulf %7, %8 : vector<1x128xf32>
    %c0_6 = arith.constant 0 : index
    %c1 = arith.constant 1 : index
    %c0_7 = arith.constant 0 : index
    %10 = vector.load %arg3[%c0_6, %c1, %c0_7] : memref<1x2x128xf32, #tpu.memory_space<vmem>>, vector<1x1x128xf32>
    %11 = vector.shape_cast %10 : vector<1x1x128xf32> to vector<1x128xf32>
    %cst_8 = arith.constant 3.906250e-03 : f32
    %12 = vector.broadcast %cst_8 : f32 to vector<1x128xf32>
    %13 = arith.mulf %11, %12 : vector<1x128xf32>
    %14 = arith.mulf %9, %9 : vector<1x128xf32>
    %15 = arith.subf %13, %14 : vector<1x128xf32>
    %cst_9 = arith.constant 0.000000e+00 : f32
    %16 = vector.broadcast %cst_9 : f32 to vector<1x128xf32>
    %17 = arith.maximumf %15, %16 : vector<1x128xf32>
    %cst_10 = arith.constant 9.99999974E-6 : f32
    %18 = vector.broadcast %cst_10 : f32 to vector<1x128xf32>
    %19 = arith.addf %17, %18 : vector<1x128xf32>
    %20 = math.rsqrt %19 : vector<1x128xf32>
    %c0_11 = arith.constant 0 : index
    %c0_12 = arith.constant 0 : index
    %21 = vector.load %arg4[%c0_11, %c0_12] : memref<1x128xf32, #tpu.memory_space<vmem>>, vector<1x128xf32>
    %22 = arith.mulf %20, %21 : vector<1x128xf32>
    %c0_13 = arith.constant 0 : index
    %c0_14 = arith.constant 0 : index
    %23 = vector.load %arg5[%c0_13, %c0_14] : memref<1x128xf32, #tpu.memory_space<vmem>>, vector<1x128xf32>
    %24 = arith.mulf %9, %22 : vector<1x128xf32>
    %25 = arith.subf %23, %24 : vector<1x128xf32>
    %26 = vector.broadcast %22 : vector<1x128xf32> to vector<128x128xf32>
    %27 = arith.mulf %5, %26 : vector<128x128xf32>
    %28 = vector.broadcast %25 : vector<1x128xf32> to vector<128x128xf32>
    %29 = arith.addf %27, %28 : vector<128x128xf32>
    %30 = arith.truncf %29 : vector<128x128xf32> to vector<128x128xbf16>
    %c0_15 = arith.constant 0 : index
    %c0_16 = arith.constant 0 : index
    %31 = vector.load %arg22[%c0_15, %c0_16] : memref<128x128xbf16, #tpu.memory_space<vmem>>, vector<128x128xbf16>
    tpu.vector_store %arg22[%c0_15, %c0_16], %30 {strides = array<i32>} : memref<128x128xbf16, #tpu.memory_space<vmem>>, vector<128x128xbf16>,
    %c0_17 = arith.constant 0 : index
    %c0_18 = arith.constant 0 : index
    %32 = vector.load %arg22[%c0_17, %c0_18] : memref<128x128xbf16, #tpu.memory_space<vmem>>, vector<128x128xbf16>
    %c0_19 = arith.constant 0 : index
    %c0_20 = arith.constant 0 : index
    %33 = vector.load %arg10[%c0_19, %c0_20] : memref<128x128xbf16, #tpu.memory_space<vmem>>, vector<128x128xbf16>
    %cst_21 = arith.constant dense<0.000000e+00> : vector<128x128xf32>
    %34 = tpu.matmul %32, %33, %cst_21 {dimension_numbers = #tpu.dot_dimension_numbers<[1], [0], [0], [1], [0, 0, 1, 1], [], []>} : vector<128x128xbf16>, vector<128x128xbf16>, vector<128x128xf32> -> vector<128x128xf32>
    %c0_22 = arith.constant 0 : index
    %c0_23 = arith.constant 0 : index
    %35 = vector.load %arg11[%c0_22, %c0_23] : memref<1x128xf32, #tpu.memory_space<vmem>>, vector<1x128xf32>
    %36 = vector.broadcast %35 : vector<1x128xf32> to vector<128x128xf32>
    %37 = arith.addf %34, %36 : vector<128x128xf32>
    %cst_24 = arith.constant 0.000000e+00 : f32
    %38 = vector.broadcast %cst_24 : f32 to vector<128x128xf32>
    %39 = arith.cmpf ogt, %37, %38 : vector<128x128xf32>
    %cst_25 = arith.constant 0.000000e+00 : f32
    %40 = vector.broadcast %cst_25 : f32 to vector<128x128xf32>
    %41 = arith.minimumf %37, %40 : vector<128x128xf32>
    %42 = math.exp %41 : vector<128x128xf32>
    %cst_26 = arith.constant 1.000000e+00 : f32
    %43 = vector.broadcast %cst_26 : f32 to vector<128x128xf32>
    %44 = arith.subf %42, %43 : vector<128x128xf32>
    %45 = arith.select %39, %37, %44 : vector<128x128xi1>, vector<128x128xf32>
    %c0_27 = arith.constant 0 : index
    %c0_28 = arith.constant 0 : index
    %46 = vector.load %arg12[%c0_27, %c0_28] : memref<128x128xbf16, #tpu.memory_space<vmem>>, vector<128x128xbf16>
    %cst_29 = arith.constant dense<0.000000e+00> : vector<128x128xf32>
    %47 = tpu.matmul %4, %46, %cst_29 {dimension_numbers = #tpu.dot_dimension_numbers<[1], [0], [0], [1], [0, 0, 1, 1], [], []>} : vector<128x128xbf16>, vector<128x128xbf16>, vector<128x128xf32> -> vector<128x128xf32>
    %48 = arith.truncf %45 : vector<128x128xf32> to vector<128x128xbf16>
    %c0_30 = arith.constant 0 : index
    %c0_31 = arith.constant 0 : index
    %49 = vector.load %arg13[%c0_30, %c0_31] : memref<128x128xbf16, #tpu.memory_space<vmem>>, vector<128x128xbf16>
    %cst_32 = arith.constant dense<0.000000e+00> : vector<128x128xf32>
    %50 = tpu.matmul %48, %49, %cst_32 {dimension_numbers = #tpu.dot_dimension_numbers<[1], [0], [0], [1], [0, 0, 1, 1], [], []>} : vector<128x128xbf16>, vector<128x128xbf16>, vector<128x128xf32> -> vector<128x128xf32>
    %51 = arith.addf %47, %50 : vector<128x128xf32>
    %c0_33 = arith.constant 0 : index
    %c0_34 = arith.constant 0 : index
    %52 = vector.load %arg14[%c0_33, %c0_34] : memref<1x128xf32, #tpu.memory_space<vmem>>, vector<1x128xf32>
    %53 = vector.broadcast %52 : vector<1x128xf32> to vector<128x128xf32>
    %54 = arith.addf %51, %53 : vector<128x128xf32>
    %cst_35 = arith.constant 0.000000e+00 : f32
    %55 = vector.broadcast %cst_35 : f32 to vector<128x128xf32>
    %56 = arith.cmpf ogt, %54, %55 : vector<128x128xf32>
    %cst_36 = arith.constant 0.000000e+00 : f32
    %57 = vector.broadcast %cst_36 : f32 to vector<128x128xf32>
    %58 = arith.minimumf %54, %57 : vector<128x128xf32>
    %59 = math.exp %58 : vector<128x128xf32>
    %cst_37 = arith.constant 1.000000e+00 : f32
    %60 = vector.broadcast %cst_37 : f32 to vector<128x128xf32>
    %61 = arith.subf %59, %60 : vector<128x128xf32>
    %62 = arith.select %56, %54, %61 : vector<128x128xi1>, vector<128x128xf32>
    %63 = arith.truncf %62 : vector<128x128xf32> to vector<128x128xbf16>
    %c0_38 = arith.constant 0 : index
    %c0_39 = arith.constant 0 : index
    %c0_40 = arith.constant 0 : index
    %64 = vector.load %arg19[%c0_38, %c0_39, %c0_40] : memref<1x128x128xbf16, #tpu.memory_space<vmem>>, vector<1x128x128xbf16>
    %65 = vector.shape_cast %64 : vector<1x128x128xbf16> to vector<128x128xbf16>
    %66 = vector.shape_cast %63 : vector<128x128xbf16> to vector<1x128x128xbf16>
    tpu.vector_store %arg19[%c0_38, %c0_39, %c0_40], %66 {strides = array<i32>} : memref<1x128x128xbf16, #tpu.memory_space<vmem>>, vector<1x128x128xbf16>,
    %c0_41 = arith.constant 0 : index
    %c0_42 = arith.constant 0 : index
    %c0_43 = arith.constant 0 : index
    %67 = vector.load %arg20[%c0_41, %c0_42, %c0_43] : memref<1x2x128xf32, #tpu.memory_space<vmem>>, vector<1x1x128xf32>
    %68 = vector.shape_cast %67 : vector<1x1x128xf32> to vector<1x128xf32>
    %cst_44 = arith.constant dense<0.000000e+00> : vector<128xf32>
    %69 = vector.multi_reduction <add>, %62, %cst_44 [0] : vector<128x128xf32> to vector<128xf32>
    %70 = vector.shape_cast %69 : vector<128xf32> to vector<1x128xf32>
    %71 = arith.addf %68, %70 : vector<1x128xf32>
    %c0_45 = arith.constant 0 : index
    %c0_46 = arith.constant 0 : index
    %c0_47 = arith.constant 0 : index
    %72 = vector.load %arg20[%c0_45, %c0_46, %c0_47] : memref<1x2x128xf32, #tpu.memory_space<vmem>>, vector<1x1x128xf32>
    %73 = vector.shape_cast %72 : vector<1x1x128xf32> to vector<1x128xf32>
    %74 = vector.shape_cast %71 : vector<1x128xf32> to vector<1x1x128xf32>
    tpu.vector_store %arg20[%c0_45, %c0_46, %c0_47], %74 {strides = array<i32>} : memref<1x2x128xf32, #tpu.memory_space<vmem>>, vector<1x1x128xf32>,
    %c0_48 = arith.constant 0 : index
    %c1_49 = arith.constant 1 : index
    %c0_50 = arith.constant 0 : index
    %75 = vector.load %arg20[%c0_48, %c1_49, %c0_50] : memref<1x2x128xf32, #tpu.memory_space<vmem>>, vector<1x1x128xf32>
    %76 = vector.shape_cast %75 : vector<1x1x128xf32> to vector<1x128xf32>
    %77 = arith.mulf %62, %62 : vector<128x128xf32>
    %cst_51 = arith.constant dense<0.000000e+00> : vector<128xf32>
    %78 = vector.multi_reduction <add>, %77, %cst_51 [0] : vector<128x128xf32> to vector<128xf32>
    %79 = vector.shape_cast %78 : vector<128xf32> to vector<1x128xf32>
    %80 = arith.addf %76, %79 : vector<1x128xf32>
    %c0_52 = arith.constant 0 : index
    %c1_53 = arith.constant 1 : index
    %c0_54 = arith.constant 0 : index
    %81 = vector.load %arg20[%c0_52, %c1_53, %c0_54] : memref<1x2x128xf32, #tpu.memory_space<vmem>>, vector<1x1x128xf32>
    %82 = vector.shape_cast %81 : vector<1x1x128xf32> to vector<1x128xf32>
    %83 = vector.shape_cast %80 : vector<1x128xf32> to vector<1x1x128xf32>
    tpu.vector_store %arg20[%c0_52, %c1_53, %c0_54], %83 {strides = array<i32>} : memref<1x2x128xf32, #tpu.memory_space<vmem>>, vector<1x1x128xf32>,
    %c0_55 = arith.constant 0 : index
    %c0_56 = arith.constant 0 : index
    %84 = vector.load %arg8[%c0_55, %c0_56] : memref<3x128xbf16, #tpu.memory_space<vmem>>, vector<3x128xbf16>
    %c0_57 = arith.constant 0 : index
    %c0_58 = arith.constant 0 : index
    %85 = vector.load %arg9[%c0_57, %c0_58] : memref<3x1xf32, #tpu.memory_space<vmem>>, vector<3x1xf32>
    %c0_59 = arith.constant 0 : index
    %c0_60 = arith.constant 0 : index
    %86 = vector.load %arg15[%c0_59, %c0_60] : memref<128x50xbf16, #tpu.memory_space<vmem>>, vector<128x50xbf16>
    %c0_61 = arith.constant 0 : index
    %c0_62 = arith.constant 0 : index
    %87 = vector.load %arg16[%c0_61, %c0_62] : memref<1x50xf32, #tpu.memory_space<vmem>>, vector<1x50xf32>
    %c0_63 = arith.constant 0 : index
    %c0_64 = arith.constant 0 : index
    %88 = vector.load %arg17[%c0_63, %c0_64] : memref<1x50xf32, #tpu.memory_space<vmem>>, vector<1x50xf32>
    %c0_i32_65 = arith.constant 0 : i32
    %c8_i32 = arith.constant 8 : i32
    %89 = arith.addi %c0_i32_65, %c8_i32 : i32
    %c1_i32 = arith.constant 1 : i32
    scf.for %arg23 = %c0_i32_65 to %89 step %c1_i32  : i32 {
      %c16_i32 = arith.constant 16 : i32
      %90 = arith.muli %arg23, %c16_i32 : i32
      %91 = tpu.assume_multiple %90, 16 : i32
      %92 = arith.index_cast %91 : i32 to index
      %c0_67 = arith.constant 0 : index
      %93 = vector.load %arg22[%92, %c0_67] : memref<128x128xbf16, #tpu.memory_space<vmem>>, vector<16x128xbf16>
      %cst_68 = arith.constant dense<0.000000e+00> : vector<3x16xf32>
      %94 = tpu.matmul %84, %93, %cst_68 {dimension_numbers = #tpu.dot_dimension_numbers<[1], [1], [0], [0], [0, 0, 1, 0], [], []>} : vector<3x128xbf16>, vector<16x128xbf16>, vector<3x16xf32> -> vector<3x16xf32>
      %95 = vector.broadcast %85 : vector<3x1xf32> to vector<3x16xf32>
      %96 = arith.addf %94, %95 : vector<3x16xf32>
      %c0_69 = arith.constant 0 : index
      %c0_70 = arith.constant 0 : index
      %97 = arith.index_cast %arg23 : i32 to index
      %c0_71 = arith.constant 0 : index
      %98 = vector.load %arg6[%c0_69, %c0_70, %97, %c0_71] : memref<1x1x8x16xf32, #tpu.memory_space<vmem>>, vector<1x1x1x16xf32>
      %99 = vector.shape_cast %98 : vector<1x1x1x16xf32> to vector<1x16xf32>
      %100 = vector.broadcast %99 : vector<1x16xf32> to vector<3x16xf32>
      %101 = arith.mulf %96, %100 : vector<3x16xf32>
      %102 = vector.shape_cast %101 : vector<3x16xf32> to vector<3x1x16xf32>
      %c0_72 = arith.constant 0 : index
      %c0_73 = arith.constant 0 : index
      %103 = arith.index_cast %arg23 : i32 to index
      %c0_74 = arith.constant 0 : index
      %104 = vector.load %arg18[%c0_72, %c0_73, %103, %c0_74] : memref<1x3x8x16xf32, #tpu.memory_space<vmem>>, vector<1x3x1x16xf32>
      %105 = vector.shape_cast %104 : vector<1x3x1x16xf32> to vector<3x1x16xf32>
      %106 = vector.shape_cast %102 : vector<3x1x16xf32> to vector<1x3x1x16xf32>
      tpu.vector_store %arg18[%c0_72, %c0_73, %103, %c0_74], %106 {strides = array<i32>} : memref<1x3x8x16xf32, #tpu.memory_space<vmem>>, vector<1x3x1x16xf32>,
      %c0_75 = arith.constant 0 : index
      %107 = arith.index_cast %91 : i32 to index
      %c0_76 = arith.constant 0 : index
      %108 = vector.load %arg7[%c0_75, %107, %c0_76] : memref<1x128x1xbf16, #tpu.memory_space<vmem>>, vector<1x16x1xbf16>
      %109 = vector.shape_cast %108 : vector<1x16x1xbf16> to vector<16x1xbf16>
      %110 = arith.extf %109 : vector<16x1xbf16> to vector<16x1xf32>
      %cst_77 = arith.constant dense<0.000000e+00> : vector<16x50xf32>
      %111 = tpu.matmul %93, %86, %cst_77 {dimension_numbers = #tpu.dot_dimension_numbers<[1], [0], [0], [1], [0, 0, 1, 1], [], []>} : vector<16x128xbf16>, vector<128x50xbf16>, vector<16x50xf32> -> vector<16x50xf32>
      %112 = vector.broadcast %110 : vector<16x1xf32> to vector<16x50xf32>
      %113 = vector.broadcast %87 : vector<1x50xf32> to vector<16x50xf32>
      %114 = arith.mulf %112, %113 : vector<16x50xf32>
      %115 = arith.addf %111, %114 : vector<16x50xf32>
      %116 = vector.broadcast %88 : vector<1x50xf32> to vector<16x50xf32>
      %117 = arith.addf %115, %116 : vector<16x50xf32>
      %cst_78 = arith.constant 0.000000e+00 : f32
      %118 = vector.broadcast %cst_78 : f32 to vector<16x50xf32>
      %119 = arith.cmpf ogt, %117, %118 : vector<16x50xf32>
      %cst_79 = arith.constant 0.000000e+00 : f32
      %120 = vector.broadcast %cst_79 : f32 to vector<16x50xf32>
      %121 = arith.minimumf %117, %120 : vector<16x50xf32>
      %122 = math.exp %121 : vector<16x50xf32>
      %cst_80 = arith.constant 1.000000e+00 : f32
      %123 = vector.broadcast %cst_80 : f32 to vector<16x50xf32>
      %124 = arith.subf %122, %123 : vector<16x50xf32>
      %125 = arith.select %119, %117, %124 : vector<16x50xi1>, vector<16x50xf32>
      %cst_81 = arith.constant dense<0.000000e+00> : vector<50xf32>
      %126 = vector.multi_reduction <add>, %125, %cst_81 [0] : vector<16x50xf32> to vector<50xf32>
      %127 = vector.shape_cast %126 : vector<50xf32> to vector<1x50xf32>
      %cst_82 = arith.constant 6.250000e-02 : f32
      %128 = vector.broadcast %cst_82 : f32 to vector<1x50xf32>
      %129 = arith.mulf %127, %128 : vector<1x50xf32>
      %c0_83 = arith.constant 0 : index
      %130 = arith.index_cast %arg23 : i32 to index
      %c0_84 = arith.constant 0 : index
      %131 = vector.load %arg21[%c0_83, %130, %c0_84] : memref<1x8x50xf32, #tpu.memory_space<vmem>>, vector<1x1x50xf32>
      %132 = vector.shape_cast %131 : vector<1x1x50xf32> to vector<1x50xf32>
      %133 = vector.shape_cast %129 : vector<1x50xf32> to vector<1x1x50xf32>
      tpu.vector_store %arg21[%c0_83, %130, %c0_84], %133 {strides = array<i32>} : memref<1x8x50xf32, #tpu.memory_space<vmem>>, vector<1x1x50xf32>,
    }
    %c8_i32_66 = arith.constant 8 : i32
    return
  }
  func.func @transform_0(%arg0: i32, %arg1: i32) -> (i32, i32, i32) {
    %c0_i32 = arith.constant 0 : i32
    %c0_i32_0 = arith.constant 0 : i32
    return %arg0, %arg1, %c0_i32 : i32, i32, i32
  }
  func.func @transform_1(%arg0: i32, %arg1: i32) -> (i32, i32, i32) {
    %c0_i32 = arith.constant 0 : i32
    %c0_i32_0 = arith.constant 0 : i32
    %c0_i32_1 = arith.constant 0 : i32
    return %arg0, %c0_i32, %c0_i32_0 : i32, i32, i32
  }
  func.func @transform_2(%arg0: i32, %arg1: i32) -> (i32, i32) {
    %c0_i32 = arith.constant 0 : i32
    %c0_i32_0 = arith.constant 0 : i32
    %c0_i32_1 = arith.constant 0 : i32
    return %c0_i32, %c0_i32_0 : i32, i32
  }
  func.func @transform_3(%arg0: i32, %arg1: i32) -> (i32, i32) {
    %c0_i32 = arith.constant 0 : i32
    %c0_i32_0 = arith.constant 0 : i32
    %c0_i32_1 = arith.constant 0 : i32
    return %c0_i32, %c0_i32_0 : i32, i32
  }
  func.func @transform_4(%arg0: i32, %arg1: i32) -> (i32, i32, i32, i32) {
    %c0_i32 = arith.constant 0 : i32
    %c0_i32_0 = arith.constant 0 : i32
    %c0_i32_1 = arith.constant 0 : i32
    return %arg0, %c0_i32, %arg1, %c0_i32_0 : i32, i32, i32, i32
  }
  func.func @transform_5(%arg0: i32, %arg1: i32) -> (i32, i32, i32) {
    %c0_i32 = arith.constant 0 : i32
    %c0_i32_0 = arith.constant 0 : i32
    return %arg0, %arg1, %c0_i32 : i32, i32, i32
  }
  func.func @transform_6(%arg0: i32, %arg1: i32) -> (i32, i32) {
    %c0_i32 = arith.constant 0 : i32
    %c0_i32_0 = arith.constant 0 : i32
    %c0_i32_1 = arith.constant 0 : i32
    return %c0_i32, %c0_i32_0 : i32, i32
  }
  func.func @transform_7(%arg0: i32, %arg1: i32) -> (i32, i32) {
    %c0_i32 = arith.constant 0 : i32
    %c0_i32_0 = arith.constant 0 : i32
    %c0_i32_1 = arith.constant 0 : i32
    return %c0_i32, %c0_i32_0 : i32, i32
  }
  func.func @transform_8(%arg0: i32, %arg1: i32) -> (i32, i32) {
    %c0_i32 = arith.constant 0 : i32
    %c0_i32_0 = arith.constant 0 : i32
    %c0_i32_1 = arith.constant 0 : i32
    return %c0_i32, %c0_i32_0 : i32, i32
  }
  func.func @transform_9(%arg0: i32, %arg1: i32) -> (i32, i32) {
    %c0_i32 = arith.constant 0 : i32
    %c0_i32_0 = arith.constant 0 : i32
    %c0_i32_1 = arith.constant 0 : i32
    return %c0_i32, %c0_i32_0 : i32, i32
  }
  func.func @transform_10(%arg0: i32, %arg1: i32) -> (i32, i32) {
    %c0_i32 = arith.constant 0 : i32
    %c0_i32_0 = arith.constant 0 : i32
    %c0_i32_1 = arith.constant 0 : i32
    return %c0_i32, %c0_i32_0 : i32, i32
  }
  func.func @transform_11(%arg0: i32, %arg1: i32) -> (i32, i32) {
    %c0_i32 = arith.constant 0 : i32
    %c0_i32_0 = arith.constant 0 : i32
    %c0_i32_1 = arith.constant 0 : i32
    return %c0_i32, %c0_i32_0 : i32, i32
  }
  func.func @transform_12(%arg0: i32, %arg1: i32) -> (i32, i32) {
    %c0_i32 = arith.constant 0 : i32
    %c0_i32_0 = arith.constant 0 : i32
    %c0_i32_1 = arith.constant 0 : i32
    return %c0_i32, %c0_i32_0 : i32, i32
  }
  func.func @transform_13(%arg0: i32, %arg1: i32) -> (i32, i32) {
    %c0_i32 = arith.constant 0 : i32
    %c0_i32_0 = arith.constant 0 : i32
    %c0_i32_1 = arith.constant 0 : i32
    return %c0_i32, %c0_i32_0 : i32, i32
  }
  func.func @transform_14(%arg0: i32, %arg1: i32) -> (i32, i32) {
    %c0_i32 = arith.constant 0 : i32
    %c0_i32_0 = arith.constant 0 : i32
    %c0_i32_1 = arith.constant 0 : i32
    return %c0_i32, %c0_i32_0 : i32, i32
  }
  func.func @transform_15(%arg0: i32, %arg1: i32) -> (i32, i32) {
    %c0_i32 = arith.constant 0 : i32
    %c0_i32_0 = arith.constant 0 : i32
    %c0_i32_1 = arith.constant 0 : i32
    return %c0_i32, %c0_i32_0 : i32, i32
  }
  func.func @transform_16(%arg0: i32, %arg1: i32) -> (i32, i32, i32, i32) {
    %c0_i32 = arith.constant 0 : i32
    %c0_i32_0 = arith.constant 0 : i32
    %c0_i32_1 = arith.constant 0 : i32
    return %arg0, %c0_i32, %arg1, %c0_i32_0 : i32, i32, i32, i32
  }
  func.func @transform_17(%arg0: i32, %arg1: i32) -> (i32, i32, i32) {
    %c0_i32 = arith.constant 0 : i32
    %c0_i32_0 = arith.constant 0 : i32
    return %arg0, %arg1, %c0_i32 : i32, i32, i32
  }
  func.func @transform_18(%arg0: i32, %arg1: i32) -> (i32, i32, i32) {
    %c0_i32 = arith.constant 0 : i32
    %c0_i32_0 = arith.constant 0 : i32
    %c0_i32_1 = arith.constant 0 : i32
    return %arg0, %c0_i32, %c0_i32_0 : i32, i32, i32
  }
  func.func @transform_19(%arg0: i32, %arg1: i32) -> (i32, i32, i32) {
    %c0_i32 = arith.constant 0 : i32
    %c0_i32_0 = arith.constant 0 : i32
    return %arg0, %arg1, %c0_i32 : i32, i32, i32
  }
}

module attributes {stable_mosaic.version = 11 : i64} {
  func.func @kernel(%arg0: i32, %arg1: i32, %arg2: memref<1x128x128xbf16, #tpu.memory_space<vmem>>, %arg3: memref<1x2x128xf32, #tpu.memory_space<vmem>>, %arg4: memref<1x128xf32, #tpu.memory_space<vmem>>, %arg5: memref<1x128xf32, #tpu.memory_space<vmem>>, %arg6: memref<1x128x1xbf16, #tpu.memory_space<vmem>>, %arg7: memref<128x128xbf16, #tpu.memory_space<vmem>>, %arg8: memref<1x128xf32, #tpu.memory_space<vmem>>, %arg9: memref<1x128xf32, #tpu.memory_space<vmem>>, %arg10: memref<128x50xbf16, #tpu.memory_space<vmem>>, %arg11: memref<1x50xf32, #tpu.memory_space<vmem>>, %arg12: memref<1x50xf32, #tpu.memory_space<vmem>>, %arg13: memref<1x128x128xbf16, #tpu.memory_space<vmem>>, %arg14: memref<1x8x50xf32, #tpu.memory_space<vmem>>, %arg15: memref<128x128xbf16, #tpu.memory_space<vmem>>) attributes {dimension_semantics = [#tpu.dimension_semantics<parallel>, #tpu.dimension_semantics<parallel>], iteration_bounds = array<i64: 2, 2>, scalar_prefetch = 0 : i64, scratch_operands = 1 : i64, tpu.core_type = #tpu.core_type<tc>, window_params = [{transform_indices = @transform_0, window_bounds = array<i64: 1, 128, 128>}, {transform_indices = @transform_1, window_bounds = array<i64: 1, 2, 128>}, {pipeline_mode = #tpu.pipeline_mode<synchronous>, transform_indices = @transform_2, window_bounds = array<i64: 1, 128>}, {pipeline_mode = #tpu.pipeline_mode<synchronous>, transform_indices = @transform_3, window_bounds = array<i64: 1, 128>}, {transform_indices = @transform_4, window_bounds = array<i64: 1, 128, 1>}, {pipeline_mode = #tpu.pipeline_mode<synchronous>, transform_indices = @transform_5, window_bounds = array<i64: 128, 128>}, {pipeline_mode = #tpu.pipeline_mode<synchronous>, transform_indices = @transform_6, window_bounds = array<i64: 1, 128>}, {pipeline_mode = #tpu.pipeline_mode<synchronous>, transform_indices = @transform_7, window_bounds = array<i64: 1, 128>}, {pipeline_mode = #tpu.pipeline_mode<synchronous>, transform_indices = @transform_8, window_bounds = array<i64: 128, 50>}, {pipeline_mode = #tpu.pipeline_mode<synchronous>, transform_indices = @transform_9, window_bounds = array<i64: 1, 50>}, {pipeline_mode = #tpu.pipeline_mode<synchronous>, transform_indices = @transform_10, window_bounds = array<i64: 1, 50>}, {transform_indices = @transform_11, window_bounds = array<i64: 1, 128, 128>}, {transform_indices = @transform_12, window_bounds = array<i64: 1, 8, 50>}]} {
    %c0 = arith.constant 0 : index
    %c0_0 = arith.constant 0 : index
    %c0_1 = arith.constant 0 : index
    %0 = vector.load %arg2[%c0, %c0_0, %c0_1] : memref<1x128x128xbf16, #tpu.memory_space<vmem>>, vector<1x128x128xbf16>
    %1 = vector.shape_cast %0 : vector<1x128x128xbf16> to vector<128x128xbf16>
    %2 = arith.extf %1 : vector<128x128xbf16> to vector<128x128xf32>
    %c0_2 = arith.constant 0 : index
    %c0_3 = arith.constant 0 : index
    %c0_4 = arith.constant 0 : index
    %3 = vector.load %arg3[%c0_2, %c0_3, %c0_4] : memref<1x2x128xf32, #tpu.memory_space<vmem>>, vector<1x1x128xf32>
    %4 = vector.shape_cast %3 : vector<1x1x128xf32> to vector<1x128xf32>
    %cst = arith.constant 3.906250e-03 : f32
    %5 = vector.broadcast %cst : f32 to vector<1x128xf32>
    %6 = arith.mulf %4, %5 : vector<1x128xf32>
    %c0_5 = arith.constant 0 : index
    %c1 = arith.constant 1 : index
    %c0_6 = arith.constant 0 : index
    %7 = vector.load %arg3[%c0_5, %c1, %c0_6] : memref<1x2x128xf32, #tpu.memory_space<vmem>>, vector<1x1x128xf32>
    %8 = vector.shape_cast %7 : vector<1x1x128xf32> to vector<1x128xf32>
    %cst_7 = arith.constant 3.906250e-03 : f32
    %9 = vector.broadcast %cst_7 : f32 to vector<1x128xf32>
    %10 = arith.mulf %8, %9 : vector<1x128xf32>
    %11 = arith.mulf %6, %6 : vector<1x128xf32>
    %12 = arith.subf %10, %11 : vector<1x128xf32>
    %cst_8 = arith.constant 0.000000e+00 : f32
    %13 = vector.broadcast %cst_8 : f32 to vector<1x128xf32>
    %14 = arith.maximumf %12, %13 : vector<1x128xf32>
    %cst_9 = arith.constant 9.99999974E-6 : f32
    %15 = vector.broadcast %cst_9 : f32 to vector<1x128xf32>
    %16 = arith.addf %14, %15 : vector<1x128xf32>
    %17 = math.rsqrt %16 : vector<1x128xf32>
    %c0_10 = arith.constant 0 : index
    %c0_11 = arith.constant 0 : index
    %18 = vector.load %arg4[%c0_10, %c0_11] : memref<1x128xf32, #tpu.memory_space<vmem>>, vector<1x128xf32>
    %19 = arith.mulf %17, %18 : vector<1x128xf32>
    %c0_12 = arith.constant 0 : index
    %c0_13 = arith.constant 0 : index
    %20 = vector.load %arg5[%c0_12, %c0_13] : memref<1x128xf32, #tpu.memory_space<vmem>>, vector<1x128xf32>
    %21 = arith.mulf %6, %19 : vector<1x128xf32>
    %22 = arith.subf %20, %21 : vector<1x128xf32>
    %23 = vector.broadcast %19 : vector<1x128xf32> to vector<128x128xf32>
    %24 = arith.mulf %2, %23 : vector<128x128xf32>
    %25 = vector.broadcast %22 : vector<1x128xf32> to vector<128x128xf32>
    %26 = arith.addf %24, %25 : vector<128x128xf32>
    %27 = arith.truncf %26 : vector<128x128xf32> to vector<128x128xbf16>
    %c0_14 = arith.constant 0 : index
    %c0_15 = arith.constant 0 : index
    %28 = vector.load %arg15[%c0_14, %c0_15] : memref<128x128xbf16, #tpu.memory_space<vmem>>, vector<128x128xbf16>
    tpu.vector_store %arg15[%c0_14, %c0_15], %27 {strides = array<i32>} : memref<128x128xbf16, #tpu.memory_space<vmem>>, vector<128x128xbf16>,
    %c0_16 = arith.constant 0 : index
    %c0_17 = arith.constant 0 : index
    %29 = vector.load %arg15[%c0_16, %c0_17] : memref<128x128xbf16, #tpu.memory_space<vmem>>, vector<128x128xbf16>
    %c0_18 = arith.constant 0 : index
    %c0_19 = arith.constant 0 : index
    %c0_20 = arith.constant 0 : index
    %30 = vector.load %arg6[%c0_18, %c0_19, %c0_20] : memref<1x128x1xbf16, #tpu.memory_space<vmem>>, vector<1x128x1xbf16>
    %31 = vector.shape_cast %30 : vector<1x128x1xbf16> to vector<128x1xbf16>
    %32 = arith.extf %31 : vector<128x1xbf16> to vector<128x1xf32>
    %c0_21 = arith.constant 0 : index
    %c0_22 = arith.constant 0 : index
    %33 = vector.load %arg7[%c0_21, %c0_22] : memref<128x128xbf16, #tpu.memory_space<vmem>>, vector<128x128xbf16>
    %cst_23 = arith.constant dense<0.000000e+00> : vector<128x128xf32>
    %34 = tpu.matmul %29, %33, %cst_23 {dimension_numbers = #tpu.dot_dimension_numbers<[1], [0], [0], [1], [0, 0, 1, 1], [], []>} : vector<128x128xbf16>, vector<128x128xbf16>, vector<128x128xf32> -> vector<128x128xf32>
    %c0_24 = arith.constant 0 : index
    %c0_25 = arith.constant 0 : index
    %35 = vector.load %arg8[%c0_24, %c0_25] : memref<1x128xf32, #tpu.memory_space<vmem>>, vector<1x128xf32>
    %36 = vector.broadcast %32 : vector<128x1xf32> to vector<128x128xf32>
    %37 = vector.broadcast %35 : vector<1x128xf32> to vector<128x128xf32>
    %38 = arith.mulf %36, %37 : vector<128x128xf32>
    %39 = arith.addf %34, %38 : vector<128x128xf32>
    %c0_26 = arith.constant 0 : index
    %c0_27 = arith.constant 0 : index
    %40 = vector.load %arg9[%c0_26, %c0_27] : memref<1x128xf32, #tpu.memory_space<vmem>>, vector<1x128xf32>
    %41 = vector.broadcast %40 : vector<1x128xf32> to vector<128x128xf32>
    %42 = arith.addf %39, %41 : vector<128x128xf32>
    %cst_28 = arith.constant 0.000000e+00 : f32
    %43 = vector.broadcast %cst_28 : f32 to vector<128x128xf32>
    %44 = arith.cmpf ogt, %42, %43 : vector<128x128xf32>
    %cst_29 = arith.constant 0.000000e+00 : f32
    %45 = vector.broadcast %cst_29 : f32 to vector<128x128xf32>
    %46 = arith.minimumf %42, %45 : vector<128x128xf32>
    %47 = math.exp %46 : vector<128x128xf32>
    %cst_30 = arith.constant 1.000000e+00 : f32
    %48 = vector.broadcast %cst_30 : f32 to vector<128x128xf32>
    %49 = arith.subf %47, %48 : vector<128x128xf32>
    %50 = arith.select %44, %42, %49 : vector<128x128xi1>, vector<128x128xf32>
    %51 = arith.truncf %50 : vector<128x128xf32> to vector<128x128xbf16>
    %c0_31 = arith.constant 0 : index
    %c0_32 = arith.constant 0 : index
    %c0_33 = arith.constant 0 : index
    %52 = vector.load %arg13[%c0_31, %c0_32, %c0_33] : memref<1x128x128xbf16, #tpu.memory_space<vmem>>, vector<1x128x128xbf16>
    %53 = vector.shape_cast %52 : vector<1x128x128xbf16> to vector<128x128xbf16>
    %54 = vector.shape_cast %51 : vector<128x128xbf16> to vector<1x128x128xbf16>
    tpu.vector_store %arg13[%c0_31, %c0_32, %c0_33], %54 {strides = array<i32>} : memref<1x128x128xbf16, #tpu.memory_space<vmem>>, vector<1x128x128xbf16>,
    %c0_34 = arith.constant 0 : index
    %c0_35 = arith.constant 0 : index
    %55 = vector.load %arg10[%c0_34, %c0_35] : memref<128x50xbf16, #tpu.memory_space<vmem>>, vector<128x50xbf16>
    %c0_36 = arith.constant 0 : index
    %c0_37 = arith.constant 0 : index
    %56 = vector.load %arg11[%c0_36, %c0_37] : memref<1x50xf32, #tpu.memory_space<vmem>>, vector<1x50xf32>
    %c0_38 = arith.constant 0 : index
    %c0_39 = arith.constant 0 : index
    %57 = vector.load %arg12[%c0_38, %c0_39] : memref<1x50xf32, #tpu.memory_space<vmem>>, vector<1x50xf32>
    %c0_i32 = arith.constant 0 : i32
    %c8_i32 = arith.constant 8 : i32
    %58 = arith.addi %c0_i32, %c8_i32 : i32
    %c1_i32 = arith.constant 1 : i32
    scf.for %arg16 = %c0_i32 to %58 step %c1_i32  : i32 {
      %c16_i32 = arith.constant 16 : i32
      %59 = arith.muli %arg16, %c16_i32 : i32
      %60 = tpu.assume_multiple %59, 16 : i32
      %61 = arith.index_cast %60 : i32 to index
      %c0_41 = arith.constant 0 : index
      %62 = vector.load %arg15[%61, %c0_41] : memref<128x128xbf16, #tpu.memory_space<vmem>>, vector<16x128xbf16>
      %c0_42 = arith.constant 0 : index
      %63 = arith.index_cast %60 : i32 to index
      %c0_43 = arith.constant 0 : index
      %64 = vector.load %arg6[%c0_42, %63, %c0_43] : memref<1x128x1xbf16, #tpu.memory_space<vmem>>, vector<1x16x1xbf16>
      %65 = vector.shape_cast %64 : vector<1x16x1xbf16> to vector<16x1xbf16>
      %66 = arith.extf %65 : vector<16x1xbf16> to vector<16x1xf32>
      %cst_44 = arith.constant dense<0.000000e+00> : vector<16x50xf32>
      %67 = tpu.matmul %62, %55, %cst_44 {dimension_numbers = #tpu.dot_dimension_numbers<[1], [0], [0], [1], [0, 0, 1, 1], [], []>} : vector<16x128xbf16>, vector<128x50xbf16>, vector<16x50xf32> -> vector<16x50xf32>
      %68 = vector.broadcast %66 : vector<16x1xf32> to vector<16x50xf32>
      %69 = vector.broadcast %56 : vector<1x50xf32> to vector<16x50xf32>
      %70 = arith.mulf %68, %69 : vector<16x50xf32>
      %71 = arith.addf %67, %70 : vector<16x50xf32>
      %72 = vector.broadcast %57 : vector<1x50xf32> to vector<16x50xf32>
      %73 = arith.addf %71, %72 : vector<16x50xf32>
      %cst_45 = arith.constant 0.000000e+00 : f32
      %74 = vector.broadcast %cst_45 : f32 to vector<16x50xf32>
      %75 = arith.cmpf ogt, %73, %74 : vector<16x50xf32>
      %cst_46 = arith.constant 0.000000e+00 : f32
      %76 = vector.broadcast %cst_46 : f32 to vector<16x50xf32>
      %77 = arith.minimumf %73, %76 : vector<16x50xf32>
      %78 = math.exp %77 : vector<16x50xf32>
      %cst_47 = arith.constant 1.000000e+00 : f32
      %79 = vector.broadcast %cst_47 : f32 to vector<16x50xf32>
      %80 = arith.subf %78, %79 : vector<16x50xf32>
      %81 = arith.select %75, %73, %80 : vector<16x50xi1>, vector<16x50xf32>
      %cst_48 = arith.constant dense<0.000000e+00> : vector<50xf32>
      %82 = vector.multi_reduction <add>, %81, %cst_48 [0] : vector<16x50xf32> to vector<50xf32>
      %83 = vector.shape_cast %82 : vector<50xf32> to vector<1x50xf32>
      %cst_49 = arith.constant 6.250000e-02 : f32
      %84 = vector.broadcast %cst_49 : f32 to vector<1x50xf32>
      %85 = arith.mulf %83, %84 : vector<1x50xf32>
      %c0_50 = arith.constant 0 : index
      %86 = arith.index_cast %arg16 : i32 to index
      %c0_51 = arith.constant 0 : index
      %87 = vector.load %arg14[%c0_50, %86, %c0_51] : memref<1x8x50xf32, #tpu.memory_space<vmem>>, vector<1x1x50xf32>
      %88 = vector.shape_cast %87 : vector<1x1x50xf32> to vector<1x50xf32>
      %89 = vector.shape_cast %85 : vector<1x50xf32> to vector<1x1x50xf32>
      tpu.vector_store %arg14[%c0_50, %86, %c0_51], %89 {strides = array<i32>} : memref<1x8x50xf32, #tpu.memory_space<vmem>>, vector<1x1x50xf32>,
    }
    %c8_i32_40 = arith.constant 8 : i32
    return
  }
  func.func @transform_0(%arg0: i32, %arg1: i32) -> (i32, i32, i32) {
    %c0_i32 = arith.constant 0 : i32
    %c0_i32_0 = arith.constant 0 : i32
    return %arg0, %arg1, %c0_i32 : i32, i32, i32
  }
  func.func @transform_1(%arg0: i32, %arg1: i32) -> (i32, i32, i32) {
    %c0_i32 = arith.constant 0 : i32
    %c0_i32_0 = arith.constant 0 : i32
    %c0_i32_1 = arith.constant 0 : i32
    return %arg0, %c0_i32, %c0_i32_0 : i32, i32, i32
  }
  func.func @transform_2(%arg0: i32, %arg1: i32) -> (i32, i32) {
    %c0_i32 = arith.constant 0 : i32
    %c0_i32_0 = arith.constant 0 : i32
    %c0_i32_1 = arith.constant 0 : i32
    return %c0_i32, %c0_i32_0 : i32, i32
  }
  func.func @transform_3(%arg0: i32, %arg1: i32) -> (i32, i32) {
    %c0_i32 = arith.constant 0 : i32
    %c0_i32_0 = arith.constant 0 : i32
    %c0_i32_1 = arith.constant 0 : i32
    return %c0_i32, %c0_i32_0 : i32, i32
  }
  func.func @transform_4(%arg0: i32, %arg1: i32) -> (i32, i32, i32) {
    %c0_i32 = arith.constant 0 : i32
    %c0_i32_0 = arith.constant 0 : i32
    return %arg0, %arg1, %c0_i32 : i32, i32, i32
  }
  func.func @transform_5(%arg0: i32, %arg1: i32) -> (i32, i32) {
    %c0_i32 = arith.constant 0 : i32
    %c0_i32_0 = arith.constant 0 : i32
    %c0_i32_1 = arith.constant 0 : i32
    return %c0_i32, %c0_i32_0 : i32, i32
  }
  func.func @transform_6(%arg0: i32, %arg1: i32) -> (i32, i32) {
    %c0_i32 = arith.constant 0 : i32
    %c0_i32_0 = arith.constant 0 : i32
    %c0_i32_1 = arith.constant 0 : i32
    return %c0_i32, %c0_i32_0 : i32, i32
  }
  func.func @transform_7(%arg0: i32, %arg1: i32) -> (i32, i32) {
    %c0_i32 = arith.constant 0 : i32
    %c0_i32_0 = arith.constant 0 : i32
    %c0_i32_1 = arith.constant 0 : i32
    return %c0_i32, %c0_i32_0 : i32, i32
  }
  func.func @transform_8(%arg0: i32, %arg1: i32) -> (i32, i32) {
    %c0_i32 = arith.constant 0 : i32
    %c0_i32_0 = arith.constant 0 : i32
    %c0_i32_1 = arith.constant 0 : i32
    return %c0_i32, %c0_i32_0 : i32, i32
  }
  func.func @transform_9(%arg0: i32, %arg1: i32) -> (i32, i32) {
    %c0_i32 = arith.constant 0 : i32
    %c0_i32_0 = arith.constant 0 : i32
    %c0_i32_1 = arith.constant 0 : i32
    return %c0_i32, %c0_i32_0 : i32, i32
  }
  func.func @transform_10(%arg0: i32, %arg1: i32) -> (i32, i32) {
    %c0_i32 = arith.constant 0 : i32
    %c0_i32_0 = arith.constant 0 : i32
    %c0_i32_1 = arith.constant 0 : i32
    return %c0_i32, %c0_i32_0 : i32, i32
  }
  func.func @transform_11(%arg0: i32, %arg1: i32) -> (i32, i32, i32) {
    %c0_i32 = arith.constant 0 : i32
    %c0_i32_0 = arith.constant 0 : i32
    return %arg0, %arg1, %c0_i32 : i32, i32, i32
  }
  func.func @transform_12(%arg0: i32, %arg1: i32) -> (i32, i32, i32) {
    %c0_i32 = arith.constant 0 : i32
    %c0_i32_0 = arith.constant 0 : i32
    return %arg0, %arg1, %c0_i32 : i32, i32, i32
  }
}

</mosaic_0001>

<llo_original>
// kernel: block_v1_forward.8
$region0: #{block_v1_forward.8}
  #allocation0 [shape = 'u32[]', space=smem, size = 0x4, offset = 0x4, fixed_abs, tag = 'smem constant byte address 0x4 - core index']
  #allocation1 [shape = 'u32[72,128]{1,0:T(1,128)}', space=vmem, size = 0x9000, scoped, tag = 'internal scratch']
  %s0 = inlined_call_operand.vmem [shape: f32[2,3,16,16], index: 0, kind: input, shape index: {}]
  %s1 = inlined_call_operand.vmem [shape: f32[2,16,16], index: 1, kind: output, shape index: {}]
  %s2 = sld [smem:[#allocation0]]
  $region90: #{block_v1_forward.8} parent=0
    _
  %s4 = ssub.s32 1, %s2
  %s5 = scalar_select 0, %s4, %s2
  $region1: #{block_v1_forward.8} parent=0
    #allocation2 [shape = 'u8[24576]{0}', space=vmem, size = 0x6000, scoped, tag = 'input window, operand 0']
    loop: start=0, step=1, limit=6
    $region2: #{block_v1_forward.8} parent=1 // loop_pre_header
      _
    $region3: #{block_v1_forward.8} parent=1 // loop_header
      %s7 = sphi 0, %s11
      %p8 = scmp.ge.s32.totalorder %s7, 6
      %s14 = sphi 0, %s26
      %s15 = sphi 0, %s22
      %s16 = sphi 0, %s14
      %s17 = sphi 0, %s15
      %s18 = sphi 0, %s16
      %s19 = sphi 0, %s17
      %s31 = sphi 0, %s33
      %s34 = sphi 0, %s31
      %s35 = sphi 0, %s34
      %s51 = sphi 0, %s35
      %s57 = sphi 0, %s59
      %s60 = sphi 0, %s57
      %s61 = sphi 0, %s60
      %s77 = sphi 0, %s61
    $region4: #{block_v1_forward.8} parent=1 // loop_header_branch
      %10 = sbr.rel (%p8) target = $region8
    $region5: #{block_v1_forward.8} parent=1 // loop_body
      %s12 = ssub.s32 %s7, 1
      %s13 = ssub.s32 %s7, 2
      %s20 = sadd.s32 1, %s15
      %p21 = scmp.ge.s32.totalorder %s20, 2
      %s22 = scalar_select %p21, 0, %s20
      %s23 = sadd.s32 1, %s14
      %s24 = scalar_select %p21, %s23, %s14
      %p25 = scmp.ge.s32.totalorder %s24, 2
      %s26 = scalar_select %p25, 0, %s24
      %s27 = ssub.s32 %s14, %s26
      %s28 = ssub.s32 %s15, %s22
      %s29 = sor.u32 %s27, %s28
      %p30 = scmp.eq.s32.totalorder %s29, 0
      %s32 = sadd.s32 %s31, 1
      %s33 = scalar_select %p30, %s31, %s32
      %p36 = pneg %p30
      %p37 = scmp.eq.s32.totalorder %s7, 3
      %p38 = por %p36, %p37
      %p39 = scmp.ne.s32.totalorder %s31, %s34
      %p40 = scmp.eq.s32.totalorder %s7, 0
      %p41 = por %p39, %p40
      %p42 = scmp.ne.s32.totalorder %s31, %s34
      %p43 = scmp.eq.s32.totalorder %s12, 3
      %p44 = por %p42, %p43
      %p45 = scmp.ne.s32.totalorder %s34, %s35
      %p46 = scmp.eq.s32.totalorder %s12, 0
      %p47 = por %p45, %p46
      %p48 = scmp.ne.s32.totalorder %s34, %s35
      %p49 = scmp.eq.s32.totalorder %s13, 3
      %p50 = por %p48, %p49
      %p52 = scmp.ne.s32.totalorder %s35, %s51
      %p53 = scmp.eq.s32.totalorder %s13, 0
      %p54 = por %p52, %p53
      %s55 = ssub.s32 %s14, %s26
      %p56 = scmp.eq.s32.totalorder %s55, 0
      %s58 = sadd.s32 %s57, 1
      %s59 = scalar_select %p56, %s57, %s58
      %p62 = pneg %p56
      %p63 = scmp.eq.s32.totalorder %s7, 3
      %p64 = por %p62, %p63
      %p65 = scmp.ne.s32.totalorder %s57, %s60
      %p66 = scmp.eq.s32.totalorder %s7, 0
      %p67 = por %p65, %p66
      %p68 = scmp.ne.s32.totalorder %s57, %s60
      %p69 = scmp.eq.s32.totalorder %s12, 3
      %p70 = por %p68, %p69
      %p71 = scmp.ne.s32.totalorder %s60, %s61
      %p72 = scmp.eq.s32.totalorder %s12, 0
      %p73 = por %p71, %p72
      %p74 = scmp.ne.s32.totalorder %s60, %s61
      %p75 = scmp.eq.s32.totalorder %s13, 3
      %p76 = por %p74, %p75
      %p78 = scmp.ne.s32.totalorder %s61, %s77
      %p79 = scmp.eq.s32.totalorder %s13, 0
      %p80 = por %p78, %p79
      %p81 = scmp.le.s32.totalorder 1, %s7
      %p82 = scmp.lt.s32.totalorder %s7, 5
      %p83 = pnand %p81, %p82
      %p84 = pneg %p83
      // Predicated region
      $region9: #{block_v1_forward.8} parent=5 // pred_check
        _
      $region10: #{block_v1_forward.8} parent=5 // pred_check_branch
        %86 = sbr.rel (%p83) target = $region12
      $region11: #{block_v1_forward.8} parent=5 // pred_region
        %s87 = ssub.s32 %s7, 1
      $region12: #{block_v1_forward.8} parent=5 // pred_fallthru
        _
      %p88 = scmp.lt.s32.totalorder %s7, 4
      // Predicated region
      $region13: #{block_v1_forward.8} parent=5 // pred_check
        %p89 = pneg %p88
      $region14: #{block_v1_forward.8} parent=5 // pred_check_branch
        %91 = sbr.rel (%p89) target = $region16
      $region15: #{block_v1_forward.8} parent=5 // pred_region
        // Predicated region
        $region17: #{block_v1_forward.8} parent=15 // pred_check
          %p92 = pneg %p41
        $region18: #{block_v1_forward.8} parent=15 // pred_check_branch
          %94 = sbr.rel (%p92) target = $region20
        $region19: #{block_v1_forward.8} parent=15 // pred_region
          %s95 = sand.u32 %s31, 1
          %s96 = sand.u32 %s31, 1
          %s97 = smul.addr %s96, 24
          %s98 = scalar_lea.vmem [#allocation2], %s97
          %s99 = smul.addr %s14, 6
          %s100 = sadd.s32 %s15, %s99
          %s101 = smul.addr %s100, 8
          %s102 = scalar_lea.vmem %s0, %s101
          // Predicated region
          $region21: #{block_v1_forward.8} parent=19 // pred_check
            _
          $region22: #{block_v1_forward.8} parent=19 // pred_check_branch
            %104 = sbr.rel (0) target = $region24
          $region23: #{block_v1_forward.8} parent=19 // pred_region
            // Predicated region
            $region25: #{block_v1_forward.8} parent=23 // pred_check
              _
            $region26: #{block_v1_forward.8} parent=23 // pred_check_branch
              %106 = sbr.rel (0) target = $region28
            $region27: #{block_v1_forward.8} parent=23 // pred_region
              // Predicated region
              $region40: #{block_v1_forward.8} parent=27 // pred_check
                _
              $region41: #{block_v1_forward.8} parent=27 // pred_check_branch
                %126 = sbr.rel (0) target = $region43
              $region42: #{block_v1_forward.8} parent=27 // pred_region
                loop: start=0, step=1, limit=1
                $region44: #{block_v1_forward.8} parent=42 // loop_pre_header
                  _
                $region45: #{block_v1_forward.8} parent=42 // loop_header
                  %s128 = sphi 0, %s132
                  %p129 = scmp.ge.s32.totalorder %s128, 1
                  %s133 = sphi %s102, %s102
                  %s134 = sphi %s98, %s98
                $region46: #{block_v1_forward.8} parent=42 // loop_header_branch
                  %131 = sbr.rel (%p129) target = $region50
                $region47: #{block_v1_forward.8} parent=42 // loop_body
                  %v135 = vld [vmem:[%s133] sm:$0xff]
                  %136 = vst [vmem:[%s134] sm:$0xff] %v135
                  %v137 = vld [vmem:[%s133 + $0x10] sm:$0xff]
                  %138 = vst [vmem:[%s134 + $0x8] sm:$0xff] %v137
                  %v139 = vld [vmem:[%s133 + $0x20] sm:$0xff]
                  %140 = vst [vmem:[%s134 + $0x10] sm:$0xff] %v139
                $region48: #{block_v1_forward.8} parent=42 // loop_footer
                  %s132 = sadd.s32 1, %s128
                $region49: #{block_v1_forward.8} parent=42 // loop_footer_branch
                  %127 = sbr.rel target = $region45
                $region50: #{block_v1_forward.8} parent=42 // loop_exit
                  _
              $region43: #{block_v1_forward.8} parent=27 // pred_fallthru
                _
              // Predicated region
              $region51: #{block_v1_forward.8} parent=27 // pred_check
                _
              $region52: #{block_v1_forward.8} parent=27 // pred_check_branch
                %142 = sbr.rel target = $region54
              $region53: #{block_v1_forward.8} parent=27 // pred_region
                _
              $region54: #{block_v1_forward.8} parent=27 // pred_fallthru
                _
            $region28: #{block_v1_forward.8} parent=23 // pred_fallthru
              _
            // Predicated region
            $region29: #{block_v1_forward.8} parent=23 // pred_check
              _
            $region30: #{block_v1_forward.8} parent=23 // pred_check_branch
              %108 = sbr.rel target = $region32
            $region31: #{block_v1_forward.8} parent=23 // pred_region
              %s110 = ssub.s32 256, 1
              loop: start=0, step=1, limit=1
              $region33: #{block_v1_forward.8} parent=31 // loop_pre_header
                _
              $region34: #{block_v1_forward.8} parent=31 // loop_header
                %s112 = sphi 0, %s116
                %p113 = scmp.ge.s32.totalorder %s112, 1
                %s117 = sphi %s102, %s102
                %s118 = sphi %s98, %s98
              $region35: #{block_v1_forward.8} parent=31 // loop_header_branch
                %115 = sbr.rel (%p113) target = $region39
              $region36: #{block_v1_forward.8} parent=31 // loop_body
                %v119 = vld [vmem:[%s117] sm:%s110]
                %120 = vst [vmem:[%s118] sm:%s110] %v119
                %v121 = vld [vmem:[%s117 + $0x10] sm:%s110]
                %122 = vst [vmem:[%s118 + $0x8] sm:%s110] %v121
                %v123 = vld [vmem:[%s117 + $0x20] sm:%s110]
                %124 = vst [vmem:[%s118 + $0x10] sm:%s110] %v123
              $region37: #{block_v1_forward.8} parent=31 // loop_footer
                %s116 = sadd.s32 1, %s112
              $region38: #{block_v1_forward.8} parent=31 // loop_footer_branch
                %111 = sbr.rel target = $region34
              $region39: #{block_v1_forward.8} parent=31 // loop_exit
                _
            $region32: #{block_v1_forward.8} parent=23 // pred_fallthru
              _
          $region24: #{block_v1_forward.8} parent=19 // pred_fallthru
            _
          %143 = vnop
        $region20: #{block_v1_forward.8} parent=15 // pred_fallthru
          _
      $region16: #{block_v1_forward.8} parent=5 // pred_fallthru
        _
      %p144 = scmp.le.s32.totalorder 1, %s7
      %p145 = scmp.lt.s32.totalorder %s7, 5
      %p146 = pnand %p144, %p145
      %p147 = pneg %p146
      // Predicated region
      $region55: #{block_v1_forward.8} parent=5 // pred_check
        _
      $region56: #{block_v1_forward.8} parent=5 // pred_check_branch
        %149 = sbr.rel (%p146) target = $region58
      $region57: #{block_v1_forward.8} parent=5 // pred_region
        %s150 = ssub.s32 %s7, 1
        %s151 = sand.u32 %s34, 1
        %s152 = sand.u32 %s34, 1
        %s153 = smul.addr %s152, 24
        %s154 = scalar_lea.vmem [#allocation2], %s153
        // Predicated region
        $region59: #{block_v1_forward.8} parent=57 // pred_check
          %p155 = pneg %p47
        $region60: #{block_v1_forward.8} parent=57 // pred_check_branch
          %157 = sbr.rel (%p155) target = $region62
        $region61: #{block_v1_forward.8} parent=57 // pred_region
          _
        $region62: #{block_v1_forward.8} parent=57 // pred_fallthru
          _
        %s158 = sand.u32 %s34, 1
        %s159 = sand.u32 %s34, 1
        %s160 = smul.addr %s159, 24
        %s161 = scalar_lea.vmem [#allocation2], %s160
        %p162 = pneg %p47
        %p163 = pneg %p44
        %p164 = pneg %p73
        %p165 = pneg %p70
        %p166 = scmp.lt.s32.totalorder %s16, 1
        %s167 = scalar_select %p166, %s16, 1
        %s168 = smul.addr %s167, 2
        %s169 = smul.addr %s168, 8
        %s170 = scalar_lea.vmem %s1, %s169
        %p171 = scmp.lt.s32.totalorder %s16, 1
        %s172 = scalar_select %p171, %s16, 1
        %s173 = smul.addr %s172, 2
        %s174 = smul.addr %s173, 8
        %s175 = scalar_lea.vmem %s1, %s174
        %p177 = scmp.eq.s32.totalorder %s17, 0
        // Predicated region
        $region63: #{block_v1_forward.8} parent=57 // pred_check
          %p178 = pneg %p177
        $region64: #{block_v1_forward.8} parent=57 // pred_check_branch
          %180 = sbr.rel (%p178) target = $region66
        $region65: #{block_v1_forward.8} parent=57 // pred_region
          %vm181 = vcmask 130048
          %182 = vst.msk [vmem:[%s175] sm:$0xff] %vm181, 0.0
          %183 = vst.msk [vmem:[%s175 + $0x8] sm:$0xff] %vm181, 0.0
        $region66: #{block_v1_forward.8} parent=57 // pred_fallthru
          _
        %v184 = vlaneseq
        %v185 = vshrl.u32 %v184, 7
        %v186 = vadd.s32 %v185, 8
        %v187 = vlaneseq
        %v188 = vand.u32 %v187, 127
        %vm189 = vcmp.eq.s32.totalorder %v185, %v188
        %vm190 = vcmp.eq.s32.totalorder %v186, %v188
        %v191 = vsel %vm189, 1, 0
        %v192 = vsel %vm190, 1, 0
        %v193 = vcvt.s32.f32 %v191
        %v194 = vcvt.s32.f32 %v192
        loop: start=0, step=1, limit=8
        $region67: #{block_v1_forward.8} parent=57 // loop_pre_header
          _
        $region68: #{block_v1_forward.8} parent=57 // loop_header
          %s196 = sphi 0, %s200
          %p197 = scmp.ge.s32.totalorder %s196, 8
        $region69: #{block_v1_forward.8} parent=57 // loop_header_branch
          %199 = sbr.rel (%p197) target = $region73
        $region70: #{block_v1_forward.8} parent=57 // loop_body
          %s201 = scalar_lea.vmem %s154, %s196 [#allocation2]
          %v202 = vld [vmem:[%s201] sm:$0x1]
          %v203 = vld [vmem:[%s201 + $0x8] sm:$0x1]
          %v204 = vld [vmem:[%s201 + $0x10] sm:$0x1]
          %v205 = vpack.c.bf16 %v202, %v202
          %v206 = vpack.c.bf16 %v203, %v203
          %v207 = vpack.c.bf16 %v204, %v204
          %v211 = vunpack.c.l.b16 %v205
          %v212 = vunpack.c.l.b16 %v206
          %v213 = vunpack.c.l.b16 %v207
          %v214 = vrot.slane %v212, 7
          %vm215 = vcmask 1041409
          %v216 = vsel %vm215, %v214, %v211
          %v217 = vrot.slane %v213, 6
          %vm218 = vcmask 1042434
          %v219 = vsel %vm218, %v217, %v216
          %v220 = vpack.c.b16 %v219, %v219
          %222 = vxpose.xlu0.c.b16.start [1/8] %v220, 128
          %223 = vxpose.xlu0.c.b16.cont [2/8] 0, 128
          %224 = vxpose.xlu0.c.b16.cont [3/8] 0, 128
          %225 = vxpose.xlu0.c.b16.cont [4/8] 0, 128
          %226 = vxpose.xlu0.c.b16.cont [5/8] 0, 128
          %227 = vxpose.xlu0.c.b16.cont [6/8] 0, 128
          %228 = vxpose.xlu0.c.b16.cont [7/8] 0, 128
          %229 = vxpose.xlu0.c.b16.end [8/8] 0, 128
          %v230 = vpop.trf.xlu0
          %v231 = vpop.trf.xlu0
          %v232 = vpop.trf.xlu0
          %v233 = vpop.trf.xlu0
          %v234 = vpop.trf.xlu0
          %v235 = vpop.trf.xlu0
          %v236 = vpop.trf.xlu0
          %v237 = vpop.trf.xlu0
          %vm238 = vcmask 23552
          %v240 = vsel %vm238, %v230, 0
          %vm242 = vcmask 1040384
          %vm243 = vcmask 1041408
          %v244 = vsel %vm242, 4294967295, 65535
          %v245 = vsel %vm243, %v244, 0
          %v247 = vand.u32 %v220, %v245
          %249 = vmatpush.bf16.msra.mxu0 0
          %250 = vmatpush.bf16.msra.mxu0 0
          %251 = vmatpush.bf16.msra.mxu0 0
          %252 = vmatpush.bf16.msra.mxu0 0
          %253 = vmatpush.bf16.msra.mxu0 0
          %254 = vmatpush.bf16.msra.mxu0 0
          %255 = vmatpush.bf16.msra.mxu0 0
          %256 = vmatpush.bf16.msra.mxu0 %v247
          %257 = vmatmul.bf16.gmra.mxu0 %v240
          %v258 = vpop.f32.mrf.mxu0
          %v259 = vadd.f32 0.0, %v258
          %v260 = vpop.f32.mrf.mxu0
          %v261 = vadd.f32 0.0, %v260
          %262 = vdwg.mxu0
          %v263 = vmul.f32 %v259, %v193
          %v264 = vmul.f32 %v261, %v194
          %vm265 = vcmask 130048
          %v266 = vsel %vm265, %v263, 0.0
          %267 = vadd.xlane.f32.xlu0 %v266
          %v268 = vpop.xlane.xlu0 %267
          %v269 = vsel %vm265, %v264, 0.0
          %270 = vadd.xlane.f32.xlu0 %v269
          %v271 = vpop.xlane.xlu0 %270
          %v272 = vadd.f32 %v266, %v269
          %v273 = vrot.slane %v272, 4
          %v274 = vadd.f32 %v272, %v273
          %v275 = vrot.slane %v274, 2
          %v276 = vadd.f32 %v274, %v275
          %v277 = vrot.slane %v276, 1
          %v278 = vadd.f32 %v276, %v277
          %v279 = vadd.f32 %v268, %v278
          %v280 = vadd.f32 %v271, %v278
          %v281 = vmul.f32 %v259, 2.0
          %v282 = vmul.f32 %v261, 2.0
          %v283 = vsub.f32 %v279, %v281
          %v284 = vsub.f32 %v280, %v282
          %v285 = vmax.f32 %v283, 0.0
          %v286 = vmax.f32 %v284, 0.0
          %v287 = vld [vmem:[%s175] sm:$0xff]
          %v288 = vld [vmem:[%s175 + $0x8] sm:$0xff]
          %v289 = vadd.f32 %v285, 1e-08
          %v290 = vadd.f32 %v286, 1e-08
          %v291 = vrsqrt.pop %v289
          %v292 = vmul.f32 %v291, %v289
          %v293 = vmul.f32 %v292, %v291
          %v294 = vmul.f32 0.5, %v293
          %v295 = vsub.f32 1.5, %v294
          %v296 = vmul.f32 %v291, %v295
          %v297 = vmul.f32 %v289, %v296
          %vm298 = vcmp.eq.f32.partialorder %v289, inf
          %v299 = vsel %vm298, %v289, %v297
          %vm300 = vcmp.eq.f32.partialorder %v289, 0.0
          %v301 = vand.u32 %v289, 2147483648
          %v302 = vsel %vm300, %v301, %v299
          %v303 = vrsqrt.pop %v290
          %v304 = vmul.f32 %v303, %v290
          %v305 = vmul.f32 %v304, %v303
          %v306 = vmul.f32 0.5, %v305
          %v307 = vsub.f32 1.5, %v306
          %v308 = vmul.f32 %v303, %v307
          %v309 = vmul.f32 %v290, %v308
          %vm310 = vcmp.eq.f32.partialorder %v290, inf
          %v311 = vsel %vm310, %v290, %v309
          %vm312 = vcmp.eq.f32.partialorder %v290, 0.0
          %v313 = vand.u32 %v290, 2147483648
          %v314 = vsel %vm312, %v313, %v311
          %v315 = vadd.f32 %v287, %v302
          %v316 = vadd.f32 %v288, %v314
          %317 = vst.msk [vmem:[%s175] sm:$0xff] %vm265, %v315
          %318 = vst.msk [vmem:[%s175 + $0x8] sm:$0xff] %vm265, %v316
        $region71: #{block_v1_forward.8} parent=57 // loop_footer
          %s200 = sadd.s32 1, %s196
        $region72: #{block_v1_forward.8} parent=57 // loop_footer_branch
          %195 = sbr.rel target = $region68
        $region73: #{block_v1_forward.8} parent=57 // loop_exit
          _
        %p319 = scmp.eq.s32.totalorder %s17, 1
        // Predicated region
        $region74: #{block_v1_forward.8} parent=57 // pred_check
          %p320 = pneg %p319
        $region75: #{block_v1_forward.8} parent=57 // pred_check_branch
          %322 = sbr.rel (%p320) target = $region77
        $region76: #{block_v1_forward.8} parent=57 // pred_region
          %v323 = vld [vmem:[%s175] sm:$0xff]
          %v324 = vld [vmem:[%s175 + $0x8] sm:$0xff]
          %v325 = vmul.f32 %v323, 0.0625
          %v326 = vmul.f32 %v324, 0.0625
          %vm327 = vcmask 130048
          %328 = vst.msk [vmem:[%s175] sm:$0xff] %vm327, %v325
          %329 = vst.msk [vmem:[%s175 + $0x8] sm:$0xff] %vm327, %v326
        $region77: #{block_v1_forward.8} parent=57 // pred_fallthru
          _
        %p330 = scmp.lt.s32.totalorder %s16, 1
        %s331 = scalar_select %p330, %s16, 1
        %s332 = smul.addr %s331, 2
        %s333 = smul.addr %s332, 8
        %s334 = scalar_lea.vmem %s1, %s333
        // Predicated region
        $region78: #{block_v1_forward.8} parent=57 // pred_check
          %p335 = pneg %p70
        $region79: #{block_v1_forward.8} parent=57 // pred_check_branch
          %337 = sbr.rel (%p335) target = $region81
        $region80: #{block_v1_forward.8} parent=57 // pred_region
          _
        $region81: #{block_v1_forward.8} parent=57 // pred_fallthru
          _
      $region58: #{block_v1_forward.8} parent=5 // pred_fallthru
        _
      %p338 = scmp.le.s32.totalorder 2, %s7
      // Predicated region
      $region82: #{block_v1_forward.8} parent=5 // pred_check
        %p339 = pneg %p338
      $region83: #{block_v1_forward.8} parent=5 // pred_check_branch
        %341 = sbr.rel (%p339) target = $region85
      $region84: #{block_v1_forward.8} parent=5 // pred_region
        %s342 = ssub.s32 %s7, 2
        // Predicated region
        $region86: #{block_v1_forward.8} parent=84 // pred_check
          %p343 = pneg %p76
        $region87: #{block_v1_forward.8} parent=84 // pred_check_branch
          %345 = sbr.rel (%p343) target = $region89
        $region88: #{block_v1_forward.8} parent=84 // pred_region
          %p346 = scmp.lt.s32.totalorder %s18, 1
          %s347 = scalar_select %p346, %s18, 1
          %s348 = smul.addr %s347, 2
          %s349 = smul.addr %s348, 8
          %s350 = scalar_lea.vmem %s1, %s349
        $region89: #{block_v1_forward.8} parent=84 // pred_fallthru
          _
      $region85: #{block_v1_forward.8} parent=5 // pred_fallthru
        _
    $region6: #{block_v1_forward.8} parent=1 // loop_footer
      %s11 = sadd.s32 1, %s7
    $region7: #{block_v1_forward.8} parent=1 // loop_footer_branch
      %6 = sbr.rel target = $region3
    $region8: #{block_v1_forward.8} parent=1 // loop_exit
      _

// kernel: block_v1_forward.6
$region0: #{block_v1_forward.6}
  #allocation0 [shape = 'u32[]', space=smem, size = 0x4, offset = 0x4, fixed_abs, tag = 'smem constant byte address 0x4 - core index']
  #allocation1 [shape = 'u32[72,128]{1,0:T(1,128)}', space=vmem, size = 0x9000, scoped, tag = 'internal scratch']
  %s0 = inlined_call_operand.vmem [shape: s32[2,256,1], index: 0, kind: input, shape index: {}]
  %s1 = inlined_call_operand.hbm [shape: f32[2,256,128], index: 1, kind: input, shape index: {}]
  %s2 = inlined_call_operand.vmem [shape: bf16[128,128], index: 2, kind: input, shape index: {}]
  %s3 = inlined_call_operand.vmem [shape: bf16[128,128], index: 3, kind: input, shape index: {}]
  %s4 = inlined_call_operand.vmem [shape: f32[1,128], index: 4, kind: input, shape index: {}]
  %s5 = inlined_call_operand.vmem [shape: bf16[2,256,128], index: 5, kind: output, shape index: {0}]
  %s6 = inlined_call_operand.vmem [shape: f32[2,2,128], index: 6, kind: output, shape index: {1}]
  %7 = xla_tuple %s5, %s6
  %s8 = sld [smem:[#allocation0]]
  $region69: #{block_v1_forward.6} parent=0
    _
  %s10 = ssub.s32 1, %s8
  %s11 = scalar_select 0, %s10, %s8
  $region1: #{block_v1_forward.6} parent=0
    #allocation2 [shape = 'u8[131072]{0}', space=vmem, size = 0x20000, scoped, tag = 'input window, operand 1']
    #allocation3 [shape = 's32[2]{0}', space=sflag, size = 0x8, scoped, tag = 'scoped memory for block_v1_forward.6']
    %12 = vsyncpa [#allocation3], 0
    %s13 = scalar_lea.sflag [#allocation3], 1
    %14 = vsyncpa %s13, 0
    loop: start=0, step=1, limit=6
    $region2: #{block_v1_forward.6} parent=1 // loop_pre_header
      _
    $region3: #{block_v1_forward.6} parent=1 // loop_header
      %s16 = sphi 0, %s20
      %p17 = scmp.ge.s32.totalorder %s16, 6
      %s23 = sphi 0, %s35
      %s24 = sphi 0, %s31
      %s25 = sphi 0, %s23
      %s26 = sphi 0, %s24
      %s27 = sphi 0, %s25
      %s28 = sphi 0, %s26
      %s40 = sphi 0, %s42
      %s43 = sphi 0, %s40
      %s44 = sphi 0, %s43
      %s60 = sphi 0, %s44
      %s68 = sphi 0, %s70
      %s71 = sphi 0, %s68
      %s72 = sphi 0, %s71
      %s88 = sphi 0, %s72
      %s92 = sphi 0, %s92
      %s94 = sphi 0, %s92
      %s95 = sphi 0, %s94
      %s109 = sphi 0, %s95
      %s113 = sphi 0, %s113
      %s115 = sphi 0, %s113
      %s116 = sphi 0, %s115
      %s130 = sphi 0, %s116
      %s134 = sphi 0, %s134
      %s136 = sphi 0, %s134
      %s137 = sphi 0, %s136
      %s151 = sphi 0, %s137
      %s159 = sphi 0, %s161
      %s162 = sphi 0, %s159
      %s163 = sphi 0, %s162
      %s179 = sphi 0, %s163
      %s185 = sphi 0, %s187
      %s188 = sphi 0, %s185
      %s189 = sphi 0, %s188
      %s205 = sphi 0, %s189
    $region4: #{block_v1_forward.6} parent=1 // loop_header_branch
      %19 = sbr.rel (%p17) target = $region8
    $region5: #{block_v1_forward.6} parent=1 // loop_body
      %s21 = ssub.s32 %s16, 1
      %s22 = ssub.s32 %s16, 2
      %s29 = sadd.s32 1, %s24
      %p30 = scmp.ge.s32.totalorder %s29, 2
      %s31 = scalar_select %p30, 0, %s29
      %s32 = sadd.s32 1, %s23
      %s33 = scalar_select %p30, %s32, %s23
      %p34 = scmp.ge.s32.totalorder %s33, 2
      %s35 = scalar_select %p34, 0, %s33
      %s36 = ssub.s32 %s23, %s35
      %s37 = ssub.s32 %s24, %s31
      %s38 = sor.u32 %s36, %s37
      %p39 = scmp.eq.s32.totalorder %s38, 0
      %s41 = sadd.s32 %s40, 1
      %s42 = scalar_select %p39, %s40, %s41
      %p45 = pneg %p39
      %p46 = scmp.eq.s32.totalorder %s16, 3
      %p47 = por %p45, %p46
      %p48 = scmp.ne.s32.totalorder %s40, %s43
      %p49 = scmp.eq.s32.totalorder %s16, 0
      %p50 = por %p48, %p49
      %p51 = scmp.ne.s32.totalorder %s40, %s43
      %p52 = scmp.eq.s32.totalorder %s21, 3
      %p53 = por %p51, %p52
      %p54 = scmp.ne.s32.totalorder %s43, %s44
      %p55 = scmp.eq.s32.totalorder %s21, 0
      %p56 = por %p54, %p55
      %p57 = scmp.ne.s32.totalorder %s43, %s44
      %p58 = scmp.eq.s32.totalorder %s22, 3
      %p59 = por %p57, %p58
      %p61 = scmp.ne.s32.totalorder %s44, %s60
      %p62 = scmp.eq.s32.totalorder %s22, 0
      %p63 = por %p61, %p62
      %s64 = ssub.s32 %s23, %s35
      %s65 = ssub.s32 %s24, %s31
      %s66 = sor.u32 %s64, %s65
      %p67 = scmp.eq.s32.totalorder %s66, 0
      %s69 = sadd.s32 %s68, 1
      %s70 = scalar_select %p67, %s68, %s69
      %p73 = pneg %p67
      %p74 = scmp.eq.s32.totalorder %s16, 3
      %p75 = por %p73, %p74
      %p76 = scmp.ne.s32.totalorder %s68, %s71
      %p77 = scmp.eq.s32.totalorder %s16, 0
      %p78 = por %p76, %p77
      %p79 = scmp.ne.s32.totalorder %s68, %s71
      %p80 = scmp.eq.s32.totalorder %s21, 3
      %p81 = por %p79, %p80
      %p82 = scmp.ne.s32.totalorder %s71, %s72
      %p83 = scmp.eq.s32.totalorder %s21, 0
      %p84 = por %p82, %p83
      %p85 = scmp.ne.s32.totalorder %s71, %s72
      %p86 = scmp.eq.s32.totalorder %s22, 3
      %p87 = por %p85, %p86
      %p89 = scmp.ne.s32.totalorder %s72, %s88
      %p90 = scmp.eq.s32.totalorder %s22, 0
      %p91 = por %p89, %p90
      %s93 = sadd.s32 %s92, 1
      %p96 = scmp.eq.s32.totalorder %s16, 3
      %p97 = scmp.ne.s32.totalorder %s92, %s94
      %p98 = scmp.eq.s32.totalorder %s16, 0
      %p99 = por %p97, %p98
      %p100 = scmp.ne.s32.totalorder %s92, %s94
      %p101 = scmp.eq.s32.totalorder %s21, 3
      %p102 = por %p100, %p101
      %p103 = scmp.ne.s32.totalorder %s94, %s95
      %p104 = scmp.eq.s32.totalorder %s21, 0
      %p105 = por %p103, %p104
      %p106 = scmp.ne.s32.totalorder %s94, %s95
      %p107 = scmp.eq.s32.totalorder %s22, 3
      %p108 = por %p106, %p107
      %p110 = scmp.ne.s32.totalorder %s95, %s109
      %p111 = scmp.eq.s32.totalorder %s22, 0
      %p112 = por %p110, %p111
      %s114 = sadd.s32 %s113, 1
      %p117 = scmp.eq.s32.totalorder %s16, 3
      %p118 = scmp.ne.s32.totalorder %s113, %s115
      %p119 = scmp.eq.s32.totalorder %s16, 0
      %p120 = por %p118, %p119
      %p121 = scmp.ne.s32.totalorder %s113, %s115
      %p122 = scmp.eq.s32.totalorder %s21, 3
      %p123 = por %p121, %p122
      %p124 = scmp.ne.s32.totalorder %s115, %s116
      %p125 = scmp.eq.s32.totalorder %s21, 0
      %p126 = por %p124, %p125
      %p127 = scmp.ne.s32.totalorder %s115, %s116
      %p128 = scmp.eq.s32.totalorder %s22, 3
      %p129 = por %p127, %p128
      %p131 = scmp.ne.s32.totalorder %s116, %s130
      %p132 = scmp.eq.s32.totalorder %s22, 0
      %p133 = por %p131, %p132
      %s135 = sadd.s32 %s134, 1
      %p138 = scmp.eq.s32.totalorder %s16, 3
      %p139 = scmp.ne.s32.totalorder %s134, %s136
      %p140 = scmp.eq.s32.totalorder %s16, 0
      %p141 = por %p139, %p140
      %p142 = scmp.ne.s32.totalorder %s134, %s136
      %p143 = scmp.eq.s32.totalorder %s21, 3
      %p144 = por %p142, %p143
      %p145 = scmp.ne.s32.totalorder %s136, %s137
      %p146 = scmp.eq.s32.totalorder %s21, 0
      %p147 = por %p145, %p146
      %p148 = scmp.ne.s32.totalorder %s136, %s137
      %p149 = scmp.eq.s32.totalorder %s22, 3
      %p150 = por %p148, %p149
      %p152 = scmp.ne.s32.totalorder %s137, %s151
      %p153 = scmp.eq.s32.totalorder %s22, 0
      %p154 = por %p152, %p153
      %s155 = ssub.s32 %s23, %s35
      %s156 = ssub.s32 %s24, %s31
      %s157 = sor.u32 %s155, %s156
      %p158 = scmp.eq.s32.totalorder %s157, 0
      %s160 = sadd.s32 %s159, 1
      %s161 = scalar_select %p158, %s159, %s160
      %p164 = pneg %p158
      %p165 = scmp.eq.s32.totalorder %s16, 3
      %p166 = por %p164, %p165
      %p167 = scmp.ne.s32.totalorder %s159, %s162
      %p168 = scmp.eq.s32.totalorder %s16, 0
      %p169 = por %p167, %p168
      %p170 = scmp.ne.s32.totalorder %s159, %s162
      %p171 = scmp.eq.s32.totalorder %s21, 3
      %p172 = por %p170, %p171
      %p173 = scmp.ne.s32.totalorder %s162, %s163
      %p174 = scmp.eq.s32.totalorder %s21, 0
      %p175 = por %p173, %p174
      %p176 = scmp.ne.s32.totalorder %s162, %s163
      %p177 = scmp.eq.s32.totalorder %s22, 3
      %p178 = por %p176, %p177
      %p180 = scmp.ne.s32.totalorder %s163, %s179
      %p181 = scmp.eq.s32.totalorder %s22, 0
      %p182 = por %p180, %p181
      %s183 = ssub.s32 %s23, %s35
      %p184 = scmp.eq.s32.totalorder %s183, 0
      %s186 = sadd.s32 %s185, 1
      %s187 = scalar_select %p184, %s185, %s186
      %p190 = pneg %p184
      %p191 = scmp.eq.s32.totalorder %s16, 3
      %p192 = por %p190, %p191
      %p193 = scmp.ne.s32.totalorder %s185, %s188
      %p194 = scmp.eq.s32.totalorder %s16, 0
      %p195 = por %p193, %p194
      %p196 = scmp.ne.s32.totalorder %s185, %s188
      %p197 = scmp.eq.s32.totalorder %s21, 3
      %p198 = por %p196, %p197
      %p199 = scmp.ne.s32.totalorder %s188, %s189
      %p200 = scmp.eq.s32.totalorder %s21, 0
      %p201 = por %p199, %p200
      %p202 = scmp.ne.s32.totalorder %s188, %s189
      %p203 = scmp.eq.s32.totalorder %s22, 3
      %p204 = por %p202, %p203
      %p206 = scmp.ne.s32.totalorder %s189, %s205
      %p207 = scmp.eq.s32.totalorder %s22, 0
      %p208 = por %p206, %p207
      %p209 = scmp.le.s32.totalorder 1, %s16
      %p210 = scmp.lt.s32.totalorder %s16, 5
      %p211 = pnand %p209, %p210
      %p212 = pneg %p211
      // Predicated region
      $region9: #{block_v1_forward.6} parent=5 // pred_check
        _
      $region10: #{block_v1_forward.6} parent=5 // pred_check_branch
        %214 = sbr.rel (%p211) target = $region12
      $region11: #{block_v1_forward.6} parent=5 // pred_region
        %s215 = ssub.s32 %s16, 1
        // Predicated region
        $region13: #{block_v1_forward.6} parent=11 // pred_check
          %p216 = pneg %p105
        $region14: #{block_v1_forward.6} parent=11 // pred_check_branch
          %218 = sbr.rel (%p216) target = $region16
        $region15: #{block_v1_forward.6} parent=11 // pred_region
          _
        $region16: #{block_v1_forward.6} parent=11 // pred_fallthru
          _
        // Predicated region
        $region17: #{block_v1_forward.6} parent=11 // pred_check
          %p219 = pneg %p126
        $region18: #{block_v1_forward.6} parent=11 // pred_check_branch
          %221 = sbr.rel (%p219) target = $region20
        $region19: #{block_v1_forward.6} parent=11 // pred_region
          _
        $region20: #{block_v1_forward.6} parent=11 // pred_fallthru
          _
        // Predicated region
        $region21: #{block_v1_forward.6} parent=11 // pred_check
          %p222 = pneg %p147
        $region22: #{block_v1_forward.6} parent=11 // pred_check_branch
          %224 = sbr.rel (%p222) target = $region24
        $region23: #{block_v1_forward.6} parent=11 // pred_region
          _
        $region24: #{block_v1_forward.6} parent=11 // pred_fallthru
          _
      $region12: #{block_v1_forward.6} parent=5 // pred_fallthru
        _
      %p225 = scmp.lt.s32.totalorder %s16, 4
      // Predicated region
      $region25: #{block_v1_forward.6} parent=5 // pred_check
        %p226 = pneg %p225
      $region26: #{block_v1_forward.6} parent=5 // pred_check_branch
        %228 = sbr.rel (%p226) target = $region28
      $region27: #{block_v1_forward.6} parent=5 // pred_region
        // Predicated region
        $region29: #{block_v1_forward.6} parent=27 // pred_check
          %p229 = pneg %p50
        $region30: #{block_v1_forward.6} parent=27 // pred_check_branch
          %231 = sbr.rel (%p229) target = $region32
        $region31: #{block_v1_forward.6} parent=27 // pred_region
          %s232 = smul.u32 16, %s24
          %p233 = scmp.lt.s32.totalorder %s23, 1
          %s234 = scalar_select %p233, %s23, 1
          %p235 = scmp.lt.s32.totalorder %s232, 31
          %s236 = scalar_select %p235, %s232, 31
          %s237 = smul.addr %s234, 32
          %s238 = sadd.s32 %s236, %s237
          %s239 = smul.addr %s238, 8
          %s240 = scalar_lea.vmem %s0, %s239
          %s241 = smul.u32 16, %s24
        $region32: #{block_v1_forward.6} parent=27 // pred_fallthru
          _
        // Predicated region
        $region33: #{block_v1_forward.6} parent=27 // pred_check
          %p242 = pneg %p78
        $region34: #{block_v1_forward.6} parent=27 // pred_check_branch
          %244 = sbr.rel (%p242) target = $region36
        $region35: #{block_v1_forward.6} parent=27 // pred_region
          %s245 = sand.u32 %s68, 1
          %s246 = scalar_lea.sflag [#allocation3], %s245
          %s247 = sand.u32 %s68, 1
          %s248 = smul.addr %s247, 128
          %s249 = scalar_lea.vmem [#allocation2], %s248
          %s250 = smul.u32 16, %s24
          %252 = vsyncadd %s246, 0
          %s253 = smul.addr %s23, 32
          %s254 = sadd.s32 %s250, %s253
          %s255 = smul.addr %s254, 8
          %s256 = scalar_lea.hbm %s1, %s255
          %s257 = sshll.u32 %s256, 4
          %s258 = int_to_ptr.hbm [resolvable:$true] %s257
          %s259 = sshll.u32 %s249, 4
          %s260 = int_to_ptr.vmem [resolvable:$true] %s259
          %265 = dma.hbm_to_vmem [thread:$0]  %s258, 2048, %s260, %s246, 128, 128, 8
        $region36: #{block_v1_forward.6} parent=27 // pred_fallthru
          _
      $region28: #{block_v1_forward.6} parent=5 // pred_fallthru
        _
      %p266 = scmp.le.s32.totalorder 1, %s16
      %p267 = scmp.lt.s32.totalorder %s16, 5
      %p268 = pnand %p266, %p267
      %p269 = pneg %p268
      // Predicated region
      $region37: #{block_v1_forward.6} parent=5 // pred_check
        _
      $region38: #{block_v1_forward.6} parent=5 // pred_check_branch
        %271 = sbr.rel (%p268) target = $region40
      $region39: #{block_v1_forward.6} parent=5 // pred_region
        %s272 = ssub.s32 %s16, 1
        %s273 = sand.u32 %s71, 1
        %s274 = scalar_lea.sflag [#allocation3], %s273
        %s275 = sand.u32 %s71, 1
        %s276 = smul.addr %s275, 128
        %s277 = scalar_lea.vmem [#allocation2], %s276
        // Predicated region
        $region41: #{block_v1_forward.6} parent=39 // pred_check
          %p278 = pneg %p84
        $region42: #{block_v1_forward.6} parent=39 // pred_check_branch
          %280 = sbr.rel (%p278) target = $region44
        $region43: #{block_v1_forward.6} parent=39 // pred_region
          %282 = dma.done %s274, 2048
        $region44: #{block_v1_forward.6} parent=39 // pred_fallthru
          _
        %s283 = smul.u32 16, %s26
        %p284 = scmp.lt.s32.totalorder %s25, 1
        %s285 = scalar_select %p284, %s25, 1
        %p286 = scmp.lt.s32.totalorder %s283, 31
        %s287 = scalar_select %p286, %s283, 31
        %s288 = smul.addr %s285, 32
        %s289 = sadd.s32 %s287, %s288
        %s290 = smul.addr %s289, 8
        %s291 = scalar_lea.vmem %s0, %s290
        %p292 = pneg %p56
        %p293 = pneg %p53
        %s294 = sand.u32 %s71, 1
        %s295 = scalar_lea.sflag [#allocation3], %s294
        %s296 = sand.u32 %s71, 1
        %s297 = smul.addr %s296, 128
        %s298 = scalar_lea.vmem [#allocation2], %s297
        %p299 = pneg %p84
        %p300 = pneg %p81
        %p301 = pneg %p105
        %p302 = pneg %p102
        %p303 = pneg %p126
        %p304 = pneg %p123
        %p305 = pneg %p147
        %p306 = pneg %p144
        %p307 = pneg %p175
        %p308 = pneg %p172
        %s309 = smul.u32 16, %s26
        %p310 = scmp.lt.s32.totalorder %s25, 1
        %s311 = scalar_select %p310, %s25, 1
        %p312 = scmp.lt.s32.totalorder %s309, 31
        %s313 = scalar_select %p312, %s309, 31
        %s314 = smul.addr %s311, 32
        %s315 = sadd.s32 %s313, %s314
        %s316 = smul.addr %s315, 4
        %s317 = scalar_lea.vmem %s5, %s316
        %p318 = pneg %p201
        %p319 = pneg %p198
        %p320 = scmp.lt.s32.totalorder %s25, 1
        %s321 = scalar_select %p320, %s25, 1
        %s322 = smul.addr %s321, 2
        %s323 = scalar_lea.vmem %s6, %s322
        %s324 = smul.u32 16, %s26
        %p325 = scmp.lt.s32.totalorder %s25, 1
        %s326 = scalar_select %p325, %s25, 1
        %p327 = scmp.lt.s32.totalorder %s324, 31
        %s328 = scalar_select %p327, %s324, 31
        %s329 = smul.addr %s326, 32
        %s330 = sadd.s32 %s328, %s329
        %s331 = smul.addr %s330, 8
        %s332 = scalar_lea.vmem %s0, %s331
        %s333 = smul.u32 16, %s26
        %s334 = smul.u32 16, %s26
        %s335 = smul.u32 16, %s26
        %p336 = scmp.lt.s32.totalorder %s25, 1
        %s337 = scalar_select %p336, %s25, 1
        %p338 = scmp.lt.s32.totalorder %s335, 31
        %s339 = scalar_select %p338, %s335, 31
        %s340 = smul.addr %s337, 32
        %s341 = sadd.s32 %s339, %s340
        %s342 = smul.addr %s341, 4
        %s343 = scalar_lea.vmem %s5, %s342
        %s344 = smul.u32 16, %s26
        %p345 = scmp.lt.s32.totalorder %s25, 1
        %s346 = scalar_select %p345, %s25, 1
        %s347 = smul.addr %s346, 2
        %s348 = scalar_lea.vmem %s6, %s347
        %p349 = scmp.eq.s32.totalorder %s26, 0
        // Predicated region
        $region45: #{block_v1_forward.6} parent=39 // pred_check
          %p350 = pneg %p349
        $region46: #{block_v1_forward.6} parent=39 // pred_check_branch
          %352 = sbr.rel (%p350) target = $region48
        $region47: #{block_v1_forward.6} parent=39 // pred_region
          %353 = vst [vmem:[%s348] sm:$0x3] 0.0
        $region48: #{block_v1_forward.6} parent=39 // pred_fallthru
          _
        %v354 = vld [vmem:[%s332] sm:$0xff]
        %v355 = vld [vmem:[%s332 + $0x8] sm:$0xff]
        %v356 = vld [vmem:[%s332 + $0x10] sm:$0xff]
        %v357 = vld [vmem:[%s332 + $0x18] sm:$0xff]
        %v358 = vld [vmem:[%s332 + $0x20] sm:$0xff]
        %v359 = vld [vmem:[%s332 + $0x28] sm:$0xff]
        %v360 = vld [vmem:[%s332 + $0x30] sm:$0xff]
        %v361 = vld [vmem:[%s332 + $0x38] sm:$0xff]
        %v362 = vld [vmem:[%s332 + $0x40] sm:$0xff]
        %v363 = vld [vmem:[%s332 + $0x48] sm:$0xff]
        %v364 = vld [vmem:[%s332 + $0x50] sm:$0xff]
        %v365 = vld [vmem:[%s332 + $0x58] sm:$0xff]
        %v366 = vld [vmem:[%s332 + $0x60] sm:$0xff]
        %v367 = vld [vmem:[%s332 + $0x68] sm:$0xff]
        %v368 = vld [vmem:[%s332 + $0x70] sm:$0xff]
        %v369 = vld [vmem:[%s332 + $0x78] sm:$0xff]
        %v370 = vlaneseq
        %v371 = vand.u32 %v370, 127
        %372 = vset.pattern.permute.xlu0 0
        %373 = vperm.xlu0 %372, %v354
        %v374 = vpop.permute.xlu0 %373
        %375 = vset.pattern.permute.xlu0 0
        %376 = vperm.xlu0 %375, %v355
        %v377 = vpop.permute.xlu0 %376
        %378 = vset.pattern.permute.xlu0 0
        %379 = vperm.xlu0 %378, %v356
        %v380 = vpop.permute.xlu0 %379
        %381 = vset.pattern.permute.xlu0 0
        %382 = vperm.xlu0 %381, %v357
        %v383 = vpop.permute.xlu0 %382
        %384 = vset.pattern.permute.xlu0 0
        %385 = vperm.xlu0 %384, %v358
        %v386 = vpop.permute.xlu0 %385
        %387 = vset.pattern.permute.xlu0 0
        %388 = vperm.xlu0 %387, %v359
        %v389 = vpop.permute.xlu0 %388
        %390 = vset.pattern.permute.xlu0 0
        %391 = vperm.xlu0 %390, %v360
        %v392 = vpop.permute.xlu0 %391
        %393 = vset.pattern.permute.xlu0 0
        %394 = vperm.xlu0 %393, %v361
        %v395 = vpop.permute.xlu0 %394
        %396 = vset.pattern.permute.xlu0 0
        %397 = vperm.xlu0 %396, %v362
        %v398 = vpop.permute.xlu0 %397
        %399 = vset.pattern.permute.xlu0 0
        %400 = vperm.xlu0 %399, %v363
        %v401 = vpop.permute.xlu0 %400
        %402 = vset.pattern.permute.xlu0 0
        %403 = vperm.xlu0 %402, %v364
        %v404 = vpop.permute.xlu0 %403
        %405 = vset.pattern.permute.xlu0 0
        %406 = vperm.xlu0 %405, %v365
        %v407 = vpop.permute.xlu0 %406
        %408 = vset.pattern.permute.xlu0 0
        %409 = vperm.xlu0 %408, %v366
        %v410 = vpop.permute.xlu0 %409
        %411 = vset.pattern.permute.xlu0 0
        %412 = vperm.xlu0 %411, %v367
        %v413 = vpop.permute.xlu0 %412
        %414 = vset.pattern.permute.xlu0 0
        %415 = vperm.xlu0 %414, %v368
        %v416 = vpop.permute.xlu0 %415
        %417 = vset.pattern.permute.xlu0 0
        %418 = vperm.xlu0 %417, %v369
        %v419 = vpop.permute.xlu0 %418
        %vm420 = vcmp.eq.s32.totalorder %v374, %v371
        %vm421 = vcmp.eq.s32.totalorder %v377, %v371
        %vm422 = vcmp.eq.s32.totalorder %v380, %v371
        %vm423 = vcmp.eq.s32.totalorder %v383, %v371
        %vm424 = vcmp.eq.s32.totalorder %v386, %v371
        %vm425 = vcmp.eq.s32.totalorder %v389, %v371
        %vm426 = vcmp.eq.s32.totalorder %v392, %v371
        %vm427 = vcmp.eq.s32.totalorder %v395, %v371
        %vm428 = vcmp.eq.s32.totalorder %v398, %v371
        %vm429 = vcmp.eq.s32.totalorder %v401, %v371
        %vm430 = vcmp.eq.s32.totalorder %v404, %v371
        %vm431 = vcmp.eq.s32.totalorder %v407, %v371
        %vm432 = vcmp.eq.s32.totalorder %v410, %v371
        %vm433 = vcmp.eq.s32.totalorder %v413, %v371
        %vm434 = vcmp.eq.s32.totalorder %v416, %v371
        %vm435 = vcmp.eq.s32.totalorder %v419, %v371
        %v436 = vsel %vm420, 1, 0
        %v437 = vsel %vm421, 1, 0
        %v438 = vsel %vm422, 1, 0
        %v439 = vsel %vm423, 1, 0
        %v440 = vsel %vm424, 1, 0
        %v441 = vsel %vm425, 1, 0
        %v442 = vsel %vm426, 1, 0
        %v443 = vsel %vm427, 1, 0
        %v444 = vsel %vm428, 1, 0
        %v445 = vsel %vm429, 1, 0
        %v446 = vsel %vm430, 1, 0
        %v447 = vsel %vm431, 1, 0
        %v448 = vsel %vm432, 1, 0
        %v449 = vsel %vm433, 1, 0
        %v450 = vsel %vm434, 1, 0
        %v451 = vsel %vm435, 1, 0
        %v452 = vcvt.s32.f32 %v436
        %v453 = vcvt.s32.f32 %v437
        %v454 = vcvt.s32.f32 %v438
        %v455 = vcvt.s32.f32 %v439
        %v456 = vcvt.s32.f32 %v440
        %v457 = vcvt.s32.f32 %v441
        %v458 = vcvt.s32.f32 %v442
        %v459 = vcvt.s32.f32 %v443
        %v460 = vcvt.s32.f32 %v444
        %v461 = vcvt.s32.f32 %v445
        %v462 = vcvt.s32.f32 %v446
        %v463 = vcvt.s32.f32 %v447
        %v464 = vcvt.s32.f32 %v448
        %v465 = vcvt.s32.f32 %v449
        %v466 = vcvt.s32.f32 %v450
        %v467 = vcvt.s32.f32 %v451
        %v468 = vpack.c.bf16 %v453, %v452
        %v469 = vpack.c.bf16 %v455, %v454
        %v470 = vpack.c.bf16 %v457, %v456
        %v471 = vpack.c.bf16 %v459, %v458
        %v472 = vpack.c.bf16 %v461, %v460
        %v473 = vpack.c.bf16 %v463, %v462
        %v474 = vpack.c.bf16 %v465, %v464
        %v475 = vpack.c.bf16 %v467, %v466
        %v476 = vld [vmem:[%s2] sm:$0xf]
        %v477 = vld [vmem:[%s2 + $0x4] sm:$0xf]
        %v478 = vld [vmem:[%s2 + $0x8] sm:$0xf]
        %v479 = vld [vmem:[%s2 + $0xc] sm:$0xf]
        %v480 = vld [vmem:[%s2 + $0x10] sm:$0xf]
        %v481 = vld [vmem:[%s2 + $0x14] sm:$0xf]
        %v482 = vld [vmem:[%s2 + $0x18] sm:$0xf]
        %v483 = vld [vmem:[%s2 + $0x1c] sm:$0xf]
        %v484 = vld [vmem:[%s2 + $0x20] sm:$0xf]
        %v485 = vld [vmem:[%s2 + $0x24] sm:$0xf]
        %v486 = vld [vmem:[%s2 + $0x28] sm:$0xf]
        %v487 = vld [vmem:[%s2 + $0x2c] sm:$0xf]
        %v488 = vld [vmem:[%s2 + $0x30] sm:$0xf]
        %v489 = vld [vmem:[%s2 + $0x34] sm:$0xf]
        %v490 = vld [vmem:[%s2 + $0x38] sm:$0xf]
        %v491 = vld [vmem:[%s2 + $0x3c] sm:$0xf]
        %v508 = vunpack.c.l.b16 %v476
        %v509 = vunpack.c.l.b16 %v477
        %v510 = vunpack.c.l.b16 %v478
        %v511 = vunpack.c.l.b16 %v479
        %v512 = vunpack.c.l.b16 %v480
        %v513 = vunpack.c.l.b16 %v481
        %v514 = vunpack.c.l.b16 %v482
        %v515 = vunpack.c.l.b16 %v483
        %v516 = vunpack.c.l.b16 %v484
        %v517 = vunpack.c.l.b16 %v485
        %v518 = vunpack.c.l.b16 %v486
        %v519 = vunpack.c.l.b16 %v487
        %v520 = vunpack.c.l.b16 %v488
        %v521 = vunpack.c.l.b16 %v489
        %v522 = vunpack.c.l.b16 %v490
        %v523 = vunpack.c.l.b16 %v491
        %v524 = vpack.c.b16 %v509, %v508
        %v525 = vpack.c.b16 %v511, %v510
        %v526 = vpack.c.b16 %v513, %v512
        %v527 = vpack.c.b16 %v515, %v514
        %v528 = vpack.c.b16 %v517, %v516
        %v529 = vpack.c.b16 %v519, %v518
        %v530 = vpack.c.b16 %v521, %v520
        %v531 = vpack.c.b16 %v523, %v522
        %540 = vmatpush.bf16.msra.mxu0 %v531
        %541 = vmatpush.bf16.msra.mxu0 %v530
        %542 = vmatpush.bf16.msra.mxu0 %v529
        %543 = vmatpush.bf16.msra.mxu0 %v528
        %544 = vmatpush.bf16.msra.mxu0 %v527
        %545 = vmatpush.bf16.msra.mxu0 %v526
        %546 = vmatpush.bf16.msra.mxu0 %v525
        %547 = vmatpush.bf16.msra.mxu0 %v524
        %548 = vmatmul.bf16.gmra.mxu0 %v468
        %v549 = vpop.f32.mrf.mxu0
        %v550 = vadd.f32 0.0, %v549
        %v551 = vpop.f32.mrf.mxu0
        %v552 = vadd.f32 0.0, %v551
        %553 = vmatmul.bf16.gmra.mxu0 %v469
        %v554 = vpop.f32.mrf.mxu0
        %v555 = vadd.f32 0.0, %v554
        %v556 = vpop.f32.mrf.mxu0
        %v557 = vadd.f32 0.0, %v556
        %558 = vmatmul.bf16.gmra.mxu0 %v470
        %v559 = vpop.f32.mrf.mxu0
        %v560 = vadd.f32 0.0, %v559
        %v561 = vpop.f32.mrf.mxu0
        %v562 = vadd.f32 0.0, %v561
        %563 = vmatmul.bf16.gmra.mxu0 %v471
        %v564 = vpop.f32.mrf.mxu0
        %v565 = vadd.f32 0.0, %v564
        %v566 = vpop.f32.mrf.mxu0
        %v567 = vadd.f32 0.0, %v566
        %568 = vmatmul.bf16.gmra.mxu0 %v472
        %v569 = vpop.f32.mrf.mxu0
        %v570 = vadd.f32 0.0, %v569
        %v571 = vpop.f32.mrf.mxu0
        %v572 = vadd.f32 0.0, %v571
        %573 = vmatmul.bf16.gmra.mxu0 %v473
        %v574 = vpop.f32.mrf.mxu0
        %v575 = vadd.f32 0.0, %v574
        %v576 = vpop.f32.mrf.mxu0
        %v577 = vadd.f32 0.0, %v576
        %578 = vmatmul.bf16.gmra.mxu0 %v474
        %v579 = vpop.f32.mrf.mxu0
        %v580 = vadd.f32 0.0, %v579
        %v581 = vpop.f32.mrf.mxu0
        %v582 = vadd.f32 0.0, %v581
        %583 = vmatmul.bf16.gmra.mxu0 %v475
        %v584 = vpop.f32.mrf.mxu0
        %v585 = vadd.f32 0.0, %v584
        %v586 = vpop.f32.mrf.mxu0
        %v587 = vadd.f32 0.0, %v586
        %588 = vdwg.mxu0
        %v589 = vld [vmem:[%s277] sm:$0xff]
        %v590 = vld [vmem:[%s277 + $0x8] sm:$0xff]
        %v591 = vld [vmem:[%s277 + $0x10] sm:$0xff]
        %v592 = vld [vmem:[%s277 + $0x18] sm:$0xff]
        %v593 = vld [vmem:[%s277 + $0x20] sm:$0xff]
        %v594 = vld [vmem:[%s277 + $0x28] sm:$0xff]
        %v595 = vld [vmem:[%s277 + $0x30] sm:$0xff]
        %v596 = vld [vmem:[%s277 + $0x38] sm:$0xff]
        %v597 = vld [vmem:[%s277 + $0x40] sm:$0xff]
        %v598 = vld [vmem:[%s277 + $0x48] sm:$0xff]
        %v599 = vld [vmem:[%s277 + $0x50] sm:$0xff]
        %v600 = vld [vmem:[%s277 + $0x58] sm:$0xff]
        %v601 = vld [vmem:[%s277 + $0x60] sm:$0xff]
        %v602 = vld [vmem:[%s277 + $0x68] sm:$0xff]
        %v603 = vld [vmem:[%s277 + $0x70] sm:$0xff]
        %v604 = vld [vmem:[%s277 + $0x78] sm:$0xff]
        %v605 = vadd.f32 %v589, %v550
        %v606 = vadd.f32 %v590, %v552
        %v607 = vadd.f32 %v591, %v555
        %v608 = vadd.f32 %v592, %v557
        %v609 = vadd.f32 %v593, %v560
        %v610 = vadd.f32 %v594, %v562
        %v611 = vadd.f32 %v595, %v565
        %v612 = vadd.f32 %v596, %v567
        %v613 = vadd.f32 %v597, %v570
        %v614 = vadd.f32 %v598, %v572
        %v615 = vadd.f32 %v599, %v575
        %v616 = vadd.f32 %v600, %v577
        %v617 = vadd.f32 %v601, %v580
        %v618 = vadd.f32 %v602, %v582
        %v619 = vadd.f32 %v603, %v585
        %v620 = vadd.f32 %v604, %v587
        %v621 = vpack.c.bf16 %v606, %v605
        %v622 = vpack.c.bf16 %v608, %v607
        %v623 = vpack.c.bf16 %v610, %v609
        %v624 = vpack.c.bf16 %v612, %v611
        %v625 = vpack.c.bf16 %v614, %v613
        %v626 = vpack.c.bf16 %v616, %v615
        %v627 = vpack.c.bf16 %v618, %v617
        %v628 = vpack.c.bf16 %v620, %v619
        %v629 = vld [vmem:[%s3] sm:$0xf]
        %v630 = vld [vmem:[%s3 + $0x4] sm:$0xf]
        %v631 = vld [vmem:[%s3 + $0x8] sm:$0xf]
        %v632 = vld [vmem:[%s3 + $0xc] sm:$0xf]
        %v633 = vld [vmem:[%s3 + $0x10] sm:$0xf]
        %v634 = vld [vmem:[%s3 + $0x14] sm:$0xf]
        %v635 = vld [vmem:[%s3 + $0x18] sm:$0xf]
        %v636 = vld [vmem:[%s3 + $0x1c] sm:$0xf]
        %v637 = vld [vmem:[%s3 + $0x20] sm:$0xf]
        %v638 = vld [vmem:[%s3 + $0x24] sm:$0xf]
        %v639 = vld [vmem:[%s3 + $0x28] sm:$0xf]
        %v640 = vld [vmem:[%s3 + $0x2c] sm:$0xf]
        %v641 = vld [vmem:[%s3 + $0x30] sm:$0xf]
        %v642 = vld [vmem:[%s3 + $0x34] sm:$0xf]
        %v643 = vld [vmem:[%s3 + $0x38] sm:$0xf]
        %v644 = vld [vmem:[%s3 + $0x3c] sm:$0xf]
        %v645 = vld [vmem:[%s4] sm:$0x1]
        %v647 = vperm.slane %v645, 0
        %v665 = vunpack.c.l.b16 %v629
        %v666 = vunpack.c.l.b16 %v630
        %v667 = vunpack.c.l.b16 %v631
        %v668 = vunpack.c.l.b16 %v632
        %v669 = vunpack.c.l.b16 %v633
        %v670 = vunpack.c.l.b16 %v634
        %v671 = vunpack.c.l.b16 %v635
        %v672 = vunpack.c.l.b16 %v636
        %v673 = vunpack.c.l.b16 %v637
        %v674 = vunpack.c.l.b16 %v638
        %v675 = vunpack.c.l.b16 %v639
        %v676 = vunpack.c.l.b16 %v640
        %v677 = vunpack.c.l.b16 %v641
        %v678 = vunpack.c.l.b16 %v642
        %v679 = vunpack.c.l.b16 %v643
        %v680 = vunpack.c.l.b16 %v644
        %v681 = vpack.c.b16 %v666, %v665
        %v682 = vpack.c.b16 %v668, %v667
        %v683 = vpack.c.b16 %v670, %v669
        %v684 = vpack.c.b16 %v672, %v671
        %v685 = vpack.c.b16 %v674, %v673
        %v686 = vpack.c.b16 %v676, %v675
        %v687 = vpack.c.b16 %v678, %v677
        %v688 = vpack.c.b16 %v680, %v679
        %697 = vmatpush.bf16.msra.mxu0 %v688
        %698 = vmatpush.bf16.msra.mxu0 %v687
        %699 = vmatpush.bf16.msra.mxu0 %v686
        %700 = vmatpush.bf16.msra.mxu0 %v685
        %701 = vmatpush.bf16.msra.mxu0 %v684
        %702 = vmatpush.bf16.msra.mxu0 %v683
        %703 = vmatpush.bf16.msra.mxu0 %v682
        %704 = vmatpush.bf16.msra.mxu0 %v681
        %705 = vmatmul.bf16.gmra.mxu0 %v621
        %v706 = vpop.f32.mrf.mxu0
        %v707 = vadd.f32 %v647, %v706
        %v708 = vpop.f32.mrf.mxu0
        %v709 = vadd.f32 %v647, %v708
        %710 = vmatmul.bf16.gmra.mxu0 %v622
        %v711 = vpop.f32.mrf.mxu0
        %v712 = vadd.f32 %v647, %v711
        %v713 = vpop.f32.mrf.mxu0
        %v714 = vadd.f32 %v647, %v713
        %715 = vmatmul.bf16.gmra.mxu0 %v623
        %v716 = vpop.f32.mrf.mxu0
        %v717 = vadd.f32 %v647, %v716
        %v718 = vpop.f32.mrf.mxu0
        %v719 = vadd.f32 %v647, %v718
        %720 = vmatmul.bf16.gmra.mxu0 %v624
        %v721 = vpop.f32.mrf.mxu0
        %v722 = vadd.f32 %v647, %v721
        %v723 = vpop.f32.mrf.mxu0
        %v724 = vadd.f32 %v647, %v723
        %725 = vmatmul.bf16.gmra.mxu0 %v625
        %v726 = vpop.f32.mrf.mxu0
        %v727 = vadd.f32 %v647, %v726
        %v728 = vpop.f32.mrf.mxu0
        %v729 = vadd.f32 %v647, %v728
        %730 = vmatmul.bf16.gmra.mxu0 %v626
        %v731 = vpop.f32.mrf.mxu0
        %v732 = vadd.f32 %v647, %v731
        %v733 = vpop.f32.mrf.mxu0
        %v734 = vadd.f32 %v647, %v733
        %735 = vmatmul.bf16.gmra.mxu0 %v627
        %v736 = vpop.f32.mrf.mxu0
        %v737 = vadd.f32 %v647, %v736
        %v738 = vpop.f32.mrf.mxu0
        %v739 = vadd.f32 %v647, %v738
        %740 = vmatmul.bf16.gmra.mxu0 %v628
        %v741 = vpop.f32.mrf.mxu0
        %v742 = vadd.f32 %v647, %v741
        %v743 = vpop.f32.mrf.mxu0
        %v744 = vadd.f32 %v647, %v743
        %745 = vdwg.mxu0
        %vm746 = vcmp.gt.f32.partialorder %v707, 0.0
        %vm747 = vcmp.gt.f32.partialorder %v709, 0.0
        %vm748 = vcmp.gt.f32.partialorder %v712, 0.0
        %vm749 = vcmp.gt.f32.partialorder %v714, 0.0
        %vm750 = vcmp.gt.f32.partialorder %v717, 0.0
        %vm751 = vcmp.gt.f32.partialorder %v719, 0.0
        %vm752 = vcmp.gt.f32.partialorder %v722, 0.0
        %vm753 = vcmp.gt.f32.partialorder %v724, 0.0
        %vm754 = vcmp.gt.f32.partialorder %v727, 0.0
        %vm755 = vcmp.gt.f32.partialorder %v729, 0.0
        %vm756 = vcmp.gt.f32.partialorder %v732, 0.0
        %vm757 = vcmp.gt.f32.partialorder %v734, 0.0
        %vm758 = vcmp.gt.f32.partialorder %v737, 0.0
        %vm759 = vcmp.gt.f32.partialorder %v739, 0.0
        %vm760 = vcmp.gt.f32.partialorder %v742, 0.0
        %vm761 = vcmp.gt.f32.partialorder %v744, 0.0
        %v762 = vmin.f32 %v707, 0.0
        %v763 = vmin.f32 %v709, 0.0
        %v764 = vmin.f32 %v712, 0.0
        %v765 = vmin.f32 %v714, 0.0
        %v766 = vmin.f32 %v717, 0.0
        %v767 = vmin.f32 %v719, 0.0
        %v768 = vmin.f32 %v722, 0.0
        %v769 = vmin.f32 %v724, 0.0
        %v770 = vmin.f32 %v727, 0.0
        %v771 = vmin.f32 %v729, 0.0
        %v772 = vmin.f32 %v732, 0.0
        %v773 = vmin.f32 %v734, 0.0
        %v774 = vmin.f32 %v737, 0.0
        %v775 = vmin.f32 %v739, 0.0
        %v776 = vmin.f32 %v742, 0.0
        %v777 = vmin.f32 %v744, 0.0
        %v778 = vmul.f32 %v762, 1.442695
        %v779 = vpow.pop %v778
        %v780 = vmul.f32 %v763, 1.442695
        %v781 = vpow.pop %v780
        %v782 = vmul.f32 %v764, 1.442695
        %v783 = vpow.pop %v782
        %v784 = vmul.f32 %v765, 1.442695
        %v785 = vpow.pop %v784
        %v786 = vmul.f32 %v766, 1.442695
        %v787 = vpow.pop %v786
        %v788 = vmul.f32 %v767, 1.442695
        %v789 = vpow.pop %v788
        %v790 = vmul.f32 %v768, 1.442695
        %v791 = vpow.pop %v790
        %v792 = vmul.f32 %v769, 1.442695
        %v793 = vpow.pop %v792
        %v794 = vmul.f32 %v770, 1.442695
        %v795 = vpow.pop %v794
        %v796 = vmul.f32 %v771, 1.442695
        %v797 = vpow.pop %v796
        %v798 = vmul.f32 %v772, 1.442695
        %v799 = vpow.pop %v798
        %v800 = vmul.f32 %v773, 1.442695
        %v801 = vpow.pop %v800
        %v802 = vmul.f32 %v774, 1.442695
        %v803 = vpow.pop %v802
        %v804 = vmul.f32 %v775, 1.442695
        %v805 = vpow.pop %v804
        %v806 = vmul.f32 %v776, 1.442695
        %v807 = vpow.pop %v806
        %v808 = vmul.f32 %v777, 1.442695
        %v809 = vpow.pop %v808
        %v810 = vsub.f32 %v779, 1.0
        %v811 = vsub.f32 %v781, 1.0
        %v812 = vsub.f32 %v783, 1.0
        %v813 = vsub.f32 %v785, 1.0
        %v814 = vsub.f32 %v787, 1.0
        %v815 = vsub.f32 %v789, 1.0
        %v816 = vsub.f32 %v791, 1.0
        %v817 = vsub.f32 %v793, 1.0
        %v818 = vsub.f32 %v795, 1.0
        %v819 = vsub.f32 %v797, 1.0
        %v820 = vsub.f32 %v799, 1.0
        %v821 = vsub.f32 %v801, 1.0
        %v822 = vsub.f32 %v803, 1.0
        %v823 = vsub.f32 %v805, 1.0
        %v824 = vsub.f32 %v807, 1.0
        %v825 = vsub.f32 %v809, 1.0
        %v826 = vsel %vm746, %v707, %v810
        %v827 = vsel %vm747, %v709, %v811
        %v828 = vsel %vm748, %v712, %v812
        %v829 = vsel %vm749, %v714, %v813
        %v830 = vsel %vm750, %v717, %v814
        %v831 = vsel %vm751, %v719, %v815
        %v832 = vsel %vm752, %v722, %v816
        %v833 = vsel %vm753, %v724, %v817
        %v834 = vsel %vm754, %v727, %v818
        %v835 = vsel %vm755, %v729, %v819
        %v836 = vsel %vm756, %v732, %v820
        %v837 = vsel %vm757, %v734, %v821
        %v838 = vsel %vm758, %v737, %v822
        %v839 = vsel %vm759, %v739, %v823
        %v840 = vsel %vm760, %v742, %v824
        %v841 = vsel %vm761, %v744, %v825
        %v842 = vpack.c.bf16 %v826, %v826
        %v843 = vpack.c.bf16 %v827, %v827
        %v844 = vpack.c.bf16 %v828, %v828
        %v845 = vpack.c.bf16 %v829, %v829
        %v846 = vpack.c.bf16 %v830, %v830
        %v847 = vpack.c.bf16 %v831, %v831
        %v848 = vpack.c.bf16 %v832, %v832
        %v849 = vpack.c.bf16 %v833, %v833
        %v850 = vpack.c.bf16 %v834, %v834
        %v851 = vpack.c.bf16 %v835, %v835
        %v852 = vpack.c.bf16 %v836, %v836
        %v853 = vpack.c.bf16 %v837, %v837
        %v854 = vpack.c.bf16 %v838, %v838
        %v855 = vpack.c.bf16 %v839, %v839
        %v856 = vpack.c.bf16 %v840, %v840
        %v857 = vpack.c.bf16 %v841, %v841
        %858 = vst [vmem:[%s343] sm:$0xf] %v842
        %859 = vst [vmem:[%s343 + $0x4] sm:$0xf] %v843
        %860 = vst [vmem:[%s343 + $0x8] sm:$0xf] %v844
        %861 = vst [vmem:[%s343 + $0xc] sm:$0xf] %v845
        %862 = vst [vmem:[%s343 + $0x10] sm:$0xf] %v846
        %863 = vst [vmem:[%s343 + $0x14] sm:$0xf] %v847
        %864 = vst [vmem:[%s343 + $0x18] sm:$0xf] %v848
        %865 = vst [vmem:[%s343 + $0x1c] sm:$0xf] %v849
        %866 = vst [vmem:[%s343 + $0x20] sm:$0xf] %v850
        %867 = vst [vmem:[%s343 + $0x24] sm:$0xf] %v851
        %868 = vst [vmem:[%s343 + $0x28] sm:$0xf] %v852
        %869 = vst [vmem:[%s343 + $0x2c] sm:$0xf] %v853
        %870 = vst [vmem:[%s343 + $0x30] sm:$0xf] %v854
        %871 = vst [vmem:[%s343 + $0x34] sm:$0xf] %v855
        %872 = vst [vmem:[%s343 + $0x38] sm:$0xf] %v856
        %873 = vst [vmem:[%s343 + $0x3c] sm:$0xf] %v857
        %v874 = vld [vmem:[%s348] sm:$0x1]
        %v875 = vadd.f32 %v826, %v827
        %v876 = vadd.f32 %v875, %v828
        %v877 = vadd.f32 %v876, %v829
        %v878 = vadd.f32 %v877, %v830
        %v879 = vadd.f32 %v878, %v831
        %v880 = vadd.f32 %v879, %v832
        %v881 = vadd.f32 %v880, %v833
        %v882 = vadd.f32 %v881, %v834
        %v883 = vadd.f32 %v882, %v835
        %v884 = vadd.f32 %v883, %v836
        %v885 = vadd.f32 %v884, %v837
        %v886 = vadd.f32 %v885, %v838
        %v887 = vadd.f32 %v886, %v839
        %v888 = vadd.f32 %v887, %v840
        %v889 = vadd.f32 %v888, %v841
        %v890 = vrot.slane %v889, 4
        %v891 = vadd.f32 %v889, %v890
        %v892 = vrot.slane %v891, 2
        %v893 = vadd.f32 %v891, %v892
        %v894 = vrot.slane %v893, 1
        %v895 = vadd.f32 %v893, %v894
        %v896 = vadd.f32 %v874, %v895
        %897 = vst [vmem:[%s348] sm:$0x1] %v896
        %v898 = vld [vmem:[%s348 + $0x1] sm:$0x1]
        %v899 = vmul.f32 %v826, %v826
        %v900 = vmul.f32 %v827, %v827
        %v901 = vmul.f32 %v828, %v828
        %v902 = vmul.f32 %v829, %v829
        %v903 = vmul.f32 %v830, %v830
        %v904 = vmul.f32 %v831, %v831
        %v905 = vmul.f32 %v832, %v832
        %v906 = vmul.f32 %v833, %v833
        %v907 = vmul.f32 %v834, %v834
        %v908 = vmul.f32 %v835, %v835
        %v909 = vmul.f32 %v836, %v836
        %v910 = vmul.f32 %v837, %v837
        %v911 = vmul.f32 %v838, %v838
        %v912 = vmul.f32 %v839, %v839
        %v913 = vmul.f32 %v840, %v840
        %v914 = vmul.f32 %v841, %v841
        %v915 = vadd.f32 %v899, %v900
        %v916 = vadd.f32 %v915, %v901
        %v917 = vadd.f32 %v916, %v902
        %v918 = vadd.f32 %v917, %v903
        %v919 = vadd.f32 %v918, %v904
        %v920 = vadd.f32 %v919, %v905
        %v921 = vadd.f32 %v920, %v906
        %v922 = vadd.f32 %v921, %v907
        %v923 = vadd.f32 %v922, %v908
        %v924 = vadd.f32 %v923, %v909
        %v925 = vadd.f32 %v924, %v910
        %v926 = vadd.f32 %v925, %v911
        %v927 = vadd.f32 %v926, %v912
        %v928 = vadd.f32 %v927, %v913
        %v929 = vadd.f32 %v928, %v914
        %v930 = vrot.slane %v929, 4
        %v931 = vadd.f32 %v929, %v930
        %v932 = vrot.slane %v931, 2
        %v933 = vadd.f32 %v931, %v932
        %v934 = vrot.slane %v933, 1
        %v935 = vadd.f32 %v933, %v934
        %v936 = vadd.f32 %v898, %v935
        %937 = vst [vmem:[%s348 + $0x1] sm:$0x1] %v936
        %s938 = smul.u32 16, %s26
        %p939 = scmp.lt.s32.totalorder %s25, 1
        %s940 = scalar_select %p939, %s25, 1
        %p941 = scmp.lt.s32.totalorder %s938, 31
        %s942 = scalar_select %p941, %s938, 31
        %s943 = smul.addr %s940, 32
        %s944 = sadd.s32 %s942, %s943
        %s945 = smul.addr %s944, 4
        %s946 = scalar_lea.vmem %s5, %s945
        %p947 = scmp.lt.s32.totalorder %s25, 1
        %s948 = scalar_select %p947, %s25, 1
        %s949 = smul.addr %s948, 2
        %s950 = scalar_lea.vmem %s6, %s949
        // Predicated region
        $region49: #{block_v1_forward.6} parent=39 // pred_check
          %p951 = pneg %p172
        $region50: #{block_v1_forward.6} parent=39 // pred_check_branch
          %953 = sbr.rel (%p951) target = $region52
        $region51: #{block_v1_forward.6} parent=39 // pred_region
          %s954 = smul.u32 16, %s26
        $region52: #{block_v1_forward.6} parent=39 // pred_fallthru
          _
        // Predicated region
        $region53: #{block_v1_forward.6} parent=39 // pred_check
          %p955 = pneg %p198
        $region54: #{block_v1_forward.6} parent=39 // pred_check_branch
          %957 = sbr.rel (%p955) target = $region56
        $region55: #{block_v1_forward.6} parent=39 // pred_region
          _
        $region56: #{block_v1_forward.6} parent=39 // pred_fallthru
          _
      $region40: #{block_v1_forward.6} parent=5 // pred_fallthru
        _
      %p958 = scmp.le.s32.totalorder 2, %s16
      // Predicated region
      $region57: #{block_v1_forward.6} parent=5 // pred_check
        %p959 = pneg %p958
      $region58: #{block_v1_forward.6} parent=5 // pred_check_branch
        %961 = sbr.rel (%p959) target = $region60
      $region59: #{block_v1_forward.6} parent=5 // pred_region
        %s962 = ssub.s32 %s16, 2
        // Predicated region
        $region61: #{block_v1_forward.6} parent=59 // pred_check
          %p963 = pneg %p178
        $region62: #{block_v1_forward.6} parent=59 // pred_check_branch
          %965 = sbr.rel (%p963) target = $region64
        $region63: #{block_v1_forward.6} parent=59 // pred_region
          %s966 = smul.u32 16, %s28
          %p967 = scmp.lt.s32.totalorder %s27, 1
          %s968 = scalar_select %p967, %s27, 1
          %p969 = scmp.lt.s32.totalorder %s966, 31
          %s970 = scalar_select %p969, %s966, 31
          %s971 = smul.addr %s968, 32
          %s972 = sadd.s32 %s970, %s971
          %s973 = smul.addr %s972, 4
          %s974 = scalar_lea.vmem %s5, %s973
        $region64: #{block_v1_forward.6} parent=59 // pred_fallthru
          _
        // Predicated region
        $region65: #{block_v1_forward.6} parent=59 // pred_check
          %p975 = pneg %p204
        $region66: #{block_v1_forward.6} parent=59 // pred_check_branch
          %977 = sbr.rel (%p975) target = $region68
        $region67: #{block_v1_forward.6} parent=59 // pred_region
          %p978 = scmp.lt.s32.totalorder %s27, 1
          %s979 = scalar_select %p978, %s27, 1
          %s980 = smul.addr %s979, 2
          %s981 = scalar_lea.vmem %s6, %s980
        $region68: #{block_v1_forward.6} parent=59 // pred_fallthru
          _
      $region60: #{block_v1_forward.6} parent=5 // pred_fallthru
        _
    $region6: #{block_v1_forward.6} parent=1 // loop_footer
      %s20 = sadd.s32 1, %s16
    $region7: #{block_v1_forward.6} parent=1 // loop_footer_branch
      %15 = sbr.rel target = $region3
    $region8: #{block_v1_forward.6} parent=1 // loop_exit
      _
    %982 = vsyncpa [#allocation3], 1
    %s983 = scalar_lea.sflag [#allocation3], 1
    %984 = vsyncpa %s983, 1

// kernel: block_v1_forward.7
$region0: #{block_v1_forward.7}
  #allocation0 [shape = 'u32[]', space=smem, size = 0x4, offset = 0x4, fixed_abs, tag = 'smem constant byte address 0x4 - core index']
  #allocation1 [shape = 'u32[72,128]{1,0:T(1,128)}', space=vmem, size = 0x9000, scoped, tag = 'internal scratch']
  #allocation2 [shape = 'bf16[128,128]{1,0:T(8,128)(2,1)}', space=vmem, size = 0x8000, scoped, tag = 'scratch operand']
  %s0 = inlined_call_operand.vmem [shape: bf16[2,256,128], index: 0, kind: input, shape index: {}]
  %s1 = inlined_call_operand.vmem [shape: f32[2,2,128], index: 1, kind: input, shape index: {}]
  %s2 = inlined_call_operand.vmem [shape: f32[1,128], index: 2, kind: input, shape index: {}]
  %s3 = inlined_call_operand.vmem [shape: f32[1,128], index: 3, kind: input, shape index: {}]
  %s4 = inlined_call_operand.vmem [shape: f32[2,1,16,16], index: 4, kind: input, shape index: {}]
  %s5 = inlined_call_operand.vmem [shape: bf16[3,128], index: 5, kind: input, shape index: {}]
  %s6 = inlined_call_operand.vmem [shape: f32[3,1], index: 6, kind: input, shape index: {}]
  %s7 = inlined_call_operand.vmem [shape: bf16[128,128], index: 7, kind: input, shape index: {}]
  %s8 = inlined_call_operand.vmem [shape: f32[1,128], index: 8, kind: input, shape index: {}]
  %s9 = inlined_call_operand.vmem [shape: bf16[128,128], index: 9, kind: input, shape index: {}]
  %s10 = inlined_call_operand.vmem [shape: bf16[128,128], index: 10, kind: input, shape index: {}]
  %s11 = inlined_call_operand.vmem [shape: f32[1,128], index: 11, kind: input, shape index: {}]
  %s12 = inlined_call_operand.vmem [shape: f32[2,3,16,16], index: 12, kind: output, shape index: {0}]
  %s13 = inlined_call_operand.vmem [shape: bf16[2,256,128], index: 13, kind: output, shape index: {1}]
  %s14 = inlined_call_operand.vmem [shape: f32[2,2,128], index: 14, kind: output, shape index: {2}]
  %15 = xla_tuple %s12, %s13, %s14
  %s16 = sld [smem:[#allocation0]]
  $region142: #{block_v1_forward.7} parent=0
    _
  %s18 = ssub.s32 1, %s16
  %s19 = scalar_select 0, %s18, %s16
  $region1: #{block_v1_forward.7} parent=0
    #allocation3 [shape = 'u8[24576]{0}', space=vmem, size = 0x6000, scoped, tag = 'output window, operand 0']
    loop: start=0, step=1, limit=6
    $region2: #{block_v1_forward.7} parent=1 // loop_pre_header
      _
    $region3: #{block_v1_forward.7} parent=1 // loop_header
      %s21 = sphi 0, %s25
      %p22 = scmp.ge.s32.totalorder %s21, 6
      %s28 = sphi 0, %s40
      %s29 = sphi 0, %s36
      %s30 = sphi 0, %s28
      %s31 = sphi 0, %s29
      %s32 = sphi 0, %s30
      %s33 = sphi 0, %s31
      %s45 = sphi 0, %s47
      %s48 = sphi 0, %s45
      %s49 = sphi 0, %s48
      %s65 = sphi 0, %s49
      %s71 = sphi 0, %s73
      %s74 = sphi 0, %s71
      %s75 = sphi 0, %s74
      %s91 = sphi 0, %s75
      %s95 = sphi 0, %s95
      %s97 = sphi 0, %s95
      %s98 = sphi 0, %s97
      %s112 = sphi 0, %s98
      %s116 = sphi 0, %s116
      %s118 = sphi 0, %s116
      %s119 = sphi 0, %s118
      %s133 = sphi 0, %s119
      %s141 = sphi 0, %s143
      %s144 = sphi 0, %s141
      %s145 = sphi 0, %s144
      %s161 = sphi 0, %s145
      %s165 = sphi 0, %s165
      %s167 = sphi 0, %s165
      %s168 = sphi 0, %s167
      %s182 = sphi 0, %s168
      %s186 = sphi 0, %s186
      %s188 = sphi 0, %s186
      %s189 = sphi 0, %s188
      %s203 = sphi 0, %s189
      %s207 = sphi 0, %s207
      %s209 = sphi 0, %s207
      %s210 = sphi 0, %s209
      %s224 = sphi 0, %s210
      %s228 = sphi 0, %s228
      %s230 = sphi 0, %s228
      %s231 = sphi 0, %s230
      %s245 = sphi 0, %s231
      %s249 = sphi 0, %s249
      %s251 = sphi 0, %s249
      %s252 = sphi 0, %s251
      %s266 = sphi 0, %s252
      %s270 = sphi 0, %s270
      %s272 = sphi 0, %s270
      %s273 = sphi 0, %s272
      %s287 = sphi 0, %s273
      %s291 = sphi 0, %s291
      %s293 = sphi 0, %s291
      %s294 = sphi 0, %s293
      %s308 = sphi 0, %s294
      %s316 = sphi 0, %s318
      %s319 = sphi 0, %s316
      %s320 = sphi 0, %s319
      %s336 = sphi 0, %s320
      %s344 = sphi 0, %s346
      %s347 = sphi 0, %s344
      %s348 = sphi 0, %s347
      %s364 = sphi 0, %s348
      %s370 = sphi 0, %s372
      %s373 = sphi 0, %s370
      %s374 = sphi 0, %s373
      %s390 = sphi 0, %s374
    $region4: #{block_v1_forward.7} parent=1 // loop_header_branch
      %24 = sbr.rel (%p22) target = $region8
    $region5: #{block_v1_forward.7} parent=1 // loop_body
      %s26 = ssub.s32 %s21, 1
      %s27 = ssub.s32 %s21, 2
      %s34 = sadd.s32 1, %s29
      %p35 = scmp.ge.s32.totalorder %s34, 2
      %s36 = scalar_select %p35, 0, %s34
      %s37 = sadd.s32 1, %s28
      %s38 = scalar_select %p35, %s37, %s28
      %p39 = scmp.ge.s32.totalorder %s38, 2
      %s40 = scalar_select %p39, 0, %s38
      %s41 = ssub.s32 %s28, %s40
      %s42 = ssub.s32 %s29, %s36
      %s43 = sor.u32 %s41, %s42
      %p44 = scmp.eq.s32.totalorder %s43, 0
      %s46 = sadd.s32 %s45, 1
      %s47 = scalar_select %p44, %s45, %s46
      %p50 = pneg %p44
      %p51 = scmp.eq.s32.totalorder %s21, 3
      %p52 = por %p50, %p51
      %p53 = scmp.ne.s32.totalorder %s45, %s48
      %p54 = scmp.eq.s32.totalorder %s21, 0
      %p55 = por %p53, %p54
      %p56 = scmp.ne.s32.totalorder %s45, %s48
      %p57 = scmp.eq.s32.totalorder %s26, 3
      %p58 = por %p56, %p57
      %p59 = scmp.ne.s32.totalorder %s48, %s49
      %p60 = scmp.eq.s32.totalorder %s26, 0
      %p61 = por %p59, %p60
      %p62 = scmp.ne.s32.totalorder %s48, %s49
      %p63 = scmp.eq.s32.totalorder %s27, 3
      %p64 = por %p62, %p63
      %p66 = scmp.ne.s32.totalorder %s49, %s65
      %p67 = scmp.eq.s32.totalorder %s27, 0
      %p68 = por %p66, %p67
      %s69 = ssub.s32 %s28, %s40
      %p70 = scmp.eq.s32.totalorder %s69, 0
      %s72 = sadd.s32 %s71, 1
      %s73 = scalar_select %p70, %s71, %s72
      %p76 = pneg %p70
      %p77 = scmp.eq.s32.totalorder %s21, 3
      %p78 = por %p76, %p77
      %p79 = scmp.ne.s32.totalorder %s71, %s74
      %p80 = scmp.eq.s32.totalorder %s21, 0
      %p81 = por %p79, %p80
      %p82 = scmp.ne.s32.totalorder %s71, %s74
      %p83 = scmp.eq.s32.totalorder %s26, 3
      %p84 = por %p82, %p83
      %p85 = scmp.ne.s32.totalorder %s74, %s75
      %p86 = scmp.eq.s32.totalorder %s26, 0
      %p87 = por %p85, %p86
      %p88 = scmp.ne.s32.totalorder %s74, %s75
      %p89 = scmp.eq.s32.totalorder %s27, 3
      %p90 = por %p88, %p89
      %p92 = scmp.ne.s32.totalorder %s75, %s91
      %p93 = scmp.eq.s32.totalorder %s27, 0
      %p94 = por %p92, %p93
      %s96 = sadd.s32 %s95, 1
      %p99 = scmp.eq.s32.totalorder %s21, 3
      %p100 = scmp.ne.s32.totalorder %s95, %s97
      %p101 = scmp.eq.s32.totalorder %s21, 0
      %p102 = por %p100, %p101
      %p103 = scmp.ne.s32.totalorder %s95, %s97
      %p104 = scmp.eq.s32.totalorder %s26, 3
      %p105 = por %p103, %p104
      %p106 = scmp.ne.s32.totalorder %s97, %s98
      %p107 = scmp.eq.s32.totalorder %s26, 0
      %p108 = por %p106, %p107
      %p109 = scmp.ne.s32.totalorder %s97, %s98
      %p110 = scmp.eq.s32.totalorder %s27, 3
      %p111 = por %p109, %p110
      %p113 = scmp.ne.s32.totalorder %s98, %s112
      %p114 = scmp.eq.s32.totalorder %s27, 0
      %p115 = por %p113, %p114
      %s117 = sadd.s32 %s116, 1
      %p120 = scmp.eq.s32.totalorder %s21, 3
      %p121 = scmp.ne.s32.totalorder %s116, %s118
      %p122 = scmp.eq.s32.totalorder %s21, 0
      %p123 = por %p121, %p122
      %p124 = scmp.ne.s32.totalorder %s116, %s118
      %p125 = scmp.eq.s32.totalorder %s26, 3
      %p126 = por %p124, %p125
      %p127 = scmp.ne.s32.totalorder %s118, %s119
      %p128 = scmp.eq.s32.totalorder %s26, 0
      %p129 = por %p127, %p128
      %p130 = scmp.ne.s32.totalorder %s118, %s119
      %p131 = scmp.eq.s32.totalorder %s27, 3
      %p132 = por %p130, %p131
      %p134 = scmp.ne.s32.totalorder %s119, %s133
      %p135 = scmp.eq.s32.totalorder %s27, 0
      %p136 = por %p134, %p135
      %s137 = ssub.s32 %s28, %s40
      %s138 = ssub.s32 %s29, %s36
      %s139 = sor.u32 %s137, %s138
      %p140 = scmp.eq.s32.totalorder %s139, 0
      %s142 = sadd.s32 %s141, 1
      %s143 = scalar_select %p140, %s141, %s142
      %p146 = pneg %p140
      %p147 = scmp.eq.s32.totalorder %s21, 3
      %p148 = por %p146, %p147
      %p149 = scmp.ne.s32.totalorder %s141, %s144
      %p150 = scmp.eq.s32.totalorder %s21, 0
      %p151 = por %p149, %p150
      %p152 = scmp.ne.s32.totalorder %s141, %s144
      %p153 = scmp.eq.s32.totalorder %s26, 3
      %p154 = por %p152, %p153
      %p155 = scmp.ne.s32.totalorder %s144, %s145
      %p156 = scmp.eq.s32.totalorder %s26, 0
      %p157 = por %p155, %p156
      %p158 = scmp.ne.s32.totalorder %s144, %s145
      %p159 = scmp.eq.s32.totalorder %s27, 3
      %p160 = por %p158, %p159
      %p162 = scmp.ne.s32.totalorder %s145, %s161
      %p163 = scmp.eq.s32.totalorder %s27, 0
      %p164 = por %p162, %p163
      %s166 = sadd.s32 %s165, 1
      %p169 = scmp.eq.s32.totalorder %s21, 3
      %p170 = scmp.ne.s32.totalorder %s165, %s167
      %p171 = scmp.eq.s32.totalorder %s21, 0
      %p172 = por %p170, %p171
      %p173 = scmp.ne.s32.totalorder %s165, %s167
      %p174 = scmp.eq.s32.totalorder %s26, 3
      %p175 = por %p173, %p174
      %p176 = scmp.ne.s32.totalorder %s167, %s168
      %p177 = scmp.eq.s32.totalorder %s26, 0
      %p178 = por %p176, %p177
      %p179 = scmp.ne.s32.totalorder %s167, %s168
      %p180 = scmp.eq.s32.totalorder %s27, 3
      %p181 = por %p179, %p180
      %p183 = scmp.ne.s32.totalorder %s168, %s182
      %p184 = scmp.eq.s32.totalorder %s27, 0
      %p185 = por %p183, %p184
      %s187 = sadd.s32 %s186, 1
      %p190 = scmp.eq.s32.totalorder %s21, 3
      %p191 = scmp.ne.s32.totalorder %s186, %s188
      %p192 = scmp.eq.s32.totalorder %s21, 0
      %p193 = por %p191, %p192
      %p194 = scmp.ne.s32.totalorder %s186, %s188
      %p195 = scmp.eq.s32.totalorder %s26, 3
      %p196 = por %p194, %p195
      %p197 = scmp.ne.s32.totalorder %s188, %s189
      %p198 = scmp.eq.s32.totalorder %s26, 0
      %p199 = por %p197, %p198
      %p200 = scmp.ne.s32.totalorder %s188, %s189
      %p201 = scmp.eq.s32.totalorder %s27, 3
      %p202 = por %p200, %p201
      %p204 = scmp.ne.s32.totalorder %s189, %s203
      %p205 = scmp.eq.s32.totalorder %s27, 0
      %p206 = por %p204, %p205
      %s208 = sadd.s32 %s207, 1
      %p211 = scmp.eq.s32.totalorder %s21, 3
      %p212 = scmp.ne.s32.totalorder %s207, %s209
      %p213 = scmp.eq.s32.totalorder %s21, 0
      %p214 = por %p212, %p213
      %p215 = scmp.ne.s32.totalorder %s207, %s209
      %p216 = scmp.eq.s32.totalorder %s26, 3
      %p217 = por %p215, %p216
      %p218 = scmp.ne.s32.totalorder %s209, %s210
      %p219 = scmp.eq.s32.totalorder %s26, 0
      %p220 = por %p218, %p219
      %p221 = scmp.ne.s32.totalorder %s209, %s210
      %p222 = scmp.eq.s32.totalorder %s27, 3
      %p223 = por %p221, %p222
      %p225 = scmp.ne.s32.totalorder %s210, %s224
      %p226 = scmp.eq.s32.totalorder %s27, 0
      %p227 = por %p225, %p226
      %s229 = sadd.s32 %s228, 1
      %p232 = scmp.eq.s32.totalorder %s21, 3
      %p233 = scmp.ne.s32.totalorder %s228, %s230
      %p234 = scmp.eq.s32.totalorder %s21, 0
      %p235 = por %p233, %p234
      %p236 = scmp.ne.s32.totalorder %s228, %s230
      %p237 = scmp.eq.s32.totalorder %s26, 3
      %p238 = por %p236, %p237
      %p239 = scmp.ne.s32.totalorder %s230, %s231
      %p240 = scmp.eq.s32.totalorder %s26, 0
      %p241 = por %p239, %p240
      %p242 = scmp.ne.s32.totalorder %s230, %s231
      %p243 = scmp.eq.s32.totalorder %s27, 3
      %p244 = por %p242, %p243
      %p246 = scmp.ne.s32.totalorder %s231, %s245
      %p247 = scmp.eq.s32.totalorder %s27, 0
      %p248 = por %p246, %p247
      %s250 = sadd.s32 %s249, 1
      %p253 = scmp.eq.s32.totalorder %s21, 3
      %p254 = scmp.ne.s32.totalorder %s249, %s251
      %p255 = scmp.eq.s32.totalorder %s21, 0
      %p256 = por %p254, %p255
      %p257 = scmp.ne.s32.totalorder %s249, %s251
      %p258 = scmp.eq.s32.totalorder %s26, 3
      %p259 = por %p257, %p258
      %p260 = scmp.ne.s32.totalorder %s251, %s252
      %p261 = scmp.eq.s32.totalorder %s26, 0
      %p262 = por %p260, %p261
      %p263 = scmp.ne.s32.totalorder %s251, %s252
      %p264 = scmp.eq.s32.totalorder %s27, 3
      %p265 = por %p263, %p264
      %p267 = scmp.ne.s32.totalorder %s252, %s266
      %p268 = scmp.eq.s32.totalorder %s27, 0
      %p269 = por %p267, %p268
      %s271 = sadd.s32 %s270, 1
      %p274 = scmp.eq.s32.totalorder %s21, 3
      %p275 = scmp.ne.s32.totalorder %s270, %s272
      %p276 = scmp.eq.s32.totalorder %s21, 0
      %p277 = por %p275, %p276
      %p278 = scmp.ne.s32.totalorder %s270, %s272
      %p279 = scmp.eq.s32.totalorder %s26, 3
      %p280 = por %p278, %p279
      %p281 = scmp.ne.s32.totalorder %s272, %s273
      %p282 = scmp.eq.s32.totalorder %s26, 0
      %p283 = por %p281, %p282
      %p284 = scmp.ne.s32.totalorder %s272, %s273
      %p285 = scmp.eq.s32.totalorder %s27, 3
      %p286 = por %p284, %p285
      %p288 = scmp.ne.s32.totalorder %s273, %s287
      %p289 = scmp.eq.s32.totalorder %s27, 0
      %p290 = por %p288, %p289
      %s292 = sadd.s32 %s291, 1
      %p295 = scmp.eq.s32.totalorder %s21, 3
      %p296 = scmp.ne.s32.totalorder %s291, %s293
      %p297 = scmp.eq.s32.totalorder %s21, 0
      %p298 = por %p296, %p297
      %p299 = scmp.ne.s32.totalorder %s291, %s293
      %p300 = scmp.eq.s32.totalorder %s26, 3
      %p301 = por %p299, %p300
      %p302 = scmp.ne.s32.totalorder %s293, %s294
      %p303 = scmp.eq.s32.totalorder %s26, 0
      %p304 = por %p302, %p303
      %p305 = scmp.ne.s32.totalorder %s293, %s294
      %p306 = scmp.eq.s32.totalorder %s27, 3
      %p307 = por %p305, %p306
      %p309 = scmp.ne.s32.totalorder %s294, %s308
      %p310 = scmp.eq.s32.totalorder %s27, 0
      %p311 = por %p309, %p310
      %s312 = ssub.s32 %s28, %s40
      %s313 = ssub.s32 %s29, %s36
      %s314 = sor.u32 %s312, %s313
      %p315 = scmp.eq.s32.totalorder %s314, 0
      %s317 = sadd.s32 %s316, 1
      %s318 = scalar_select %p315, %s316, %s317
      %p321 = pneg %p315
      %p322 = scmp.eq.s32.totalorder %s21, 3
      %p323 = por %p321, %p322
      %p324 = scmp.ne.s32.totalorder %s316, %s319
      %p325 = scmp.eq.s32.totalorder %s21, 0
      %p326 = por %p324, %p325
      %p327 = scmp.ne.s32.totalorder %s316, %s319
      %p328 = scmp.eq.s32.totalorder %s26, 3
      %p329 = por %p327, %p328
      %p330 = scmp.ne.s32.totalorder %s319, %s320
      %p331 = scmp.eq.s32.totalorder %s26, 0
      %p332 = por %p330, %p331
      %p333 = scmp.ne.s32.totalorder %s319, %s320
      %p334 = scmp.eq.s32.totalorder %s27, 3
      %p335 = por %p333, %p334
      %p337 = scmp.ne.s32.totalorder %s320, %s336
      %p338 = scmp.eq.s32.totalorder %s27, 0
      %p339 = por %p337, %p338
      %s340 = ssub.s32 %s28, %s40
      %s341 = ssub.s32 %s29, %s36
      %s342 = sor.u32 %s340, %s341
      %p343 = scmp.eq.s32.totalorder %s342, 0
      %s345 = sadd.s32 %s344, 1
      %s346 = scalar_select %p343, %s344, %s345
      %p349 = pneg %p343
      %p350 = scmp.eq.s32.totalorder %s21, 3
      %p351 = por %p349, %p350
      %p352 = scmp.ne.s32.totalorder %s344, %s347
      %p353 = scmp.eq.s32.totalorder %s21, 0
      %p354 = por %p352, %p353
      %p355 = scmp.ne.s32.totalorder %s344, %s347
      %p356 = scmp.eq.s32.totalorder %s26, 3
      %p357 = por %p355, %p356
      %p358 = scmp.ne.s32.totalorder %s347, %s348
      %p359 = scmp.eq.s32.totalorder %s26, 0
      %p360 = por %p358, %p359
      %p361 = scmp.ne.s32.totalorder %s347, %s348
      %p362 = scmp.eq.s32.totalorder %s27, 3
      %p363 = por %p361, %p362
      %p365 = scmp.ne.s32.totalorder %s348, %s364
      %p366 = scmp.eq.s32.totalorder %s27, 0
      %p367 = por %p365, %p366
      %s368 = ssub.s32 %s28, %s40
      %p369 = scmp.eq.s32.totalorder %s368, 0
      %s371 = sadd.s32 %s370, 1
      %s372 = scalar_select %p369, %s370, %s371
      %p375 = pneg %p369
      %p376 = scmp.eq.s32.totalorder %s21, 3
      %p377 = por %p375, %p376
      %p378 = scmp.ne.s32.totalorder %s370, %s373
      %p379 = scmp.eq.s32.totalorder %s21, 0
      %p380 = por %p378, %p379
      %p381 = scmp.ne.s32.totalorder %s370, %s373
      %p382 = scmp.eq.s32.totalorder %s26, 3
      %p383 = por %p381, %p382
      %p384 = scmp.ne.s32.totalorder %s373, %s374
      %p385 = scmp.eq.s32.totalorder %s26, 0
      %p386 = por %p384, %p385
      %p387 = scmp.ne.s32.totalorder %s373, %s374
      %p388 = scmp.eq.s32.totalorder %s27, 3
      %p389 = por %p387, %p388
      %p391 = scmp.ne.s32.totalorder %s374, %s390
      %p392 = scmp.eq.s32.totalorder %s27, 0
      %p393 = por %p391, %p392
      %p394 = scmp.le.s32.totalorder 1, %s21
      %p395 = scmp.lt.s32.totalorder %s21, 5
      %p396 = pnand %p394, %p395
      %p397 = pneg %p396
      // Predicated region
      $region9: #{block_v1_forward.7} parent=5 // pred_check
        _
      $region10: #{block_v1_forward.7} parent=5 // pred_check_branch
        %399 = sbr.rel (%p396) target = $region12
      $region11: #{block_v1_forward.7} parent=5 // pred_region
        %s400 = ssub.s32 %s21, 1
        // Predicated region
        $region13: #{block_v1_forward.7} parent=11 // pred_check
          %p401 = pneg %p108
        $region14: #{block_v1_forward.7} parent=11 // pred_check_branch
          %403 = sbr.rel (%p401) target = $region16
        $region15: #{block_v1_forward.7} parent=11 // pred_region
          _
        $region16: #{block_v1_forward.7} parent=11 // pred_fallthru
          _
        // Predicated region
        $region17: #{block_v1_forward.7} parent=11 // pred_check
          %p404 = pneg %p129
        $region18: #{block_v1_forward.7} parent=11 // pred_check_branch
          %406 = sbr.rel (%p404) target = $region20
        $region19: #{block_v1_forward.7} parent=11 // pred_region
          _
        $region20: #{block_v1_forward.7} parent=11 // pred_fallthru
          _
        // Predicated region
        $region21: #{block_v1_forward.7} parent=11 // pred_check
          %p407 = pneg %p178
        $region22: #{block_v1_forward.7} parent=11 // pred_check_branch
          %409 = sbr.rel (%p407) target = $region24
        $region23: #{block_v1_forward.7} parent=11 // pred_region
          _
        $region24: #{block_v1_forward.7} parent=11 // pred_fallthru
          _
        // Predicated region
        $region25: #{block_v1_forward.7} parent=11 // pred_check
          %p410 = pneg %p199
        $region26: #{block_v1_forward.7} parent=11 // pred_check_branch
          %412 = sbr.rel (%p410) target = $region28
        $region27: #{block_v1_forward.7} parent=11 // pred_region
          _
        $region28: #{block_v1_forward.7} parent=11 // pred_fallthru
          _
        // Predicated region
        $region29: #{block_v1_forward.7} parent=11 // pred_check
          %p413 = pneg %p220
        $region30: #{block_v1_forward.7} parent=11 // pred_check_branch
          %415 = sbr.rel (%p413) target = $region32
        $region31: #{block_v1_forward.7} parent=11 // pred_region
          _
        $region32: #{block_v1_forward.7} parent=11 // pred_fallthru
          _
        // Predicated region
        $region33: #{block_v1_forward.7} parent=11 // pred_check
          %p416 = pneg %p241
        $region34: #{block_v1_forward.7} parent=11 // pred_check_branch
          %418 = sbr.rel (%p416) target = $region36
        $region35: #{block_v1_forward.7} parent=11 // pred_region
          _
        $region36: #{block_v1_forward.7} parent=11 // pred_fallthru
          _
        // Predicated region
        $region37: #{block_v1_forward.7} parent=11 // pred_check
          %p419 = pneg %p262
        $region38: #{block_v1_forward.7} parent=11 // pred_check_branch
          %421 = sbr.rel (%p419) target = $region40
        $region39: #{block_v1_forward.7} parent=11 // pred_region
          _
        $region40: #{block_v1_forward.7} parent=11 // pred_fallthru
          _
        // Predicated region
        $region41: #{block_v1_forward.7} parent=11 // pred_check
          %p422 = pneg %p283
        $region42: #{block_v1_forward.7} parent=11 // pred_check_branch
          %424 = sbr.rel (%p422) target = $region44
        $region43: #{block_v1_forward.7} parent=11 // pred_region
          _
        $region44: #{block_v1_forward.7} parent=11 // pred_fallthru
          _
        // Predicated region
        $region45: #{block_v1_forward.7} parent=11 // pred_check
          %p425 = pneg %p304
        $region46: #{block_v1_forward.7} parent=11 // pred_check_branch
          %427 = sbr.rel (%p425) target = $region48
        $region47: #{block_v1_forward.7} parent=11 // pred_region
          _
        $region48: #{block_v1_forward.7} parent=11 // pred_fallthru
          _
      $region12: #{block_v1_forward.7} parent=5 // pred_fallthru
        _
      %p428 = scmp.lt.s32.totalorder %s21, 4
      // Predicated region
      $region49: #{block_v1_forward.7} parent=5 // pred_check
        %p429 = pneg %p428
      $region50: #{block_v1_forward.7} parent=5 // pred_check_branch
        %431 = sbr.rel (%p429) target = $region52
      $region51: #{block_v1_forward.7} parent=5 // pred_region
        // Predicated region
        $region53: #{block_v1_forward.7} parent=51 // pred_check
          %p432 = pneg %p55
        $region54: #{block_v1_forward.7} parent=51 // pred_check_branch
          %434 = sbr.rel (%p432) target = $region56
        $region55: #{block_v1_forward.7} parent=51 // pred_region
          %s435 = smul.u32 16, %s29
          %p436 = scmp.lt.s32.totalorder %s28, 1
          %s437 = scalar_select %p436, %s28, 1
          %p438 = scmp.lt.s32.totalorder %s435, 31
          %s439 = scalar_select %p438, %s435, 31
          %s440 = smul.addr %s437, 32
          %s441 = sadd.s32 %s439, %s440
          %s442 = smul.addr %s441, 4
          %s443 = scalar_lea.vmem %s0, %s442
          %s444 = smul.u32 16, %s29
        $region56: #{block_v1_forward.7} parent=51 // pred_fallthru
          _
        // Predicated region
        $region57: #{block_v1_forward.7} parent=51 // pred_check
          %p445 = pneg %p81
        $region58: #{block_v1_forward.7} parent=51 // pred_check_branch
          %447 = sbr.rel (%p445) target = $region60
        $region59: #{block_v1_forward.7} parent=51 // pred_region
          %p448 = scmp.lt.s32.totalorder %s28, 1
          %s449 = scalar_select %p448, %s28, 1
          %s450 = smul.addr %s449, 2
          %s451 = scalar_lea.vmem %s1, %s450
        $region60: #{block_v1_forward.7} parent=51 // pred_fallthru
          _
        // Predicated region
        $region61: #{block_v1_forward.7} parent=51 // pred_check
          %p452 = pneg %p151
        $region62: #{block_v1_forward.7} parent=51 // pred_check_branch
          %454 = sbr.rel (%p452) target = $region64
        $region63: #{block_v1_forward.7} parent=51 // pred_region
          %p455 = scmp.lt.s32.totalorder %s28, 1
          %s456 = scalar_select %p455, %s28, 1
          %p457 = scmp.lt.s32.totalorder %s29, 1
          %s458 = scalar_select %p457, %s29, 1
          %s459 = smul.addr %s456, 2
          %s460 = sadd.s32 %s458, %s459
          %s461 = smul.addr %s460, 8
          %s462 = scalar_lea.vmem %s4, %s461
        $region64: #{block_v1_forward.7} parent=51 // pred_fallthru
          _
      $region52: #{block_v1_forward.7} parent=5 // pred_fallthru
        _
      %p463 = scmp.le.s32.totalorder 1, %s21
      %p464 = scmp.lt.s32.totalorder %s21, 5
      %p465 = pnand %p463, %p464
      %p466 = pneg %p465
      // Predicated region
      $region65: #{block_v1_forward.7} parent=5 // pred_check
        _
      $region66: #{block_v1_forward.7} parent=5 // pred_check_branch
        %468 = sbr.rel (%p465) target = $region68
      $region67: #{block_v1_forward.7} parent=5 // pred_region
        %s469 = ssub.s32 %s21, 1
        %s470 = smul.u32 16, %s31
        %p471 = scmp.lt.s32.totalorder %s30, 1
        %s472 = scalar_select %p471, %s30, 1
        %p473 = scmp.lt.s32.totalorder %s470, 31
        %s474 = scalar_select %p473, %s470, 31
        %s475 = smul.addr %s472, 32
        %s476 = sadd.s32 %s474, %s475
        %s477 = smul.addr %s476, 4
        %s478 = scalar_lea.vmem %s0, %s477
        %p479 = pneg %p61
        %p480 = pneg %p58
        %p481 = scmp.lt.s32.totalorder %s30, 1
        %s482 = scalar_select %p481, %s30, 1
        %s483 = smul.addr %s482, 2
        %s484 = scalar_lea.vmem %s1, %s483
        %p485 = pneg %p87
        %p486 = pneg %p84
        %p487 = pneg %p108
        %p488 = pneg %p105
        %p489 = pneg %p129
        %p490 = pneg %p126
        %p491 = scmp.lt.s32.totalorder %s30, 1
        %s492 = scalar_select %p491, %s30, 1
        %p493 = scmp.lt.s32.totalorder %s31, 1
        %s494 = scalar_select %p493, %s31, 1
        %s495 = smul.addr %s492, 2
        %s496 = sadd.s32 %s494, %s495
        %s497 = smul.addr %s496, 8
        %s498 = scalar_lea.vmem %s4, %s497
        %p499 = pneg %p157
        %p500 = pneg %p154
        %p501 = pneg %p178
        %p502 = pneg %p175
        %p503 = pneg %p199
        %p504 = pneg %p196
        %p505 = pneg %p220
        %p506 = pneg %p217
        %p507 = pneg %p241
        %p508 = pneg %p238
        %p509 = pneg %p262
        %p510 = pneg %p259
        %p511 = pneg %p283
        %p512 = pneg %p280
        %p513 = pneg %p304
        %p514 = pneg %p301
        %p515 = pneg %p332
        %p516 = pneg %p329
        %s517 = sand.u32 %s319, 1
        %s518 = sand.u32 %s319, 1
        %s519 = smul.addr %s518, 24
        %s520 = scalar_lea.vmem [#allocation3], %s519
        %p521 = pneg %p360
        %p522 = pneg %p357
        %s523 = smul.u32 16, %s31
        %p524 = scmp.lt.s32.totalorder %s30, 1
        %s525 = scalar_select %p524, %s30, 1
        %p526 = scmp.lt.s32.totalorder %s523, 31
        %s527 = scalar_select %p526, %s523, 31
        %s528 = smul.addr %s525, 32
        %s529 = sadd.s32 %s527, %s528
        %s530 = smul.addr %s529, 4
        %s531 = scalar_lea.vmem %s13, %s530
        %p532 = pneg %p386
        %p533 = pneg %p383
        %p534 = scmp.lt.s32.totalorder %s30, 1
        %s535 = scalar_select %p534, %s30, 1
        %s536 = smul.addr %s535, 2
        %s537 = scalar_lea.vmem %s14, %s536
        %s538 = smul.u32 16, %s31
        %p539 = scmp.lt.s32.totalorder %s30, 1
        %s540 = scalar_select %p539, %s30, 1
        %p541 = scmp.lt.s32.totalorder %s538, 31
        %s542 = scalar_select %p541, %s538, 31
        %s543 = smul.addr %s540, 32
        %s544 = sadd.s32 %s542, %s543
        %s545 = smul.addr %s544, 4
        %s546 = scalar_lea.vmem %s0, %s545
        %s547 = smul.u32 16, %s31
        %p548 = scmp.lt.s32.totalorder %s30, 1
        %s549 = scalar_select %p548, %s30, 1
        %s550 = smul.addr %s549, 2
        %s551 = scalar_lea.vmem %s1, %s550
        %p552 = scmp.lt.s32.totalorder %s30, 1
        %s553 = scalar_select %p552, %s30, 1
        %p554 = scmp.lt.s32.totalorder %s31, 1
        %s555 = scalar_select %p554, %s31, 1
        %s556 = smul.addr %s553, 2
        %s557 = sadd.s32 %s555, %s556
        %s558 = smul.addr %s557, 8
        %s559 = scalar_lea.vmem %s4, %s558
        %s560 = smul.u32 16, %s31
        %p561 = scmp.lt.s32.totalorder %s30, 1
        %s562 = scalar_select %p561, %s30, 1
        %p563 = scmp.lt.s32.totalorder %s560, 31
        %s564 = scalar_select %p563, %s560, 31
        %s565 = smul.addr %s562, 32
        %s566 = sadd.s32 %s564, %s565
        %s567 = smul.addr %s566, 4
        %s568 = scalar_lea.vmem %s13, %s567
        %s569 = smul.u32 16, %s31
        %p570 = scmp.lt.s32.totalorder %s30, 1
        %s571 = scalar_select %p570, %s30, 1
        %s572 = smul.addr %s571, 2
        %s573 = scalar_lea.vmem %s14, %s572
        %p575 = scmp.eq.s32.totalorder %s31, 0
        // Predicated region
        $region69: #{block_v1_forward.7} parent=67 // pred_check
          %p576 = pneg %p575
        $region70: #{block_v1_forward.7} parent=67 // pred_check_branch
          %578 = sbr.rel (%p576) target = $region72
        $region71: #{block_v1_forward.7} parent=67 // pred_region
          %579 = vst [vmem:[%s573] sm:$0x3] 0.0
        $region72: #{block_v1_forward.7} parent=67 // pred_fallthru
          _
        %v580 = vld [vmem:[%s546] sm:$0xf]
        %v581 = vld [vmem:[%s546 + $0x4] sm:$0xf]
        %v582 = vld [vmem:[%s546 + $0x8] sm:$0xf]
        %v583 = vld [vmem:[%s546 + $0xc] sm:$0xf]
        %v584 = vld [vmem:[%s546 + $0x10] sm:$0xf]
        %v585 = vld [vmem:[%s546 + $0x14] sm:$0xf]
        %v586 = vld [vmem:[%s546 + $0x18] sm:$0xf]
        %v587 = vld [vmem:[%s546 + $0x1c] sm:$0xf]
        %v588 = vld [vmem:[%s546 + $0x20] sm:$0xf]
        %v589 = vld [vmem:[%s546 + $0x24] sm:$0xf]
        %v590 = vld [vmem:[%s546 + $0x28] sm:$0xf]
        %v591 = vld [vmem:[%s546 + $0x2c] sm:$0xf]
        %v592 = vld [vmem:[%s546 + $0x30] sm:$0xf]
        %v593 = vld [vmem:[%s546 + $0x34] sm:$0xf]
        %v594 = vld [vmem:[%s546 + $0x38] sm:$0xf]
        %v595 = vld [vmem:[%s546 + $0x3c] sm:$0xf]
        %v596 = vunpack.c.l.bf16 %v580
        %v597 = vunpack.c.l.bf16 %v581
        %v598 = vunpack.c.l.bf16 %v582
        %v599 = vunpack.c.l.bf16 %v583
        %v600 = vunpack.c.l.bf16 %v584
        %v601 = vunpack.c.l.bf16 %v585
        %v602 = vunpack.c.l.bf16 %v586
        %v603 = vunpack.c.l.bf16 %v587
        %v604 = vunpack.c.l.bf16 %v588
        %v605 = vunpack.c.l.bf16 %v589
        %v606 = vunpack.c.l.bf16 %v590
        %v607 = vunpack.c.l.bf16 %v591
        %v608 = vunpack.c.l.bf16 %v592
        %v609 = vunpack.c.l.bf16 %v593
        %v610 = vunpack.c.l.bf16 %v594
        %v611 = vunpack.c.l.bf16 %v595
        %v612 = vld [vmem:[%s551] sm:$0x1]
        %v613 = vmul.f32 %v612, 0.00390625
        %v614 = vld [vmem:[%s551 + $0x1] sm:$0x1]
        %v615 = vmul.f32 %v614, 0.00390625
        %v616 = vmul.f32 %v613, %v613
        %v617 = vsub.f32 %v615, %v616
        %v618 = vmax.f32 %v617, 0.0
        %v619 = vadd.f32 %v618, 1e-05
        %v620 = vrsqrt.pop %v619
        %v621 = vmul.f32 %v620, %v619
        %v622 = vmul.f32 %v621, %v620
        %v623 = vmul.f32 0.5, %v622
        %v624 = vsub.f32 1.5, %v623
        %v625 = vmul.f32 %v620, %v624
        %vm626 = vweird.f32 %v619
        %vm627 = vweird.f32 %v620
        %vm628 = vmor %vm626, %vm627
        %v629 = vsel %vm628, %v620, %v625
        %v630 = vld [vmem:[%s2] sm:$0x1]
        %v631 = vmul.f32 %v629, %v630
        %v632 = vld [vmem:[%s3] sm:$0x1]
        %v633 = vmul.f32 %v613, %v631
        %v634 = vsub.f32 %v632, %v633
        %v635 = vperm.slane %v631, 0
        %v636 = vmul.f32 %v596, %v635
        %v637 = vmul.f32 %v597, %v635
        %v638 = vmul.f32 %v598, %v635
        %v639 = vmul.f32 %v599, %v635
        %v640 = vmul.f32 %v600, %v635
        %v641 = vmul.f32 %v601, %v635
        %v642 = vmul.f32 %v602, %v635
        %v643 = vmul.f32 %v603, %v635
        %v644 = vmul.f32 %v604, %v635
        %v645 = vmul.f32 %v605, %v635
        %v646 = vmul.f32 %v606, %v635
        %v647 = vmul.f32 %v607, %v635
        %v648 = vmul.f32 %v608, %v635
        %v649 = vmul.f32 %v609, %v635
        %v650 = vmul.f32 %v610, %v635
        %v651 = vmul.f32 %v611, %v635
        %v653 = vperm.slane %v634, 0
        %v655 = vadd.f32 %v636, %v653
        %v656 = vadd.f32 %v637, %v653
        %v657 = vadd.f32 %v638, %v653
        %v658 = vadd.f32 %v639, %v653
        %v659 = vadd.f32 %v640, %v653
        %v660 = vadd.f32 %v641, %v653
        %v661 = vadd.f32 %v642, %v653
        %v662 = vadd.f32 %v643, %v653
        %v663 = vadd.f32 %v644, %v653
        %v664 = vadd.f32 %v645, %v653
        %v665 = vadd.f32 %v646, %v653
        %v666 = vadd.f32 %v647, %v653
        %v667 = vadd.f32 %v648, %v653
        %v668 = vadd.f32 %v649, %v653
        %v669 = vadd.f32 %v650, %v653
        %v670 = vadd.f32 %v651, %v653
        %v671 = vpack.c.bf16 %v655, %v655
        %v672 = vpack.c.bf16 %v656, %v656
        %v673 = vpack.c.bf16 %v657, %v657
        %v674 = vpack.c.bf16 %v658, %v658
        %v675 = vpack.c.bf16 %v659, %v659
        %v676 = vpack.c.bf16 %v660, %v660
        %v677 = vpack.c.bf16 %v661, %v661
        %v678 = vpack.c.bf16 %v662, %v662
        %v679 = vpack.c.bf16 %v663, %v663
        %v680 = vpack.c.bf16 %v664, %v664
        %v681 = vpack.c.bf16 %v665, %v665
        %v682 = vpack.c.bf16 %v666, %v666
        %v683 = vpack.c.bf16 %v667, %v667
        %v684 = vpack.c.bf16 %v668, %v668
        %v685 = vpack.c.bf16 %v669, %v669
        %v686 = vpack.c.bf16 %v670, %v670
        %687 = vst [vmem:[#allocation2] sm:$0xf] %v671
        %688 = vst [vmem:[#allocation2 + $0x4] sm:$0xf] %v672
        %689 = vst [vmem:[#allocation2 + $0x8] sm:$0xf] %v673
        %690 = vst [vmem:[#allocation2 + $0xc] sm:$0xf] %v674
        %691 = vst [vmem:[#allocation2 + $0x10] sm:$0xf] %v675
        %692 = vst [vmem:[#allocation2 + $0x14] sm:$0xf] %v676
        %693 = vst [vmem:[#allocation2 + $0x18] sm:$0xf] %v677
        %694 = vst [vmem:[#allocation2 + $0x1c] sm:$0xf] %v678
        %695 = vst [vmem:[#allocation2 + $0x20] sm:$0xf] %v679
        %696 = vst [vmem:[#allocation2 + $0x24] sm:$0xf] %v680
        %697 = vst [vmem:[#allocation2 + $0x28] sm:$0xf] %v681
        %698 = vst [vmem:[#allocation2 + $0x2c] sm:$0xf] %v682
        %699 = vst [vmem:[#allocation2 + $0x30] sm:$0xf] %v683
        %700 = vst [vmem:[#allocation2 + $0x34] sm:$0xf] %v684
        %701 = vst [vmem:[#allocation2 + $0x38] sm:$0xf] %v685
        %702 = vst [vmem:[#allocation2 + $0x3c] sm:$0xf] %v686
        %v703 = vld [vmem:[#allocation2] sm:$0xf]
        %v704 = vld [vmem:[#allocation2 + $0x4] sm:$0xf]
        %v705 = vld [vmem:[#allocation2 + $0x8] sm:$0xf]
        %v706 = vld [vmem:[#allocation2 + $0xc] sm:$0xf]
        %v707 = vld [vmem:[#allocation2 + $0x10] sm:$0xf]
        %v708 = vld [vmem:[#allocation2 + $0x14] sm:$0xf]
        %v709 = vld [vmem:[#allocation2 + $0x18] sm:$0xf]
        %v710 = vld [vmem:[#allocation2 + $0x1c] sm:$0xf]
        %v711 = vld [vmem:[#allocation2 + $0x20] sm:$0xf]
        %v712 = vld [vmem:[#allocation2 + $0x24] sm:$0xf]
        %v713 = vld [vmem:[#allocation2 + $0x28] sm:$0xf]
        %v714 = vld [vmem:[#allocation2 + $0x2c] sm:$0xf]
        %v715 = vld [vmem:[#allocation2 + $0x30] sm:$0xf]
        %v716 = vld [vmem:[#allocation2 + $0x34] sm:$0xf]
        %v717 = vld [vmem:[#allocation2 + $0x38] sm:$0xf]
        %v718 = vld [vmem:[#allocation2 + $0x3c] sm:$0xf]
        %v719 = vld [vmem:[%s7] sm:$0xf]
        %v720 = vld [vmem:[%s7 + $0x4] sm:$0xf]
        %v721 = vld [vmem:[%s7 + $0x8] sm:$0xf]
        %v722 = vld [vmem:[%s7 + $0xc] sm:$0xf]
        %v723 = vld [vmem:[%s7 + $0x10] sm:$0xf]
        %v724 = vld [vmem:[%s7 + $0x14] sm:$0xf]
        %v725 = vld [vmem:[%s7 + $0x18] sm:$0xf]
        %v726 = vld [vmem:[%s7 + $0x1c] sm:$0xf]
        %v727 = vld [vmem:[%s7 + $0x20] sm:$0xf]
        %v728 = vld [vmem:[%s7 + $0x24] sm:$0xf]
        %v729 = vld [vmem:[%s7 + $0x28] sm:$0xf]
        %v730 = vld [vmem:[%s7 + $0x2c] sm:$0xf]
        %v731 = vld [vmem:[%s7 + $0x30] sm:$0xf]
        %v732 = vld [vmem:[%s7 + $0x34] sm:$0xf]
        %v733 = vld [vmem:[%s7 + $0x38] sm:$0xf]
        %v734 = vld [vmem:[%s7 + $0x3c] sm:$0xf]
        %v735 = vld [vmem:[%s8] sm:$0x1]
        %v737 = vperm.slane %v735, 0
        %v755 = vunpack.c.l.b16 %v703
        %v756 = vunpack.c.l.b16 %v704
        %v757 = vunpack.c.l.b16 %v705
        %v758 = vunpack.c.l.b16 %v706
        %v759 = vunpack.c.l.b16 %v707
        %v760 = vunpack.c.l.b16 %v708
        %v761 = vunpack.c.l.b16 %v709
        %v762 = vunpack.c.l.b16 %v710
        %v763 = vunpack.c.l.b16 %v711
        %v764 = vunpack.c.l.b16 %v712
        %v765 = vunpack.c.l.b16 %v713
        %v766 = vunpack.c.l.b16 %v714
        %v767 = vunpack.c.l.b16 %v715
        %v768 = vunpack.c.l.b16 %v716
        %v769 = vunpack.c.l.b16 %v717
        %v770 = vunpack.c.l.b16 %v718
        %v771 = vpack.c.b16 %v756, %v755
        %v772 = vpack.c.b16 %v758, %v757
        %v773 = vpack.c.b16 %v760, %v759
        %v774 = vpack.c.b16 %v762, %v761
        %v775 = vpack.c.b16 %v764, %v763
        %v776 = vpack.c.b16 %v766, %v765
        %v777 = vpack.c.b16 %v768, %v767
        %v778 = vpack.c.b16 %v770, %v769
        %v803 = vunpack.c.l.b16 %v719
        %v804 = vunpack.c.l.b16 %v720
        %v805 = vunpack.c.l.b16 %v721
        %v806 = vunpack.c.l.b16 %v722
        %v807 = vunpack.c.l.b16 %v723
        %v808 = vunpack.c.l.b16 %v724
        %v809 = vunpack.c.l.b16 %v725
        %v810 = vunpack.c.l.b16 %v726
        %v811 = vunpack.c.l.b16 %v727
        %v812 = vunpack.c.l.b16 %v728
        %v813 = vunpack.c.l.b16 %v729
        %v814 = vunpack.c.l.b16 %v730
        %v815 = vunpack.c.l.b16 %v731
        %v816 = vunpack.c.l.b16 %v732
        %v817 = vunpack.c.l.b16 %v733
        %v818 = vunpack.c.l.b16 %v734
        %v819 = vpack.c.b16 %v804, %v803
        %v820 = vpack.c.b16 %v806, %v805
        %v821 = vpack.c.b16 %v808, %v807
        %v822 = vpack.c.b16 %v810, %v809
        %v823 = vpack.c.b16 %v812, %v811
        %v824 = vpack.c.b16 %v814, %v813
        %v825 = vpack.c.b16 %v816, %v815
        %v826 = vpack.c.b16 %v818, %v817
        %835 = vmatpush.bf16.msra.mxu0 %v826
        %836 = vmatpush.bf16.msra.mxu0 %v825
        %837 = vmatpush.bf16.msra.mxu0 %v824
        %838 = vmatpush.bf16.msra.mxu0 %v823
        %839 = vmatpush.bf16.msra.mxu0 %v822
        %840 = vmatpush.bf16.msra.mxu0 %v821
        %841 = vmatpush.bf16.msra.mxu0 %v820
        %842 = vmatpush.bf16.msra.mxu0 %v819
        %843 = vmatmul.bf16.gmra.mxu0 %v771
        %v844 = vpop.f32.mrf.mxu0
        %v845 = vadd.f32 %v737, %v844
        %v846 = vpop.f32.mrf.mxu0
        %v847 = vadd.f32 %v737, %v846
        %848 = vmatmul.bf16.gmra.mxu0 %v772
        %v849 = vpop.f32.mrf.mxu0
        %v850 = vadd.f32 %v737, %v849
        %v851 = vpop.f32.mrf.mxu0
        %v852 = vadd.f32 %v737, %v851
        %853 = vmatmul.bf16.gmra.mxu0 %v773
        %v854 = vpop.f32.mrf.mxu0
        %v855 = vadd.f32 %v737, %v854
        %v856 = vpop.f32.mrf.mxu0
        %v857 = vadd.f32 %v737, %v856
        %858 = vmatmul.bf16.gmra.mxu0 %v774
        %v859 = vpop.f32.mrf.mxu0
        %v860 = vadd.f32 %v737, %v859
        %v861 = vpop.f32.mrf.mxu0
        %v862 = vadd.f32 %v737, %v861
        %863 = vmatmul.bf16.gmra.mxu0 %v775
        %v864 = vpop.f32.mrf.mxu0
        %v865 = vadd.f32 %v737, %v864
        %v866 = vpop.f32.mrf.mxu0
        %v867 = vadd.f32 %v737, %v866
        %868 = vmatmul.bf16.gmra.mxu0 %v776
        %v869 = vpop.f32.mrf.mxu0
        %v870 = vadd.f32 %v737, %v869
        %v871 = vpop.f32.mrf.mxu0
        %v872 = vadd.f32 %v737, %v871
        %873 = vmatmul.bf16.gmra.mxu0 %v777
        %v874 = vpop.f32.mrf.mxu0
        %v875 = vadd.f32 %v737, %v874
        %v876 = vpop.f32.mrf.mxu0
        %v877 = vadd.f32 %v737, %v876
        %878 = vmatmul.bf16.gmra.mxu0 %v778
        %v879 = vpop.f32.mrf.mxu0
        %v880 = vadd.f32 %v737, %v879
        %v881 = vpop.f32.mrf.mxu0
        %v882 = vadd.f32 %v737, %v881
        %883 = vdwg.mxu0
        %vm884 = vcmp.gt.f32.partialorder %v845, 0.0
        %vm885 = vcmp.gt.f32.partialorder %v847, 0.0
        %vm886 = vcmp.gt.f32.partialorder %v850, 0.0
        %vm887 = vcmp.gt.f32.partialorder %v852, 0.0
        %vm888 = vcmp.gt.f32.partialorder %v855, 0.0
        %vm889 = vcmp.gt.f32.partialorder %v857, 0.0
        %vm890 = vcmp.gt.f32.partialorder %v860, 0.0
        %vm891 = vcmp.gt.f32.partialorder %v862, 0.0
        %vm892 = vcmp.gt.f32.partialorder %v865, 0.0
        %vm893 = vcmp.gt.f32.partialorder %v867, 0.0
        %vm894 = vcmp.gt.f32.partialorder %v870, 0.0
        %vm895 = vcmp.gt.f32.partialorder %v872, 0.0
        %vm896 = vcmp.gt.f32.partialorder %v875, 0.0
        %vm897 = vcmp.gt.f32.partialorder %v877, 0.0
        %vm898 = vcmp.gt.f32.partialorder %v880, 0.0
        %vm899 = vcmp.gt.f32.partialorder %v882, 0.0
        %v900 = vmin.f32 %v845, 0.0
        %v901 = vmin.f32 %v847, 0.0
        %v902 = vmin.f32 %v850, 0.0
        %v903 = vmin.f32 %v852, 0.0
        %v904 = vmin.f32 %v855, 0.0
        %v905 = vmin.f32 %v857, 0.0
        %v906 = vmin.f32 %v860, 0.0
        %v907 = vmin.f32 %v862, 0.0
        %v908 = vmin.f32 %v865, 0.0
        %v909 = vmin.f32 %v867, 0.0
        %v910 = vmin.f32 %v870, 0.0
        %v911 = vmin.f32 %v872, 0.0
        %v912 = vmin.f32 %v875, 0.0
        %v913 = vmin.f32 %v877, 0.0
        %v914 = vmin.f32 %v880, 0.0
        %v915 = vmin.f32 %v882, 0.0
        %v916 = vmul.f32 %v900, 1.442695
        %v917 = vpow.pop %v916
        %v918 = vmul.f32 %v901, 1.442695
        %v919 = vpow.pop %v918
        %v920 = vmul.f32 %v902, 1.442695
        %v921 = vpow.pop %v920
        %v922 = vmul.f32 %v903, 1.442695
        %v923 = vpow.pop %v922
        %v924 = vmul.f32 %v904, 1.442695
        %v925 = vpow.pop %v924
        %v926 = vmul.f32 %v905, 1.442695
        %v927 = vpow.pop %v926
        %v928 = vmul.f32 %v906, 1.442695
        %v929 = vpow.pop %v928
        %v930 = vmul.f32 %v907, 1.442695
        %v931 = vpow.pop %v930
        %v932 = vmul.f32 %v908, 1.442695
        %v933 = vpow.pop %v932
        %v934 = vmul.f32 %v909, 1.442695
        %v935 = vpow.pop %v934
        %v936 = vmul.f32 %v910, 1.442695
        %v937 = vpow.pop %v936
        %v938 = vmul.f32 %v911, 1.442695
        %v939 = vpow.pop %v938
        %v940 = vmul.f32 %v912, 1.442695
        %v941 = vpow.pop %v940
        %v942 = vmul.f32 %v913, 1.442695
        %v943 = vpow.pop %v942
        %v944 = vmul.f32 %v914, 1.442695
        %v945 = vpow.pop %v944
        %v946 = vmul.f32 %v915, 1.442695
        %v947 = vpow.pop %v946
        %v948 = vsub.f32 %v917, 1.0
        %v949 = vsub.f32 %v919, 1.0
        %v950 = vsub.f32 %v921, 1.0
        %v951 = vsub.f32 %v923, 1.0
        %v952 = vsub.f32 %v925, 1.0
        %v953 = vsub.f32 %v927, 1.0
        %v954 = vsub.f32 %v929, 1.0
        %v955 = vsub.f32 %v931, 1.0
        %v956 = vsub.f32 %v933, 1.0
        %v957 = vsub.f32 %v935, 1.0
        %v958 = vsub.f32 %v937, 1.0
        %v959 = vsub.f32 %v939, 1.0
        %v960 = vsub.f32 %v941, 1.0
        %v961 = vsub.f32 %v943, 1.0
        %v962 = vsub.f32 %v945, 1.0
        %v963 = vsub.f32 %v947, 1.0
        %v964 = vsel %vm884, %v845, %v948
        %v965 = vsel %vm885, %v847, %v949
        %v966 = vsel %vm886, %v850, %v950
        %v967 = vsel %vm887, %v852, %v951
        %v968 = vsel %vm888, %v855, %v952
        %v969 = vsel %vm889, %v857, %v953
        %v970 = vsel %vm890, %v860, %v954
        %v971 = vsel %vm891, %v862, %v955
        %v972 = vsel %vm892, %v865, %v956
        %v973 = vsel %vm893, %v867, %v957
        %v974 = vsel %vm894, %v870, %v958
        %v975 = vsel %vm895, %v872, %v959
        %v976 = vsel %vm896, %v875, %v960
        %v977 = vsel %vm897, %v877, %v961
        %v978 = vsel %vm898, %v880, %v962
        %v979 = vsel %vm899, %v882, %v963
        %v980 = vld [vmem:[%s9] sm:$0xf]
        %v981 = vld [vmem:[%s9 + $0x4] sm:$0xf]
        %v982 = vld [vmem:[%s9 + $0x8] sm:$0xf]
        %v983 = vld [vmem:[%s9 + $0xc] sm:$0xf]
        %v984 = vld [vmem:[%s9 + $0x10] sm:$0xf]
        %v985 = vld [vmem:[%s9 + $0x14] sm:$0xf]
        %v986 = vld [vmem:[%s9 + $0x18] sm:$0xf]
        %v987 = vld [vmem:[%s9 + $0x1c] sm:$0xf]
        %v988 = vld [vmem:[%s9 + $0x20] sm:$0xf]
        %v989 = vld [vmem:[%s9 + $0x24] sm:$0xf]
        %v990 = vld [vmem:[%s9 + $0x28] sm:$0xf]
        %v991 = vld [vmem:[%s9 + $0x2c] sm:$0xf]
        %v992 = vld [vmem:[%s9 + $0x30] sm:$0xf]
        %v993 = vld [vmem:[%s9 + $0x34] sm:$0xf]
        %v994 = vld [vmem:[%s9 + $0x38] sm:$0xf]
        %v995 = vld [vmem:[%s9 + $0x3c] sm:$0xf]
        %v996 = vpack.c.bf16 %v965, %v964
        %v997 = vpack.c.bf16 %v967, %v966
        %v998 = vpack.c.bf16 %v969, %v968
        %v999 = vpack.c.bf16 %v971, %v970
        %v1000 = vpack.c.bf16 %v973, %v972
        %v1001 = vpack.c.bf16 %v975, %v974
        %v1002 = vpack.c.bf16 %v977, %v976
        %v1003 = vpack.c.bf16 %v979, %v978
        %v1004 = vld [vmem:[%s10] sm:$0xf]
        %v1005 = vld [vmem:[%s10 + $0x4] sm:$0xf]
        %v1006 = vld [vmem:[%s10 + $0x8] sm:$0xf]
        %v1007 = vld [vmem:[%s10 + $0xc] sm:$0xf]
        %v1008 = vld [vmem:[%s10 + $0x10] sm:$0xf]
        %v1009 = vld [vmem:[%s10 + $0x14] sm:$0xf]
        %v1010 = vld [vmem:[%s10 + $0x18] sm:$0xf]
        %v1011 = vld [vmem:[%s10 + $0x1c] sm:$0xf]
        %v1012 = vld [vmem:[%s10 + $0x20] sm:$0xf]
        %v1013 = vld [vmem:[%s10 + $0x24] sm:$0xf]
        %v1014 = vld [vmem:[%s10 + $0x28] sm:$0xf]
        %v1015 = vld [vmem:[%s10 + $0x2c] sm:$0xf]
        %v1016 = vld [vmem:[%s10 + $0x30] sm:$0xf]
        %v1017 = vld [vmem:[%s10 + $0x34] sm:$0xf]
        %v1018 = vld [vmem:[%s10 + $0x38] sm:$0xf]
        %v1019 = vld [vmem:[%s10 + $0x3c] sm:$0xf]
        %v1036 = vunpack.c.l.b16 %v1004
        %v1037 = vunpack.c.l.b16 %v1005
        %v1038 = vunpack.c.l.b16 %v1006
        %v1039 = vunpack.c.l.b16 %v1007
        %v1040 = vunpack.c.l.b16 %v1008
        %v1041 = vunpack.c.l.b16 %v1009
        %v1042 = vunpack.c.l.b16 %v1010
        %v1043 = vunpack.c.l.b16 %v1011
        %v1044 = vunpack.c.l.b16 %v1012
        %v1045 = vunpack.c.l.b16 %v1013
        %v1046 = vunpack.c.l.b16 %v1014
        %v1047 = vunpack.c.l.b16 %v1015
        %v1048 = vunpack.c.l.b16 %v1016
        %v1049 = vunpack.c.l.b16 %v1017
        %v1050 = vunpack.c.l.b16 %v1018
        %v1051 = vunpack.c.l.b16 %v1019
        %v1052 = vpack.c.b16 %v1037, %v1036
        %v1053 = vpack.c.b16 %v1039, %v1038
        %v1054 = vpack.c.b16 %v1041, %v1040
        %v1055 = vpack.c.b16 %v1043, %v1042
        %v1056 = vpack.c.b16 %v1045, %v1044
        %v1057 = vpack.c.b16 %v1047, %v1046
        %v1058 = vpack.c.b16 %v1049, %v1048
        %v1059 = vpack.c.b16 %v1051, %v1050
        %1068 = vmatpush.bf16.msra.mxu0 %v1059
        %1069 = vmatpush.bf16.msra.mxu0 %v1058
        %1070 = vmatpush.bf16.msra.mxu0 %v1057
        %1071 = vmatpush.bf16.msra.mxu0 %v1056
        %1072 = vmatpush.bf16.msra.mxu0 %v1055
        %1073 = vmatpush.bf16.msra.mxu0 %v1054
        %1074 = vmatpush.bf16.msra.mxu0 %v1053
        %1075 = vmatpush.bf16.msra.mxu0 %v1052
        %1076 = vmatmul.bf16.gmra.mxu0 %v996
        %v1077 = vpop.f32.mrf.mxu0
        %v1078 = vadd.f32 0.0, %v1077
        %v1079 = vpop.f32.mrf.mxu0
        %v1080 = vadd.f32 0.0, %v1079
        %1081 = vmatmul.bf16.gmra.mxu0 %v997
        %v1082 = vpop.f32.mrf.mxu0
        %v1083 = vadd.f32 0.0, %v1082
        %v1084 = vpop.f32.mrf.mxu0
        %v1085 = vadd.f32 0.0, %v1084
        %1086 = vmatmul.bf16.gmra.mxu0 %v998
        %v1087 = vpop.f32.mrf.mxu0
        %v1088 = vadd.f32 0.0, %v1087
        %v1089 = vpop.f32.mrf.mxu0
        %v1090 = vadd.f32 0.0, %v1089
        %1091 = vmatmul.bf16.gmra.mxu0 %v999
        %v1092 = vpop.f32.mrf.mxu0
        %v1093 = vadd.f32 0.0, %v1092
        %v1094 = vpop.f32.mrf.mxu0
        %v1095 = vadd.f32 0.0, %v1094
        %1096 = vmatmul.bf16.gmra.mxu0 %v1000
        %v1097 = vpop.f32.mrf.mxu0
        %v1098 = vadd.f32 0.0, %v1097
        %v1099 = vpop.f32.mrf.mxu0
        %v1100 = vadd.f32 0.0, %v1099
        %1101 = vmatmul.bf16.gmra.mxu0 %v1001
        %v1102 = vpop.f32.mrf.mxu0
        %v1103 = vadd.f32 0.0, %v1102
        %v1104 = vpop.f32.mrf.mxu0
        %v1105 = vadd.f32 0.0, %v1104
        %1106 = vmatmul.bf16.gmra.mxu0 %v1002
        %v1107 = vpop.f32.mrf.mxu0
        %v1108 = vadd.f32 0.0, %v1107
        %v1109 = vpop.f32.mrf.mxu0
        %v1110 = vadd.f32 0.0, %v1109
        %1111 = vmatmul.bf16.gmra.mxu0 %v1003
        %v1112 = vpop.f32.mrf.mxu0
        %v1113 = vadd.f32 0.0, %v1112
        %v1114 = vpop.f32.mrf.mxu0
        %v1115 = vadd.f32 0.0, %v1114
        %1116 = vdwg.mxu0
        %v1133 = vunpack.c.l.b16 %v580
        %v1134 = vunpack.c.l.b16 %v581
        %v1135 = vunpack.c.l.b16 %v582
        %v1136 = vunpack.c.l.b16 %v583
        %v1137 = vunpack.c.l.b16 %v584
        %v1138 = vunpack.c.l.b16 %v585
        %v1139 = vunpack.c.l.b16 %v586
        %v1140 = vunpack.c.l.b16 %v587
        %v1141 = vunpack.c.l.b16 %v588
        %v1142 = vunpack.c.l.b16 %v589
        %v1143 = vunpack.c.l.b16 %v590
        %v1144 = vunpack.c.l.b16 %v591
        %v1145 = vunpack.c.l.b16 %v592
        %v1146 = vunpack.c.l.b16 %v593
        %v1147 = vunpack.c.l.b16 %v594
        %v1148 = vunpack.c.l.b16 %v595
        %v1149 = vpack.c.b16 %v1134, %v1133
        %v1150 = vpack.c.b16 %v1136, %v1135
        %v1151 = vpack.c.b16 %v1138, %v1137
        %v1152 = vpack.c.b16 %v1140, %v1139
        %v1153 = vpack.c.b16 %v1142, %v1141
        %v1154 = vpack.c.b16 %v1144, %v1143
        %v1155 = vpack.c.b16 %v1146, %v1145
        %v1156 = vpack.c.b16 %v1148, %v1147
        %v1181 = vunpack.c.l.b16 %v980
        %v1182 = vunpack.c.l.b16 %v981
        %v1183 = vunpack.c.l.b16 %v982
        %v1184 = vunpack.c.l.b16 %v983
        %v1185 = vunpack.c.l.b16 %v984
        %v1186 = vunpack.c.l.b16 %v985
        %v1187 = vunpack.c.l.b16 %v986
        %v1188 = vunpack.c.l.b16 %v987
        %v1189 = vunpack.c.l.b16 %v988
        %v1190 = vunpack.c.l.b16 %v989
        %v1191 = vunpack.c.l.b16 %v990
        %v1192 = vunpack.c.l.b16 %v991
        %v1193 = vunpack.c.l.b16 %v992
        %v1194 = vunpack.c.l.b16 %v993
        %v1195 = vunpack.c.l.b16 %v994
        %v1196 = vunpack.c.l.b16 %v995
        %v1197 = vpack.c.b16 %v1182, %v1181
        %v1198 = vpack.c.b16 %v1184, %v1183
        %v1199 = vpack.c.b16 %v1186, %v1185
        %v1200 = vpack.c.b16 %v1188, %v1187
        %v1201 = vpack.c.b16 %v1190, %v1189
        %v1202 = vpack.c.b16 %v1192, %v1191
        %v1203 = vpack.c.b16 %v1194, %v1193
        %v1204 = vpack.c.b16 %v1196, %v1195
        %1213 = vmatpush.bf16.msra.mxu0 %v1204
        %1214 = vmatpush.bf16.msra.mxu0 %v1203
        %1215 = vmatpush.bf16.msra.mxu0 %v1202
        %1216 = vmatpush.bf16.msra.mxu0 %v1201
        %1217 = vmatpush.bf16.msra.mxu0 %v1200
        %1218 = vmatpush.bf16.msra.mxu0 %v1199
        %1219 = vmatpush.bf16.msra.mxu0 %v1198
        %1220 = vmatpush.bf16.msra.mxu0 %v1197
        %1221 = vmatmul.bf16.gmra.mxu0 %v1149
        %v1222 = vpop.f32.mrf.mxu0
        %v1223 = vadd.f32 %v1078, %v1222
        %v1224 = vpop.f32.mrf.mxu0
        %v1225 = vadd.f32 %v1080, %v1224
        %1226 = vmatmul.bf16.gmra.mxu0 %v1150
        %v1227 = vpop.f32.mrf.mxu0
        %v1228 = vadd.f32 %v1083, %v1227
        %v1229 = vpop.f32.mrf.mxu0
        %v1230 = vadd.f32 %v1085, %v1229
        %1231 = vmatmul.bf16.gmra.mxu0 %v1151
        %v1232 = vpop.f32.mrf.mxu0
        %v1233 = vadd.f32 %v1088, %v1232
        %v1234 = vpop.f32.mrf.mxu0
        %v1235 = vadd.f32 %v1090, %v1234
        %1236 = vmatmul.bf16.gmra.mxu0 %v1152
        %v1237 = vpop.f32.mrf.mxu0
        %v1238 = vadd.f32 %v1093, %v1237
        %v1239 = vpop.f32.mrf.mxu0
        %v1240 = vadd.f32 %v1095, %v1239
        %1241 = vmatmul.bf16.gmra.mxu0 %v1153
        %v1242 = vpop.f32.mrf.mxu0
        %v1243 = vadd.f32 %v1098, %v1242
        %v1244 = vpop.f32.mrf.mxu0
        %v1245 = vadd.f32 %v1100, %v1244
        %1246 = vmatmul.bf16.gmra.mxu0 %v1154
        %v1247 = vpop.f32.mrf.mxu0
        %v1248 = vadd.f32 %v1103, %v1247
        %v1249 = vpop.f32.mrf.mxu0
        %v1250 = vadd.f32 %v1105, %v1249
        %1251 = vmatmul.bf16.gmra.mxu0 %v1155
        %v1252 = vpop.f32.mrf.mxu0
        %v1253 = vadd.f32 %v1108, %v1252
        %v1254 = vpop.f32.mrf.mxu0
        %v1255 = vadd.f32 %v1110, %v1254
        %1256 = vmatmul.bf16.gmra.mxu0 %v1156
        %v1257 = vpop.f32.mrf.mxu0
        %v1258 = vadd.f32 %v1113, %v1257
        %v1259 = vpop.f32.mrf.mxu0
        %v1260 = vadd.f32 %v1115, %v1259
        %1261 = vdwg.mxu0
        %v1262 = vld [vmem:[%s11] sm:$0x1]
        %v1264 = vperm.slane %v1262, 0
        %v1266 = vadd.f32 %v1223, %v1264
        %v1267 = vadd.f32 %v1225, %v1264
        %v1268 = vadd.f32 %v1228, %v1264
        %v1269 = vadd.f32 %v1230, %v1264
        %v1270 = vadd.f32 %v1233, %v1264
        %v1271 = vadd.f32 %v1235, %v1264
        %v1272 = vadd.f32 %v1238, %v1264
        %v1273 = vadd.f32 %v1240, %v1264
        %v1274 = vadd.f32 %v1243, %v1264
        %v1275 = vadd.f32 %v1245, %v1264
        %v1276 = vadd.f32 %v1248, %v1264
        %v1277 = vadd.f32 %v1250, %v1264
        %v1278 = vadd.f32 %v1253, %v1264
        %v1279 = vadd.f32 %v1255, %v1264
        %v1280 = vadd.f32 %v1258, %v1264
        %v1281 = vadd.f32 %v1260, %v1264
        %vm1282 = vcmp.gt.f32.partialorder %v1266, 0.0
        %vm1283 = vcmp.gt.f32.partialorder %v1267, 0.0
        %vm1284 = vcmp.gt.f32.partialorder %v1268, 0.0
        %vm1285 = vcmp.gt.f32.partialorder %v1269, 0.0
        %vm1286 = vcmp.gt.f32.partialorder %v1270, 0.0
        %vm1287 = vcmp.gt.f32.partialorder %v1271, 0.0
        %vm1288 = vcmp.gt.f32.partialorder %v1272, 0.0
        %vm1289 = vcmp.gt.f32.partialorder %v1273, 0.0
        %vm1290 = vcmp.gt.f32.partialorder %v1274, 0.0
        %vm1291 = vcmp.gt.f32.partialorder %v1275, 0.0
        %vm1292 = vcmp.gt.f32.partialorder %v1276, 0.0
        %vm1293 = vcmp.gt.f32.partialorder %v1277, 0.0
        %vm1294 = vcmp.gt.f32.partialorder %v1278, 0.0
        %vm1295 = vcmp.gt.f32.partialorder %v1279, 0.0
        %vm1296 = vcmp.gt.f32.partialorder %v1280, 0.0
        %vm1297 = vcmp.gt.f32.partialorder %v1281, 0.0
        %v1298 = vmin.f32 %v1266, 0.0
        %v1299 = vmin.f32 %v1267, 0.0
        %v1300 = vmin.f32 %v1268, 0.0
        %v1301 = vmin.f32 %v1269, 0.0
        %v1302 = vmin.f32 %v1270, 0.0
        %v1303 = vmin.f32 %v1271, 0.0
        %v1304 = vmin.f32 %v1272, 0.0
        %v1305 = vmin.f32 %v1273, 0.0
        %v1306 = vmin.f32 %v1274, 0.0
        %v1307 = vmin.f32 %v1275, 0.0
        %v1308 = vmin.f32 %v1276, 0.0
        %v1309 = vmin.f32 %v1277, 0.0
        %v1310 = vmin.f32 %v1278, 0.0
        %v1311 = vmin.f32 %v1279, 0.0
        %v1312 = vmin.f32 %v1280, 0.0
        %v1313 = vmin.f32 %v1281, 0.0
        %v1314 = vmul.f32 %v1298, 1.442695
        %v1315 = vpow.pop %v1314
        %v1316 = vmul.f32 %v1299, 1.442695
        %v1317 = vpow.pop %v1316
        %v1318 = vmul.f32 %v1300, 1.442695
        %v1319 = vpow.pop %v1318
        %v1320 = vmul.f32 %v1301, 1.442695
        %v1321 = vpow.pop %v1320
        %v1322 = vmul.f32 %v1302, 1.442695
        %v1323 = vpow.pop %v1322
        %v1324 = vmul.f32 %v1303, 1.442695
        %v1325 = vpow.pop %v1324
        %v1326 = vmul.f32 %v1304, 1.442695
        %v1327 = vpow.pop %v1326
        %v1328 = vmul.f32 %v1305, 1.442695
        %v1329 = vpow.pop %v1328
        %v1330 = vmul.f32 %v1306, 1.442695
        %v1331 = vpow.pop %v1330
        %v1332 = vmul.f32 %v1307, 1.442695
        %v1333 = vpow.pop %v1332
        %v1334 = vmul.f32 %v1308, 1.442695
        %v1335 = vpow.pop %v1334
        %v1336 = vmul.f32 %v1309, 1.442695
        %v1337 = vpow.pop %v1336
        %v1338 = vmul.f32 %v1310, 1.442695
        %v1339 = vpow.pop %v1338
        %v1340 = vmul.f32 %v1311, 1.442695
        %v1341 = vpow.pop %v1340
        %v1342 = vmul.f32 %v1312, 1.442695
        %v1343 = vpow.pop %v1342
        %v1344 = vmul.f32 %v1313, 1.442695
        %v1345 = vpow.pop %v1344
        %v1346 = vsub.f32 %v1315, 1.0
        %v1347 = vsub.f32 %v1317, 1.0
        %v1348 = vsub.f32 %v1319, 1.0
        %v1349 = vsub.f32 %v1321, 1.0
        %v1350 = vsub.f32 %v1323, 1.0
        %v1351 = vsub.f32 %v1325, 1.0
        %v1352 = vsub.f32 %v1327, 1.0
        %v1353 = vsub.f32 %v1329, 1.0
        %v1354 = vsub.f32 %v1331, 1.0
        %v1355 = vsub.f32 %v1333, 1.0
        %v1356 = vsub.f32 %v1335, 1.0
        %v1357 = vsub.f32 %v1337, 1.0
        %v1358 = vsub.f32 %v1339, 1.0
        %v1359 = vsub.f32 %v1341, 1.0
        %v1360 = vsub.f32 %v1343, 1.0
        %v1361 = vsub.f32 %v1345, 1.0
        %v1362 = vsel %vm1282, %v1266, %v1346
        %v1363 = vsel %vm1283, %v1267, %v1347
        %v1364 = vsel %vm1284, %v1268, %v1348
        %v1365 = vsel %vm1285, %v1269, %v1349
        %v1366 = vsel %vm1286, %v1270, %v1350
        %v1367 = vsel %vm1287, %v1271, %v1351
        %v1368 = vsel %vm1288, %v1272, %v1352
        %v1369 = vsel %vm1289, %v1273, %v1353
        %v1370 = vsel %vm1290, %v1274, %v1354
        %v1371 = vsel %vm1291, %v1275, %v1355
        %v1372 = vsel %vm1292, %v1276, %v1356
        %v1373 = vsel %vm1293, %v1277, %v1357
        %v1374 = vsel %vm1294, %v1278, %v1358
        %v1375 = vsel %vm1295, %v1279, %v1359
        %v1376 = vsel %vm1296, %v1280, %v1360
        %v1377 = vsel %vm1297, %v1281, %v1361
        %v1378 = vpack.c.bf16 %v1362, %v1362
        %v1379 = vpack.c.bf16 %v1363, %v1363
        %v1380 = vpack.c.bf16 %v1364, %v1364
        %v1381 = vpack.c.bf16 %v1365, %v1365
        %v1382 = vpack.c.bf16 %v1366, %v1366
        %v1383 = vpack.c.bf16 %v1367, %v1367
        %v1384 = vpack.c.bf16 %v1368, %v1368
        %v1385 = vpack.c.bf16 %v1369, %v1369
        %v1386 = vpack.c.bf16 %v1370, %v1370
        %v1387 = vpack.c.bf16 %v1371, %v1371
        %v1388 = vpack.c.bf16 %v1372, %v1372
        %v1389 = vpack.c.bf16 %v1373, %v1373
        %v1390 = vpack.c.bf16 %v1374, %v1374
        %v1391 = vpack.c.bf16 %v1375, %v1375
        %v1392 = vpack.c.bf16 %v1376, %v1376
        %v1393 = vpack.c.bf16 %v1377, %v1377
        %1394 = vst [vmem:[%s568] sm:$0xf] %v1378
        %1395 = vst [vmem:[%s568 + $0x4] sm:$0xf] %v1379
        %1396 = vst [vmem:[%s568 + $0x8] sm:$0xf] %v1380
        %1397 = vst [vmem:[%s568 + $0xc] sm:$0xf] %v1381
        %1398 = vst [vmem:[%s568 + $0x10] sm:$0xf] %v1382
        %1399 = vst [vmem:[%s568 + $0x14] sm:$0xf] %v1383
        %1400 = vst [vmem:[%s568 + $0x18] sm:$0xf] %v1384
        %1401 = vst [vmem:[%s568 + $0x1c] sm:$0xf] %v1385
        %1402 = vst [vmem:[%s568 + $0x20] sm:$0xf] %v1386
        %1403 = vst [vmem:[%s568 + $0x24] sm:$0xf] %v1387
        %1404 = vst [vmem:[%s568 + $0x28] sm:$0xf] %v1388
        %1405 = vst [vmem:[%s568 + $0x2c] sm:$0xf] %v1389
        %1406 = vst [vmem:[%s568 + $0x30] sm:$0xf] %v1390
        %1407 = vst [vmem:[%s568 + $0x34] sm:$0xf] %v1391
        %1408 = vst [vmem:[%s568 + $0x38] sm:$0xf] %v1392
        %1409 = vst [vmem:[%s568 + $0x3c] sm:$0xf] %v1393
        %v1410 = vld [vmem:[%s573] sm:$0x1]
        %v1411 = vadd.f32 %v1362, %v1363
        %v1412 = vadd.f32 %v1411, %v1364
        %v1413 = vadd.f32 %v1412, %v1365
        %v1414 = vadd.f32 %v1413, %v1366
        %v1415 = vadd.f32 %v1414, %v1367
        %v1416 = vadd.f32 %v1415, %v1368
        %v1417 = vadd.f32 %v1416, %v1369
        %v1418 = vadd.f32 %v1417, %v1370
        %v1419 = vadd.f32 %v1418, %v1371
        %v1420 = vadd.f32 %v1419, %v1372
        %v1421 = vadd.f32 %v1420, %v1373
        %v1422 = vadd.f32 %v1421, %v1374
        %v1423 = vadd.f32 %v1422, %v1375
        %v1424 = vadd.f32 %v1423, %v1376
        %v1425 = vadd.f32 %v1424, %v1377
        %v1426 = vrot.slane %v1425, 4
        %v1427 = vadd.f32 %v1425, %v1426
        %v1428 = vrot.slane %v1427, 2
        %v1429 = vadd.f32 %v1427, %v1428
        %v1430 = vrot.slane %v1429, 1
        %v1431 = vadd.f32 %v1429, %v1430
        %v1432 = vadd.f32 %v1410, %v1431
        %1433 = vst [vmem:[%s573] sm:$0x1] %v1432
        %v1434 = vld [vmem:[%s573 + $0x1] sm:$0x1]
        %v1435 = vmul.f32 %v1362, %v1362
        %v1436 = vmul.f32 %v1363, %v1363
        %v1437 = vmul.f32 %v1364, %v1364
        %v1438 = vmul.f32 %v1365, %v1365
        %v1439 = vmul.f32 %v1366, %v1366
        %v1440 = vmul.f32 %v1367, %v1367
        %v1441 = vmul.f32 %v1368, %v1368
        %v1442 = vmul.f32 %v1369, %v1369
        %v1443 = vmul.f32 %v1370, %v1370
        %v1444 = vmul.f32 %v1371, %v1371
        %v1445 = vmul.f32 %v1372, %v1372
        %v1446 = vmul.f32 %v1373, %v1373
        %v1447 = vmul.f32 %v1374, %v1374
        %v1448 = vmul.f32 %v1375, %v1375
        %v1449 = vmul.f32 %v1376, %v1376
        %v1450 = vmul.f32 %v1377, %v1377
        %v1451 = vadd.f32 %v1435, %v1436
        %v1452 = vadd.f32 %v1451, %v1437
        %v1453 = vadd.f32 %v1452, %v1438
        %v1454 = vadd.f32 %v1453, %v1439
        %v1455 = vadd.f32 %v1454, %v1440
        %v1456 = vadd.f32 %v1455, %v1441
        %v1457 = vadd.f32 %v1456, %v1442
        %v1458 = vadd.f32 %v1457, %v1443
        %v1459 = vadd.f32 %v1458, %v1444
        %v1460 = vadd.f32 %v1459, %v1445
        %v1461 = vadd.f32 %v1460, %v1446
        %v1462 = vadd.f32 %v1461, %v1447
        %v1463 = vadd.f32 %v1462, %v1448
        %v1464 = vadd.f32 %v1463, %v1449
        %v1465 = vadd.f32 %v1464, %v1450
        %v1466 = vrot.slane %v1465, 4
        %v1467 = vadd.f32 %v1465, %v1466
        %v1468 = vrot.slane %v1467, 2
        %v1469 = vadd.f32 %v1467, %v1468
        %v1470 = vrot.slane %v1469, 1
        %v1471 = vadd.f32 %v1469, %v1470
        %v1472 = vadd.f32 %v1434, %v1471
        %1473 = vst [vmem:[%s573 + $0x1] sm:$0x1] %v1472
        %v1474 = vld [vmem:[%s5] sm:$0x3]
        %v1475 = vld [vmem:[%s6] sm:$0x7]
        loop: start=0, step=1, limit=8
        $region73: #{block_v1_forward.7} parent=67 // loop_pre_header
          _
        $region74: #{block_v1_forward.7} parent=67 // loop_header
          %s1477 = sphi 0, %s1481
          %p1478 = scmp.ge.s32.totalorder %s1477, 8
        $region75: #{block_v1_forward.7} parent=67 // loop_header_branch
          %1480 = sbr.rel (%p1478) target = $region79
        $region76: #{block_v1_forward.7} parent=67 // loop_body
          %s1482 = smul.u32 %s1477, 16
          %s1483 = sshra.s32 %s1482, 3
          %s1484 = sand.u32 %s1482, 7
          %s1485 = smul.addr %s1483, 4
          %s1486 = scalar_lea.vmem [#allocation2], %s1485
          %v1487 = vld [vmem:[%s1486] sm:$0xf]
          %v1488 = vld [vmem:[%s1486 + $0x4] sm:$0xf]
          %1490 = vset.pattern.permute.xlu0 0
          %1491 = vperm.xlu0 %1490, %v1475
          %v1492 = vpop.permute.xlu0 %1491
          %v1496 = vunpack.c.l.b16 %v1487
          %v1497 = vunpack.c.l.b16 %v1488
          %v1498 = vpack.c.b16 %v1497, %v1496
          %1500 = vmatpush.bf16.xpose.msra.mxu0 0
          %1501 = vmatpush.bf16.xpose.msra.mxu0 0
          %1502 = vmatpush.bf16.xpose.msra.mxu0 0
          %1503 = vmatpush.bf16.xpose.msra.mxu0 0
          %1504 = vmatpush.bf16.xpose.msra.mxu0 0
          %1505 = vmatpush.bf16.xpose.msra.mxu0 0
          %1506 = vmatpush.bf16.xpose.msra.mxu0 0
          %1507 = vmatpush.bf16.xpose.msra.mxu0 %v1498
          %1508 = vmatmul.bf16.gmra.mxu0 %v1474
          %v1509 = vpop.f32.mrf.mxu0
          %v1510 = vadd.f32 %v1492, %v1509
          %v1511 = vpop.f32.mrf.mxu0
          %1512 = vdwg.mxu0
          %s1513 = scalar_lea.vmem %s559, %s1477
          %v1514 = vld [vmem:[%s1513] sm:$0x1]
          %v1515 = vperm.slane %v1514, 0
          %v1516 = vmul.f32 %v1510, %v1515
          %v1518 = vrot.slane %v1516, 1
          %v1519 = vrot.slane %v1516, 2
          %s1522 = scalar_lea.vmem %s520, %s1477 [#allocation3]
          %vm1523 = vcmask 122880
          %1524 = vst.msk [vmem:[%s1522] sm:$0x1] %vm1523, %v1516
          %1525 = vst.msk [vmem:[%s1522 + $0x8] sm:$0x1] %vm1523, %v1518
          %1526 = vst.msk [vmem:[%s1522 + $0x10] sm:$0x1] %vm1523, %v1519
        $region77: #{block_v1_forward.7} parent=67 // loop_footer
          %s1481 = sadd.s32 1, %s1477
        $region78: #{block_v1_forward.7} parent=67 // loop_footer_branch
          %1476 = sbr.rel target = $region74
        $region79: #{block_v1_forward.7} parent=67 // loop_exit
          _
        %s1527 = sand.u32 %s319, 1
        %s1528 = sand.u32 %s319, 1
        %s1529 = smul.addr %s1528, 24
        %s1530 = scalar_lea.vmem [#allocation3], %s1529
        %s1531 = smul.u32 16, %s31
        %p1532 = scmp.lt.s32.totalorder %s30, 1
        %s1533 = scalar_select %p1532, %s30, 1
        %p1534 = scmp.lt.s32.totalorder %s1531, 31
        %s1535 = scalar_select %p1534, %s1531, 31
        %s1536 = smul.addr %s1533, 32
        %s1537 = sadd.s32 %s1535, %s1536
        %s1538 = smul.addr %s1537, 4
        %s1539 = scalar_lea.vmem %s13, %s1538
        %p1540 = scmp.lt.s32.totalorder %s30, 1
        %s1541 = scalar_select %p1540, %s30, 1
        %s1542 = smul.addr %s1541, 2
        %s1543 = scalar_lea.vmem %s14, %s1542
        // Predicated region
        $region80: #{block_v1_forward.7} parent=67 // pred_check
          %p1544 = pneg %p329
        $region81: #{block_v1_forward.7} parent=67 // pred_check_branch
          %1546 = sbr.rel (%p1544) target = $region83
        $region82: #{block_v1_forward.7} parent=67 // pred_region
          %s1547 = smul.addr %s30, 6
          %s1548 = sadd.s32 %s31, %s1547
          %s1549 = smul.addr %s1548, 8
          %s1550 = scalar_lea.vmem %s12, %s1549
          // Predicated region
          $region84: #{block_v1_forward.7} parent=82 // pred_check
            _
          $region85: #{block_v1_forward.7} parent=82 // pred_check_branch
            %1552 = sbr.rel (0) target = $region87
          $region86: #{block_v1_forward.7} parent=82 // pred_region
            // Predicated region
            $region88: #{block_v1_forward.7} parent=86 // pred_check
              _
            $region89: #{block_v1_forward.7} parent=86 // pred_check_branch
              %1554 = sbr.rel (0) target = $region91
            $region90: #{block_v1_forward.7} parent=86 // pred_region
              // Predicated region
              $region103: #{block_v1_forward.7} parent=90 // pred_check
                _
              $region104: #{block_v1_forward.7} parent=90 // pred_check_branch
                %1574 = sbr.rel (0) target = $region106
              $region105: #{block_v1_forward.7} parent=90 // pred_region
                loop: start=0, step=1, limit=1
                $region107: #{block_v1_forward.7} parent=105 // loop_pre_header
                  _
                $region108: #{block_v1_forward.7} parent=105 // loop_header
                  %s1576 = sphi 0, %s1580
                  %p1577 = scmp.ge.s32.totalorder %s1576, 1
                  %s1581 = sphi %s1530, %s1530
                  %s1582 = sphi %s1550, %s1550
                $region109: #{block_v1_forward.7} parent=105 // loop_header_branch
                  %1579 = sbr.rel (%p1577) target = $region113
                $region110: #{block_v1_forward.7} parent=105 // loop_body
                  %v1583 = vld [vmem:[%s1581] sm:$0xff]
                  %1584 = vst [vmem:[%s1582] sm:$0xff] %v1583
                  %v1585 = vld [vmem:[%s1581 + $0x8] sm:$0xff]
                  %1586 = vst [vmem:[%s1582 + $0x10] sm:$0xff] %v1585
                  %v1587 = vld [vmem:[%s1581 + $0x10] sm:$0xff]
                  %1588 = vst [vmem:[%s1582 + $0x20] sm:$0xff] %v1587
                $region111: #{block_v1_forward.7} parent=105 // loop_footer
                  %s1580 = sadd.s32 1, %s1576
                $region112: #{block_v1_forward.7} parent=105 // loop_footer_branch
                  %1575 = sbr.rel target = $region108
                $region113: #{block_v1_forward.7} parent=105 // loop_exit
                  _
              $region106: #{block_v1_forward.7} parent=90 // pred_fallthru
                _
              // Predicated region
              $region114: #{block_v1_forward.7} parent=90 // pred_check
                _
              $region115: #{block_v1_forward.7} parent=90 // pred_check_branch
                %1590 = sbr.rel target = $region117
              $region116: #{block_v1_forward.7} parent=90 // pred_region
                _
              $region117: #{block_v1_forward.7} parent=90 // pred_fallthru
                _
            $region91: #{block_v1_forward.7} parent=86 // pred_fallthru
              _
            // Predicated region
            $region92: #{block_v1_forward.7} parent=86 // pred_check
              _
            $region93: #{block_v1_forward.7} parent=86 // pred_check_branch
              %1556 = sbr.rel target = $region95
            $region94: #{block_v1_forward.7} parent=86 // pred_region
              %s1558 = ssub.s32 256, 1
              loop: start=0, step=1, limit=1
              $region96: #{block_v1_forward.7} parent=94 // loop_pre_header
                _
              $region97: #{block_v1_forward.7} parent=94 // loop_header
                %s1560 = sphi 0, %s1564
                %p1561 = scmp.ge.s32.totalorder %s1560, 1
                %s1565 = sphi %s1530, %s1530
                %s1566 = sphi %s1550, %s1550
              $region98: #{block_v1_forward.7} parent=94 // loop_header_branch
                %1563 = sbr.rel (%p1561) target = $region102
              $region99: #{block_v1_forward.7} parent=94 // loop_body
                %v1567 = vld [vmem:[%s1565] sm:%s1558]
                %1568 = vst [vmem:[%s1566] sm:%s1558] %v1567
                %v1569 = vld [vmem:[%s1565 + $0x8] sm:%s1558]
                %1570 = vst [vmem:[%s1566 + $0x10] sm:%s1558] %v1569
                %v1571 = vld [vmem:[%s1565 + $0x10] sm:%s1558]
                %1572 = vst [vmem:[%s1566 + $0x20] sm:%s1558] %v1571
              $region100: #{block_v1_forward.7} parent=94 // loop_footer
                %s1564 = sadd.s32 1, %s1560
              $region101: #{block_v1_forward.7} parent=94 // loop_footer_branch
                %1559 = sbr.rel target = $region97
              $region102: #{block_v1_forward.7} parent=94 // loop_exit
                _
            $region95: #{block_v1_forward.7} parent=86 // pred_fallthru
              _
          $region87: #{block_v1_forward.7} parent=82 // pred_fallthru
            _
          %1591 = vnop
        $region83: #{block_v1_forward.7} parent=67 // pred_fallthru
          _
        // Predicated region
        $region118: #{block_v1_forward.7} parent=67 // pred_check
          %p1592 = pneg %p357
        $region119: #{block_v1_forward.7} parent=67 // pred_check_branch
          %1594 = sbr.rel (%p1592) target = $region121
        $region120: #{block_v1_forward.7} parent=67 // pred_region
          %s1595 = smul.u32 16, %s31
        $region121: #{block_v1_forward.7} parent=67 // pred_fallthru
          _
        // Predicated region
        $region122: #{block_v1_forward.7} parent=67 // pred_check
          %p1596 = pneg %p383
        $region123: #{block_v1_forward.7} parent=67 // pred_check_branch
          %1598 = sbr.rel (%p1596) target = $region125
        $region124: #{block_v1_forward.7} parent=67 // pred_region
          _
        $region125: #{block_v1_forward.7} parent=67 // pred_fallthru
          _
      $region68: #{block_v1_forward.7} parent=5 // pred_fallthru
        _
      %p1599 = scmp.le.s32.totalorder 2, %s21
      // Predicated region
      $region126: #{block_v1_forward.7} parent=5 // pred_check
        %p1600 = pneg %p1599
      $region127: #{block_v1_forward.7} parent=5 // pred_check_branch
        %1602 = sbr.rel (%p1600) target = $region129
      $region128: #{block_v1_forward.7} parent=5 // pred_region
        %s1603 = ssub.s32 %s21, 2
        // Predicated region
        $region130: #{block_v1_forward.7} parent=128 // pred_check
          %p1604 = pneg %p335
        $region131: #{block_v1_forward.7} parent=128 // pred_check_branch
          %1606 = sbr.rel (%p1604) target = $region133
        $region132: #{block_v1_forward.7} parent=128 // pred_region
          %s1607 = sand.u32 %s320, 1
          %s1608 = sand.u32 %s320, 1
          %s1609 = smul.addr %s1608, 24
          %s1610 = scalar_lea.vmem [#allocation3], %s1609
        $region133: #{block_v1_forward.7} parent=128 // pred_fallthru
          _
        // Predicated region
        $region134: #{block_v1_forward.7} parent=128 // pred_check
          %p1611 = pneg %p363
        $region135: #{block_v1_forward.7} parent=128 // pred_check_branch
          %1613 = sbr.rel (%p1611) target = $region137
        $region136: #{block_v1_forward.7} parent=128 // pred_region
          %s1614 = smul.u32 16, %s33
          %p1615 = scmp.lt.s32.totalorder %s32, 1
          %s1616 = scalar_select %p1615, %s32, 1
          %p1617 = scmp.lt.s32.totalorder %s1614, 31
          %s1618 = scalar_select %p1617, %s1614, 31
          %s1619 = smul.addr %s1616, 32
          %s1620 = sadd.s32 %s1618, %s1619
          %s1621 = smul.addr %s1620, 4
          %s1622 = scalar_lea.vmem %s13, %s1621
        $region137: #{block_v1_forward.7} parent=128 // pred_fallthru
          _
        // Predicated region
        $region138: #{block_v1_forward.7} parent=128 // pred_check
          %p1623 = pneg %p389
        $region139: #{block_v1_forward.7} parent=128 // pred_check_branch
          %1625 = sbr.rel (%p1623) target = $region141
        $region140: #{block_v1_forward.7} parent=128 // pred_region
          %p1626 = scmp.lt.s32.totalorder %s32, 1
          %s1627 = scalar_select %p1626, %s32, 1
          %s1628 = smul.addr %s1627, 2
          %s1629 = scalar_lea.vmem %s14, %s1628
        $region141: #{block_v1_forward.7} parent=128 // pred_fallthru
          _
      $region129: #{block_v1_forward.7} parent=5 // pred_fallthru
        _
    $region6: #{block_v1_forward.7} parent=1 // loop_footer
      %s25 = sadd.s32 1, %s21
    $region7: #{block_v1_forward.7} parent=1 // loop_footer_branch
      %20 = sbr.rel target = $region3
    $region8: #{block_v1_forward.7} parent=1 // loop_exit
      _

// kernel: block_v1_forward.9
$region0: #{block_v1_forward.9}
  #allocation0 [shape = 'u32[]', space=smem, size = 0x4, offset = 0x4, fixed_abs, tag = 'smem constant byte address 0x4 - core index']
  #allocation1 [shape = 'u32[72,128]{1,0:T(1,128)}', space=vmem, size = 0x9000, scoped, tag = 'internal scratch']
  #allocation2 [shape = 'bf16[128,128]{1,0:T(8,128)(2,1)}', space=vmem, size = 0x8000, scoped, tag = 'scratch operand']
  %s0 = inlined_call_operand.vmem [shape: bf16[2,256,128], index: 0, kind: input, shape index: {}]
  %s1 = inlined_call_operand.vmem [shape: f32[2,2,128], index: 1, kind: input, shape index: {}]
  %s2 = inlined_call_operand.vmem [shape: f32[1,128], index: 2, kind: input, shape index: {}]
  %s3 = inlined_call_operand.vmem [shape: f32[1,128], index: 3, kind: input, shape index: {}]
  %s4 = inlined_call_operand.vmem [shape: f32[2,1,16,16], index: 4, kind: input, shape index: {}]
  %s5 = inlined_call_operand.vmem [shape: bf16[2,256,1], index: 5, kind: input, shape index: {}]
  %s6 = inlined_call_operand.vmem [shape: bf16[3,128], index: 6, kind: input, shape index: {}]
  %s7 = inlined_call_operand.vmem [shape: f32[3,1], index: 7, kind: input, shape index: {}]
  %s8 = inlined_call_operand.vmem [shape: bf16[128,128], index: 8, kind: input, shape index: {}]
  %s9 = inlined_call_operand.vmem [shape: f32[1,128], index: 9, kind: input, shape index: {}]
  %s10 = inlined_call_operand.vmem [shape: bf16[128,128], index: 10, kind: input, shape index: {}]
  %s11 = inlined_call_operand.vmem [shape: bf16[128,128], index: 11, kind: input, shape index: {}]
  %s12 = inlined_call_operand.vmem [shape: f32[1,128], index: 12, kind: input, shape index: {}]
  %s13 = inlined_call_operand.vmem [shape: bf16[128,50], index: 13, kind: input, shape index: {}]
  %s14 = inlined_call_operand.vmem [shape: f32[1,50], index: 14, kind: input, shape index: {}]
  %s15 = inlined_call_operand.vmem [shape: f32[1,50], index: 15, kind: input, shape index: {}]
  %s16 = inlined_call_operand.vmem [shape: f32[2,3,16,16], index: 16, kind: output, shape index: {0}]
  %s17 = inlined_call_operand.vmem [shape: bf16[2,256,128], index: 17, kind: output, shape index: {1}]
  %s18 = inlined_call_operand.vmem [shape: f32[2,2,128], index: 18, kind: output, shape index: {2}]
  %s19 = inlined_call_operand.hbm [shape: f32[2,16,50], index: 19, kind: output, shape index: {3}]
  %20 = xla_tuple %s16, %s17, %s18, %s19
  %s21 = sld [smem:[#allocation0]]
  $region166: #{block_v1_forward.9} parent=0
    _
  %s23 = ssub.s32 1, %s21
  %s24 = scalar_select 0, %s23, %s21
  $region1: #{block_v1_forward.9} parent=0
    #allocation3 [shape = 'u8[24576]{0}', space=vmem, size = 0x6000, scoped, tag = 'output window, operand 0']
    #allocation4 [shape = 'u8[8192]{0}', space=vmem, size = 0x2000, scoped, tag = 'output window, operand 3']
    #allocation5 [shape = 's32[2]{0}', space=sflag, size = 0x8, scoped, tag = 'scoped memory for block_v1_forward.9']
    %25 = vsyncpa [#allocation5], 0
    %s26 = scalar_lea.sflag [#allocation5], 1
    %27 = vsyncpa %s26, 0
    loop: start=0, step=1, limit=6
    $region2: #{block_v1_forward.9} parent=1 // loop_pre_header
      _
    $region3: #{block_v1_forward.9} parent=1 // loop_header
      %s29 = sphi 0, %s33
      %p30 = scmp.ge.s32.totalorder %s29, 6
      %s36 = sphi 0, %s48
      %s37 = sphi 0, %s44
      %s38 = sphi 0, %s36
      %s39 = sphi 0, %s37
      %s40 = sphi 0, %s38
      %s41 = sphi 0, %s39
      %s53 = sphi 0, %s55
      %s56 = sphi 0, %s53
      %s57 = sphi 0, %s56
      %s73 = sphi 0, %s57
      %s79 = sphi 0, %s81
      %s82 = sphi 0, %s79
      %s83 = sphi 0, %s82
      %s99 = sphi 0, %s83
      %s103 = sphi 0, %s103
      %s105 = sphi 0, %s103
      %s106 = sphi 0, %s105
      %s120 = sphi 0, %s106
      %s124 = sphi 0, %s124
      %s126 = sphi 0, %s124
      %s127 = sphi 0, %s126
      %s141 = sphi 0, %s127
      %s149 = sphi 0, %s151
      %s152 = sphi 0, %s149
      %s153 = sphi 0, %s152
      %s169 = sphi 0, %s153
      %s177 = sphi 0, %s179
      %s180 = sphi 0, %s177
      %s181 = sphi 0, %s180
      %s197 = sphi 0, %s181
      %s201 = sphi 0, %s201
      %s203 = sphi 0, %s201
      %s204 = sphi 0, %s203
      %s218 = sphi 0, %s204
      %s222 = sphi 0, %s222
      %s224 = sphi 0, %s222
      %s225 = sphi 0, %s224
      %s239 = sphi 0, %s225
      %s243 = sphi 0, %s243
      %s245 = sphi 0, %s243
      %s246 = sphi 0, %s245
      %s260 = sphi 0, %s246
      %s264 = sphi 0, %s264
      %s266 = sphi 0, %s264
      %s267 = sphi 0, %s266
      %s281 = sphi 0, %s267
      %s285 = sphi 0, %s285
      %s287 = sphi 0, %s285
      %s288 = sphi 0, %s287
      %s302 = sphi 0, %s288
      %s306 = sphi 0, %s306
      %s308 = sphi 0, %s306
      %s309 = sphi 0, %s308
      %s323 = sphi 0, %s309
      %s327 = sphi 0, %s327
      %s329 = sphi 0, %s327
      %s330 = sphi 0, %s329
      %s344 = sphi 0, %s330
      %s348 = sphi 0, %s348
      %s350 = sphi 0, %s348
      %s351 = sphi 0, %s350
      %s365 = sphi 0, %s351
      %s369 = sphi 0, %s369
      %s371 = sphi 0, %s369
      %s372 = sphi 0, %s371
      %s386 = sphi 0, %s372
      %s390 = sphi 0, %s390
      %s392 = sphi 0, %s390
      %s393 = sphi 0, %s392
      %s407 = sphi 0, %s393
      %s415 = sphi 0, %s417
      %s418 = sphi 0, %s415
      %s419 = sphi 0, %s418
      %s435 = sphi 0, %s419
      %s443 = sphi 0, %s445
      %s446 = sphi 0, %s443
      %s447 = sphi 0, %s446
      %s463 = sphi 0, %s447
      %s469 = sphi 0, %s471
      %s472 = sphi 0, %s469
      %s473 = sphi 0, %s472
      %s489 = sphi 0, %s473
      %s497 = sphi 0, %s499
      %s500 = sphi 0, %s497
      %s501 = sphi 0, %s500
      %s517 = sphi 0, %s501
    $region4: #{block_v1_forward.9} parent=1 // loop_header_branch
      %32 = sbr.rel (%p30) target = $region8
    $region5: #{block_v1_forward.9} parent=1 // loop_body
      %s34 = ssub.s32 %s29, 1
      %s35 = ssub.s32 %s29, 2
      %s42 = sadd.s32 1, %s37
      %p43 = scmp.ge.s32.totalorder %s42, 2
      %s44 = scalar_select %p43, 0, %s42
      %s45 = sadd.s32 1, %s36
      %s46 = scalar_select %p43, %s45, %s36
      %p47 = scmp.ge.s32.totalorder %s46, 2
      %s48 = scalar_select %p47, 0, %s46
      %s49 = ssub.s32 %s36, %s48
      %s50 = ssub.s32 %s37, %s44
      %s51 = sor.u32 %s49, %s50
      %p52 = scmp.eq.s32.totalorder %s51, 0
      %s54 = sadd.s32 %s53, 1
      %s55 = scalar_select %p52, %s53, %s54
      %p58 = pneg %p52
      %p59 = scmp.eq.s32.totalorder %s29, 3
      %p60 = por %p58, %p59
      %p61 = scmp.ne.s32.totalorder %s53, %s56
      %p62 = scmp.eq.s32.totalorder %s29, 0
      %p63 = por %p61, %p62
      %p64 = scmp.ne.s32.totalorder %s53, %s56
      %p65 = scmp.eq.s32.totalorder %s34, 3
      %p66 = por %p64, %p65
      %p67 = scmp.ne.s32.totalorder %s56, %s57
      %p68 = scmp.eq.s32.totalorder %s34, 0
      %p69 = por %p67, %p68
      %p70 = scmp.ne.s32.totalorder %s56, %s57
      %p71 = scmp.eq.s32.totalorder %s35, 3
      %p72 = por %p70, %p71
      %p74 = scmp.ne.s32.totalorder %s57, %s73
      %p75 = scmp.eq.s32.totalorder %s35, 0
      %p76 = por %p74, %p75
      %s77 = ssub.s32 %s36, %s48
      %p78 = scmp.eq.s32.totalorder %s77, 0
      %s80 = sadd.s32 %s79, 1
      %s81 = scalar_select %p78, %s79, %s80
      %p84 = pneg %p78
      %p85 = scmp.eq.s32.totalorder %s29, 3
      %p86 = por %p84, %p85
      %p87 = scmp.ne.s32.totalorder %s79, %s82
      %p88 = scmp.eq.s32.totalorder %s29, 0
      %p89 = por %p87, %p88
      %p90 = scmp.ne.s32.totalorder %s79, %s82
      %p91 = scmp.eq.s32.totalorder %s34, 3
      %p92 = por %p90, %p91
      %p93 = scmp.ne.s32.totalorder %s82, %s83
      %p94 = scmp.eq.s32.totalorder %s34, 0
      %p95 = por %p93, %p94
      %p96 = scmp.ne.s32.totalorder %s82, %s83
      %p97 = scmp.eq.s32.totalorder %s35, 3
      %p98 = por %p96, %p97
      %p100 = scmp.ne.s32.totalorder %s83, %s99
      %p101 = scmp.eq.s32.totalorder %s35, 0
      %p102 = por %p100, %p101
      %s104 = sadd.s32 %s103, 1
      %p107 = scmp.eq.s32.totalorder %s29, 3
      %p108 = scmp.ne.s32.totalorder %s103, %s105
      %p109 = scmp.eq.s32.totalorder %s29, 0
      %p110 = por %p108, %p109
      %p111 = scmp.ne.s32.totalorder %s103, %s105
      %p112 = scmp.eq.s32.totalorder %s34, 3
      %p113 = por %p111, %p112
      %p114 = scmp.ne.s32.totalorder %s105, %s106
      %p115 = scmp.eq.s32.totalorder %s34, 0
      %p116 = por %p114, %p115
      %p117 = scmp.ne.s32.totalorder %s105, %s106
      %p118 = scmp.eq.s32.totalorder %s35, 3
      %p119 = por %p117, %p118
      %p121 = scmp.ne.s32.totalorder %s106, %s120
      %p122 = scmp.eq.s32.totalorder %s35, 0
      %p123 = por %p121, %p122
      %s125 = sadd.s32 %s124, 1
      %p128 = scmp.eq.s32.totalorder %s29, 3
      %p129 = scmp.ne.s32.totalorder %s124, %s126
      %p130 = scmp.eq.s32.totalorder %s29, 0
      %p131 = por %p129, %p130
      %p132 = scmp.ne.s32.totalorder %s124, %s126
      %p133 = scmp.eq.s32.totalorder %s34, 3
      %p134 = por %p132, %p133
      %p135 = scmp.ne.s32.totalorder %s126, %s127
      %p136 = scmp.eq.s32.totalorder %s34, 0
      %p137 = por %p135, %p136
      %p138 = scmp.ne.s32.totalorder %s126, %s127
      %p139 = scmp.eq.s32.totalorder %s35, 3
      %p140 = por %p138, %p139
      %p142 = scmp.ne.s32.totalorder %s127, %s141
      %p143 = scmp.eq.s32.totalorder %s35, 0
      %p144 = por %p142, %p143
      %s145 = ssub.s32 %s36, %s48
      %s146 = ssub.s32 %s37, %s44
      %s147 = sor.u32 %s145, %s146
      %p148 = scmp.eq.s32.totalorder %s147, 0
      %s150 = sadd.s32 %s149, 1
      %s151 = scalar_select %p148, %s149, %s150
      %p154 = pneg %p148
      %p155 = scmp.eq.s32.totalorder %s29, 3
      %p156 = por %p154, %p155
      %p157 = scmp.ne.s32.totalorder %s149, %s152
      %p158 = scmp.eq.s32.totalorder %s29, 0
      %p159 = por %p157, %p158
      %p160 = scmp.ne.s32.totalorder %s149, %s152
      %p161 = scmp.eq.s32.totalorder %s34, 3
      %p162 = por %p160, %p161
      %p163 = scmp.ne.s32.totalorder %s152, %s153
      %p164 = scmp.eq.s32.totalorder %s34, 0
      %p165 = por %p163, %p164
      %p166 = scmp.ne.s32.totalorder %s152, %s153
      %p167 = scmp.eq.s32.totalorder %s35, 3
      %p168 = por %p166, %p167
      %p170 = scmp.ne.s32.totalorder %s153, %s169
      %p171 = scmp.eq.s32.totalorder %s35, 0
      %p172 = por %p170, %p171
      %s173 = ssub.s32 %s36, %s48
      %s174 = ssub.s32 %s37, %s44
      %s175 = sor.u32 %s173, %s174
      %p176 = scmp.eq.s32.totalorder %s175, 0
      %s178 = sadd.s32 %s177, 1
      %s179 = scalar_select %p176, %s177, %s178
      %p182 = pneg %p176
      %p183 = scmp.eq.s32.totalorder %s29, 3
      %p184 = por %p182, %p183
      %p185 = scmp.ne.s32.totalorder %s177, %s180
      %p186 = scmp.eq.s32.totalorder %s29, 0
      %p187 = por %p185, %p186
      %p188 = scmp.ne.s32.totalorder %s177, %s180
      %p189 = scmp.eq.s32.totalorder %s34, 3
      %p190 = por %p188, %p189
      %p191 = scmp.ne.s32.totalorder %s180, %s181
      %p192 = scmp.eq.s32.totalorder %s34, 0
      %p193 = por %p191, %p192
      %p194 = scmp.ne.s32.totalorder %s180, %s181
      %p195 = scmp.eq.s32.totalorder %s35, 3
      %p196 = por %p194, %p195
      %p198 = scmp.ne.s32.totalorder %s181, %s197
      %p199 = scmp.eq.s32.totalorder %s35, 0
      %p200 = por %p198, %p199
      %s202 = sadd.s32 %s201, 1
      %p205 = scmp.eq.s32.totalorder %s29, 3
      %p206 = scmp.ne.s32.totalorder %s201, %s203
      %p207 = scmp.eq.s32.totalorder %s29, 0
      %p208 = por %p206, %p207
      %p209 = scmp.ne.s32.totalorder %s201, %s203
      %p210 = scmp.eq.s32.totalorder %s34, 3
      %p211 = por %p209, %p210
      %p212 = scmp.ne.s32.totalorder %s203, %s204
      %p213 = scmp.eq.s32.totalorder %s34, 0
      %p214 = por %p212, %p213
      %p215 = scmp.ne.s32.totalorder %s203, %s204
      %p216 = scmp.eq.s32.totalorder %s35, 3
      %p217 = por %p215, %p216
      %p219 = scmp.ne.s32.totalorder %s204, %s218
      %p220 = scmp.eq.s32.totalorder %s35, 0
      %p221 = por %p219, %p220
      %s223 = sadd.s32 %s222, 1
      %p226 = scmp.eq.s32.totalorder %s29, 3
      %p227 = scmp.ne.s32.totalorder %s222, %s224
      %p228 = scmp.eq.s32.totalorder %s29, 0
      %p229 = por %p227, %p228
      %p230 = scmp.ne.s32.totalorder %s222, %s224
      %p231 = scmp.eq.s32.totalorder %s34, 3
      %p232 = por %p230, %p231
      %p233 = scmp.ne.s32.totalorder %s224, %s225
      %p234 = scmp.eq.s32.totalorder %s34, 0
      %p235 = por %p233, %p234
      %p236 = scmp.ne.s32.totalorder %s224, %s225
      %p237 = scmp.eq.s32.totalorder %s35, 3
      %p238 = por %p236, %p237
      %p240 = scmp.ne.s32.totalorder %s225, %s239
      %p241 = scmp.eq.s32.totalorder %s35, 0
      %p242 = por %p240, %p241
      %s244 = sadd.s32 %s243, 1
      %p247 = scmp.eq.s32.totalorder %s29, 3
      %p248 = scmp.ne.s32.totalorder %s243, %s245
      %p249 = scmp.eq.s32.totalorder %s29, 0
      %p250 = por %p248, %p249
      %p251 = scmp.ne.s32.totalorder %s243, %s245
      %p252 = scmp.eq.s32.totalorder %s34, 3
      %p253 = por %p251, %p252
      %p254 = scmp.ne.s32.totalorder %s245, %s246
      %p255 = scmp.eq.s32.totalorder %s34, 0
      %p256 = por %p254, %p255
      %p257 = scmp.ne.s32.totalorder %s245, %s246
      %p258 = scmp.eq.s32.totalorder %s35, 3
      %p259 = por %p257, %p258
      %p261 = scmp.ne.s32.totalorder %s246, %s260
      %p262 = scmp.eq.s32.totalorder %s35, 0
      %p263 = por %p261, %p262
      %s265 = sadd.s32 %s264, 1
      %p268 = scmp.eq.s32.totalorder %s29, 3
      %p269 = scmp.ne.s32.totalorder %s264, %s266
      %p270 = scmp.eq.s32.totalorder %s29, 0
      %p271 = por %p269, %p270
      %p272 = scmp.ne.s32.totalorder %s264, %s266
      %p273 = scmp.eq.s32.totalorder %s34, 3
      %p274 = por %p272, %p273
      %p275 = scmp.ne.s32.totalorder %s266, %s267
      %p276 = scmp.eq.s32.totalorder %s34, 0
      %p277 = por %p275, %p276
      %p278 = scmp.ne.s32.totalorder %s266, %s267
      %p279 = scmp.eq.s32.totalorder %s35, 3
      %p280 = por %p278, %p279
      %p282 = scmp.ne.s32.totalorder %s267, %s281
      %p283 = scmp.eq.s32.totalorder %s35, 0
      %p284 = por %p282, %p283
      %s286 = sadd.s32 %s285, 1
      %p289 = scmp.eq.s32.totalorder %s29, 3
      %p290 = scmp.ne.s32.totalorder %s285, %s287
      %p291 = scmp.eq.s32.totalorder %s29, 0
      %p292 = por %p290, %p291
      %p293 = scmp.ne.s32.totalorder %s285, %s287
      %p294 = scmp.eq.s32.totalorder %s34, 3
      %p295 = por %p293, %p294
      %p296 = scmp.ne.s32.totalorder %s287, %s288
      %p297 = scmp.eq.s32.totalorder %s34, 0
      %p298 = por %p296, %p297
      %p299 = scmp.ne.s32.totalorder %s287, %s288
      %p300 = scmp.eq.s32.totalorder %s35, 3
      %p301 = por %p299, %p300
      %p303 = scmp.ne.s32.totalorder %s288, %s302
      %p304 = scmp.eq.s32.totalorder %s35, 0
      %p305 = por %p303, %p304
      %s307 = sadd.s32 %s306, 1
      %p310 = scmp.eq.s32.totalorder %s29, 3
      %p311 = scmp.ne.s32.totalorder %s306, %s308
      %p312 = scmp.eq.s32.totalorder %s29, 0
      %p313 = por %p311, %p312
      %p314 = scmp.ne.s32.totalorder %s306, %s308
      %p315 = scmp.eq.s32.totalorder %s34, 3
      %p316 = por %p314, %p315
      %p317 = scmp.ne.s32.totalorder %s308, %s309
      %p318 = scmp.eq.s32.totalorder %s34, 0
      %p319 = por %p317, %p318
      %p320 = scmp.ne.s32.totalorder %s308, %s309
      %p321 = scmp.eq.s32.totalorder %s35, 3
      %p322 = por %p320, %p321
      %p324 = scmp.ne.s32.totalorder %s309, %s323
      %p325 = scmp.eq.s32.totalorder %s35, 0
      %p326 = por %p324, %p325
      %s328 = sadd.s32 %s327, 1
      %p331 = scmp.eq.s32.totalorder %s29, 3
      %p332 = scmp.ne.s32.totalorder %s327, %s329
      %p333 = scmp.eq.s32.totalorder %s29, 0
      %p334 = por %p332, %p333
      %p335 = scmp.ne.s32.totalorder %s327, %s329
      %p336 = scmp.eq.s32.totalorder %s34, 3
      %p337 = por %p335, %p336
      %p338 = scmp.ne.s32.totalorder %s329, %s330
      %p339 = scmp.eq.s32.totalorder %s34, 0
      %p340 = por %p338, %p339
      %p341 = scmp.ne.s32.totalorder %s329, %s330
      %p342 = scmp.eq.s32.totalorder %s35, 3
      %p343 = por %p341, %p342
      %p345 = scmp.ne.s32.totalorder %s330, %s344
      %p346 = scmp.eq.s32.totalorder %s35, 0
      %p347 = por %p345, %p346
      %s349 = sadd.s32 %s348, 1
      %p352 = scmp.eq.s32.totalorder %s29, 3
      %p353 = scmp.ne.s32.totalorder %s348, %s350
      %p354 = scmp.eq.s32.totalorder %s29, 0
      %p355 = por %p353, %p354
      %p356 = scmp.ne.s32.totalorder %s348, %s350
      %p357 = scmp.eq.s32.totalorder %s34, 3
      %p358 = por %p356, %p357
      %p359 = scmp.ne.s32.totalorder %s350, %s351
      %p360 = scmp.eq.s32.totalorder %s34, 0
      %p361 = por %p359, %p360
      %p362 = scmp.ne.s32.totalorder %s350, %s351
      %p363 = scmp.eq.s32.totalorder %s35, 3
      %p364 = por %p362, %p363
      %p366 = scmp.ne.s32.totalorder %s351, %s365
      %p367 = scmp.eq.s32.totalorder %s35, 0
      %p368 = por %p366, %p367
      %s370 = sadd.s32 %s369, 1
      %p373 = scmp.eq.s32.totalorder %s29, 3
      %p374 = scmp.ne.s32.totalorder %s369, %s371
      %p375 = scmp.eq.s32.totalorder %s29, 0
      %p376 = por %p374, %p375
      %p377 = scmp.ne.s32.totalorder %s369, %s371
      %p378 = scmp.eq.s32.totalorder %s34, 3
      %p379 = por %p377, %p378
      %p380 = scmp.ne.s32.totalorder %s371, %s372
      %p381 = scmp.eq.s32.totalorder %s34, 0
      %p382 = por %p380, %p381
      %p383 = scmp.ne.s32.totalorder %s371, %s372
      %p384 = scmp.eq.s32.totalorder %s35, 3
      %p385 = por %p383, %p384
      %p387 = scmp.ne.s32.totalorder %s372, %s386
      %p388 = scmp.eq.s32.totalorder %s35, 0
      %p389 = por %p387, %p388
      %s391 = sadd.s32 %s390, 1
      %p394 = scmp.eq.s32.totalorder %s29, 3
      %p395 = scmp.ne.s32.totalorder %s390, %s392
      %p396 = scmp.eq.s32.totalorder %s29, 0
      %p397 = por %p395, %p396
      %p398 = scmp.ne.s32.totalorder %s390, %s392
      %p399 = scmp.eq.s32.totalorder %s34, 3
      %p400 = por %p398, %p399
      %p401 = scmp.ne.s32.totalorder %s392, %s393
      %p402 = scmp.eq.s32.totalorder %s34, 0
      %p403 = por %p401, %p402
      %p404 = scmp.ne.s32.totalorder %s392, %s393
      %p405 = scmp.eq.s32.totalorder %s35, 3
      %p406 = por %p404, %p405
      %p408 = scmp.ne.s32.totalorder %s393, %s407
      %p409 = scmp.eq.s32.totalorder %s35, 0
      %p410 = por %p408, %p409
      %s411 = ssub.s32 %s36, %s48
      %s412 = ssub.s32 %s37, %s44
      %s413 = sor.u32 %s411, %s412
      %p414 = scmp.eq.s32.totalorder %s413, 0
      %s416 = sadd.s32 %s415, 1
      %s417 = scalar_select %p414, %s415, %s416
      %p420 = pneg %p414
      %p421 = scmp.eq.s32.totalorder %s29, 3
      %p422 = por %p420, %p421
      %p423 = scmp.ne.s32.totalorder %s415, %s418
      %p424 = scmp.eq.s32.totalorder %s29, 0
      %p425 = por %p423, %p424
      %p426 = scmp.ne.s32.totalorder %s415, %s418
      %p427 = scmp.eq.s32.totalorder %s34, 3
      %p428 = por %p426, %p427
      %p429 = scmp.ne.s32.totalorder %s418, %s419
      %p430 = scmp.eq.s32.totalorder %s34, 0
      %p431 = por %p429, %p430
      %p432 = scmp.ne.s32.totalorder %s418, %s419
      %p433 = scmp.eq.s32.totalorder %s35, 3
      %p434 = por %p432, %p433
      %p436 = scmp.ne.s32.totalorder %s419, %s435
      %p437 = scmp.eq.s32.totalorder %s35, 0
      %p438 = por %p436, %p437
      %s439 = ssub.s32 %s36, %s48
      %s440 = ssub.s32 %s37, %s44
      %s441 = sor.u32 %s439, %s440
      %p442 = scmp.eq.s32.totalorder %s441, 0
      %s444 = sadd.s32 %s443, 1
      %s445 = scalar_select %p442, %s443, %s444
      %p448 = pneg %p442
      %p449 = scmp.eq.s32.totalorder %s29, 3
      %p450 = por %p448, %p449
      %p451 = scmp.ne.s32.totalorder %s443, %s446
      %p452 = scmp.eq.s32.totalorder %s29, 0
      %p453 = por %p451, %p452
      %p454 = scmp.ne.s32.totalorder %s443, %s446
      %p455 = scmp.eq.s32.totalorder %s34, 3
      %p456 = por %p454, %p455
      %p457 = scmp.ne.s32.totalorder %s446, %s447
      %p458 = scmp.eq.s32.totalorder %s34, 0
      %p459 = por %p457, %p458
      %p460 = scmp.ne.s32.totalorder %s446, %s447
      %p461 = scmp.eq.s32.totalorder %s35, 3
      %p462 = por %p460, %p461
      %p464 = scmp.ne.s32.totalorder %s447, %s463
      %p465 = scmp.eq.s32.totalorder %s35, 0
      %p466 = por %p464, %p465
      %s467 = ssub.s32 %s36, %s48
      %p468 = scmp.eq.s32.totalorder %s467, 0
      %s470 = sadd.s32 %s469, 1
      %s471 = scalar_select %p468, %s469, %s470
      %p474 = pneg %p468
      %p475 = scmp.eq.s32.totalorder %s29, 3
      %p476 = por %p474, %p475
      %p477 = scmp.ne.s32.totalorder %s469, %s472
      %p478 = scmp.eq.s32.totalorder %s29, 0
      %p479 = por %p477, %p478
      %p480 = scmp.ne.s32.totalorder %s469, %s472
      %p481 = scmp.eq.s32.totalorder %s34, 3
      %p482 = por %p480, %p481
      %p483 = scmp.ne.s32.totalorder %s472, %s473
      %p484 = scmp.eq.s32.totalorder %s34, 0
      %p485 = por %p483, %p484
      %p486 = scmp.ne.s32.totalorder %s472, %s473
      %p487 = scmp.eq.s32.totalorder %s35, 3
      %p488 = por %p486, %p487
      %p490 = scmp.ne.s32.totalorder %s473, %s489
      %p491 = scmp.eq.s32.totalorder %s35, 0
      %p492 = por %p490, %p491
      %s493 = ssub.s32 %s36, %s48
      %s494 = ssub.s32 %s37, %s44
      %s495 = sor.u32 %s493, %s494
      %p496 = scmp.eq.s32.totalorder %s495, 0
      %s498 = sadd.s32 %s497, 1
      %s499 = scalar_select %p496, %s497, %s498
      %p502 = pneg %p496
      %p503 = scmp.eq.s32.totalorder %s29, 3
      %p504 = por %p502, %p503
      %p505 = scmp.ne.s32.totalorder %s497, %s500
      %p506 = scmp.eq.s32.totalorder %s29, 0
      %p507 = por %p505, %p506
      %p508 = scmp.ne.s32.totalorder %s497, %s500
      %p509 = scmp.eq.s32.totalorder %s34, 3
      %p510 = por %p508, %p509
      %p511 = scmp.ne.s32.totalorder %s500, %s501
      %p512 = scmp.eq.s32.totalorder %s34, 0
      %p513 = por %p511, %p512
      %p514 = scmp.ne.s32.totalorder %s500, %s501
      %p515 = scmp.eq.s32.totalorder %s35, 3
      %p516 = por %p514, %p515
      %p518 = scmp.ne.s32.totalorder %s501, %s517
      %p519 = scmp.eq.s32.totalorder %s35, 0
      %p520 = por %p518, %p519
      %p521 = scmp.le.s32.totalorder 1, %s29
      %p522 = scmp.lt.s32.totalorder %s29, 5
      %p523 = pnand %p521, %p522
      %p524 = pneg %p523
      // Predicated region
      $region9: #{block_v1_forward.9} parent=5 // pred_check
        _
      $region10: #{block_v1_forward.9} parent=5 // pred_check_branch
        %526 = sbr.rel (%p523) target = $region12
      $region11: #{block_v1_forward.9} parent=5 // pred_region
        %s527 = ssub.s32 %s29, 1
        // Predicated region
        $region13: #{block_v1_forward.9} parent=11 // pred_check
          %p528 = pneg %p116
        $region14: #{block_v1_forward.9} parent=11 // pred_check_branch
          %530 = sbr.rel (%p528) target = $region16
        $region15: #{block_v1_forward.9} parent=11 // pred_region
          _
        $region16: #{block_v1_forward.9} parent=11 // pred_fallthru
          _
        // Predicated region
        $region17: #{block_v1_forward.9} parent=11 // pred_check
          %p531 = pneg %p137
        $region18: #{block_v1_forward.9} parent=11 // pred_check_branch
          %533 = sbr.rel (%p531) target = $region20
        $region19: #{block_v1_forward.9} parent=11 // pred_region
          _
        $region20: #{block_v1_forward.9} parent=11 // pred_fallthru
          _
        // Predicated region
        $region21: #{block_v1_forward.9} parent=11 // pred_check
          %p534 = pneg %p214
        $region22: #{block_v1_forward.9} parent=11 // pred_check_branch
          %536 = sbr.rel (%p534) target = $region24
        $region23: #{block_v1_forward.9} parent=11 // pred_region
          _
        $region24: #{block_v1_forward.9} parent=11 // pred_fallthru
          _
        // Predicated region
        $region25: #{block_v1_forward.9} parent=11 // pred_check
          %p537 = pneg %p235
        $region26: #{block_v1_forward.9} parent=11 // pred_check_branch
          %539 = sbr.rel (%p537) target = $region28
        $region27: #{block_v1_forward.9} parent=11 // pred_region
          _
        $region28: #{block_v1_forward.9} parent=11 // pred_fallthru
          _
        // Predicated region
        $region29: #{block_v1_forward.9} parent=11 // pred_check
          %p540 = pneg %p256
        $region30: #{block_v1_forward.9} parent=11 // pred_check_branch
          %542 = sbr.rel (%p540) target = $region32
        $region31: #{block_v1_forward.9} parent=11 // pred_region
          _
        $region32: #{block_v1_forward.9} parent=11 // pred_fallthru
          _
        // Predicated region
        $region33: #{block_v1_forward.9} parent=11 // pred_check
          %p543 = pneg %p277
        $region34: #{block_v1_forward.9} parent=11 // pred_check_branch
          %545 = sbr.rel (%p543) target = $region36
        $region35: #{block_v1_forward.9} parent=11 // pred_region
          _
        $region36: #{block_v1_forward.9} parent=11 // pred_fallthru
          _
        // Predicated region
        $region37: #{block_v1_forward.9} parent=11 // pred_check
          %p546 = pneg %p298
        $region38: #{block_v1_forward.9} parent=11 // pred_check_branch
          %548 = sbr.rel (%p546) target = $region40
        $region39: #{block_v1_forward.9} parent=11 // pred_region
          _
        $region40: #{block_v1_forward.9} parent=11 // pred_fallthru
          _
        // Predicated region
        $region41: #{block_v1_forward.9} parent=11 // pred_check
          %p549 = pneg %p319
        $region42: #{block_v1_forward.9} parent=11 // pred_check_branch
          %551 = sbr.rel (%p549) target = $region44
        $region43: #{block_v1_forward.9} parent=11 // pred_region
          _
        $region44: #{block_v1_forward.9} parent=11 // pred_fallthru
          _
        // Predicated region
        $region45: #{block_v1_forward.9} parent=11 // pred_check
          %p552 = pneg %p340
        $region46: #{block_v1_forward.9} parent=11 // pred_check_branch
          %554 = sbr.rel (%p552) target = $region48
        $region47: #{block_v1_forward.9} parent=11 // pred_region
          _
        $region48: #{block_v1_forward.9} parent=11 // pred_fallthru
          _
        // Predicated region
        $region49: #{block_v1_forward.9} parent=11 // pred_check
          %p555 = pneg %p361
        $region50: #{block_v1_forward.9} parent=11 // pred_check_branch
          %557 = sbr.rel (%p555) target = $region52
        $region51: #{block_v1_forward.9} parent=11 // pred_region
          _
        $region52: #{block_v1_forward.9} parent=11 // pred_fallthru
          _
        // Predicated region
        $region53: #{block_v1_forward.9} parent=11 // pred_check
          %p558 = pneg %p382
        $region54: #{block_v1_forward.9} parent=11 // pred_check_branch
          %560 = sbr.rel (%p558) target = $region56
        $region55: #{block_v1_forward.9} parent=11 // pred_region
          _
        $region56: #{block_v1_forward.9} parent=11 // pred_fallthru
          _
        // Predicated region
        $region57: #{block_v1_forward.9} parent=11 // pred_check
          %p561 = pneg %p403
        $region58: #{block_v1_forward.9} parent=11 // pred_check_branch
          %563 = sbr.rel (%p561) target = $region60
        $region59: #{block_v1_forward.9} parent=11 // pred_region
          _
        $region60: #{block_v1_forward.9} parent=11 // pred_fallthru
          _
      $region12: #{block_v1_forward.9} parent=5 // pred_fallthru
        _
      %p564 = scmp.lt.s32.totalorder %s29, 4
      // Predicated region
      $region61: #{block_v1_forward.9} parent=5 // pred_check
        %p565 = pneg %p564
      $region62: #{block_v1_forward.9} parent=5 // pred_check_branch
        %567 = sbr.rel (%p565) target = $region64
      $region63: #{block_v1_forward.9} parent=5 // pred_region
        // Predicated region
        $region65: #{block_v1_forward.9} parent=63 // pred_check
          %p568 = pneg %p63
        $region66: #{block_v1_forward.9} parent=63 // pred_check_branch
          %570 = sbr.rel (%p568) target = $region68
        $region67: #{block_v1_forward.9} parent=63 // pred_region
          %s571 = smul.u32 16, %s37
          %p572 = scmp.lt.s32.totalorder %s36, 1
          %s573 = scalar_select %p572, %s36, 1
          %p574 = scmp.lt.s32.totalorder %s571, 31
          %s575 = scalar_select %p574, %s571, 31
          %s576 = smul.addr %s573, 32
          %s577 = sadd.s32 %s575, %s576
          %s578 = smul.addr %s577, 4
          %s579 = scalar_lea.vmem %s0, %s578
          %s580 = smul.u32 16, %s37
        $region68: #{block_v1_forward.9} parent=63 // pred_fallthru
          _
        // Predicated region
        $region69: #{block_v1_forward.9} parent=63 // pred_check
          %p581 = pneg %p89
        $region70: #{block_v1_forward.9} parent=63 // pred_check_branch
          %583 = sbr.rel (%p581) target = $region72
        $region71: #{block_v1_forward.9} parent=63 // pred_region
          %p584 = scmp.lt.s32.totalorder %s36, 1
          %s585 = scalar_select %p584, %s36, 1
          %s586 = smul.addr %s585, 2
          %s587 = scalar_lea.vmem %s1, %s586
        $region72: #{block_v1_forward.9} parent=63 // pred_fallthru
          _
        // Predicated region
        $region73: #{block_v1_forward.9} parent=63 // pred_check
          %p588 = pneg %p159
        $region74: #{block_v1_forward.9} parent=63 // pred_check_branch
          %590 = sbr.rel (%p588) target = $region76
        $region75: #{block_v1_forward.9} parent=63 // pred_region
          %p591 = scmp.lt.s32.totalorder %s36, 1
          %s592 = scalar_select %p591, %s36, 1
          %p593 = scmp.lt.s32.totalorder %s37, 1
          %s594 = scalar_select %p593, %s37, 1
          %s595 = smul.addr %s592, 2
          %s596 = sadd.s32 %s594, %s595
          %s597 = smul.addr %s596, 8
          %s598 = scalar_lea.vmem %s4, %s597
        $region76: #{block_v1_forward.9} parent=63 // pred_fallthru
          _
        // Predicated region
        $region77: #{block_v1_forward.9} parent=63 // pred_check
          %p599 = pneg %p187
        $region78: #{block_v1_forward.9} parent=63 // pred_check_branch
          %601 = sbr.rel (%p599) target = $region80
        $region79: #{block_v1_forward.9} parent=63 // pred_region
          %s602 = smul.u32 16, %s37
          %p603 = scmp.lt.s32.totalorder %s36, 1
          %s604 = scalar_select %p603, %s36, 1
          %p605 = scmp.lt.s32.totalorder %s602, 31
          %s606 = scalar_select %p605, %s602, 31
          %s607 = smul.addr %s604, 32
          %s608 = sadd.s32 %s606, %s607
          %s609 = smul.addr %s608, 4
          %s610 = scalar_lea.vmem %s5, %s609
          %s611 = smul.u32 16, %s37
        $region80: #{block_v1_forward.9} parent=63 // pred_fallthru
          _
      $region64: #{block_v1_forward.9} parent=5 // pred_fallthru
        _
      %p612 = scmp.le.s32.totalorder 1, %s29
      %p613 = scmp.lt.s32.totalorder %s29, 5
      %p614 = pnand %p612, %p613
      %p615 = pneg %p614
      // Predicated region
      $region81: #{block_v1_forward.9} parent=5 // pred_check
        _
      $region82: #{block_v1_forward.9} parent=5 // pred_check_branch
        %617 = sbr.rel (%p614) target = $region84
      $region83: #{block_v1_forward.9} parent=5 // pred_region
        %s618 = ssub.s32 %s29, 1
        %s619 = smul.u32 16, %s39
        %p620 = scmp.lt.s32.totalorder %s38, 1
        %s621 = scalar_select %p620, %s38, 1
        %p622 = scmp.lt.s32.totalorder %s619, 31
        %s623 = scalar_select %p622, %s619, 31
        %s624 = smul.addr %s621, 32
        %s625 = sadd.s32 %s623, %s624
        %s626 = smul.addr %s625, 4
        %s627 = scalar_lea.vmem %s0, %s626
        %p628 = pneg %p69
        %p629 = pneg %p66
        %p630 = scmp.lt.s32.totalorder %s38, 1
        %s631 = scalar_select %p630, %s38, 1
        %s632 = smul.addr %s631, 2
        %s633 = scalar_lea.vmem %s1, %s632
        %p634 = pneg %p95
        %p635 = pneg %p92
        %p636 = pneg %p116
        %p637 = pneg %p113
        %p638 = pneg %p137
        %p639 = pneg %p134
        %p640 = scmp.lt.s32.totalorder %s38, 1
        %s641 = scalar_select %p640, %s38, 1
        %p642 = scmp.lt.s32.totalorder %s39, 1
        %s643 = scalar_select %p642, %s39, 1
        %s644 = smul.addr %s641, 2
        %s645 = sadd.s32 %s643, %s644
        %s646 = smul.addr %s645, 8
        %s647 = scalar_lea.vmem %s4, %s646
        %p648 = pneg %p165
        %p649 = pneg %p162
        %s650 = smul.u32 16, %s39
        %p651 = scmp.lt.s32.totalorder %s38, 1
        %s652 = scalar_select %p651, %s38, 1
        %p653 = scmp.lt.s32.totalorder %s650, 31
        %s654 = scalar_select %p653, %s650, 31
        %s655 = smul.addr %s652, 32
        %s656 = sadd.s32 %s654, %s655
        %s657 = smul.addr %s656, 4
        %s658 = scalar_lea.vmem %s5, %s657
        %p659 = pneg %p193
        %p660 = pneg %p190
        %p661 = pneg %p214
        %p662 = pneg %p211
        %p663 = pneg %p235
        %p664 = pneg %p232
        %p665 = pneg %p256
        %p666 = pneg %p253
        %p667 = pneg %p277
        %p668 = pneg %p274
        %p669 = pneg %p298
        %p670 = pneg %p295
        %p671 = pneg %p319
        %p672 = pneg %p316
        %p673 = pneg %p340
        %p674 = pneg %p337
        %p675 = pneg %p361
        %p676 = pneg %p358
        %p677 = pneg %p382
        %p678 = pneg %p379
        %p679 = pneg %p403
        %p680 = pneg %p400
        %p681 = pneg %p431
        %p682 = pneg %p428
        %s683 = sand.u32 %s418, 1
        %s684 = sand.u32 %s418, 1
        %s685 = smul.addr %s684, 24
        %s686 = scalar_lea.vmem [#allocation3], %s685
        %p687 = pneg %p459
        %p688 = pneg %p456
        %s689 = smul.u32 16, %s39
        %p690 = scmp.lt.s32.totalorder %s38, 1
        %s691 = scalar_select %p690, %s38, 1
        %p692 = scmp.lt.s32.totalorder %s689, 31
        %s693 = scalar_select %p692, %s689, 31
        %s694 = smul.addr %s691, 32
        %s695 = sadd.s32 %s693, %s694
        %s696 = smul.addr %s695, 4
        %s697 = scalar_lea.vmem %s17, %s696
        %p698 = pneg %p485
        %p699 = pneg %p482
        %p700 = scmp.lt.s32.totalorder %s38, 1
        %s701 = scalar_select %p700, %s38, 1
        %s702 = smul.addr %s701, 2
        %s703 = scalar_lea.vmem %s18, %s702
        %p704 = pneg %p513
        %p705 = pneg %p510
        %s706 = sand.u32 %s500, 1
        %s707 = scalar_lea.sflag [#allocation5], %s706
        %s708 = sand.u32 %s500, 1
        %s709 = smul.addr %s708, 8
        %s710 = scalar_lea.vmem [#allocation4], %s709
        %s711 = smul.u32 16, %s39
        %p712 = scmp.lt.s32.totalorder %s38, 1
        %s713 = scalar_select %p712, %s38, 1
        %p714 = scmp.lt.s32.totalorder %s711, 31
        %s715 = scalar_select %p714, %s711, 31
        %s716 = smul.addr %s713, 32
        %s717 = sadd.s32 %s715, %s716
        %s718 = smul.addr %s717, 4
        %s719 = scalar_lea.vmem %s0, %s718
        %s720 = smul.u32 16, %s39
        %p721 = scmp.lt.s32.totalorder %s38, 1
        %s722 = scalar_select %p721, %s38, 1
        %s723 = smul.addr %s722, 2
        %s724 = scalar_lea.vmem %s1, %s723
        %p725 = scmp.lt.s32.totalorder %s38, 1
        %s726 = scalar_select %p725, %s38, 1
        %p727 = scmp.lt.s32.totalorder %s39, 1
        %s728 = scalar_select %p727, %s39, 1
        %s729 = smul.addr %s726, 2
        %s730 = sadd.s32 %s728, %s729
        %s731 = smul.addr %s730, 8
        %s732 = scalar_lea.vmem %s4, %s731
        %s733 = smul.u32 16, %s39
        %p734 = scmp.lt.s32.totalorder %s38, 1
        %s735 = scalar_select %p734, %s38, 1
        %p736 = scmp.lt.s32.totalorder %s733, 31
        %s737 = scalar_select %p736, %s733, 31
        %s738 = smul.addr %s735, 32
        %s739 = sadd.s32 %s737, %s738
        %s740 = smul.addr %s739, 4
        %s741 = scalar_lea.vmem %s5, %s740
        %s742 = smul.u32 16, %s39
        %s743 = smul.u32 16, %s39
        %p744 = scmp.lt.s32.totalorder %s38, 1
        %s745 = scalar_select %p744, %s38, 1
        %p746 = scmp.lt.s32.totalorder %s743, 31
        %s747 = scalar_select %p746, %s743, 31
        %s748 = smul.addr %s745, 32
        %s749 = sadd.s32 %s747, %s748
        %s750 = smul.addr %s749, 4
        %s751 = scalar_lea.vmem %s17, %s750
        %s752 = smul.u32 16, %s39
        %p753 = scmp.lt.s32.totalorder %s38, 1
        %s754 = scalar_select %p753, %s38, 1
        %s755 = smul.addr %s754, 2
        %s756 = scalar_lea.vmem %s18, %s755
        %p758 = scmp.eq.s32.totalorder %s39, 0
        // Predicated region
        $region85: #{block_v1_forward.9} parent=83 // pred_check
          %p759 = pneg %p758
        $region86: #{block_v1_forward.9} parent=83 // pred_check_branch
          %761 = sbr.rel (%p759) target = $region88
        $region87: #{block_v1_forward.9} parent=83 // pred_region
          %762 = vst [vmem:[%s756] sm:$0x3] 0.0
        $region88: #{block_v1_forward.9} parent=83 // pred_fallthru
          _
        %v763 = vld [vmem:[%s719] sm:$0xf]
        %v764 = vld [vmem:[%s719 + $0x4] sm:$0xf]
        %v765 = vld [vmem:[%s719 + $0x8] sm:$0xf]
        %v766 = vld [vmem:[%s719 + $0xc] sm:$0xf]
        %v767 = vld [vmem:[%s719 + $0x10] sm:$0xf]
        %v768 = vld [vmem:[%s719 + $0x14] sm:$0xf]
        %v769 = vld [vmem:[%s719 + $0x18] sm:$0xf]
        %v770 = vld [vmem:[%s719 + $0x1c] sm:$0xf]
        %v771 = vld [vmem:[%s719 + $0x20] sm:$0xf]
        %v772 = vld [vmem:[%s719 + $0x24] sm:$0xf]
        %v773 = vld [vmem:[%s719 + $0x28] sm:$0xf]
        %v774 = vld [vmem:[%s719 + $0x2c] sm:$0xf]
        %v775 = vld [vmem:[%s719 + $0x30] sm:$0xf]
        %v776 = vld [vmem:[%s719 + $0x34] sm:$0xf]
        %v777 = vld [vmem:[%s719 + $0x38] sm:$0xf]
        %v778 = vld [vmem:[%s719 + $0x3c] sm:$0xf]
        %v779 = vunpack.c.l.bf16 %v763
        %v780 = vunpack.c.l.bf16 %v764
        %v781 = vunpack.c.l.bf16 %v765
        %v782 = vunpack.c.l.bf16 %v766
        %v783 = vunpack.c.l.bf16 %v767
        %v784 = vunpack.c.l.bf16 %v768
        %v785 = vunpack.c.l.bf16 %v769
        %v786 = vunpack.c.l.bf16 %v770
        %v787 = vunpack.c.l.bf16 %v771
        %v788 = vunpack.c.l.bf16 %v772
        %v789 = vunpack.c.l.bf16 %v773
        %v790 = vunpack.c.l.bf16 %v774
        %v791 = vunpack.c.l.bf16 %v775
        %v792 = vunpack.c.l.bf16 %v776
        %v793 = vunpack.c.l.bf16 %v777
        %v794 = vunpack.c.l.bf16 %v778
        %v795 = vld [vmem:[%s724] sm:$0x1]
        %v796 = vmul.f32 %v795, 0.00390625
        %v797 = vld [vmem:[%s724 + $0x1] sm:$0x1]
        %v798 = vmul.f32 %v797, 0.00390625
        %v799 = vmul.f32 %v796, %v796
        %v800 = vsub.f32 %v798, %v799
        %v801 = vmax.f32 %v800, 0.0
        %v802 = vadd.f32 %v801, 1e-05
        %v803 = vrsqrt.pop %v802
        %v804 = vmul.f32 %v803, %v802
        %v805 = vmul.f32 %v804, %v803
        %v806 = vmul.f32 0.5, %v805
        %v807 = vsub.f32 1.5, %v806
        %v808 = vmul.f32 %v803, %v807
        %vm809 = vweird.f32 %v802
        %vm810 = vweird.f32 %v803
        %vm811 = vmor %vm809, %vm810
        %v812 = vsel %vm811, %v803, %v808
        %v813 = vld [vmem:[%s2] sm:$0x1]
        %v814 = vmul.f32 %v812, %v813
        %v815 = vld [vmem:[%s3] sm:$0x1]
        %v816 = vmul.f32 %v796, %v814
        %v817 = vsub.f32 %v815, %v816
        %v818 = vperm.slane %v814, 0
        %v819 = vmul.f32 %v779, %v818
        %v820 = vmul.f32 %v780, %v818
        %v821 = vmul.f32 %v781, %v818
        %v822 = vmul.f32 %v782, %v818
        %v823 = vmul.f32 %v783, %v818
        %v824 = vmul.f32 %v784, %v818
        %v825 = vmul.f32 %v785, %v818
        %v826 = vmul.f32 %v786, %v818
        %v827 = vmul.f32 %v787, %v818
        %v828 = vmul.f32 %v788, %v818
        %v829 = vmul.f32 %v789, %v818
        %v830 = vmul.f32 %v790, %v818
        %v831 = vmul.f32 %v791, %v818
        %v832 = vmul.f32 %v792, %v818
        %v833 = vmul.f32 %v793, %v818
        %v834 = vmul.f32 %v794, %v818
        %v836 = vperm.slane %v817, 0
        %v838 = vadd.f32 %v819, %v836
        %v839 = vadd.f32 %v820, %v836
        %v840 = vadd.f32 %v821, %v836
        %v841 = vadd.f32 %v822, %v836
        %v842 = vadd.f32 %v823, %v836
        %v843 = vadd.f32 %v824, %v836
        %v844 = vadd.f32 %v825, %v836
        %v845 = vadd.f32 %v826, %v836
        %v846 = vadd.f32 %v827, %v836
        %v847 = vadd.f32 %v828, %v836
        %v848 = vadd.f32 %v829, %v836
        %v849 = vadd.f32 %v830, %v836
        %v850 = vadd.f32 %v831, %v836
        %v851 = vadd.f32 %v832, %v836
        %v852 = vadd.f32 %v833, %v836
        %v853 = vadd.f32 %v834, %v836
        %v854 = vpack.c.bf16 %v838, %v838
        %v855 = vpack.c.bf16 %v839, %v839
        %v856 = vpack.c.bf16 %v840, %v840
        %v857 = vpack.c.bf16 %v841, %v841
        %v858 = vpack.c.bf16 %v842, %v842
        %v859 = vpack.c.bf16 %v843, %v843
        %v860 = vpack.c.bf16 %v844, %v844
        %v861 = vpack.c.bf16 %v845, %v845
        %v862 = vpack.c.bf16 %v846, %v846
        %v863 = vpack.c.bf16 %v847, %v847
        %v864 = vpack.c.bf16 %v848, %v848
        %v865 = vpack.c.bf16 %v849, %v849
        %v866 = vpack.c.bf16 %v850, %v850
        %v867 = vpack.c.bf16 %v851, %v851
        %v868 = vpack.c.bf16 %v852, %v852
        %v869 = vpack.c.bf16 %v853, %v853
        %870 = vst [vmem:[#allocation2] sm:$0xf] %v854
        %871 = vst [vmem:[#allocation2 + $0x4] sm:$0xf] %v855
        %872 = vst [vmem:[#allocation2 + $0x8] sm:$0xf] %v856
        %873 = vst [vmem:[#allocation2 + $0xc] sm:$0xf] %v857
        %874 = vst [vmem:[#allocation2 + $0x10] sm:$0xf] %v858
        %875 = vst [vmem:[#allocation2 + $0x14] sm:$0xf] %v859
        %876 = vst [vmem:[#allocation2 + $0x18] sm:$0xf] %v860
        %877 = vst [vmem:[#allocation2 + $0x1c] sm:$0xf] %v861
        %878 = vst [vmem:[#allocation2 + $0x20] sm:$0xf] %v862
        %879 = vst [vmem:[#allocation2 + $0x24] sm:$0xf] %v863
        %880 = vst [vmem:[#allocation2 + $0x28] sm:$0xf] %v864
        %881 = vst [vmem:[#allocation2 + $0x2c] sm:$0xf] %v865
        %882 = vst [vmem:[#allocation2 + $0x30] sm:$0xf] %v866
        %883 = vst [vmem:[#allocation2 + $0x34] sm:$0xf] %v867
        %884 = vst [vmem:[#allocation2 + $0x38] sm:$0xf] %v868
        %885 = vst [vmem:[#allocation2 + $0x3c] sm:$0xf] %v869
        %v886 = vld [vmem:[#allocation2] sm:$0xf]
        %v887 = vld [vmem:[#allocation2 + $0x4] sm:$0xf]
        %v888 = vld [vmem:[#allocation2 + $0x8] sm:$0xf]
        %v889 = vld [vmem:[#allocation2 + $0xc] sm:$0xf]
        %v890 = vld [vmem:[#allocation2 + $0x10] sm:$0xf]
        %v891 = vld [vmem:[#allocation2 + $0x14] sm:$0xf]
        %v892 = vld [vmem:[#allocation2 + $0x18] sm:$0xf]
        %v893 = vld [vmem:[#allocation2 + $0x1c] sm:$0xf]
        %v894 = vld [vmem:[#allocation2 + $0x20] sm:$0xf]
        %v895 = vld [vmem:[#allocation2 + $0x24] sm:$0xf]
        %v896 = vld [vmem:[#allocation2 + $0x28] sm:$0xf]
        %v897 = vld [vmem:[#allocation2 + $0x2c] sm:$0xf]
        %v898 = vld [vmem:[#allocation2 + $0x30] sm:$0xf]
        %v899 = vld [vmem:[#allocation2 + $0x34] sm:$0xf]
        %v900 = vld [vmem:[#allocation2 + $0x38] sm:$0xf]
        %v901 = vld [vmem:[#allocation2 + $0x3c] sm:$0xf]
        %v902 = vld [vmem:[%s8] sm:$0xf]
        %v903 = vld [vmem:[%s8 + $0x4] sm:$0xf]
        %v904 = vld [vmem:[%s8 + $0x8] sm:$0xf]
        %v905 = vld [vmem:[%s8 + $0xc] sm:$0xf]
        %v906 = vld [vmem:[%s8 + $0x10] sm:$0xf]
        %v907 = vld [vmem:[%s8 + $0x14] sm:$0xf]
        %v908 = vld [vmem:[%s8 + $0x18] sm:$0xf]
        %v909 = vld [vmem:[%s8 + $0x1c] sm:$0xf]
        %v910 = vld [vmem:[%s8 + $0x20] sm:$0xf]
        %v911 = vld [vmem:[%s8 + $0x24] sm:$0xf]
        %v912 = vld [vmem:[%s8 + $0x28] sm:$0xf]
        %v913 = vld [vmem:[%s8 + $0x2c] sm:$0xf]
        %v914 = vld [vmem:[%s8 + $0x30] sm:$0xf]
        %v915 = vld [vmem:[%s8 + $0x34] sm:$0xf]
        %v916 = vld [vmem:[%s8 + $0x38] sm:$0xf]
        %v917 = vld [vmem:[%s8 + $0x3c] sm:$0xf]
        %v918 = vld [vmem:[%s9] sm:$0x1]
        %v920 = vperm.slane %v918, 0
        %v938 = vunpack.c.l.b16 %v886
        %v939 = vunpack.c.l.b16 %v887
        %v940 = vunpack.c.l.b16 %v888
        %v941 = vunpack.c.l.b16 %v889
        %v942 = vunpack.c.l.b16 %v890
        %v943 = vunpack.c.l.b16 %v891
        %v944 = vunpack.c.l.b16 %v892
        %v945 = vunpack.c.l.b16 %v893
        %v946 = vunpack.c.l.b16 %v894
        %v947 = vunpack.c.l.b16 %v895
        %v948 = vunpack.c.l.b16 %v896
        %v949 = vunpack.c.l.b16 %v897
        %v950 = vunpack.c.l.b16 %v898
        %v951 = vunpack.c.l.b16 %v899
        %v952 = vunpack.c.l.b16 %v900
        %v953 = vunpack.c.l.b16 %v901
        %v954 = vpack.c.b16 %v939, %v938
        %v955 = vpack.c.b16 %v941, %v940
        %v956 = vpack.c.b16 %v943, %v942
        %v957 = vpack.c.b16 %v945, %v944
        %v958 = vpack.c.b16 %v947, %v946
        %v959 = vpack.c.b16 %v949, %v948
        %v960 = vpack.c.b16 %v951, %v950
        %v961 = vpack.c.b16 %v953, %v952
        %v986 = vunpack.c.l.b16 %v902
        %v987 = vunpack.c.l.b16 %v903
        %v988 = vunpack.c.l.b16 %v904
        %v989 = vunpack.c.l.b16 %v905
        %v990 = vunpack.c.l.b16 %v906
        %v991 = vunpack.c.l.b16 %v907
        %v992 = vunpack.c.l.b16 %v908
        %v993 = vunpack.c.l.b16 %v909
        %v994 = vunpack.c.l.b16 %v910
        %v995 = vunpack.c.l.b16 %v911
        %v996 = vunpack.c.l.b16 %v912
        %v997 = vunpack.c.l.b16 %v913
        %v998 = vunpack.c.l.b16 %v914
        %v999 = vunpack.c.l.b16 %v915
        %v1000 = vunpack.c.l.b16 %v916
        %v1001 = vunpack.c.l.b16 %v917
        %v1002 = vpack.c.b16 %v987, %v986
        %v1003 = vpack.c.b16 %v989, %v988
        %v1004 = vpack.c.b16 %v991, %v990
        %v1005 = vpack.c.b16 %v993, %v992
        %v1006 = vpack.c.b16 %v995, %v994
        %v1007 = vpack.c.b16 %v997, %v996
        %v1008 = vpack.c.b16 %v999, %v998
        %v1009 = vpack.c.b16 %v1001, %v1000
        %1018 = vmatpush.bf16.msra.mxu0 %v1009
        %1019 = vmatpush.bf16.msra.mxu0 %v1008
        %1020 = vmatpush.bf16.msra.mxu0 %v1007
        %1021 = vmatpush.bf16.msra.mxu0 %v1006
        %1022 = vmatpush.bf16.msra.mxu0 %v1005
        %1023 = vmatpush.bf16.msra.mxu0 %v1004
        %1024 = vmatpush.bf16.msra.mxu0 %v1003
        %1025 = vmatpush.bf16.msra.mxu0 %v1002
        %1026 = vmatmul.bf16.gmra.mxu0 %v954
        %v1027 = vpop.f32.mrf.mxu0
        %v1028 = vadd.f32 %v920, %v1027
        %v1029 = vpop.f32.mrf.mxu0
        %v1030 = vadd.f32 %v920, %v1029
        %1031 = vmatmul.bf16.gmra.mxu0 %v955
        %v1032 = vpop.f32.mrf.mxu0
        %v1033 = vadd.f32 %v920, %v1032
        %v1034 = vpop.f32.mrf.mxu0
        %v1035 = vadd.f32 %v920, %v1034
        %1036 = vmatmul.bf16.gmra.mxu0 %v956
        %v1037 = vpop.f32.mrf.mxu0
        %v1038 = vadd.f32 %v920, %v1037
        %v1039 = vpop.f32.mrf.mxu0
        %v1040 = vadd.f32 %v920, %v1039
        %1041 = vmatmul.bf16.gmra.mxu0 %v957
        %v1042 = vpop.f32.mrf.mxu0
        %v1043 = vadd.f32 %v920, %v1042
        %v1044 = vpop.f32.mrf.mxu0
        %v1045 = vadd.f32 %v920, %v1044
        %1046 = vmatmul.bf16.gmra.mxu0 %v958
        %v1047 = vpop.f32.mrf.mxu0
        %v1048 = vadd.f32 %v920, %v1047
        %v1049 = vpop.f32.mrf.mxu0
        %v1050 = vadd.f32 %v920, %v1049
        %1051 = vmatmul.bf16.gmra.mxu0 %v959
        %v1052 = vpop.f32.mrf.mxu0
        %v1053 = vadd.f32 %v920, %v1052
        %v1054 = vpop.f32.mrf.mxu0
        %v1055 = vadd.f32 %v920, %v1054
        %1056 = vmatmul.bf16.gmra.mxu0 %v960
        %v1057 = vpop.f32.mrf.mxu0
        %v1058 = vadd.f32 %v920, %v1057
        %v1059 = vpop.f32.mrf.mxu0
        %v1060 = vadd.f32 %v920, %v1059
        %1061 = vmatmul.bf16.gmra.mxu0 %v961
        %v1062 = vpop.f32.mrf.mxu0
        %v1063 = vadd.f32 %v920, %v1062
        %v1064 = vpop.f32.mrf.mxu0
        %v1065 = vadd.f32 %v920, %v1064
        %1066 = vdwg.mxu0
        %vm1067 = vcmp.gt.f32.partialorder %v1028, 0.0
        %vm1068 = vcmp.gt.f32.partialorder %v1030, 0.0
        %vm1069 = vcmp.gt.f32.partialorder %v1033, 0.0
        %vm1070 = vcmp.gt.f32.partialorder %v1035, 0.0
        %vm1071 = vcmp.gt.f32.partialorder %v1038, 0.0
        %vm1072 = vcmp.gt.f32.partialorder %v1040, 0.0
        %vm1073 = vcmp.gt.f32.partialorder %v1043, 0.0
        %vm1074 = vcmp.gt.f32.partialorder %v1045, 0.0
        %vm1075 = vcmp.gt.f32.partialorder %v1048, 0.0
        %vm1076 = vcmp.gt.f32.partialorder %v1050, 0.0
        %vm1077 = vcmp.gt.f32.partialorder %v1053, 0.0
        %vm1078 = vcmp.gt.f32.partialorder %v1055, 0.0
        %vm1079 = vcmp.gt.f32.partialorder %v1058, 0.0
        %vm1080 = vcmp.gt.f32.partialorder %v1060, 0.0
        %vm1081 = vcmp.gt.f32.partialorder %v1063, 0.0
        %vm1082 = vcmp.gt.f32.partialorder %v1065, 0.0
        %v1083 = vmin.f32 %v1028, 0.0
        %v1084 = vmin.f32 %v1030, 0.0
        %v1085 = vmin.f32 %v1033, 0.0
        %v1086 = vmin.f32 %v1035, 0.0
        %v1087 = vmin.f32 %v1038, 0.0
        %v1088 = vmin.f32 %v1040, 0.0
        %v1089 = vmin.f32 %v1043, 0.0
        %v1090 = vmin.f32 %v1045, 0.0
        %v1091 = vmin.f32 %v1048, 0.0
        %v1092 = vmin.f32 %v1050, 0.0
        %v1093 = vmin.f32 %v1053, 0.0
        %v1094 = vmin.f32 %v1055, 0.0
        %v1095 = vmin.f32 %v1058, 0.0
        %v1096 = vmin.f32 %v1060, 0.0
        %v1097 = vmin.f32 %v1063, 0.0
        %v1098 = vmin.f32 %v1065, 0.0
        %v1099 = vmul.f32 %v1083, 1.442695
        %v1100 = vpow.pop %v1099
        %v1101 = vmul.f32 %v1084, 1.442695
        %v1102 = vpow.pop %v1101
        %v1103 = vmul.f32 %v1085, 1.442695
        %v1104 = vpow.pop %v1103
        %v1105 = vmul.f32 %v1086, 1.442695
        %v1106 = vpow.pop %v1105
        %v1107 = vmul.f32 %v1087, 1.442695
        %v1108 = vpow.pop %v1107
        %v1109 = vmul.f32 %v1088, 1.442695
        %v1110 = vpow.pop %v1109
        %v1111 = vmul.f32 %v1089, 1.442695
        %v1112 = vpow.pop %v1111
        %v1113 = vmul.f32 %v1090, 1.442695
        %v1114 = vpow.pop %v1113
        %v1115 = vmul.f32 %v1091, 1.442695
        %v1116 = vpow.pop %v1115
        %v1117 = vmul.f32 %v1092, 1.442695
        %v1118 = vpow.pop %v1117
        %v1119 = vmul.f32 %v1093, 1.442695
        %v1120 = vpow.pop %v1119
        %v1121 = vmul.f32 %v1094, 1.442695
        %v1122 = vpow.pop %v1121
        %v1123 = vmul.f32 %v1095, 1.442695
        %v1124 = vpow.pop %v1123
        %v1125 = vmul.f32 %v1096, 1.442695
        %v1126 = vpow.pop %v1125
        %v1127 = vmul.f32 %v1097, 1.442695
        %v1128 = vpow.pop %v1127
        %v1129 = vmul.f32 %v1098, 1.442695
        %v1130 = vpow.pop %v1129
        %v1131 = vsub.f32 %v1100, 1.0
        %v1132 = vsub.f32 %v1102, 1.0
        %v1133 = vsub.f32 %v1104, 1.0
        %v1134 = vsub.f32 %v1106, 1.0
        %v1135 = vsub.f32 %v1108, 1.0
        %v1136 = vsub.f32 %v1110, 1.0
        %v1137 = vsub.f32 %v1112, 1.0
        %v1138 = vsub.f32 %v1114, 1.0
        %v1139 = vsub.f32 %v1116, 1.0
        %v1140 = vsub.f32 %v1118, 1.0
        %v1141 = vsub.f32 %v1120, 1.0
        %v1142 = vsub.f32 %v1122, 1.0
        %v1143 = vsub.f32 %v1124, 1.0
        %v1144 = vsub.f32 %v1126, 1.0
        %v1145 = vsub.f32 %v1128, 1.0
        %v1146 = vsub.f32 %v1130, 1.0
        %v1147 = vsel %vm1067, %v1028, %v1131
        %v1148 = vsel %vm1068, %v1030, %v1132
        %v1149 = vsel %vm1069, %v1033, %v1133
        %v1150 = vsel %vm1070, %v1035, %v1134
        %v1151 = vsel %vm1071, %v1038, %v1135
        %v1152 = vsel %vm1072, %v1040, %v1136
        %v1153 = vsel %vm1073, %v1043, %v1137
        %v1154 = vsel %vm1074, %v1045, %v1138
        %v1155 = vsel %vm1075, %v1048, %v1139
        %v1156 = vsel %vm1076, %v1050, %v1140
        %v1157 = vsel %vm1077, %v1053, %v1141
        %v1158 = vsel %vm1078, %v1055, %v1142
        %v1159 = vsel %vm1079, %v1058, %v1143
        %v1160 = vsel %vm1080, %v1060, %v1144
        %v1161 = vsel %vm1081, %v1063, %v1145
        %v1162 = vsel %vm1082, %v1065, %v1146
        %v1163 = vld [vmem:[%s10] sm:$0xf]
        %v1164 = vld [vmem:[%s10 + $0x4] sm:$0xf]
        %v1165 = vld [vmem:[%s10 + $0x8] sm:$0xf]
        %v1166 = vld [vmem:[%s10 + $0xc] sm:$0xf]
        %v1167 = vld [vmem:[%s10 + $0x10] sm:$0xf]
        %v1168 = vld [vmem:[%s10 + $0x14] sm:$0xf]
        %v1169 = vld [vmem:[%s10 + $0x18] sm:$0xf]
        %v1170 = vld [vmem:[%s10 + $0x1c] sm:$0xf]
        %v1171 = vld [vmem:[%s10 + $0x20] sm:$0xf]
        %v1172 = vld [vmem:[%s10 + $0x24] sm:$0xf]
        %v1173 = vld [vmem:[%s10 + $0x28] sm:$0xf]
        %v1174 = vld [vmem:[%s10 + $0x2c] sm:$0xf]
        %v1175 = vld [vmem:[%s10 + $0x30] sm:$0xf]
        %v1176 = vld [vmem:[%s10 + $0x34] sm:$0xf]
        %v1177 = vld [vmem:[%s10 + $0x38] sm:$0xf]
        %v1178 = vld [vmem:[%s10 + $0x3c] sm:$0xf]
        %v1179 = vpack.c.bf16 %v1148, %v1147
        %v1180 = vpack.c.bf16 %v1150, %v1149
        %v1181 = vpack.c.bf16 %v1152, %v1151
        %v1182 = vpack.c.bf16 %v1154, %v1153
        %v1183 = vpack.c.bf16 %v1156, %v1155
        %v1184 = vpack.c.bf16 %v1158, %v1157
        %v1185 = vpack.c.bf16 %v1160, %v1159
        %v1186 = vpack.c.bf16 %v1162, %v1161
        %v1187 = vld [vmem:[%s11] sm:$0xf]
        %v1188 = vld [vmem:[%s11 + $0x4] sm:$0xf]
        %v1189 = vld [vmem:[%s11 + $0x8] sm:$0xf]
        %v1190 = vld [vmem:[%s11 + $0xc] sm:$0xf]
        %v1191 = vld [vmem:[%s11 + $0x10] sm:$0xf]
        %v1192 = vld [vmem:[%s11 + $0x14] sm:$0xf]
        %v1193 = vld [vmem:[%s11 + $0x18] sm:$0xf]
        %v1194 = vld [vmem:[%s11 + $0x1c] sm:$0xf]
        %v1195 = vld [vmem:[%s11 + $0x20] sm:$0xf]
        %v1196 = vld [vmem:[%s11 + $0x24] sm:$0xf]
        %v1197 = vld [vmem:[%s11 + $0x28] sm:$0xf]
        %v1198 = vld [vmem:[%s11 + $0x2c] sm:$0xf]
        %v1199 = vld [vmem:[%s11 + $0x30] sm:$0xf]
        %v1200 = vld [vmem:[%s11 + $0x34] sm:$0xf]
        %v1201 = vld [vmem:[%s11 + $0x38] sm:$0xf]
        %v1202 = vld [vmem:[%s11 + $0x3c] sm:$0xf]
        %v1219 = vunpack.c.l.b16 %v1187
        %v1220 = vunpack.c.l.b16 %v1188
        %v1221 = vunpack.c.l.b16 %v1189
        %v1222 = vunpack.c.l.b16 %v1190
        %v1223 = vunpack.c.l.b16 %v1191
        %v1224 = vunpack.c.l.b16 %v1192
        %v1225 = vunpack.c.l.b16 %v1193
        %v1226 = vunpack.c.l.b16 %v1194
        %v1227 = vunpack.c.l.b16 %v1195
        %v1228 = vunpack.c.l.b16 %v1196
        %v1229 = vunpack.c.l.b16 %v1197
        %v1230 = vunpack.c.l.b16 %v1198
        %v1231 = vunpack.c.l.b16 %v1199
        %v1232 = vunpack.c.l.b16 %v1200
        %v1233 = vunpack.c.l.b16 %v1201
        %v1234 = vunpack.c.l.b16 %v1202
        %v1235 = vpack.c.b16 %v1220, %v1219
        %v1236 = vpack.c.b16 %v1222, %v1221
        %v1237 = vpack.c.b16 %v1224, %v1223
        %v1238 = vpack.c.b16 %v1226, %v1225
        %v1239 = vpack.c.b16 %v1228, %v1227
        %v1240 = vpack.c.b16 %v1230, %v1229
        %v1241 = vpack.c.b16 %v1232, %v1231
        %v1242 = vpack.c.b16 %v1234, %v1233
        %1251 = vmatpush.bf16.msra.mxu0 %v1242
        %1252 = vmatpush.bf16.msra.mxu0 %v1241
        %1253 = vmatpush.bf16.msra.mxu0 %v1240
        %1254 = vmatpush.bf16.msra.mxu0 %v1239
        %1255 = vmatpush.bf16.msra.mxu0 %v1238
        %1256 = vmatpush.bf16.msra.mxu0 %v1237
        %1257 = vmatpush.bf16.msra.mxu0 %v1236
        %1258 = vmatpush.bf16.msra.mxu0 %v1235
        %1259 = vmatmul.bf16.gmra.mxu0 %v1179
        %v1260 = vpop.f32.mrf.mxu0
        %v1261 = vadd.f32 0.0, %v1260
        %v1262 = vpop.f32.mrf.mxu0
        %v1263 = vadd.f32 0.0, %v1262
        %1264 = vmatmul.bf16.gmra.mxu0 %v1180
        %v1265 = vpop.f32.mrf.mxu0
        %v1266 = vadd.f32 0.0, %v1265
        %v1267 = vpop.f32.mrf.mxu0
        %v1268 = vadd.f32 0.0, %v1267
        %1269 = vmatmul.bf16.gmra.mxu0 %v1181
        %v1270 = vpop.f32.mrf.mxu0
        %v1271 = vadd.f32 0.0, %v1270
        %v1272 = vpop.f32.mrf.mxu0
        %v1273 = vadd.f32 0.0, %v1272
        %1274 = vmatmul.bf16.gmra.mxu0 %v1182
        %v1275 = vpop.f32.mrf.mxu0
        %v1276 = vadd.f32 0.0, %v1275
        %v1277 = vpop.f32.mrf.mxu0
        %v1278 = vadd.f32 0.0, %v1277
        %1279 = vmatmul.bf16.gmra.mxu0 %v1183
        %v1280 = vpop.f32.mrf.mxu0
        %v1281 = vadd.f32 0.0, %v1280
        %v1282 = vpop.f32.mrf.mxu0
        %v1283 = vadd.f32 0.0, %v1282
        %1284 = vmatmul.bf16.gmra.mxu0 %v1184
        %v1285 = vpop.f32.mrf.mxu0
        %v1286 = vadd.f32 0.0, %v1285
        %v1287 = vpop.f32.mrf.mxu0
        %v1288 = vadd.f32 0.0, %v1287
        %1289 = vmatmul.bf16.gmra.mxu0 %v1185
        %v1290 = vpop.f32.mrf.mxu0
        %v1291 = vadd.f32 0.0, %v1290
        %v1292 = vpop.f32.mrf.mxu0
        %v1293 = vadd.f32 0.0, %v1292
        %1294 = vmatmul.bf16.gmra.mxu0 %v1186
        %v1295 = vpop.f32.mrf.mxu0
        %v1296 = vadd.f32 0.0, %v1295
        %v1297 = vpop.f32.mrf.mxu0
        %v1298 = vadd.f32 0.0, %v1297
        %1299 = vdwg.mxu0
        %v1316 = vunpack.c.l.b16 %v763
        %v1317 = vunpack.c.l.b16 %v764
        %v1318 = vunpack.c.l.b16 %v765
        %v1319 = vunpack.c.l.b16 %v766
        %v1320 = vunpack.c.l.b16 %v767
        %v1321 = vunpack.c.l.b16 %v768
        %v1322 = vunpack.c.l.b16 %v769
        %v1323 = vunpack.c.l.b16 %v770
        %v1324 = vunpack.c.l.b16 %v771
        %v1325 = vunpack.c.l.b16 %v772
        %v1326 = vunpack.c.l.b16 %v773
        %v1327 = vunpack.c.l.b16 %v774
        %v1328 = vunpack.c.l.b16 %v775
        %v1329 = vunpack.c.l.b16 %v776
        %v1330 = vunpack.c.l.b16 %v777
        %v1331 = vunpack.c.l.b16 %v778
        %v1332 = vpack.c.b16 %v1317, %v1316
        %v1333 = vpack.c.b16 %v1319, %v1318
        %v1334 = vpack.c.b16 %v1321, %v1320
        %v1335 = vpack.c.b16 %v1323, %v1322
        %v1336 = vpack.c.b16 %v1325, %v1324
        %v1337 = vpack.c.b16 %v1327, %v1326
        %v1338 = vpack.c.b16 %v1329, %v1328
        %v1339 = vpack.c.b16 %v1331, %v1330
        %v1364 = vunpack.c.l.b16 %v1163
        %v1365 = vunpack.c.l.b16 %v1164
        %v1366 = vunpack.c.l.b16 %v1165
        %v1367 = vunpack.c.l.b16 %v1166
        %v1368 = vunpack.c.l.b16 %v1167
        %v1369 = vunpack.c.l.b16 %v1168
        %v1370 = vunpack.c.l.b16 %v1169
        %v1371 = vunpack.c.l.b16 %v1170
        %v1372 = vunpack.c.l.b16 %v1171
        %v1373 = vunpack.c.l.b16 %v1172
        %v1374 = vunpack.c.l.b16 %v1173
        %v1375 = vunpack.c.l.b16 %v1174
        %v1376 = vunpack.c.l.b16 %v1175
        %v1377 = vunpack.c.l.b16 %v1176
        %v1378 = vunpack.c.l.b16 %v1177
        %v1379 = vunpack.c.l.b16 %v1178
        %v1380 = vpack.c.b16 %v1365, %v1364
        %v1381 = vpack.c.b16 %v1367, %v1366
        %v1382 = vpack.c.b16 %v1369, %v1368
        %v1383 = vpack.c.b16 %v1371, %v1370
        %v1384 = vpack.c.b16 %v1373, %v1372
        %v1385 = vpack.c.b16 %v1375, %v1374
        %v1386 = vpack.c.b16 %v1377, %v1376
        %v1387 = vpack.c.b16 %v1379, %v1378
        %1396 = vmatpush.bf16.msra.mxu0 %v1387
        %1397 = vmatpush.bf16.msra.mxu0 %v1386
        %1398 = vmatpush.bf16.msra.mxu0 %v1385
        %1399 = vmatpush.bf16.msra.mxu0 %v1384
        %1400 = vmatpush.bf16.msra.mxu0 %v1383
        %1401 = vmatpush.bf16.msra.mxu0 %v1382
        %1402 = vmatpush.bf16.msra.mxu0 %v1381
        %1403 = vmatpush.bf16.msra.mxu0 %v1380
        %1404 = vmatmul.bf16.gmra.mxu0 %v1332
        %v1405 = vpop.f32.mrf.mxu0
        %v1406 = vadd.f32 %v1261, %v1405
        %v1407 = vpop.f32.mrf.mxu0
        %v1408 = vadd.f32 %v1263, %v1407
        %1409 = vmatmul.bf16.gmra.mxu0 %v1333
        %v1410 = vpop.f32.mrf.mxu0
        %v1411 = vadd.f32 %v1266, %v1410
        %v1412 = vpop.f32.mrf.mxu0
        %v1413 = vadd.f32 %v1268, %v1412
        %1414 = vmatmul.bf16.gmra.mxu0 %v1334
        %v1415 = vpop.f32.mrf.mxu0
        %v1416 = vadd.f32 %v1271, %v1415
        %v1417 = vpop.f32.mrf.mxu0
        %v1418 = vadd.f32 %v1273, %v1417
        %1419 = vmatmul.bf16.gmra.mxu0 %v1335
        %v1420 = vpop.f32.mrf.mxu0
        %v1421 = vadd.f32 %v1276, %v1420
        %v1422 = vpop.f32.mrf.mxu0
        %v1423 = vadd.f32 %v1278, %v1422
        %1424 = vmatmul.bf16.gmra.mxu0 %v1336
        %v1425 = vpop.f32.mrf.mxu0
        %v1426 = vadd.f32 %v1281, %v1425
        %v1427 = vpop.f32.mrf.mxu0
        %v1428 = vadd.f32 %v1283, %v1427
        %1429 = vmatmul.bf16.gmra.mxu0 %v1337
        %v1430 = vpop.f32.mrf.mxu0
        %v1431 = vadd.f32 %v1286, %v1430
        %v1432 = vpop.f32.mrf.mxu0
        %v1433 = vadd.f32 %v1288, %v1432
        %1434 = vmatmul.bf16.gmra.mxu0 %v1338
        %v1435 = vpop.f32.mrf.mxu0
        %v1436 = vadd.f32 %v1291, %v1435
        %v1437 = vpop.f32.mrf.mxu0
        %v1438 = vadd.f32 %v1293, %v1437
        %1439 = vmatmul.bf16.gmra.mxu0 %v1339
        %v1440 = vpop.f32.mrf.mxu0
        %v1441 = vadd.f32 %v1296, %v1440
        %v1442 = vpop.f32.mrf.mxu0
        %v1443 = vadd.f32 %v1298, %v1442
        %1444 = vdwg.mxu0
        %v1445 = vld [vmem:[%s12] sm:$0x1]
        %v1447 = vperm.slane %v1445, 0
        %v1449 = vadd.f32 %v1406, %v1447
        %v1450 = vadd.f32 %v1408, %v1447
        %v1451 = vadd.f32 %v1411, %v1447
        %v1452 = vadd.f32 %v1413, %v1447
        %v1453 = vadd.f32 %v1416, %v1447
        %v1454 = vadd.f32 %v1418, %v1447
        %v1455 = vadd.f32 %v1421, %v1447
        %v1456 = vadd.f32 %v1423, %v1447
        %v1457 = vadd.f32 %v1426, %v1447
        %v1458 = vadd.f32 %v1428, %v1447
        %v1459 = vadd.f32 %v1431, %v1447
        %v1460 = vadd.f32 %v1433, %v1447
        %v1461 = vadd.f32 %v1436, %v1447
        %v1462 = vadd.f32 %v1438, %v1447
        %v1463 = vadd.f32 %v1441, %v1447
        %v1464 = vadd.f32 %v1443, %v1447
        %vm1465 = vcmp.gt.f32.partialorder %v1449, 0.0
        %vm1466 = vcmp.gt.f32.partialorder %v1450, 0.0
        %vm1467 = vcmp.gt.f32.partialorder %v1451, 0.0
        %vm1468 = vcmp.gt.f32.partialorder %v1452, 0.0
        %vm1469 = vcmp.gt.f32.partialorder %v1453, 0.0
        %vm1470 = vcmp.gt.f32.partialorder %v1454, 0.0
        %vm1471 = vcmp.gt.f32.partialorder %v1455, 0.0
        %vm1472 = vcmp.gt.f32.partialorder %v1456, 0.0
        %vm1473 = vcmp.gt.f32.partialorder %v1457, 0.0
        %vm1474 = vcmp.gt.f32.partialorder %v1458, 0.0
        %vm1475 = vcmp.gt.f32.partialorder %v1459, 0.0
        %vm1476 = vcmp.gt.f32.partialorder %v1460, 0.0
        %vm1477 = vcmp.gt.f32.partialorder %v1461, 0.0
        %vm1478 = vcmp.gt.f32.partialorder %v1462, 0.0
        %vm1479 = vcmp.gt.f32.partialorder %v1463, 0.0
        %vm1480 = vcmp.gt.f32.partialorder %v1464, 0.0
        %v1481 = vmin.f32 %v1449, 0.0
        %v1482 = vmin.f32 %v1450, 0.0
        %v1483 = vmin.f32 %v1451, 0.0
        %v1484 = vmin.f32 %v1452, 0.0
        %v1485 = vmin.f32 %v1453, 0.0
        %v1486 = vmin.f32 %v1454, 0.0
        %v1487 = vmin.f32 %v1455, 0.0
        %v1488 = vmin.f32 %v1456, 0.0
        %v1489 = vmin.f32 %v1457, 0.0
        %v1490 = vmin.f32 %v1458, 0.0
        %v1491 = vmin.f32 %v1459, 0.0
        %v1492 = vmin.f32 %v1460, 0.0
        %v1493 = vmin.f32 %v1461, 0.0
        %v1494 = vmin.f32 %v1462, 0.0
        %v1495 = vmin.f32 %v1463, 0.0
        %v1496 = vmin.f32 %v1464, 0.0
        %v1497 = vmul.f32 %v1481, 1.442695
        %v1498 = vpow.pop %v1497
        %v1499 = vmul.f32 %v1482, 1.442695
        %v1500 = vpow.pop %v1499
        %v1501 = vmul.f32 %v1483, 1.442695
        %v1502 = vpow.pop %v1501
        %v1503 = vmul.f32 %v1484, 1.442695
        %v1504 = vpow.pop %v1503
        %v1505 = vmul.f32 %v1485, 1.442695
        %v1506 = vpow.pop %v1505
        %v1507 = vmul.f32 %v1486, 1.442695
        %v1508 = vpow.pop %v1507
        %v1509 = vmul.f32 %v1487, 1.442695
        %v1510 = vpow.pop %v1509
        %v1511 = vmul.f32 %v1488, 1.442695
        %v1512 = vpow.pop %v1511
        %v1513 = vmul.f32 %v1489, 1.442695
        %v1514 = vpow.pop %v1513
        %v1515 = vmul.f32 %v1490, 1.442695
        %v1516 = vpow.pop %v1515
        %v1517 = vmul.f32 %v1491, 1.442695
        %v1518 = vpow.pop %v1517
        %v1519 = vmul.f32 %v1492, 1.442695
        %v1520 = vpow.pop %v1519
        %v1521 = vmul.f32 %v1493, 1.442695
        %v1522 = vpow.pop %v1521
        %v1523 = vmul.f32 %v1494, 1.442695
        %v1524 = vpow.pop %v1523
        %v1525 = vmul.f32 %v1495, 1.442695
        %v1526 = vpow.pop %v1525
        %v1527 = vmul.f32 %v1496, 1.442695
        %v1528 = vpow.pop %v1527
        %v1529 = vsub.f32 %v1498, 1.0
        %v1530 = vsub.f32 %v1500, 1.0
        %v1531 = vsub.f32 %v1502, 1.0
        %v1532 = vsub.f32 %v1504, 1.0
        %v1533 = vsub.f32 %v1506, 1.0
        %v1534 = vsub.f32 %v1508, 1.0
        %v1535 = vsub.f32 %v1510, 1.0
        %v1536 = vsub.f32 %v1512, 1.0
        %v1537 = vsub.f32 %v1514, 1.0
        %v1538 = vsub.f32 %v1516, 1.0
        %v1539 = vsub.f32 %v1518, 1.0
        %v1540 = vsub.f32 %v1520, 1.0
        %v1541 = vsub.f32 %v1522, 1.0
        %v1542 = vsub.f32 %v1524, 1.0
        %v1543 = vsub.f32 %v1526, 1.0
        %v1544 = vsub.f32 %v1528, 1.0
        %v1545 = vsel %vm1465, %v1449, %v1529
        %v1546 = vsel %vm1466, %v1450, %v1530
        %v1547 = vsel %vm1467, %v1451, %v1531
        %v1548 = vsel %vm1468, %v1452, %v1532
        %v1549 = vsel %vm1469, %v1453, %v1533
        %v1550 = vsel %vm1470, %v1454, %v1534
        %v1551 = vsel %vm1471, %v1455, %v1535
        %v1552 = vsel %vm1472, %v1456, %v1536
        %v1553 = vsel %vm1473, %v1457, %v1537
        %v1554 = vsel %vm1474, %v1458, %v1538
        %v1555 = vsel %vm1475, %v1459, %v1539
        %v1556 = vsel %vm1476, %v1460, %v1540
        %v1557 = vsel %vm1477, %v1461, %v1541
        %v1558 = vsel %vm1478, %v1462, %v1542
        %v1559 = vsel %vm1479, %v1463, %v1543
        %v1560 = vsel %vm1480, %v1464, %v1544
        %v1561 = vpack.c.bf16 %v1545, %v1545
        %v1562 = vpack.c.bf16 %v1546, %v1546
        %v1563 = vpack.c.bf16 %v1547, %v1547
        %v1564 = vpack.c.bf16 %v1548, %v1548
        %v1565 = vpack.c.bf16 %v1549, %v1549
        %v1566 = vpack.c.bf16 %v1550, %v1550
        %v1567 = vpack.c.bf16 %v1551, %v1551
        %v1568 = vpack.c.bf16 %v1552, %v1552
        %v1569 = vpack.c.bf16 %v1553, %v1553
        %v1570 = vpack.c.bf16 %v1554, %v1554
        %v1571 = vpack.c.bf16 %v1555, %v1555
        %v1572 = vpack.c.bf16 %v1556, %v1556
        %v1573 = vpack.c.bf16 %v1557, %v1557
        %v1574 = vpack.c.bf16 %v1558, %v1558
        %v1575 = vpack.c.bf16 %v1559, %v1559
        %v1576 = vpack.c.bf16 %v1560, %v1560
        %1577 = vst [vmem:[%s751] sm:$0xf] %v1561
        %1578 = vst [vmem:[%s751 + $0x4] sm:$0xf] %v1562
        %1579 = vst [vmem:[%s751 + $0x8] sm:$0xf] %v1563
        %1580 = vst [vmem:[%s751 + $0xc] sm:$0xf] %v1564
        %1581 = vst [vmem:[%s751 + $0x10] sm:$0xf] %v1565
        %1582 = vst [vmem:[%s751 + $0x14] sm:$0xf] %v1566
        %1583 = vst [vmem:[%s751 + $0x18] sm:$0xf] %v1567
        %1584 = vst [vmem:[%s751 + $0x1c] sm:$0xf] %v1568
        %1585 = vst [vmem:[%s751 + $0x20] sm:$0xf] %v1569
        %1586 = vst [vmem:[%s751 + $0x24] sm:$0xf] %v1570
        %1587 = vst [vmem:[%s751 + $0x28] sm:$0xf] %v1571
        %1588 = vst [vmem:[%s751 + $0x2c] sm:$0xf] %v1572
        %1589 = vst [vmem:[%s751 + $0x30] sm:$0xf] %v1573
        %1590 = vst [vmem:[%s751 + $0x34] sm:$0xf] %v1574
        %1591 = vst [vmem:[%s751 + $0x38] sm:$0xf] %v1575
        %1592 = vst [vmem:[%s751 + $0x3c] sm:$0xf] %v1576
        %v1593 = vld [vmem:[%s756] sm:$0x1]
        %v1594 = vadd.f32 %v1545, %v1546
        %v1595 = vadd.f32 %v1594, %v1547
        %v1596 = vadd.f32 %v1595, %v1548
        %v1597 = vadd.f32 %v1596, %v1549
        %v1598 = vadd.f32 %v1597, %v1550
        %v1599 = vadd.f32 %v1598, %v1551
        %v1600 = vadd.f32 %v1599, %v1552
        %v1601 = vadd.f32 %v1600, %v1553
        %v1602 = vadd.f32 %v1601, %v1554
        %v1603 = vadd.f32 %v1602, %v1555
        %v1604 = vadd.f32 %v1603, %v1556
        %v1605 = vadd.f32 %v1604, %v1557
        %v1606 = vadd.f32 %v1605, %v1558
        %v1607 = vadd.f32 %v1606, %v1559
        %v1608 = vadd.f32 %v1607, %v1560
        %v1609 = vrot.slane %v1608, 4
        %v1610 = vadd.f32 %v1608, %v1609
        %v1611 = vrot.slane %v1610, 2
        %v1612 = vadd.f32 %v1610, %v1611
        %v1613 = vrot.slane %v1612, 1
        %v1614 = vadd.f32 %v1612, %v1613
        %v1615 = vadd.f32 %v1593, %v1614
        %1616 = vst [vmem:[%s756] sm:$0x1] %v1615
        %v1617 = vld [vmem:[%s756 + $0x1] sm:$0x1]
        %v1618 = vmul.f32 %v1545, %v1545
        %v1619 = vmul.f32 %v1546, %v1546
        %v1620 = vmul.f32 %v1547, %v1547
        %v1621 = vmul.f32 %v1548, %v1548
        %v1622 = vmul.f32 %v1549, %v1549
        %v1623 = vmul.f32 %v1550, %v1550
        %v1624 = vmul.f32 %v1551, %v1551
        %v1625 = vmul.f32 %v1552, %v1552
        %v1626 = vmul.f32 %v1553, %v1553
        %v1627 = vmul.f32 %v1554, %v1554
        %v1628 = vmul.f32 %v1555, %v1555
        %v1629 = vmul.f32 %v1556, %v1556
        %v1630 = vmul.f32 %v1557, %v1557
        %v1631 = vmul.f32 %v1558, %v1558
        %v1632 = vmul.f32 %v1559, %v1559
        %v1633 = vmul.f32 %v1560, %v1560
        %v1634 = vadd.f32 %v1618, %v1619
        %v1635 = vadd.f32 %v1634, %v1620
        %v1636 = vadd.f32 %v1635, %v1621
        %v1637 = vadd.f32 %v1636, %v1622
        %v1638 = vadd.f32 %v1637, %v1623
        %v1639 = vadd.f32 %v1638, %v1624
        %v1640 = vadd.f32 %v1639, %v1625
        %v1641 = vadd.f32 %v1640, %v1626
        %v1642 = vadd.f32 %v1641, %v1627
        %v1643 = vadd.f32 %v1642, %v1628
        %v1644 = vadd.f32 %v1643, %v1629
        %v1645 = vadd.f32 %v1644, %v1630
        %v1646 = vadd.f32 %v1645, %v1631
        %v1647 = vadd.f32 %v1646, %v1632
        %v1648 = vadd.f32 %v1647, %v1633
        %v1649 = vrot.slane %v1648, 4
        %v1650 = vadd.f32 %v1648, %v1649
        %v1651 = vrot.slane %v1650, 2
        %v1652 = vadd.f32 %v1650, %v1651
        %v1653 = vrot.slane %v1652, 1
        %v1654 = vadd.f32 %v1652, %v1653
        %v1655 = vadd.f32 %v1617, %v1654
        %1656 = vst [vmem:[%s756 + $0x1] sm:$0x1] %v1655
        %v1657 = vld [vmem:[%s6] sm:$0x3]
        %v1658 = vld [vmem:[%s7] sm:$0x7]
        %v1659 = vld [vmem:[%s13] sm:$0xf]
        %v1660 = vld [vmem:[%s13 + $0x4] sm:$0xf]
        %v1661 = vld [vmem:[%s13 + $0x8] sm:$0xf]
        %v1662 = vld [vmem:[%s13 + $0xc] sm:$0xf]
        %v1663 = vld [vmem:[%s13 + $0x10] sm:$0xf]
        %v1664 = vld [vmem:[%s13 + $0x14] sm:$0xf]
        %v1665 = vld [vmem:[%s13 + $0x18] sm:$0xf]
        %v1666 = vld [vmem:[%s13 + $0x1c] sm:$0xf]
        %v1667 = vld [vmem:[%s13 + $0x20] sm:$0xf]
        %v1668 = vld [vmem:[%s13 + $0x24] sm:$0xf]
        %v1669 = vld [vmem:[%s13 + $0x28] sm:$0xf]
        %v1670 = vld [vmem:[%s13 + $0x2c] sm:$0xf]
        %v1671 = vld [vmem:[%s13 + $0x30] sm:$0xf]
        %v1672 = vld [vmem:[%s13 + $0x34] sm:$0xf]
        %v1673 = vld [vmem:[%s13 + $0x38] sm:$0xf]
        %v1674 = vld [vmem:[%s13 + $0x3c] sm:$0xf]
        %v1675 = vld [vmem:[%s14] sm:$0x1]
        %v1676 = vld [vmem:[%s15] sm:$0x1]
        loop: start=0, step=1, limit=8
        $region89: #{block_v1_forward.9} parent=83 // loop_pre_header
          _
        $region90: #{block_v1_forward.9} parent=83 // loop_header
          %s1678 = sphi 0, %s1682
          %p1679 = scmp.ge.s32.totalorder %s1678, 8
        $region91: #{block_v1_forward.9} parent=83 // loop_header_branch
          %1681 = sbr.rel (%p1679) target = $region95
        $region92: #{block_v1_forward.9} parent=83 // loop_body
          %s1683 = smul.u32 %s1678, 16
          %s1684 = sshra.s32 %s1683, 3
          %s1685 = sand.u32 %s1683, 7
          %s1686 = smul.addr %s1684, 4
          %s1687 = scalar_lea.vmem [#allocation2], %s1686
          %v1688 = vld [vmem:[%s1687] sm:$0xf]
          %v1689 = vld [vmem:[%s1687 + $0x4] sm:$0xf]
          %1691 = vset.pattern.permute.xlu0 0
          %1692 = vperm.xlu0 %1691, %v1658
          %v1693 = vpop.permute.xlu0 %1692
          %v1697 = vunpack.c.l.b16 %v1688
          %v1698 = vunpack.c.l.b16 %v1689
          %v1699 = vpack.c.b16 %v1698, %v1697
          %1701 = vmatpush.bf16.xpose.msra.mxu0 0
          %1702 = vmatpush.bf16.xpose.msra.mxu0 0
          %1703 = vmatpush.bf16.xpose.msra.mxu0 0
          %1704 = vmatpush.bf16.xpose.msra.mxu0 0
          %1705 = vmatpush.bf16.xpose.msra.mxu0 0
          %1706 = vmatpush.bf16.xpose.msra.mxu0 0
          %1707 = vmatpush.bf16.xpose.msra.mxu0 0
          %1708 = vmatpush.bf16.xpose.msra.mxu0 %v1699
          %1709 = vmatmul.bf16.gmra.mxu0 %v1657
          %v1710 = vpop.f32.mrf.mxu0
          %v1711 = vadd.f32 %v1693, %v1710
          %v1712 = vpop.f32.mrf.mxu0
          %1713 = vdwg.mxu0
          %s1714 = scalar_lea.vmem %s732, %s1678
          %v1715 = vld [vmem:[%s1714] sm:$0x1]
          %v1716 = vperm.slane %v1715, 0
          %v1717 = vmul.f32 %v1711, %v1716
          %v1719 = vrot.slane %v1717, 1
          %v1720 = vrot.slane %v1717, 2
          %s1723 = scalar_lea.vmem %s686, %s1678 [#allocation3]
          %vm1724 = vcmask 122880
          %1725 = vst.msk [vmem:[%s1723] sm:$0x1] %vm1724, %v1717
          %1726 = vst.msk [vmem:[%s1723 + $0x8] sm:$0x1] %vm1724, %v1719
          %1727 = vst.msk [vmem:[%s1723 + $0x10] sm:$0x1] %vm1724, %v1720
          %s1728 = smul.addr %s1684, 4
          %s1729 = scalar_lea.vmem %s741, %s1728
          %v1730 = vld [vmem:[%s1729] sm:$0xf]
          %v1731 = vld [vmem:[%s1729 + $0x4] sm:$0xf]
          %v1732 = vunpack.c.l.bf16 %v1730
          %v1733 = vunpack.c.l.bf16 %v1731
          %1735 = vset.pattern.permute.xlu0 0
          %1736 = vperm.xlu0 %1735, %v1732
          %v1737 = vpop.permute.xlu0 %1736
          %1740 = vset.pattern.permute.xlu0 0
          %1741 = vperm.xlu0 %1740, %v1733
          %v1742 = vpop.permute.xlu0 %1741
          %v1745 = vperm.slane %v1675, 0
          %v1747 = vmul.f32 %v1737, %v1745
          %v1748 = vmul.f32 %v1742, %v1745
          %v1765 = vunpack.c.l.b16 %v1659
          %v1766 = vunpack.c.l.b16 %v1660
          %v1767 = vunpack.c.l.b16 %v1661
          %v1768 = vunpack.c.l.b16 %v1662
          %v1769 = vunpack.c.l.b16 %v1663
          %v1770 = vunpack.c.l.b16 %v1664
          %v1771 = vunpack.c.l.b16 %v1665
          %v1772 = vunpack.c.l.b16 %v1666
          %v1773 = vunpack.c.l.b16 %v1667
          %v1774 = vunpack.c.l.b16 %v1668
          %v1775 = vunpack.c.l.b16 %v1669
          %v1776 = vunpack.c.l.b16 %v1670
          %v1777 = vunpack.c.l.b16 %v1671
          %v1778 = vunpack.c.l.b16 %v1672
          %v1779 = vunpack.c.l.b16 %v1673
          %v1780 = vunpack.c.l.b16 %v1674
          %v1781 = vpack.c.b16 %v1766, %v1765
          %v1782 = vpack.c.b16 %v1768, %v1767
          %v1783 = vpack.c.b16 %v1770, %v1769
          %v1784 = vpack.c.b16 %v1772, %v1771
          %v1785 = vpack.c.b16 %v1774, %v1773
          %v1786 = vpack.c.b16 %v1776, %v1775
          %v1787 = vpack.c.b16 %v1778, %v1777
          %v1788 = vpack.c.b16 %v1780, %v1779
          %1797 = vmatpush.bf16.msra.mxu0 %v1788
          %1798 = vmatpush.bf16.msra.mxu0 %v1787
          %1799 = vmatpush.bf16.msra.mxu0 %v1786
          %1800 = vmatpush.bf16.msra.mxu0 %v1785
          %1801 = vmatpush.bf16.msra.mxu0 %v1784
          %1802 = vmatpush.bf16.msra.mxu0 %v1783
          %1803 = vmatpush.bf16.msra.mxu0 %v1782
          %1804 = vmatpush.bf16.msra.mxu0 %v1781
          %1805 = vmatmul.bf16.gmra.mxu0 %v1699
          %v1806 = vpop.f32.mrf.mxu0
          %v1807 = vadd.f32 %v1747, %v1806
          %v1808 = vpop.f32.mrf.mxu0
          %v1809 = vadd.f32 %v1748, %v1808
          %1810 = vdwg.mxu0
          %v1812 = vperm.slane %v1676, 0
          %v1814 = vadd.f32 %v1807, %v1812
          %v1815 = vadd.f32 %v1809, %v1812
          %vm1816 = vcmp.gt.f32.partialorder %v1814, 0.0
          %vm1817 = vcmp.gt.f32.partialorder %v1815, 0.0
          %v1818 = vmin.f32 %v1814, 0.0
          %v1819 = vmin.f32 %v1815, 0.0
          %v1820 = vmul.f32 %v1818, 1.442695
          %v1821 = vpow.pop %v1820
          %v1822 = vmul.f32 %v1819, 1.442695
          %v1823 = vpow.pop %v1822
          %v1824 = vsub.f32 %v1821, 1.0
          %v1825 = vsub.f32 %v1823, 1.0
          %v1826 = vsel %vm1816, %v1814, %v1824
          %v1827 = vsel %vm1817, %v1815, %v1825
          %vm1828 = vcmask 408576
          %v1829 = vsel %vm1828, %v1826, 0.0
          %v1830 = vsel %vm1828, %v1827, 0.0
          %v1831 = vadd.f32 %v1829, %v1830
          %v1832 = vrot.slane %v1831, 4
          %v1833 = vadd.f32 %v1831, %v1832
          %v1834 = vrot.slane %v1833, 2
          %v1835 = vadd.f32 %v1833, %v1834
          %v1836 = vrot.slane %v1835, 1
          %v1837 = vadd.f32 %v1835, %v1836
          %v1838 = vmul.f32 %v1837, 0.0625
          %s1839 = scalar_lea.vmem %s710, %s1678 [#allocation4]
          %vm1840 = vcmask 401408
          %1841 = vst.msk [vmem:[%s1839] sm:$0x1] %vm1840, %v1838
        $region93: #{block_v1_forward.9} parent=83 // loop_footer
          %s1682 = sadd.s32 1, %s1678
        $region94: #{block_v1_forward.9} parent=83 // loop_footer_branch
          %1677 = sbr.rel target = $region90
        $region95: #{block_v1_forward.9} parent=83 // loop_exit
          _
        %s1842 = sand.u32 %s418, 1
        %s1843 = sand.u32 %s418, 1
        %s1844 = smul.addr %s1843, 24
        %s1845 = scalar_lea.vmem [#allocation3], %s1844
        %s1846 = smul.u32 16, %s39
        %p1847 = scmp.lt.s32.totalorder %s38, 1
        %s1848 = scalar_select %p1847, %s38, 1
        %p1849 = scmp.lt.s32.totalorder %s1846, 31
        %s1850 = scalar_select %p1849, %s1846, 31
        %s1851 = smul.addr %s1848, 32
        %s1852 = sadd.s32 %s1850, %s1851
        %s1853 = smul.addr %s1852, 4
        %s1854 = scalar_lea.vmem %s17, %s1853
        %p1855 = scmp.lt.s32.totalorder %s38, 1
        %s1856 = scalar_select %p1855, %s38, 1
        %s1857 = smul.addr %s1856, 2
        %s1858 = scalar_lea.vmem %s18, %s1857
        %s1859 = sand.u32 %s500, 1
        %s1860 = scalar_lea.sflag [#allocation5], %s1859
        %s1861 = sand.u32 %s500, 1
        %s1862 = smul.addr %s1861, 8
        %s1863 = scalar_lea.vmem [#allocation4], %s1862
        // Predicated region
        $region96: #{block_v1_forward.9} parent=83 // pred_check
          %p1864 = pneg %p428
        $region97: #{block_v1_forward.9} parent=83 // pred_check_branch
          %1866 = sbr.rel (%p1864) target = $region99
        $region98: #{block_v1_forward.9} parent=83 // pred_region
          %s1867 = smul.addr %s38, 6
          %s1868 = sadd.s32 %s39, %s1867
          %s1869 = smul.addr %s1868, 8
          %s1870 = scalar_lea.vmem %s16, %s1869
          // Predicated region
          $region100: #{block_v1_forward.9} parent=98 // pred_check
            _
          $region101: #{block_v1_forward.9} parent=98 // pred_check_branch
            %1872 = sbr.rel (0) target = $region103
          $region102: #{block_v1_forward.9} parent=98 // pred_region
            // Predicated region
            $region104: #{block_v1_forward.9} parent=102 // pred_check
              _
            $region105: #{block_v1_forward.9} parent=102 // pred_check_branch
              %1874 = sbr.rel (0) target = $region107
            $region106: #{block_v1_forward.9} parent=102 // pred_region
              // Predicated region
              $region119: #{block_v1_forward.9} parent=106 // pred_check
                _
              $region120: #{block_v1_forward.9} parent=106 // pred_check_branch
                %1894 = sbr.rel (0) target = $region122
              $region121: #{block_v1_forward.9} parent=106 // pred_region
                loop: start=0, step=1, limit=1
                $region123: #{block_v1_forward.9} parent=121 // loop_pre_header
                  _
                $region124: #{block_v1_forward.9} parent=121 // loop_header
                  %s1896 = sphi 0, %s1900
                  %p1897 = scmp.ge.s32.totalorder %s1896, 1
                  %s1901 = sphi %s1845, %s1845
                  %s1902 = sphi %s1870, %s1870
                $region125: #{block_v1_forward.9} parent=121 // loop_header_branch
                  %1899 = sbr.rel (%p1897) target = $region129
                $region126: #{block_v1_forward.9} parent=121 // loop_body
                  %v1903 = vld [vmem:[%s1901] sm:$0xff]
                  %1904 = vst [vmem:[%s1902] sm:$0xff] %v1903
                  %v1905 = vld [vmem:[%s1901 + $0x8] sm:$0xff]
                  %1906 = vst [vmem:[%s1902 + $0x10] sm:$0xff] %v1905
                  %v1907 = vld [vmem:[%s1901 + $0x10] sm:$0xff]
                  %1908 = vst [vmem:[%s1902 + $0x20] sm:$0xff] %v1907
                $region127: #{block_v1_forward.9} parent=121 // loop_footer
                  %s1900 = sadd.s32 1, %s1896
                $region128: #{block_v1_forward.9} parent=121 // loop_footer_branch
                  %1895 = sbr.rel target = $region124
                $region129: #{block_v1_forward.9} parent=121 // loop_exit
                  _
              $region122: #{block_v1_forward.9} parent=106 // pred_fallthru
                _
              // Predicated region
              $region130: #{block_v1_forward.9} parent=106 // pred_check
                _
              $region131: #{block_v1_forward.9} parent=106 // pred_check_branch
                %1910 = sbr.rel target = $region133
              $region132: #{block_v1_forward.9} parent=106 // pred_region
                _
              $region133: #{block_v1_forward.9} parent=106 // pred_fallthru
                _
            $region107: #{block_v1_forward.9} parent=102 // pred_fallthru
              _
            // Predicated region
            $region108: #{block_v1_forward.9} parent=102 // pred_check
              _
            $region109: #{block_v1_forward.9} parent=102 // pred_check_branch
              %1876 = sbr.rel target = $region111
            $region110: #{block_v1_forward.9} parent=102 // pred_region
              %s1878 = ssub.s32 256, 1
              loop: start=0, step=1, limit=1
              $region112: #{block_v1_forward.9} parent=110 // loop_pre_header
                _
              $region113: #{block_v1_forward.9} parent=110 // loop_header
                %s1880 = sphi 0, %s1884
                %p1881 = scmp.ge.s32.totalorder %s1880, 1
                %s1885 = sphi %s1845, %s1845
                %s1886 = sphi %s1870, %s1870
              $region114: #{block_v1_forward.9} parent=110 // loop_header_branch
                %1883 = sbr.rel (%p1881) target = $region118
              $region115: #{block_v1_forward.9} parent=110 // loop_body
                %v1887 = vld [vmem:[%s1885] sm:%s1878]
                %1888 = vst [vmem:[%s1886] sm:%s1878] %v1887
                %v1889 = vld [vmem:[%s1885 + $0x8] sm:%s1878]
                %1890 = vst [vmem:[%s1886 + $0x10] sm:%s1878] %v1889
                %v1891 = vld [vmem:[%s1885 + $0x10] sm:%s1878]
                %1892 = vst [vmem:[%s1886 + $0x20] sm:%s1878] %v1891
              $region116: #{block_v1_forward.9} parent=110 // loop_footer
                %s1884 = sadd.s32 1, %s1880
              $region117: #{block_v1_forward.9} parent=110 // loop_footer_branch
                %1879 = sbr.rel target = $region113
              $region118: #{block_v1_forward.9} parent=110 // loop_exit
                _
            $region111: #{block_v1_forward.9} parent=102 // pred_fallthru
              _
          $region103: #{block_v1_forward.9} parent=98 // pred_fallthru
            _
          %1911 = vnop
        $region99: #{block_v1_forward.9} parent=83 // pred_fallthru
          _
        // Predicated region
        $region134: #{block_v1_forward.9} parent=83 // pred_check
          %p1912 = pneg %p456
        $region135: #{block_v1_forward.9} parent=83 // pred_check_branch
          %1914 = sbr.rel (%p1912) target = $region137
        $region136: #{block_v1_forward.9} parent=83 // pred_region
          %s1915 = smul.u32 16, %s39
        $region137: #{block_v1_forward.9} parent=83 // pred_fallthru
          _
        // Predicated region
        $region138: #{block_v1_forward.9} parent=83 // pred_check
          %p1916 = pneg %p482
        $region139: #{block_v1_forward.9} parent=83 // pred_check_branch
          %1918 = sbr.rel (%p1916) target = $region141
        $region140: #{block_v1_forward.9} parent=83 // pred_region
          _
        $region141: #{block_v1_forward.9} parent=83 // pred_fallthru
          _
        // Predicated region
        $region142: #{block_v1_forward.9} parent=83 // pred_check
          %p1919 = pneg %p510
        $region143: #{block_v1_forward.9} parent=83 // pred_check_branch
          %1921 = sbr.rel (%p1919) target = $region145
        $region144: #{block_v1_forward.9} parent=83 // pred_region
          %1923 = vsyncadd %s1860, 0
          %s1924 = smul.addr %s38, 2
          %s1925 = sadd.s32 %s39, %s1924
          %s1926 = smul.addr %s1925, 8
          %s1927 = scalar_lea.hbm %s19, %s1926
          %s1929 = sshll.u32 %s1863, 4
          %s1930 = int_to_ptr.vmem [resolvable:$true] %s1929
          %s1931 = sshll.u32 %s1927, 4
          %s1932 = int_to_ptr.hbm [resolvable:$true] %s1931
          %1934 = dma.vmem_to_hbm [thread:$0]  %s1930, 128, %s1932, %s1860
        $region145: #{block_v1_forward.9} parent=83 // pred_fallthru
          _
      $region84: #{block_v1_forward.9} parent=5 // pred_fallthru
        _
      %p1935 = scmp.le.s32.totalorder 2, %s29
      // Predicated region
      $region146: #{block_v1_forward.9} parent=5 // pred_check
        %p1936 = pneg %p1935
      $region147: #{block_v1_forward.9} parent=5 // pred_check_branch
        %1938 = sbr.rel (%p1936) target = $region149
      $region148: #{block_v1_forward.9} parent=5 // pred_region
        %s1939 = ssub.s32 %s29, 2
        // Predicated region
        $region150: #{block_v1_forward.9} parent=148 // pred_check
          %p1940 = pneg %p434
        $region151: #{block_v1_forward.9} parent=148 // pred_check_branch
          %1942 = sbr.rel (%p1940) target = $region153
        $region152: #{block_v1_forward.9} parent=148 // pred_region
          %s1943 = sand.u32 %s419, 1
          %s1944 = sand.u32 %s419, 1
          %s1945 = smul.addr %s1944, 24
          %s1946 = scalar_lea.vmem [#allocation3], %s1945
        $region153: #{block_v1_forward.9} parent=148 // pred_fallthru
          _
        // Predicated region
        $region154: #{block_v1_forward.9} parent=148 // pred_check
          %p1947 = pneg %p462
        $region155: #{block_v1_forward.9} parent=148 // pred_check_branch
          %1949 = sbr.rel (%p1947) target = $region157
        $region156: #{block_v1_forward.9} parent=148 // pred_region
          %s1950 = smul.u32 16, %s41
          %p1951 = scmp.lt.s32.totalorder %s40, 1
          %s1952 = scalar_select %p1951, %s40, 1
          %p1953 = scmp.lt.s32.totalorder %s1950, 31
          %s1954 = scalar_select %p1953, %s1950, 31
          %s1955 = smul.addr %s1952, 32
          %s1956 = sadd.s32 %s1954, %s1955
          %s1957 = smul.addr %s1956, 4
          %s1958 = scalar_lea.vmem %s17, %s1957
        $region157: #{block_v1_forward.9} parent=148 // pred_fallthru
          _
        // Predicated region
        $region158: #{block_v1_forward.9} parent=148 // pred_check
          %p1959 = pneg %p488
        $region159: #{block_v1_forward.9} parent=148 // pred_check_branch
          %1961 = sbr.rel (%p1959) target = $region161
        $region160: #{block_v1_forward.9} parent=148 // pred_region
          %p1962 = scmp.lt.s32.totalorder %s40, 1
          %s1963 = scalar_select %p1962, %s40, 1
          %s1964 = smul.addr %s1963, 2
          %s1965 = scalar_lea.vmem %s18, %s1964
        $region161: #{block_v1_forward.9} parent=148 // pred_fallthru
          _
        // Predicated region
        $region162: #{block_v1_forward.9} parent=148 // pred_check
          %p1966 = pneg %p516
        $region163: #{block_v1_forward.9} parent=148 // pred_check_branch
          %1968 = sbr.rel (%p1966) target = $region165
        $region164: #{block_v1_forward.9} parent=148 // pred_region
          %s1969 = sand.u32 %s501, 1
          %s1970 = scalar_lea.sflag [#allocation5], %s1969
          %s1971 = sand.u32 %s501, 1
          %s1972 = smul.addr %s1971, 8
          %s1973 = scalar_lea.vmem [#allocation4], %s1972
          %1975 = dma.done %s1970, 128
        $region165: #{block_v1_forward.9} parent=148 // pred_fallthru
          _
      $region149: #{block_v1_forward.9} parent=5 // pred_fallthru
        _
    $region6: #{block_v1_forward.9} parent=1 // loop_footer
      %s33 = sadd.s32 1, %s29
    $region7: #{block_v1_forward.9} parent=1 // loop_footer_branch
      %28 = sbr.rel target = $region3
    $region8: #{block_v1_forward.9} parent=1 // loop_exit
      _
    %1976 = vsyncpa [#allocation5], 1
    %s1977 = scalar_lea.sflag [#allocation5], 1
    %1978 = vsyncpa %s1977, 1

// kernel: block_v1_forward.11
$region0: #{block_v1_forward.11}
  #allocation0 [shape = 'u32[]', space=smem, size = 0x4, offset = 0x4, fixed_abs, tag = 'smem constant byte address 0x4 - core index']
  #allocation1 [shape = 'u32[72,128]{1,0:T(1,128)}', space=vmem, size = 0x9000, scoped, tag = 'internal scratch']
  #allocation2 [shape = 'bf16[128,128]{1,0:T(8,128)(2,1)}', space=vmem, size = 0x8000, scoped, tag = 'scratch operand']
  %s0 = inlined_call_operand.vmem [shape: bf16[2,256,128], index: 0, kind: input, shape index: {}]
  %s1 = inlined_call_operand.vmem [shape: f32[2,2,128], index: 1, kind: input, shape index: {}]
  %s2 = inlined_call_operand.vmem [shape: f32[1,128], index: 2, kind: input, shape index: {}]
  %s3 = inlined_call_operand.vmem [shape: f32[1,128], index: 3, kind: input, shape index: {}]
  %s4 = inlined_call_operand.vmem [shape: bf16[2,256,1], index: 4, kind: input, shape index: {}]
  %s5 = inlined_call_operand.vmem [shape: bf16[128,128], index: 5, kind: input, shape index: {}]
  %s6 = inlined_call_operand.vmem [shape: f32[1,128], index: 6, kind: input, shape index: {}]
  %s7 = inlined_call_operand.vmem [shape: f32[1,128], index: 7, kind: input, shape index: {}]
  %s8 = inlined_call_operand.vmem [shape: bf16[128,50], index: 8, kind: input, shape index: {}]
  %s9 = inlined_call_operand.vmem [shape: f32[1,50], index: 9, kind: input, shape index: {}]
  %s10 = inlined_call_operand.vmem [shape: f32[1,50], index: 10, kind: input, shape index: {}]
  %s11 = inlined_call_operand.hbm [shape: bf16[2,256,128], index: 11, kind: output, shape index: {0}]
  %s12 = inlined_call_operand.hbm [shape: f32[2,16,50], index: 12, kind: output, shape index: {1}]
  %13 = xla_tuple %s11, %s12
  %s14 = sld [smem:[#allocation0]]
  $region92: #{block_v1_forward.11} parent=0
    _
  %s16 = ssub.s32 1, %s14
  %s17 = scalar_select 0, %s16, %s14
  $region1: #{block_v1_forward.11} parent=0
    #allocation3 [shape = 'u8[65536]{0}', space=vmem, size = 0x10000, scoped, tag = 'output window, operand 0']
    #allocation4 [shape = 's32[2]{0}', space=sflag, size = 0x8, scoped, tag = 'scoped memory for block_v1_forward.11']
    #allocation5 [shape = 'u8[8192]{0}', space=vmem, size = 0x2000, scoped, tag = 'output window, operand 1']
    #allocation6 [shape = 's32[2]{0}', space=sflag, size = 0x8, scoped, tag = 'scoped memory for block_v1_forward.11']
    %18 = vsyncpa [#allocation4], 0
    %s19 = scalar_lea.sflag [#allocation4], 1
    %20 = vsyncpa %s19, 0
    %21 = vsyncpa [#allocation6], 0
    %s22 = scalar_lea.sflag [#allocation6], 1
    %23 = vsyncpa %s22, 0
    loop: start=0, step=1, limit=6
    $region2: #{block_v1_forward.11} parent=1 // loop_pre_header
      _
    $region3: #{block_v1_forward.11} parent=1 // loop_header
      %s25 = sphi 0, %s29
      %p26 = scmp.ge.s32.totalorder %s25, 6
      %s32 = sphi 0, %s44
      %s33 = sphi 0, %s40
      %s34 = sphi 0, %s32
      %s35 = sphi 0, %s33
      %s36 = sphi 0, %s34
      %s37 = sphi 0, %s35
      %s49 = sphi 0, %s51
      %s52 = sphi 0, %s49
      %s53 = sphi 0, %s52
      %s69 = sphi 0, %s53
      %s75 = sphi 0, %s77
      %s78 = sphi 0, %s75
      %s79 = sphi 0, %s78
      %s95 = sphi 0, %s79
      %s99 = sphi 0, %s99
      %s101 = sphi 0, %s99
      %s102 = sphi 0, %s101
      %s116 = sphi 0, %s102
      %s120 = sphi 0, %s120
      %s122 = sphi 0, %s120
      %s123 = sphi 0, %s122
      %s137 = sphi 0, %s123
      %s145 = sphi 0, %s147
      %s148 = sphi 0, %s145
      %s149 = sphi 0, %s148
      %s165 = sphi 0, %s149
      %s169 = sphi 0, %s169
      %s171 = sphi 0, %s169
      %s172 = sphi 0, %s171
      %s186 = sphi 0, %s172
      %s190 = sphi 0, %s190
      %s192 = sphi 0, %s190
      %s193 = sphi 0, %s192
      %s207 = sphi 0, %s193
      %s211 = sphi 0, %s211
      %s213 = sphi 0, %s211
      %s214 = sphi 0, %s213
      %s228 = sphi 0, %s214
      %s232 = sphi 0, %s232
      %s234 = sphi 0, %s232
      %s235 = sphi 0, %s234
      %s249 = sphi 0, %s235
      %s253 = sphi 0, %s253
      %s255 = sphi 0, %s253
      %s256 = sphi 0, %s255
      %s270 = sphi 0, %s256
      %s274 = sphi 0, %s274
      %s276 = sphi 0, %s274
      %s277 = sphi 0, %s276
      %s291 = sphi 0, %s277
      %s299 = sphi 0, %s301
      %s302 = sphi 0, %s299
      %s303 = sphi 0, %s302
      %s319 = sphi 0, %s303
      %s327 = sphi 0, %s329
      %s330 = sphi 0, %s327
      %s331 = sphi 0, %s330
      %s347 = sphi 0, %s331
    $region4: #{block_v1_forward.11} parent=1 // loop_header_branch
      %28 = sbr.rel (%p26) target = $region8
    $region5: #{block_v1_forward.11} parent=1 // loop_body
      %s30 = ssub.s32 %s25, 1
      %s31 = ssub.s32 %s25, 2
      %s38 = sadd.s32 1, %s33
      %p39 = scmp.ge.s32.totalorder %s38, 2
      %s40 = scalar_select %p39, 0, %s38
      %s41 = sadd.s32 1, %s32
      %s42 = scalar_select %p39, %s41, %s32
      %p43 = scmp.ge.s32.totalorder %s42, 2
      %s44 = scalar_select %p43, 0, %s42
      %s45 = ssub.s32 %s32, %s44
      %s46 = ssub.s32 %s33, %s40
      %s47 = sor.u32 %s45, %s46
      %p48 = scmp.eq.s32.totalorder %s47, 0
      %s50 = sadd.s32 %s49, 1
      %s51 = scalar_select %p48, %s49, %s50
      %p54 = pneg %p48
      %p55 = scmp.eq.s32.totalorder %s25, 3
      %p56 = por %p54, %p55
      %p57 = scmp.ne.s32.totalorder %s49, %s52
      %p58 = scmp.eq.s32.totalorder %s25, 0
      %p59 = por %p57, %p58
      %p60 = scmp.ne.s32.totalorder %s49, %s52
      %p61 = scmp.eq.s32.totalorder %s30, 3
      %p62 = por %p60, %p61
      %p63 = scmp.ne.s32.totalorder %s52, %s53
      %p64 = scmp.eq.s32.totalorder %s30, 0
      %p65 = por %p63, %p64
      %p66 = scmp.ne.s32.totalorder %s52, %s53
      %p67 = scmp.eq.s32.totalorder %s31, 3
      %p68 = por %p66, %p67
      %p70 = scmp.ne.s32.totalorder %s53, %s69
      %p71 = scmp.eq.s32.totalorder %s31, 0
      %p72 = por %p70, %p71
      %s73 = ssub.s32 %s32, %s44
      %p74 = scmp.eq.s32.totalorder %s73, 0
      %s76 = sadd.s32 %s75, 1
      %s77 = scalar_select %p74, %s75, %s76
      %p80 = pneg %p74
      %p81 = scmp.eq.s32.totalorder %s25, 3
      %p82 = por %p80, %p81
      %p83 = scmp.ne.s32.totalorder %s75, %s78
      %p84 = scmp.eq.s32.totalorder %s25, 0
      %p85 = por %p83, %p84
      %p86 = scmp.ne.s32.totalorder %s75, %s78
      %p87 = scmp.eq.s32.totalorder %s30, 3
      %p88 = por %p86, %p87
      %p89 = scmp.ne.s32.totalorder %s78, %s79
      %p90 = scmp.eq.s32.totalorder %s30, 0
      %p91 = por %p89, %p90
      %p92 = scmp.ne.s32.totalorder %s78, %s79
      %p93 = scmp.eq.s32.totalorder %s31, 3
      %p94 = por %p92, %p93
      %p96 = scmp.ne.s32.totalorder %s79, %s95
      %p97 = scmp.eq.s32.totalorder %s31, 0
      %p98 = por %p96, %p97
      %s100 = sadd.s32 %s99, 1
      %p103 = scmp.eq.s32.totalorder %s25, 3
      %p104 = scmp.ne.s32.totalorder %s99, %s101
      %p105 = scmp.eq.s32.totalorder %s25, 0
      %p106 = por %p104, %p105
      %p107 = scmp.ne.s32.totalorder %s99, %s101
      %p108 = scmp.eq.s32.totalorder %s30, 3
      %p109 = por %p107, %p108
      %p110 = scmp.ne.s32.totalorder %s101, %s102
      %p111 = scmp.eq.s32.totalorder %s30, 0
      %p112 = por %p110, %p111
      %p113 = scmp.ne.s32.totalorder %s101, %s102
      %p114 = scmp.eq.s32.totalorder %s31, 3
      %p115 = por %p113, %p114
      %p117 = scmp.ne.s32.totalorder %s102, %s116
      %p118 = scmp.eq.s32.totalorder %s31, 0
      %p119 = por %p117, %p118
      %s121 = sadd.s32 %s120, 1
      %p124 = scmp.eq.s32.totalorder %s25, 3
      %p125 = scmp.ne.s32.totalorder %s120, %s122
      %p126 = scmp.eq.s32.totalorder %s25, 0
      %p127 = por %p125, %p126
      %p128 = scmp.ne.s32.totalorder %s120, %s122
      %p129 = scmp.eq.s32.totalorder %s30, 3
      %p130 = por %p128, %p129
      %p131 = scmp.ne.s32.totalorder %s122, %s123
      %p132 = scmp.eq.s32.totalorder %s30, 0
      %p133 = por %p131, %p132
      %p134 = scmp.ne.s32.totalorder %s122, %s123
      %p135 = scmp.eq.s32.totalorder %s31, 3
      %p136 = por %p134, %p135
      %p138 = scmp.ne.s32.totalorder %s123, %s137
      %p139 = scmp.eq.s32.totalorder %s31, 0
      %p140 = por %p138, %p139
      %s141 = ssub.s32 %s32, %s44
      %s142 = ssub.s32 %s33, %s40
      %s143 = sor.u32 %s141, %s142
      %p144 = scmp.eq.s32.totalorder %s143, 0
      %s146 = sadd.s32 %s145, 1
      %s147 = scalar_select %p144, %s145, %s146
      %p150 = pneg %p144
      %p151 = scmp.eq.s32.totalorder %s25, 3
      %p152 = por %p150, %p151
      %p153 = scmp.ne.s32.totalorder %s145, %s148
      %p154 = scmp.eq.s32.totalorder %s25, 0
      %p155 = por %p153, %p154
      %p156 = scmp.ne.s32.totalorder %s145, %s148
      %p157 = scmp.eq.s32.totalorder %s30, 3
      %p158 = por %p156, %p157
      %p159 = scmp.ne.s32.totalorder %s148, %s149
      %p160 = scmp.eq.s32.totalorder %s30, 0
      %p161 = por %p159, %p160
      %p162 = scmp.ne.s32.totalorder %s148, %s149
      %p163 = scmp.eq.s32.totalorder %s31, 3
      %p164 = por %p162, %p163
      %p166 = scmp.ne.s32.totalorder %s149, %s165
      %p167 = scmp.eq.s32.totalorder %s31, 0
      %p168 = por %p166, %p167
      %s170 = sadd.s32 %s169, 1
      %p173 = scmp.eq.s32.totalorder %s25, 3
      %p174 = scmp.ne.s32.totalorder %s169, %s171
      %p175 = scmp.eq.s32.totalorder %s25, 0
      %p176 = por %p174, %p175
      %p177 = scmp.ne.s32.totalorder %s169, %s171
      %p178 = scmp.eq.s32.totalorder %s30, 3
      %p179 = por %p177, %p178
      %p180 = scmp.ne.s32.totalorder %s171, %s172
      %p181 = scmp.eq.s32.totalorder %s30, 0
      %p182 = por %p180, %p181
      %p183 = scmp.ne.s32.totalorder %s171, %s172
      %p184 = scmp.eq.s32.totalorder %s31, 3
      %p185 = por %p183, %p184
      %p187 = scmp.ne.s32.totalorder %s172, %s186
      %p188 = scmp.eq.s32.totalorder %s31, 0
      %p189 = por %p187, %p188
      %s191 = sadd.s32 %s190, 1
      %p194 = scmp.eq.s32.totalorder %s25, 3
      %p195 = scmp.ne.s32.totalorder %s190, %s192
      %p196 = scmp.eq.s32.totalorder %s25, 0
      %p197 = por %p195, %p196
      %p198 = scmp.ne.s32.totalorder %s190, %s192
      %p199 = scmp.eq.s32.totalorder %s30, 3
      %p200 = por %p198, %p199
      %p201 = scmp.ne.s32.totalorder %s192, %s193
      %p202 = scmp.eq.s32.totalorder %s30, 0
      %p203 = por %p201, %p202
      %p204 = scmp.ne.s32.totalorder %s192, %s193
      %p205 = scmp.eq.s32.totalorder %s31, 3
      %p206 = por %p204, %p205
      %p208 = scmp.ne.s32.totalorder %s193, %s207
      %p209 = scmp.eq.s32.totalorder %s31, 0
      %p210 = por %p208, %p209
      %s212 = sadd.s32 %s211, 1
      %p215 = scmp.eq.s32.totalorder %s25, 3
      %p216 = scmp.ne.s32.totalorder %s211, %s213
      %p217 = scmp.eq.s32.totalorder %s25, 0
      %p218 = por %p216, %p217
      %p219 = scmp.ne.s32.totalorder %s211, %s213
      %p220 = scmp.eq.s32.totalorder %s30, 3
      %p221 = por %p219, %p220
      %p222 = scmp.ne.s32.totalorder %s213, %s214
      %p223 = scmp.eq.s32.totalorder %s30, 0
      %p224 = por %p222, %p223
      %p225 = scmp.ne.s32.totalorder %s213, %s214
      %p226 = scmp.eq.s32.totalorder %s31, 3
      %p227 = por %p225, %p226
      %p229 = scmp.ne.s32.totalorder %s214, %s228
      %p230 = scmp.eq.s32.totalorder %s31, 0
      %p231 = por %p229, %p230
      %s233 = sadd.s32 %s232, 1
      %p236 = scmp.eq.s32.totalorder %s25, 3
      %p237 = scmp.ne.s32.totalorder %s232, %s234
      %p238 = scmp.eq.s32.totalorder %s25, 0
      %p239 = por %p237, %p238
      %p240 = scmp.ne.s32.totalorder %s232, %s234
      %p241 = scmp.eq.s32.totalorder %s30, 3
      %p242 = por %p240, %p241
      %p243 = scmp.ne.s32.totalorder %s234, %s235
      %p244 = scmp.eq.s32.totalorder %s30, 0
      %p245 = por %p243, %p244
      %p246 = scmp.ne.s32.totalorder %s234, %s235
      %p247 = scmp.eq.s32.totalorder %s31, 3
      %p248 = por %p246, %p247
      %p250 = scmp.ne.s32.totalorder %s235, %s249
      %p251 = scmp.eq.s32.totalorder %s31, 0
      %p252 = por %p250, %p251
      %s254 = sadd.s32 %s253, 1
      %p257 = scmp.eq.s32.totalorder %s25, 3
      %p258 = scmp.ne.s32.totalorder %s253, %s255
      %p259 = scmp.eq.s32.totalorder %s25, 0
      %p260 = por %p258, %p259
      %p261 = scmp.ne.s32.totalorder %s253, %s255
      %p262 = scmp.eq.s32.totalorder %s30, 3
      %p263 = por %p261, %p262
      %p264 = scmp.ne.s32.totalorder %s255, %s256
      %p265 = scmp.eq.s32.totalorder %s30, 0
      %p266 = por %p264, %p265
      %p267 = scmp.ne.s32.totalorder %s255, %s256
      %p268 = scmp.eq.s32.totalorder %s31, 3
      %p269 = por %p267, %p268
      %p271 = scmp.ne.s32.totalorder %s256, %s270
      %p272 = scmp.eq.s32.totalorder %s31, 0
      %p273 = por %p271, %p272
      %s275 = sadd.s32 %s274, 1
      %p278 = scmp.eq.s32.totalorder %s25, 3
      %p279 = scmp.ne.s32.totalorder %s274, %s276
      %p280 = scmp.eq.s32.totalorder %s25, 0
      %p281 = por %p279, %p280
      %p282 = scmp.ne.s32.totalorder %s274, %s276
      %p283 = scmp.eq.s32.totalorder %s30, 3
      %p284 = por %p282, %p283
      %p285 = scmp.ne.s32.totalorder %s276, %s277
      %p286 = scmp.eq.s32.totalorder %s30, 0
      %p287 = por %p285, %p286
      %p288 = scmp.ne.s32.totalorder %s276, %s277
      %p289 = scmp.eq.s32.totalorder %s31, 3
      %p290 = por %p288, %p289
      %p292 = scmp.ne.s32.totalorder %s277, %s291
      %p293 = scmp.eq.s32.totalorder %s31, 0
      %p294 = por %p292, %p293
      %s295 = ssub.s32 %s32, %s44
      %s296 = ssub.s32 %s33, %s40
      %s297 = sor.u32 %s295, %s296
      %p298 = scmp.eq.s32.totalorder %s297, 0
      %s300 = sadd.s32 %s299, 1
      %s301 = scalar_select %p298, %s299, %s300
      %p304 = pneg %p298
      %p305 = scmp.eq.s32.totalorder %s25, 3
      %p306 = por %p304, %p305
      %p307 = scmp.ne.s32.totalorder %s299, %s302
      %p308 = scmp.eq.s32.totalorder %s25, 0
      %p309 = por %p307, %p308
      %p310 = scmp.ne.s32.totalorder %s299, %s302
      %p311 = scmp.eq.s32.totalorder %s30, 3
      %p312 = por %p310, %p311
      %p313 = scmp.ne.s32.totalorder %s302, %s303
      %p314 = scmp.eq.s32.totalorder %s30, 0
      %p315 = por %p313, %p314
      %p316 = scmp.ne.s32.totalorder %s302, %s303
      %p317 = scmp.eq.s32.totalorder %s31, 3
      %p318 = por %p316, %p317
      %p320 = scmp.ne.s32.totalorder %s303, %s319
      %p321 = scmp.eq.s32.totalorder %s31, 0
      %p322 = por %p320, %p321
      %s323 = ssub.s32 %s32, %s44
      %s324 = ssub.s32 %s33, %s40
      %s325 = sor.u32 %s323, %s324
      %p326 = scmp.eq.s32.totalorder %s325, 0
      %s328 = sadd.s32 %s327, 1
      %s329 = scalar_select %p326, %s327, %s328
      %p332 = pneg %p326
      %p333 = scmp.eq.s32.totalorder %s25, 3
      %p334 = por %p332, %p333
      %p335 = scmp.ne.s32.totalorder %s327, %s330
      %p336 = scmp.eq.s32.totalorder %s25, 0
      %p337 = por %p335, %p336
      %p338 = scmp.ne.s32.totalorder %s327, %s330
      %p339 = scmp.eq.s32.totalorder %s30, 3
      %p340 = por %p338, %p339
      %p341 = scmp.ne.s32.totalorder %s330, %s331
      %p342 = scmp.eq.s32.totalorder %s30, 0
      %p343 = por %p341, %p342
      %p344 = scmp.ne.s32.totalorder %s330, %s331
      %p345 = scmp.eq.s32.totalorder %s31, 3
      %p346 = por %p344, %p345
      %p348 = scmp.ne.s32.totalorder %s331, %s347
      %p349 = scmp.eq.s32.totalorder %s31, 0
      %p350 = por %p348, %p349
      %p351 = scmp.le.s32.totalorder 1, %s25
      %p352 = scmp.lt.s32.totalorder %s25, 5
      %p353 = pnand %p351, %p352
      %p354 = pneg %p353
      // Predicated region
      $region9: #{block_v1_forward.11} parent=5 // pred_check
        _
      $region10: #{block_v1_forward.11} parent=5 // pred_check_branch
        %356 = sbr.rel (%p353) target = $region12
      $region11: #{block_v1_forward.11} parent=5 // pred_region
        %s357 = ssub.s32 %s25, 1
        // Predicated region
        $region13: #{block_v1_forward.11} parent=11 // pred_check
          %p358 = pneg %p112
        $region14: #{block_v1_forward.11} parent=11 // pred_check_branch
          %360 = sbr.rel (%p358) target = $region16
        $region15: #{block_v1_forward.11} parent=11 // pred_region
          _
        $region16: #{block_v1_forward.11} parent=11 // pred_fallthru
          _
        // Predicated region
        $region17: #{block_v1_forward.11} parent=11 // pred_check
          %p361 = pneg %p133
        $region18: #{block_v1_forward.11} parent=11 // pred_check_branch
          %363 = sbr.rel (%p361) target = $region20
        $region19: #{block_v1_forward.11} parent=11 // pred_region
          _
        $region20: #{block_v1_forward.11} parent=11 // pred_fallthru
          _
        // Predicated region
        $region21: #{block_v1_forward.11} parent=11 // pred_check
          %p364 = pneg %p182
        $region22: #{block_v1_forward.11} parent=11 // pred_check_branch
          %366 = sbr.rel (%p364) target = $region24
        $region23: #{block_v1_forward.11} parent=11 // pred_region
          _
        $region24: #{block_v1_forward.11} parent=11 // pred_fallthru
          _
        // Predicated region
        $region25: #{block_v1_forward.11} parent=11 // pred_check
          %p367 = pneg %p203
        $region26: #{block_v1_forward.11} parent=11 // pred_check_branch
          %369 = sbr.rel (%p367) target = $region28
        $region27: #{block_v1_forward.11} parent=11 // pred_region
          _
        $region28: #{block_v1_forward.11} parent=11 // pred_fallthru
          _
        // Predicated region
        $region29: #{block_v1_forward.11} parent=11 // pred_check
          %p370 = pneg %p224
        $region30: #{block_v1_forward.11} parent=11 // pred_check_branch
          %372 = sbr.rel (%p370) target = $region32
        $region31: #{block_v1_forward.11} parent=11 // pred_region
          _
        $region32: #{block_v1_forward.11} parent=11 // pred_fallthru
          _
        // Predicated region
        $region33: #{block_v1_forward.11} parent=11 // pred_check
          %p373 = pneg %p245
        $region34: #{block_v1_forward.11} parent=11 // pred_check_branch
          %375 = sbr.rel (%p373) target = $region36
        $region35: #{block_v1_forward.11} parent=11 // pred_region
          _
        $region36: #{block_v1_forward.11} parent=11 // pred_fallthru
          _
        // Predicated region
        $region37: #{block_v1_forward.11} parent=11 // pred_check
          %p376 = pneg %p266
        $region38: #{block_v1_forward.11} parent=11 // pred_check_branch
          %378 = sbr.rel (%p376) target = $region40
        $region39: #{block_v1_forward.11} parent=11 // pred_region
          _
        $region40: #{block_v1_forward.11} parent=11 // pred_fallthru
          _
        // Predicated region
        $region41: #{block_v1_forward.11} parent=11 // pred_check
          %p379 = pneg %p287
        $region42: #{block_v1_forward.11} parent=11 // pred_check_branch
          %381 = sbr.rel (%p379) target = $region44
        $region43: #{block_v1_forward.11} parent=11 // pred_region
          _
        $region44: #{block_v1_forward.11} parent=11 // pred_fallthru
          _
      $region12: #{block_v1_forward.11} parent=5 // pred_fallthru
        _
      %p382 = scmp.lt.s32.totalorder %s25, 4
      // Predicated region
      $region45: #{block_v1_forward.11} parent=5 // pred_check
        %p383 = pneg %p382
      $region46: #{block_v1_forward.11} parent=5 // pred_check_branch
        %385 = sbr.rel (%p383) target = $region48
      $region47: #{block_v1_forward.11} parent=5 // pred_region
        // Predicated region
        $region49: #{block_v1_forward.11} parent=47 // pred_check
          %p386 = pneg %p59
        $region50: #{block_v1_forward.11} parent=47 // pred_check_branch
          %388 = sbr.rel (%p386) target = $region52
        $region51: #{block_v1_forward.11} parent=47 // pred_region
          %s389 = smul.u32 16, %s33
          %p390 = scmp.lt.s32.totalorder %s32, 1
          %s391 = scalar_select %p390, %s32, 1
          %p392 = scmp.lt.s32.totalorder %s389, 31
          %s393 = scalar_select %p392, %s389, 31
          %s394 = smul.addr %s391, 32
          %s395 = sadd.s32 %s393, %s394
          %s396 = smul.addr %s395, 4
          %s397 = scalar_lea.vmem %s0, %s396
          %s398 = smul.u32 16, %s33
        $region52: #{block_v1_forward.11} parent=47 // pred_fallthru
          _
        // Predicated region
        $region53: #{block_v1_forward.11} parent=47 // pred_check
          %p399 = pneg %p85
        $region54: #{block_v1_forward.11} parent=47 // pred_check_branch
          %401 = sbr.rel (%p399) target = $region56
        $region55: #{block_v1_forward.11} parent=47 // pred_region
          %p402 = scmp.lt.s32.totalorder %s32, 1
          %s403 = scalar_select %p402, %s32, 1
          %s404 = smul.addr %s403, 2
          %s405 = scalar_lea.vmem %s1, %s404
        $region56: #{block_v1_forward.11} parent=47 // pred_fallthru
          _
        // Predicated region
        $region57: #{block_v1_forward.11} parent=47 // pred_check
          %p406 = pneg %p155
        $region58: #{block_v1_forward.11} parent=47 // pred_check_branch
          %408 = sbr.rel (%p406) target = $region60
        $region59: #{block_v1_forward.11} parent=47 // pred_region
          %s409 = smul.u32 16, %s33
          %p410 = scmp.lt.s32.totalorder %s32, 1
          %s411 = scalar_select %p410, %s32, 1
          %p412 = scmp.lt.s32.totalorder %s409, 31
          %s413 = scalar_select %p412, %s409, 31
          %s414 = smul.addr %s411, 32
          %s415 = sadd.s32 %s413, %s414
          %s416 = smul.addr %s415, 4
          %s417 = scalar_lea.vmem %s4, %s416
          %s418 = smul.u32 16, %s33
        $region60: #{block_v1_forward.11} parent=47 // pred_fallthru
          _
      $region48: #{block_v1_forward.11} parent=5 // pred_fallthru
        _
      %p419 = scmp.le.s32.totalorder 1, %s25
      %p420 = scmp.lt.s32.totalorder %s25, 5
      %p421 = pnand %p419, %p420
      %p422 = pneg %p421
      // Predicated region
      $region61: #{block_v1_forward.11} parent=5 // pred_check
        _
      $region62: #{block_v1_forward.11} parent=5 // pred_check_branch
        %424 = sbr.rel (%p421) target = $region64
      $region63: #{block_v1_forward.11} parent=5 // pred_region
        %s425 = ssub.s32 %s25, 1
        %s426 = smul.u32 16, %s35
        %p427 = scmp.lt.s32.totalorder %s34, 1
        %s428 = scalar_select %p427, %s34, 1
        %p429 = scmp.lt.s32.totalorder %s426, 31
        %s430 = scalar_select %p429, %s426, 31
        %s431 = smul.addr %s428, 32
        %s432 = sadd.s32 %s430, %s431
        %s433 = smul.addr %s432, 4
        %s434 = scalar_lea.vmem %s0, %s433
        %p435 = pneg %p65
        %p436 = pneg %p62
        %p437 = scmp.lt.s32.totalorder %s34, 1
        %s438 = scalar_select %p437, %s34, 1
        %s439 = smul.addr %s438, 2
        %s440 = scalar_lea.vmem %s1, %s439
        %p441 = pneg %p91
        %p442 = pneg %p88
        %p443 = pneg %p112
        %p444 = pneg %p109
        %p445 = pneg %p133
        %p446 = pneg %p130
        %s447 = smul.u32 16, %s35
        %p448 = scmp.lt.s32.totalorder %s34, 1
        %s449 = scalar_select %p448, %s34, 1
        %p450 = scmp.lt.s32.totalorder %s447, 31
        %s451 = scalar_select %p450, %s447, 31
        %s452 = smul.addr %s449, 32
        %s453 = sadd.s32 %s451, %s452
        %s454 = smul.addr %s453, 4
        %s455 = scalar_lea.vmem %s4, %s454
        %p456 = pneg %p161
        %p457 = pneg %p158
        %p458 = pneg %p182
        %p459 = pneg %p179
        %p460 = pneg %p203
        %p461 = pneg %p200
        %p462 = pneg %p224
        %p463 = pneg %p221
        %p464 = pneg %p245
        %p465 = pneg %p242
        %p466 = pneg %p266
        %p467 = pneg %p263
        %p468 = pneg %p287
        %p469 = pneg %p284
        %p470 = pneg %p315
        %p471 = pneg %p312
        %s472 = sand.u32 %s302, 1
        %s473 = scalar_lea.sflag [#allocation4], %s472
        %s474 = sand.u32 %s302, 1
        %s475 = smul.addr %s474, 64
        %s476 = scalar_lea.vmem [#allocation3], %s475
        %p477 = pneg %p343
        %p478 = pneg %p340
        %s479 = sand.u32 %s330, 1
        %s480 = scalar_lea.sflag [#allocation6], %s479
        %s481 = sand.u32 %s330, 1
        %s482 = smul.addr %s481, 8
        %s483 = scalar_lea.vmem [#allocation5], %s482
        %s484 = smul.u32 16, %s35
        %p485 = scmp.lt.s32.totalorder %s34, 1
        %s486 = scalar_select %p485, %s34, 1
        %p487 = scmp.lt.s32.totalorder %s484, 31
        %s488 = scalar_select %p487, %s484, 31
        %s489 = smul.addr %s486, 32
        %s490 = sadd.s32 %s488, %s489
        %s491 = smul.addr %s490, 4
        %s492 = scalar_lea.vmem %s0, %s491
        %s493 = smul.u32 16, %s35
        %p494 = scmp.lt.s32.totalorder %s34, 1
        %s495 = scalar_select %p494, %s34, 1
        %s496 = smul.addr %s495, 2
        %s497 = scalar_lea.vmem %s1, %s496
        %s498 = smul.u32 16, %s35
        %p499 = scmp.lt.s32.totalorder %s34, 1
        %s500 = scalar_select %p499, %s34, 1
        %p501 = scmp.lt.s32.totalorder %s498, 31
        %s502 = scalar_select %p501, %s498, 31
        %s503 = smul.addr %s500, 32
        %s504 = sadd.s32 %s502, %s503
        %s505 = smul.addr %s504, 4
        %s506 = scalar_lea.vmem %s4, %s505
        %s507 = smul.u32 16, %s35
        %s508 = smul.u32 16, %s35
        %v509 = vld [vmem:[%s492] sm:$0xf]
        %v510 = vld [vmem:[%s492 + $0x4] sm:$0xf]
        %v511 = vld [vmem:[%s492 + $0x8] sm:$0xf]
        %v512 = vld [vmem:[%s492 + $0xc] sm:$0xf]
        %v513 = vld [vmem:[%s492 + $0x10] sm:$0xf]
        %v514 = vld [vmem:[%s492 + $0x14] sm:$0xf]
        %v515 = vld [vmem:[%s492 + $0x18] sm:$0xf]
        %v516 = vld [vmem:[%s492 + $0x1c] sm:$0xf]
        %v517 = vld [vmem:[%s492 + $0x20] sm:$0xf]
        %v518 = vld [vmem:[%s492 + $0x24] sm:$0xf]
        %v519 = vld [vmem:[%s492 + $0x28] sm:$0xf]
        %v520 = vld [vmem:[%s492 + $0x2c] sm:$0xf]
        %v521 = vld [vmem:[%s492 + $0x30] sm:$0xf]
        %v522 = vld [vmem:[%s492 + $0x34] sm:$0xf]
        %v523 = vld [vmem:[%s492 + $0x38] sm:$0xf]
        %v524 = vld [vmem:[%s492 + $0x3c] sm:$0xf]
        %v525 = vunpack.c.l.bf16 %v509
        %v526 = vunpack.c.l.bf16 %v510
        %v527 = vunpack.c.l.bf16 %v511
        %v528 = vunpack.c.l.bf16 %v512
        %v529 = vunpack.c.l.bf16 %v513
        %v530 = vunpack.c.l.bf16 %v514
        %v531 = vunpack.c.l.bf16 %v515
        %v532 = vunpack.c.l.bf16 %v516
        %v533 = vunpack.c.l.bf16 %v517
        %v534 = vunpack.c.l.bf16 %v518
        %v535 = vunpack.c.l.bf16 %v519
        %v536 = vunpack.c.l.bf16 %v520
        %v537 = vunpack.c.l.bf16 %v521
        %v538 = vunpack.c.l.bf16 %v522
        %v539 = vunpack.c.l.bf16 %v523
        %v540 = vunpack.c.l.bf16 %v524
        %v541 = vld [vmem:[%s497] sm:$0x1]
        %v542 = vmul.f32 %v541, 0.00390625
        %v543 = vld [vmem:[%s497 + $0x1] sm:$0x1]
        %v544 = vmul.f32 %v543, 0.00390625
        %v545 = vmul.f32 %v542, %v542
        %v546 = vsub.f32 %v544, %v545
        %v547 = vmax.f32 %v546, 0.0
        %v548 = vadd.f32 %v547, 1e-05
        %v549 = vrsqrt.pop %v548
        %v550 = vmul.f32 %v549, %v548
        %v551 = vmul.f32 %v550, %v549
        %v552 = vmul.f32 0.5, %v551
        %v553 = vsub.f32 1.5, %v552
        %v554 = vmul.f32 %v549, %v553
        %vm555 = vweird.f32 %v548
        %vm556 = vweird.f32 %v549
        %vm557 = vmor %vm555, %vm556
        %v558 = vsel %vm557, %v549, %v554
        %v559 = vld [vmem:[%s2] sm:$0x1]
        %v560 = vmul.f32 %v558, %v559
        %v561 = vld [vmem:[%s3] sm:$0x1]
        %v562 = vmul.f32 %v542, %v560
        %v563 = vsub.f32 %v561, %v562
        %v564 = vperm.slane %v560, 0
        %v565 = vmul.f32 %v525, %v564
        %v566 = vmul.f32 %v526, %v564
        %v567 = vmul.f32 %v527, %v564
        %v568 = vmul.f32 %v528, %v564
        %v569 = vmul.f32 %v529, %v564
        %v570 = vmul.f32 %v530, %v564
        %v571 = vmul.f32 %v531, %v564
        %v572 = vmul.f32 %v532, %v564
        %v573 = vmul.f32 %v533, %v564
        %v574 = vmul.f32 %v534, %v564
        %v575 = vmul.f32 %v535, %v564
        %v576 = vmul.f32 %v536, %v564
        %v577 = vmul.f32 %v537, %v564
        %v578 = vmul.f32 %v538, %v564
        %v579 = vmul.f32 %v539, %v564
        %v580 = vmul.f32 %v540, %v564
        %v582 = vperm.slane %v563, 0
        %v584 = vadd.f32 %v565, %v582
        %v585 = vadd.f32 %v566, %v582
        %v586 = vadd.f32 %v567, %v582
        %v587 = vadd.f32 %v568, %v582
        %v588 = vadd.f32 %v569, %v582
        %v589 = vadd.f32 %v570, %v582
        %v590 = vadd.f32 %v571, %v582
        %v591 = vadd.f32 %v572, %v582
        %v592 = vadd.f32 %v573, %v582
        %v593 = vadd.f32 %v574, %v582
        %v594 = vadd.f32 %v575, %v582
        %v595 = vadd.f32 %v576, %v582
        %v596 = vadd.f32 %v577, %v582
        %v597 = vadd.f32 %v578, %v582
        %v598 = vadd.f32 %v579, %v582
        %v599 = vadd.f32 %v580, %v582
        %v600 = vpack.c.bf16 %v584, %v584
        %v601 = vpack.c.bf16 %v585, %v585
        %v602 = vpack.c.bf16 %v586, %v586
        %v603 = vpack.c.bf16 %v587, %v587
        %v604 = vpack.c.bf16 %v588, %v588
        %v605 = vpack.c.bf16 %v589, %v589
        %v606 = vpack.c.bf16 %v590, %v590
        %v607 = vpack.c.bf16 %v591, %v591
        %v608 = vpack.c.bf16 %v592, %v592
        %v609 = vpack.c.bf16 %v593, %v593
        %v610 = vpack.c.bf16 %v594, %v594
        %v611 = vpack.c.bf16 %v595, %v595
        %v612 = vpack.c.bf16 %v596, %v596
        %v613 = vpack.c.bf16 %v597, %v597
        %v614 = vpack.c.bf16 %v598, %v598
        %v615 = vpack.c.bf16 %v599, %v599
        %616 = vst [vmem:[#allocation2] sm:$0xf] %v600
        %617 = vst [vmem:[#allocation2 + $0x4] sm:$0xf] %v601
        %618 = vst [vmem:[#allocation2 + $0x8] sm:$0xf] %v602
        %619 = vst [vmem:[#allocation2 + $0xc] sm:$0xf] %v603
        %620 = vst [vmem:[#allocation2 + $0x10] sm:$0xf] %v604
        %621 = vst [vmem:[#allocation2 + $0x14] sm:$0xf] %v605
        %622 = vst [vmem:[#allocation2 + $0x18] sm:$0xf] %v606
        %623 = vst [vmem:[#allocation2 + $0x1c] sm:$0xf] %v607
        %624 = vst [vmem:[#allocation2 + $0x20] sm:$0xf] %v608
        %625 = vst [vmem:[#allocation2 + $0x24] sm:$0xf] %v609
        %626 = vst [vmem:[#allocation2 + $0x28] sm:$0xf] %v610
        %627 = vst [vmem:[#allocation2 + $0x2c] sm:$0xf] %v611
        %628 = vst [vmem:[#allocation2 + $0x30] sm:$0xf] %v612
        %629 = vst [vmem:[#allocation2 + $0x34] sm:$0xf] %v613
        %630 = vst [vmem:[#allocation2 + $0x38] sm:$0xf] %v614
        %631 = vst [vmem:[#allocation2 + $0x3c] sm:$0xf] %v615
        %v632 = vld [vmem:[#allocation2] sm:$0xf]
        %v633 = vld [vmem:[#allocation2 + $0x4] sm:$0xf]
        %v634 = vld [vmem:[#allocation2 + $0x8] sm:$0xf]
        %v635 = vld [vmem:[#allocation2 + $0xc] sm:$0xf]
        %v636 = vld [vmem:[#allocation2 + $0x10] sm:$0xf]
        %v637 = vld [vmem:[#allocation2 + $0x14] sm:$0xf]
        %v638 = vld [vmem:[#allocation2 + $0x18] sm:$0xf]
        %v639 = vld [vmem:[#allocation2 + $0x1c] sm:$0xf]
        %v640 = vld [vmem:[#allocation2 + $0x20] sm:$0xf]
        %v641 = vld [vmem:[#allocation2 + $0x24] sm:$0xf]
        %v642 = vld [vmem:[#allocation2 + $0x28] sm:$0xf]
        %v643 = vld [vmem:[#allocation2 + $0x2c] sm:$0xf]
        %v644 = vld [vmem:[#allocation2 + $0x30] sm:$0xf]
        %v645 = vld [vmem:[#allocation2 + $0x34] sm:$0xf]
        %v646 = vld [vmem:[#allocation2 + $0x38] sm:$0xf]
        %v647 = vld [vmem:[#allocation2 + $0x3c] sm:$0xf]
        %v648 = vld [vmem:[%s506] sm:$0xf]
        %v649 = vld [vmem:[%s506 + $0x4] sm:$0xf]
        %v650 = vld [vmem:[%s506 + $0x8] sm:$0xf]
        %v651 = vld [vmem:[%s506 + $0xc] sm:$0xf]
        %v652 = vld [vmem:[%s506 + $0x10] sm:$0xf]
        %v653 = vld [vmem:[%s506 + $0x14] sm:$0xf]
        %v654 = vld [vmem:[%s506 + $0x18] sm:$0xf]
        %v655 = vld [vmem:[%s506 + $0x1c] sm:$0xf]
        %v656 = vld [vmem:[%s506 + $0x20] sm:$0xf]
        %v657 = vld [vmem:[%s506 + $0x24] sm:$0xf]
        %v658 = vld [vmem:[%s506 + $0x28] sm:$0xf]
        %v659 = vld [vmem:[%s506 + $0x2c] sm:$0xf]
        %v660 = vld [vmem:[%s506 + $0x30] sm:$0xf]
        %v661 = vld [vmem:[%s506 + $0x34] sm:$0xf]
        %v662 = vld [vmem:[%s506 + $0x38] sm:$0xf]
        %v663 = vld [vmem:[%s506 + $0x3c] sm:$0xf]
        %v664 = vunpack.c.l.bf16 %v648
        %v665 = vunpack.c.l.bf16 %v649
        %v666 = vunpack.c.l.bf16 %v650
        %v667 = vunpack.c.l.bf16 %v651
        %v668 = vunpack.c.l.bf16 %v652
        %v669 = vunpack.c.l.bf16 %v653
        %v670 = vunpack.c.l.bf16 %v654
        %v671 = vunpack.c.l.bf16 %v655
        %v672 = vunpack.c.l.bf16 %v656
        %v673 = vunpack.c.l.bf16 %v657
        %v674 = vunpack.c.l.bf16 %v658
        %v675 = vunpack.c.l.bf16 %v659
        %v676 = vunpack.c.l.bf16 %v660
        %v677 = vunpack.c.l.bf16 %v661
        %v678 = vunpack.c.l.bf16 %v662
        %v679 = vunpack.c.l.bf16 %v663
        %v680 = vld [vmem:[%s5] sm:$0xf]
        %v681 = vld [vmem:[%s5 + $0x4] sm:$0xf]
        %v682 = vld [vmem:[%s5 + $0x8] sm:$0xf]
        %v683 = vld [vmem:[%s5 + $0xc] sm:$0xf]
        %v684 = vld [vmem:[%s5 + $0x10] sm:$0xf]
        %v685 = vld [vmem:[%s5 + $0x14] sm:$0xf]
        %v686 = vld [vmem:[%s5 + $0x18] sm:$0xf]
        %v687 = vld [vmem:[%s5 + $0x1c] sm:$0xf]
        %v688 = vld [vmem:[%s5 + $0x20] sm:$0xf]
        %v689 = vld [vmem:[%s5 + $0x24] sm:$0xf]
        %v690 = vld [vmem:[%s5 + $0x28] sm:$0xf]
        %v691 = vld [vmem:[%s5 + $0x2c] sm:$0xf]
        %v692 = vld [vmem:[%s5 + $0x30] sm:$0xf]
        %v693 = vld [vmem:[%s5 + $0x34] sm:$0xf]
        %v694 = vld [vmem:[%s5 + $0x38] sm:$0xf]
        %v695 = vld [vmem:[%s5 + $0x3c] sm:$0xf]
        %v696 = vld [vmem:[%s6] sm:$0x1]
        %698 = vset.pattern.permute.xlu0 0
        %699 = vperm.xlu0 %698, %v664
        %v700 = vpop.permute.xlu0 %699
        %703 = vset.pattern.permute.xlu0 0
        %704 = vperm.xlu0 %703, %v665
        %v705 = vpop.permute.xlu0 %704
        %708 = vset.pattern.permute.xlu0 0
        %709 = vperm.xlu0 %708, %v666
        %v710 = vpop.permute.xlu0 %709
        %713 = vset.pattern.permute.xlu0 0
        %714 = vperm.xlu0 %713, %v667
        %v715 = vpop.permute.xlu0 %714
        %718 = vset.pattern.permute.xlu0 0
        %719 = vperm.xlu0 %718, %v668
        %v720 = vpop.permute.xlu0 %719
        %723 = vset.pattern.permute.xlu0 0
        %724 = vperm.xlu0 %723, %v669
        %v725 = vpop.permute.xlu0 %724
        %728 = vset.pattern.permute.xlu0 0
        %729 = vperm.xlu0 %728, %v670
        %v730 = vpop.permute.xlu0 %729
        %733 = vset.pattern.permute.xlu0 0
        %734 = vperm.xlu0 %733, %v671
        %v735 = vpop.permute.xlu0 %734
        %738 = vset.pattern.permute.xlu0 0
        %739 = vperm.xlu0 %738, %v672
        %v740 = vpop.permute.xlu0 %739
        %743 = vset.pattern.permute.xlu0 0
        %744 = vperm.xlu0 %743, %v673
        %v745 = vpop.permute.xlu0 %744
        %748 = vset.pattern.permute.xlu0 0
        %749 = vperm.xlu0 %748, %v674
        %v750 = vpop.permute.xlu0 %749
        %753 = vset.pattern.permute.xlu0 0
        %754 = vperm.xlu0 %753, %v675
        %v755 = vpop.permute.xlu0 %754
        %758 = vset.pattern.permute.xlu0 0
        %759 = vperm.xlu0 %758, %v676
        %v760 = vpop.permute.xlu0 %759
        %763 = vset.pattern.permute.xlu0 0
        %764 = vperm.xlu0 %763, %v677
        %v765 = vpop.permute.xlu0 %764
        %768 = vset.pattern.permute.xlu0 0
        %769 = vperm.xlu0 %768, %v678
        %v770 = vpop.permute.xlu0 %769
        %773 = vset.pattern.permute.xlu0 0
        %774 = vperm.xlu0 %773, %v679
        %v775 = vpop.permute.xlu0 %774
        %v778 = vperm.slane %v696, 0
        %v780 = vmul.f32 %v700, %v778
        %v781 = vmul.f32 %v705, %v778
        %v782 = vmul.f32 %v710, %v778
        %v783 = vmul.f32 %v715, %v778
        %v784 = vmul.f32 %v720, %v778
        %v785 = vmul.f32 %v725, %v778
        %v786 = vmul.f32 %v730, %v778
        %v787 = vmul.f32 %v735, %v778
        %v788 = vmul.f32 %v740, %v778
        %v789 = vmul.f32 %v745, %v778
        %v790 = vmul.f32 %v750, %v778
        %v791 = vmul.f32 %v755, %v778
        %v792 = vmul.f32 %v760, %v778
        %v793 = vmul.f32 %v765, %v778
        %v794 = vmul.f32 %v770, %v778
        %v795 = vmul.f32 %v775, %v778
        %v812 = vunpack.c.l.b16 %v632
        %v813 = vunpack.c.l.b16 %v633
        %v814 = vunpack.c.l.b16 %v634
        %v815 = vunpack.c.l.b16 %v635
        %v816 = vunpack.c.l.b16 %v636
        %v817 = vunpack.c.l.b16 %v637
        %v818 = vunpack.c.l.b16 %v638
        %v819 = vunpack.c.l.b16 %v639
        %v820 = vunpack.c.l.b16 %v640
        %v821 = vunpack.c.l.b16 %v641
        %v822 = vunpack.c.l.b16 %v642
        %v823 = vunpack.c.l.b16 %v643
        %v824 = vunpack.c.l.b16 %v644
        %v825 = vunpack.c.l.b16 %v645
        %v826 = vunpack.c.l.b16 %v646
        %v827 = vunpack.c.l.b16 %v647
        %v828 = vpack.c.b16 %v813, %v812
        %v829 = vpack.c.b16 %v815, %v814
        %v830 = vpack.c.b16 %v817, %v816
        %v831 = vpack.c.b16 %v819, %v818
        %v832 = vpack.c.b16 %v821, %v820
        %v833 = vpack.c.b16 %v823, %v822
        %v834 = vpack.c.b16 %v825, %v824
        %v835 = vpack.c.b16 %v827, %v826
        %v860 = vunpack.c.l.b16 %v680
        %v861 = vunpack.c.l.b16 %v681
        %v862 = vunpack.c.l.b16 %v682
        %v863 = vunpack.c.l.b16 %v683
        %v864 = vunpack.c.l.b16 %v684
        %v865 = vunpack.c.l.b16 %v685
        %v866 = vunpack.c.l.b16 %v686
        %v867 = vunpack.c.l.b16 %v687
        %v868 = vunpack.c.l.b16 %v688
        %v869 = vunpack.c.l.b16 %v689
        %v870 = vunpack.c.l.b16 %v690
        %v871 = vunpack.c.l.b16 %v691
        %v872 = vunpack.c.l.b16 %v692
        %v873 = vunpack.c.l.b16 %v693
        %v874 = vunpack.c.l.b16 %v694
        %v875 = vunpack.c.l.b16 %v695
        %v876 = vpack.c.b16 %v861, %v860
        %v877 = vpack.c.b16 %v863, %v862
        %v878 = vpack.c.b16 %v865, %v864
        %v879 = vpack.c.b16 %v867, %v866
        %v880 = vpack.c.b16 %v869, %v868
        %v881 = vpack.c.b16 %v871, %v870
        %v882 = vpack.c.b16 %v873, %v872
        %v883 = vpack.c.b16 %v875, %v874
        %892 = vmatpush.bf16.msra.mxu0 %v883
        %893 = vmatpush.bf16.msra.mxu0 %v882
        %894 = vmatpush.bf16.msra.mxu0 %v881
        %895 = vmatpush.bf16.msra.mxu0 %v880
        %896 = vmatpush.bf16.msra.mxu0 %v879
        %897 = vmatpush.bf16.msra.mxu0 %v878
        %898 = vmatpush.bf16.msra.mxu0 %v877
        %899 = vmatpush.bf16.msra.mxu0 %v876
        %900 = vmatmul.bf16.gmra.mxu0 %v828
        %v901 = vpop.f32.mrf.mxu0
        %v902 = vadd.f32 %v780, %v901
        %v903 = vpop.f32.mrf.mxu0
        %v904 = vadd.f32 %v781, %v903
        %905 = vmatmul.bf16.gmra.mxu0 %v829
        %v906 = vpop.f32.mrf.mxu0
        %v907 = vadd.f32 %v782, %v906
        %v908 = vpop.f32.mrf.mxu0
        %v909 = vadd.f32 %v783, %v908
        %910 = vmatmul.bf16.gmra.mxu0 %v830
        %v911 = vpop.f32.mrf.mxu0
        %v912 = vadd.f32 %v784, %v911
        %v913 = vpop.f32.mrf.mxu0
        %v914 = vadd.f32 %v785, %v913
        %915 = vmatmul.bf16.gmra.mxu0 %v831
        %v916 = vpop.f32.mrf.mxu0
        %v917 = vadd.f32 %v786, %v916
        %v918 = vpop.f32.mrf.mxu0
        %v919 = vadd.f32 %v787, %v918
        %920 = vmatmul.bf16.gmra.mxu0 %v832
        %v921 = vpop.f32.mrf.mxu0
        %v922 = vadd.f32 %v788, %v921
        %v923 = vpop.f32.mrf.mxu0
        %v924 = vadd.f32 %v789, %v923
        %925 = vmatmul.bf16.gmra.mxu0 %v833
        %v926 = vpop.f32.mrf.mxu0
        %v927 = vadd.f32 %v790, %v926
        %v928 = vpop.f32.mrf.mxu0
        %v929 = vadd.f32 %v791, %v928
        %930 = vmatmul.bf16.gmra.mxu0 %v834
        %v931 = vpop.f32.mrf.mxu0
        %v932 = vadd.f32 %v792, %v931
        %v933 = vpop.f32.mrf.mxu0
        %v934 = vadd.f32 %v793, %v933
        %935 = vmatmul.bf16.gmra.mxu0 %v835
        %v936 = vpop.f32.mrf.mxu0
        %v937 = vadd.f32 %v794, %v936
        %v938 = vpop.f32.mrf.mxu0
        %v939 = vadd.f32 %v795, %v938
        %940 = vdwg.mxu0
        %v941 = vld [vmem:[%s7] sm:$0x1]
        %v943 = vperm.slane %v941, 0
        %v945 = vadd.f32 %v902, %v943
        %v946 = vadd.f32 %v904, %v943
        %v947 = vadd.f32 %v907, %v943
        %v948 = vadd.f32 %v909, %v943
        %v949 = vadd.f32 %v912, %v943
        %v950 = vadd.f32 %v914, %v943
        %v951 = vadd.f32 %v917, %v943
        %v952 = vadd.f32 %v919, %v943
        %v953 = vadd.f32 %v922, %v943
        %v954 = vadd.f32 %v924, %v943
        %v955 = vadd.f32 %v927, %v943
        %v956 = vadd.f32 %v929, %v943
        %v957 = vadd.f32 %v932, %v943
        %v958 = vadd.f32 %v934, %v943
        %v959 = vadd.f32 %v937, %v943
        %v960 = vadd.f32 %v939, %v943
        %vm961 = vcmp.gt.f32.partialorder %v945, 0.0
        %vm962 = vcmp.gt.f32.partialorder %v946, 0.0
        %vm963 = vcmp.gt.f32.partialorder %v947, 0.0
        %vm964 = vcmp.gt.f32.partialorder %v948, 0.0
        %vm965 = vcmp.gt.f32.partialorder %v949, 0.0
        %vm966 = vcmp.gt.f32.partialorder %v950, 0.0
        %vm967 = vcmp.gt.f32.partialorder %v951, 0.0
        %vm968 = vcmp.gt.f32.partialorder %v952, 0.0
        %vm969 = vcmp.gt.f32.partialorder %v953, 0.0
        %vm970 = vcmp.gt.f32.partialorder %v954, 0.0
        %vm971 = vcmp.gt.f32.partialorder %v955, 0.0
        %vm972 = vcmp.gt.f32.partialorder %v956, 0.0
        %vm973 = vcmp.gt.f32.partialorder %v957, 0.0
        %vm974 = vcmp.gt.f32.partialorder %v958, 0.0
        %vm975 = vcmp.gt.f32.partialorder %v959, 0.0
        %vm976 = vcmp.gt.f32.partialorder %v960, 0.0
        %v977 = vmin.f32 %v945, 0.0
        %v978 = vmin.f32 %v946, 0.0
        %v979 = vmin.f32 %v947, 0.0
        %v980 = vmin.f32 %v948, 0.0
        %v981 = vmin.f32 %v949, 0.0
        %v982 = vmin.f32 %v950, 0.0
        %v983 = vmin.f32 %v951, 0.0
        %v984 = vmin.f32 %v952, 0.0
        %v985 = vmin.f32 %v953, 0.0
        %v986 = vmin.f32 %v954, 0.0
        %v987 = vmin.f32 %v955, 0.0
        %v988 = vmin.f32 %v956, 0.0
        %v989 = vmin.f32 %v957, 0.0
        %v990 = vmin.f32 %v958, 0.0
        %v991 = vmin.f32 %v959, 0.0
        %v992 = vmin.f32 %v960, 0.0
        %v993 = vmul.f32 %v977, 1.442695
        %v994 = vpow.pop %v993
        %v995 = vmul.f32 %v978, 1.442695
        %v996 = vpow.pop %v995
        %v997 = vmul.f32 %v979, 1.442695
        %v998 = vpow.pop %v997
        %v999 = vmul.f32 %v980, 1.442695
        %v1000 = vpow.pop %v999
        %v1001 = vmul.f32 %v981, 1.442695
        %v1002 = vpow.pop %v1001
        %v1003 = vmul.f32 %v982, 1.442695
        %v1004 = vpow.pop %v1003
        %v1005 = vmul.f32 %v983, 1.442695
        %v1006 = vpow.pop %v1005
        %v1007 = vmul.f32 %v984, 1.442695
        %v1008 = vpow.pop %v1007
        %v1009 = vmul.f32 %v985, 1.442695
        %v1010 = vpow.pop %v1009
        %v1011 = vmul.f32 %v986, 1.442695
        %v1012 = vpow.pop %v1011
        %v1013 = vmul.f32 %v987, 1.442695
        %v1014 = vpow.pop %v1013
        %v1015 = vmul.f32 %v988, 1.442695
        %v1016 = vpow.pop %v1015
        %v1017 = vmul.f32 %v989, 1.442695
        %v1018 = vpow.pop %v1017
        %v1019 = vmul.f32 %v990, 1.442695
        %v1020 = vpow.pop %v1019
        %v1021 = vmul.f32 %v991, 1.442695
        %v1022 = vpow.pop %v1021
        %v1023 = vmul.f32 %v992, 1.442695
        %v1024 = vpow.pop %v1023
        %v1025 = vsub.f32 %v994, 1.0
        %v1026 = vsub.f32 %v996, 1.0
        %v1027 = vsub.f32 %v998, 1.0
        %v1028 = vsub.f32 %v1000, 1.0
        %v1029 = vsub.f32 %v1002, 1.0
        %v1030 = vsub.f32 %v1004, 1.0
        %v1031 = vsub.f32 %v1006, 1.0
        %v1032 = vsub.f32 %v1008, 1.0
        %v1033 = vsub.f32 %v1010, 1.0
        %v1034 = vsub.f32 %v1012, 1.0
        %v1035 = vsub.f32 %v1014, 1.0
        %v1036 = vsub.f32 %v1016, 1.0
        %v1037 = vsub.f32 %v1018, 1.0
        %v1038 = vsub.f32 %v1020, 1.0
        %v1039 = vsub.f32 %v1022, 1.0
        %v1040 = vsub.f32 %v1024, 1.0
        %v1041 = vsel %vm961, %v945, %v1025
        %v1042 = vsel %vm962, %v946, %v1026
        %v1043 = vsel %vm963, %v947, %v1027
        %v1044 = vsel %vm964, %v948, %v1028
        %v1045 = vsel %vm965, %v949, %v1029
        %v1046 = vsel %vm966, %v950, %v1030
        %v1047 = vsel %vm967, %v951, %v1031
        %v1048 = vsel %vm968, %v952, %v1032
        %v1049 = vsel %vm969, %v953, %v1033
        %v1050 = vsel %vm970, %v954, %v1034
        %v1051 = vsel %vm971, %v955, %v1035
        %v1052 = vsel %vm972, %v956, %v1036
        %v1053 = vsel %vm973, %v957, %v1037
        %v1054 = vsel %vm974, %v958, %v1038
        %v1055 = vsel %vm975, %v959, %v1039
        %v1056 = vsel %vm976, %v960, %v1040
        %v1057 = vpack.c.bf16 %v1041, %v1041
        %v1058 = vpack.c.bf16 %v1042, %v1042
        %v1059 = vpack.c.bf16 %v1043, %v1043
        %v1060 = vpack.c.bf16 %v1044, %v1044
        %v1061 = vpack.c.bf16 %v1045, %v1045
        %v1062 = vpack.c.bf16 %v1046, %v1046
        %v1063 = vpack.c.bf16 %v1047, %v1047
        %v1064 = vpack.c.bf16 %v1048, %v1048
        %v1065 = vpack.c.bf16 %v1049, %v1049
        %v1066 = vpack.c.bf16 %v1050, %v1050
        %v1067 = vpack.c.bf16 %v1051, %v1051
        %v1068 = vpack.c.bf16 %v1052, %v1052
        %v1069 = vpack.c.bf16 %v1053, %v1053
        %v1070 = vpack.c.bf16 %v1054, %v1054
        %v1071 = vpack.c.bf16 %v1055, %v1055
        %v1072 = vpack.c.bf16 %v1056, %v1056
        %1073 = vst [vmem:[%s476] sm:$0xf] %v1057
        %1074 = vst [vmem:[%s476 + $0x4] sm:$0xf] %v1058
        %1075 = vst [vmem:[%s476 + $0x8] sm:$0xf] %v1059
        %1076 = vst [vmem:[%s476 + $0xc] sm:$0xf] %v1060
        %1077 = vst [vmem:[%s476 + $0x10] sm:$0xf] %v1061
        %1078 = vst [vmem:[%s476 + $0x14] sm:$0xf] %v1062
        %1079 = vst [vmem:[%s476 + $0x18] sm:$0xf] %v1063
        %1080 = vst [vmem:[%s476 + $0x1c] sm:$0xf] %v1064
        %1081 = vst [vmem:[%s476 + $0x20] sm:$0xf] %v1065
        %1082 = vst [vmem:[%s476 + $0x24] sm:$0xf] %v1066
        %1083 = vst [vmem:[%s476 + $0x28] sm:$0xf] %v1067
        %1084 = vst [vmem:[%s476 + $0x2c] sm:$0xf] %v1068
        %1085 = vst [vmem:[%s476 + $0x30] sm:$0xf] %v1069
        %1086 = vst [vmem:[%s476 + $0x34] sm:$0xf] %v1070
        %1087 = vst [vmem:[%s476 + $0x38] sm:$0xf] %v1071
        %1088 = vst [vmem:[%s476 + $0x3c] sm:$0xf] %v1072
        %v1089 = vld [vmem:[%s8] sm:$0xf]
        %v1090 = vld [vmem:[%s8 + $0x4] sm:$0xf]
        %v1091 = vld [vmem:[%s8 + $0x8] sm:$0xf]
        %v1092 = vld [vmem:[%s8 + $0xc] sm:$0xf]
        %v1093 = vld [vmem:[%s8 + $0x10] sm:$0xf]
        %v1094 = vld [vmem:[%s8 + $0x14] sm:$0xf]
        %v1095 = vld [vmem:[%s8 + $0x18] sm:$0xf]
        %v1096 = vld [vmem:[%s8 + $0x1c] sm:$0xf]
        %v1097 = vld [vmem:[%s8 + $0x20] sm:$0xf]
        %v1098 = vld [vmem:[%s8 + $0x24] sm:$0xf]
        %v1099 = vld [vmem:[%s8 + $0x28] sm:$0xf]
        %v1100 = vld [vmem:[%s8 + $0x2c] sm:$0xf]
        %v1101 = vld [vmem:[%s8 + $0x30] sm:$0xf]
        %v1102 = vld [vmem:[%s8 + $0x34] sm:$0xf]
        %v1103 = vld [vmem:[%s8 + $0x38] sm:$0xf]
        %v1104 = vld [vmem:[%s8 + $0x3c] sm:$0xf]
        %v1105 = vld [vmem:[%s9] sm:$0x1]
        %v1106 = vld [vmem:[%s10] sm:$0x1]
        loop: start=0, step=1, limit=8
        $region65: #{block_v1_forward.11} parent=63 // loop_pre_header
          _
        $region66: #{block_v1_forward.11} parent=63 // loop_header
          %s1108 = sphi 0, %s1112
          %p1109 = scmp.ge.s32.totalorder %s1108, 8
        $region67: #{block_v1_forward.11} parent=63 // loop_header_branch
          %1111 = sbr.rel (%p1109) target = $region71
        $region68: #{block_v1_forward.11} parent=63 // loop_body
          %s1113 = smul.u32 %s1108, 16
          %s1114 = sshra.s32 %s1113, 3
          %s1115 = sand.u32 %s1113, 7
          %s1116 = smul.addr %s1114, 4
          %s1117 = scalar_lea.vmem [#allocation2], %s1116
          %v1118 = vld [vmem:[%s1117] sm:$0xf]
          %v1119 = vld [vmem:[%s1117 + $0x4] sm:$0xf]
          %s1120 = smul.addr %s1114, 4
          %s1121 = scalar_lea.vmem %s506, %s1120
          %v1122 = vld [vmem:[%s1121] sm:$0xf]
          %v1123 = vld [vmem:[%s1121 + $0x4] sm:$0xf]
          %v1124 = vunpack.c.l.bf16 %v1122
          %v1125 = vunpack.c.l.bf16 %v1123
          %1127 = vset.pattern.permute.xlu0 0
          %1128 = vperm.xlu0 %1127, %v1124
          %v1129 = vpop.permute.xlu0 %1128
          %1132 = vset.pattern.permute.xlu0 0
          %1133 = vperm.xlu0 %1132, %v1125
          %v1134 = vpop.permute.xlu0 %1133
          %v1137 = vperm.slane %v1105, 0
          %v1139 = vmul.f32 %v1129, %v1137
          %v1140 = vmul.f32 %v1134, %v1137
          %v1143 = vunpack.c.l.b16 %v1118
          %v1144 = vunpack.c.l.b16 %v1119
          %v1145 = vpack.c.b16 %v1144, %v1143
          %v1163 = vunpack.c.l.b16 %v1089
          %v1164 = vunpack.c.l.b16 %v1090
          %v1165 = vunpack.c.l.b16 %v1091
          %v1166 = vunpack.c.l.b16 %v1092
          %v1167 = vunpack.c.l.b16 %v1093
          %v1168 = vunpack.c.l.b16 %v1094
          %v1169 = vunpack.c.l.b16 %v1095
          %v1170 = vunpack.c.l.b16 %v1096
          %v1171 = vunpack.c.l.b16 %v1097
          %v1172 = vunpack.c.l.b16 %v1098
          %v1173 = vunpack.c.l.b16 %v1099
          %v1174 = vunpack.c.l.b16 %v1100
          %v1175 = vunpack.c.l.b16 %v1101
          %v1176 = vunpack.c.l.b16 %v1102
          %v1177 = vunpack.c.l.b16 %v1103
          %v1178 = vunpack.c.l.b16 %v1104
          %v1179 = vpack.c.b16 %v1164, %v1163
          %v1180 = vpack.c.b16 %v1166, %v1165
          %v1181 = vpack.c.b16 %v1168, %v1167
          %v1182 = vpack.c.b16 %v1170, %v1169
          %v1183 = vpack.c.b16 %v1172, %v1171
          %v1184 = vpack.c.b16 %v1174, %v1173
          %v1185 = vpack.c.b16 %v1176, %v1175
          %v1186 = vpack.c.b16 %v1178, %v1177
          %1195 = vmatpush.bf16.msra.mxu0 %v1186
          %1196 = vmatpush.bf16.msra.mxu0 %v1185
          %1197 = vmatpush.bf16.msra.mxu0 %v1184
          %1198 = vmatpush.bf16.msra.mxu0 %v1183
          %1199 = vmatpush.bf16.msra.mxu0 %v1182
          %1200 = vmatpush.bf16.msra.mxu0 %v1181
          %1201 = vmatpush.bf16.msra.mxu0 %v1180
          %1202 = vmatpush.bf16.msra.mxu0 %v1179
          %1203 = vmatmul.bf16.gmra.mxu0 %v1145
          %v1204 = vpop.f32.mrf.mxu0
          %v1205 = vadd.f32 %v1139, %v1204
          %v1206 = vpop.f32.mrf.mxu0
          %v1207 = vadd.f32 %v1140, %v1206
          %1208 = vdwg.mxu0
          %v1210 = vperm.slane %v1106, 0
          %v1212 = vadd.f32 %v1205, %v1210
          %v1213 = vadd.f32 %v1207, %v1210
          %vm1214 = vcmp.gt.f32.partialorder %v1212, 0.0
          %vm1215 = vcmp.gt.f32.partialorder %v1213, 0.0
          %v1216 = vmin.f32 %v1212, 0.0
          %v1217 = vmin.f32 %v1213, 0.0
          %v1218 = vmul.f32 %v1216, 1.442695
          %v1219 = vpow.pop %v1218
          %v1220 = vmul.f32 %v1217, 1.442695
          %v1221 = vpow.pop %v1220
          %v1222 = vsub.f32 %v1219, 1.0
          %v1223 = vsub.f32 %v1221, 1.0
          %v1224 = vsel %vm1214, %v1212, %v1222
          %v1225 = vsel %vm1215, %v1213, %v1223
          %vm1226 = vcmask 408576
          %v1227 = vsel %vm1226, %v1224, 0.0
          %v1228 = vsel %vm1226, %v1225, 0.0
          %v1229 = vadd.f32 %v1227, %v1228
          %v1230 = vrot.slane %v1229, 4
          %v1231 = vadd.f32 %v1229, %v1230
          %v1232 = vrot.slane %v1231, 2
          %v1233 = vadd.f32 %v1231, %v1232
          %v1234 = vrot.slane %v1233, 1
          %v1235 = vadd.f32 %v1233, %v1234
          %v1236 = vmul.f32 %v1235, 0.0625
          %s1237 = scalar_lea.vmem %s483, %s1108 [#allocation5]
          %vm1238 = vcmask 401408
          %1239 = vst.msk [vmem:[%s1237] sm:$0x1] %vm1238, %v1236
        $region69: #{block_v1_forward.11} parent=63 // loop_footer
          %s1112 = sadd.s32 1, %s1108
        $region70: #{block_v1_forward.11} parent=63 // loop_footer_branch
          %1107 = sbr.rel target = $region66
        $region71: #{block_v1_forward.11} parent=63 // loop_exit
          _
        %s1240 = sand.u32 %s302, 1
        %s1241 = scalar_lea.sflag [#allocation4], %s1240
        %s1242 = sand.u32 %s302, 1
        %s1243 = smul.addr %s1242, 64
        %s1244 = scalar_lea.vmem [#allocation3], %s1243
        %s1245 = sand.u32 %s330, 1
        %s1246 = scalar_lea.sflag [#allocation6], %s1245
        %s1247 = sand.u32 %s330, 1
        %s1248 = smul.addr %s1247, 8
        %s1249 = scalar_lea.vmem [#allocation5], %s1248
        // Predicated region
        $region72: #{block_v1_forward.11} parent=63 // pred_check
          %p1250 = pneg %p312
        $region73: #{block_v1_forward.11} parent=63 // pred_check_branch
          %1252 = sbr.rel (%p1250) target = $region75
        $region74: #{block_v1_forward.11} parent=63 // pred_region
          %s1253 = smul.u32 16, %s35
          %1255 = vsyncadd %s1241, 0
          %s1256 = smul.addr %s34, 32
          %s1257 = sadd.s32 %s1253, %s1256
          %s1258 = smul.addr %s1257, 4
          %s1259 = scalar_lea.hbm %s11, %s1258
          %s1260 = sshll.u32 %s1244, 4
          %s1261 = int_to_ptr.vmem [resolvable:$true] %s1260
          %s1262 = sshll.u32 %s1259, 4
          %s1263 = int_to_ptr.hbm [resolvable:$true] %s1262
          %1268 = dma.vmem_to_hbm [thread:$0]  %s1261, 1024, %s1263, %s1241, 64, 64, 4
        $region75: #{block_v1_forward.11} parent=63 // pred_fallthru
          _
        // Predicated region
        $region76: #{block_v1_forward.11} parent=63 // pred_check
          %p1269 = pneg %p340
        $region77: #{block_v1_forward.11} parent=63 // pred_check_branch
          %1271 = sbr.rel (%p1269) target = $region79
        $region78: #{block_v1_forward.11} parent=63 // pred_region
          %1273 = vsyncadd %s1246, 0
          %s1274 = smul.addr %s34, 2
          %s1275 = sadd.s32 %s35, %s1274
          %s1276 = smul.addr %s1275, 8
          %s1277 = scalar_lea.hbm %s12, %s1276
          %s1279 = sshll.u32 %s1249, 4
          %s1280 = int_to_ptr.vmem [resolvable:$true] %s1279
          %s1281 = sshll.u32 %s1277, 4
          %s1282 = int_to_ptr.hbm [resolvable:$true] %s1281
          %1284 = dma.vmem_to_hbm [thread:$0]  %s1280, 128, %s1282, %s1246
        $region79: #{block_v1_forward.11} parent=63 // pred_fallthru
          _
      $region64: #{block_v1_forward.11} parent=5 // pred_fallthru
        _
      %p1285 = scmp.le.s32.totalorder 2, %s25
      // Predicated region
      $region80: #{block_v1_forward.11} parent=5 // pred_check
        %p1286 = pneg %p1285
      $region81: #{block_v1_forward.11} parent=5 // pred_check_branch
        %1288 = sbr.rel (%p1286) target = $region83
      $region82: #{block_v1_forward.11} parent=5 // pred_region
        %s1289 = ssub.s32 %s25, 2
        // Predicated region
        $region84: #{block_v1_forward.11} parent=82 // pred_check
          %p1290 = pneg %p318
        $region85: #{block_v1_forward.11} parent=82 // pred_check_branch
          %1292 = sbr.rel (%p1290) target = $region87
        $region86: #{block_v1_forward.11} parent=82 // pred_region
          %s1293 = sand.u32 %s303, 1
          %s1294 = scalar_lea.sflag [#allocation4], %s1293
          %s1295 = sand.u32 %s303, 1
          %s1296 = smul.addr %s1295, 64
          %s1297 = scalar_lea.vmem [#allocation3], %s1296
          %1299 = dma.done %s1294, 1024
        $region87: #{block_v1_forward.11} parent=82 // pred_fallthru
          _
        // Predicated region
        $region88: #{block_v1_forward.11} parent=82 // pred_check
          %p1300 = pneg %p346
        $region89: #{block_v1_forward.11} parent=82 // pred_check_branch
          %1302 = sbr.rel (%p1300) target = $region91
        $region90: #{block_v1_forward.11} parent=82 // pred_region
          %s1303 = sand.u32 %s331, 1
          %s1304 = scalar_lea.sflag [#allocation6], %s1303
          %s1305 = sand.u32 %s331, 1
          %s1306 = smul.addr %s1305, 8
          %s1307 = scalar_lea.vmem [#allocation5], %s1306
          %1309 = dma.done %s1304, 128
        $region91: #{block_v1_forward.11} parent=82 // pred_fallthru
          _
      $region83: #{block_v1_forward.11} parent=5 // pred_fallthru
        _
    $region6: #{block_v1_forward.11} parent=1 // loop_footer
      %s29 = sadd.s32 1, %s25
    $region7: #{block_v1_forward.11} parent=1 // loop_footer_branch
      %24 = sbr.rel target = $region3
    $region8: #{block_v1_forward.11} parent=1 // loop_exit
      _
    %1310 = vsyncpa [#allocation4], 1
    %s1311 = scalar_lea.sflag [#allocation4], 1
    %1312 = vsyncpa %s1311, 1
    %1313 = vsyncpa [#allocation6], 1
    %s1314 = scalar_lea.sflag [#allocation6], 1
    %1315 = vsyncpa %s1314, 1

</llo_original>
